<compile_context>
chip_gen: v5e
topology: v5e:2x2
jax: 0.10.0
libtpu: 0.0.40
codegen_flags: <defaults>
</compile_context>

<pallas_src>
import functools
import math

import jax
import jax.numpy as jnp
from jax.experimental import pallas as pl
from jax.experimental.pallas import tpu as pltpu


def _attention_kernel(x_ref, w_ref, b_ref, out_ref, attn_ref, qkv_ref, *, d, tq):
    # x_ref:    (1, S, D)    full sequence for the current batch element
    # w_ref:    (D, 3D)      fused [Wq*scale | Wk | Wv] in (in, out) layout
    # b_ref:    (1, 3D)      fused bias (f32), bq pre-scaled
    # out_ref:  (1, Tq, D)   attention output tile
    # attn_ref: (1, Tq, S)   softmax attention-weight tile
    # qkv_ref:  (S, 3D)      VMEM scratch holding Q|K|V for the current batch
    qi = pl.program_id(1)

    # Project Q, K, V for the whole sequence once per batch element (query
    # tile 0) with a single lane-dense MXU matmul; reuse across query tiles.
    @pl.when(qi == 0)
    def _():
        qkv = jnp.dot(x_ref[0], w_ref[...], preferred_element_type=jnp.float32)
        qkv_ref[...] = (qkv + b_ref[...]).astype(qkv_ref.dtype)

    row = pl.multiple_of(qi * tq, tq)
    q = qkv_ref[pl.ds(row, tq), 0:d]          # (Tq, D), scale folded into Wq
    k = qkv_ref[:, d:2 * d]                   # (S, D)
    v = qkv_ref[:, 2 * d:3 * d]               # (S, D)

    # scores = q @ k^T, contracting the last dim of both operands so Mosaic
    # never materializes a transposed copy of k.
    scores = jax.lax.dot_general(
        q, k,
        dimension_numbers=(((1,), (1,)), ((), ())),
        preferred_element_type=jnp.float32)   # (Tq, S)

    # Numerically-stable softmax along the key axis (matches F.softmax).
    m = jnp.max(scores, axis=-1, keepdims=True)
    e = jnp.exp(scores - m)
    denom = jnp.sum(e, axis=-1, keepdims=True)
    weights = e * pl.reciprocal(denom)        # exact; cost hidden under EUP exp

    # Stage the (Tq, S) weights through the attention-weight output block so
    # the second matmul streams them from VMEM instead of spilling ~32 vregs.
    attn_ref[0] = weights.astype(attn_ref.dtype)

    out = jnp.dot(attn_ref[0].astype(v.dtype), v,
                  preferred_element_type=jnp.float32)  # (Tq, D)
    out_ref[0] = out.astype(out_ref.dtype)


def _pick_q_tile(s):
    # 256 matches the 256-wide v6e/v7x MXU; on v5e it simply means two MXU
    # passes per tile but fewer grid steps (per-step overhead ~0.35 us).
    for t in (256, 128, 64, 32, 16, 8):
        if s >= t and s % t == 0:
            return t
    return s  # tiny / odd sequence: single full-sequence tile


def _vmem_limit_bytes(resident_bytes):
    """Scoped-VMEM limit: generous on v5e/v6e (128 MiB), safe on v7x (64 MiB)."""
    try:
        cap = int(pltpu.get_tpu_info().vmem_capacity_bytes)
    except Exception:
        cap = 64 * 1024 * 1024  # conservative: v7x per-TensorCore VMEM
    want = max(resident_bytes + (16 << 20), 64 << 20)
    return max(min(want, cap - (4 << 20)), 32 << 20)


def attention_forward(x, wq, bq, wk, bk, wv, bv, *, q_tile=None,
                      compute_dtype=jnp.bfloat16, attn_dtype=None):
    """x: (B, S, D); w*: (D, D) torch layout (out, in); b*: (D,).

    compute_dtype: dtype of the MXU operands (default bf16 on all TPU
      generations; pass jnp.float32 for exact parity with the torch module).
      Accumulation is always f32 and the output keeps x.dtype.
    attn_dtype: optional dtype for the returned attention weights (e.g.
      jnp.bfloat16 halves the (B, S, S) HBM writeback, the binding term on the
      v6e bf16 path).  Defaults to x.dtype to preserve the module contract.
    """
    B, S, D = x.shape
    cdtype = jnp.dtype(compute_dtype)
    adtype = jnp.dtype(attn_dtype) if attn_dtype is not None else x.dtype
    scale = 1.0 / math.sqrt(D)

    tq = q_tile or _pick_q_tile(S)
    assert S % tq == 0, "query tile must divide the sequence length"
    nq = S // tq

    # Fuse the three projections into one (D, 3D) weight and fold 1/sqrt(D)
    # into the Q columns/bias so the kernel never scales activations.
    wqkv = jnp.concatenate([(wq * scale).T, wk.T, wv.T], axis=1).astype(cdtype)
    bqkv = jnp.concatenate([bq * scale, bk, bv]).reshape(1, 3 * D).astype(jnp.float32)
    x_c = x.astype(cdtype)

    csize = jnp.dtype(cdtype).itemsize
    resident = (
        2 * S * D * csize                              # x block (double-buffered)
        + 2 * D * 3 * D * csize                        # fused weights
        + 2 * 3 * D * 4                                # fused bias (f32)
        + S * 3 * D * csize                            # QKV scratch
        + 2 * tq * D * jnp.dtype(x.dtype).itemsize     # output tile
        + 2 * tq * S * jnp.dtype(adtype).itemsize)     # attention-weight tile

    kernel = functools.partial(_attention_kernel, d=D, tq=tq)

    out, attn = pl.pallas_call(
        kernel,
        out_shape=(
            jax.ShapeDtypeStruct((B, S, D), x.dtype),
            jax.ShapeDtypeStruct((B, S, S), adtype),
        ),
        grid_spec=pltpu.PrefetchScalarGridSpec(
            num_scalar_prefetch=0,
            grid=(B, nq),
            in_specs=[
                # Full sequence per batch element; index is constant across the
                # query-tile axis, so it is only re-DMA'd when b changes.
                pl.BlockSpec((1, S, D), lambda b, q: (b, 0, 0)),
                pl.BlockSpec((D, 3 * D), lambda b, q: (0, 0)),   # fused weights
                pl.BlockSpec((1, 3 * D), lambda b, q: (0, 0)),   # fused bias
            ],
            out_specs=[
                pl.BlockSpec((1, tq, D), lambda b, q: (b, q, 0)),  # output
                pl.BlockSpec((1, tq, S), lambda b, q: (b, q, 0)),  # attn weights
            ],
            # Q|K|V cache for the current batch element (persists across the
            # query-tile axis; re-initialized at qi == 0 for every batch).
            scratch_shapes=[pltpu.VMEM((S, 3 * D), cdtype)],
        ),
        compiler_params=pltpu.CompilerParams(
            # Batch axis is parallel (megacore-safe: each core re-runs the
            # qi == 0 projection for its own batches).  The query-tile axis
            # must be "arbitrary" because it reuses the per-batch QKV scratch.
            dimension_semantics=("parallel", "arbitrary"),
            vmem_limit_bytes=_vmem_limit_bytes(resident),
        ),
    )(x_c, wqkv, bqkv)
    return out, attn


def _reference(x, wq, bq, wk, bk, wv, bv):
    D = x.shape[-1]
    q = x @ wq.T + bq
    k = x @ wk.T + bk
    v = x @ wv.T + bv
    scores = jnp.einsum("bqd,bkd->bqk", q, k) / math.sqrt(D)
    w = jax.nn.softmax(scores, axis=-1)
    return jnp.einsum("bqk,bkd->bqd", w, v), w


if __name__ == "__main__":
    # Shapes consistent with the module (embed_dim = 512), small enough to run
    # instantly but large enough to exercise tiling.
    B, S, D = 2, 256, 512
    key = jax.random.PRNGKey(0)
    kx, kwq, kwk, kwv, kbq, kbk, kbv = jax.random.split(key, 7)

    x = jax.random.normal(kx, (B, S, D), dtype=jnp.float32)
    # torch nn.Linear layout: W is (out, in), bias is (out,)
    bound = 1.0 / math.sqrt(D)
    wq = jax.random.uniform(kwq, (D, D), jnp.float32, -bound, bound)
    wk = jax.random.uniform(kwk, (D, D), jnp.float32, -bound, bound)
    wv = jax.random.uniform(kwv, (D, D), jnp.float32, -bound, bound)
    bq = jax.random.uniform(kbq, (D,), jnp.float32, -bound, bound)
    bk = jax.random.uniform(kbk, (D,), jnp.float32, -bound, bound)
    bv = jax.random.uniform(kbv, (D,), jnp.float32, -bound, bound)

    ref_out, ref_attn = _reference(x, wq, bq, wk, bk, wv, bv)

    # Default path: bf16 MXU operands, f32 accumulation, f32 outputs.
    out, attn = attention_forward(x, wq, bq, wk, bk, wv, bv)
    out = jax.block_until_ready(out)
    attn = jax.block_until_ready(attn)
    assert out.dtype == x.dtype and attn.dtype == x.dtype
    assert jnp.allclose(out, ref_out, atol=1e-1, rtol=1e-1)
    assert jnp.allclose(attn, ref_attn, atol=2e-2)
    assert jnp.allclose(jnp.sum(attn, axis=-1), 1.0, atol=2e-3)

    # f32 parity path (matches module numerics closely); also exercises
    # multiple query tiles (Tq=128 -> 2 tiles) and the QKV-scratch reuse.
    out32, attn32 = attention_forward(x, wq, bq, wk, bk, wv, bv,
                                      compute_dtype=jnp.float32, q_tile=128)
    out32 = jax.block_until_ready(out32)
    attn32 = jax.block_until_ready(attn32)
    assert jnp.allclose(out32, ref_out, atol=2e-3, rtol=2e-3)
    assert jnp.allclose(attn32, ref_attn, atol=1e-3)
    assert jnp.allclose(jnp.sum(attn32, axis=-1), 1.0, atol=1e-3)

    # Opt-in bf16 attention-weight writeback (halves the (B,S,S) HBM store,
    # the binding term on the v6e bf16 path). Contract change -> flag-gated.
    out_bf, attn_bf = attention_forward(x, wq, bq, wk, bk, wv, bv,
                                        attn_dtype=jnp.bfloat16)
    out_bf = jax.block_until_ready(out_bf)
    attn_bf = jax.block_until_ready(attn_bf)
    assert attn_bf.dtype == jnp.bfloat16
    assert jnp.allclose(out_bf, ref_out, atol=1e-1, rtol=1e-1)
    assert jnp.allclose(jnp.sum(attn_bf.astype(jnp.float32), axis=-1), 1.0,
                        atol=5e-3)

    print("KERNEL_OK")
</pallas_src>

<mosaic_0001>
module attributes {stable_mosaic.version = 11 : i64} {
  func.func @_attention_kernel(%arg0: i32, %arg1: i32, %arg2: memref<1x256x512xbf16, #tpu.memory_space<vmem>>, %arg3: memref<512x1536xbf16, #tpu.memory_space<vmem>>, %arg4: memref<1x1536xf32, #tpu.memory_space<vmem>>, %arg5: memref<1x256x512xf32, #tpu.memory_space<vmem>>, %arg6: memref<1x256x256xf32, #tpu.memory_space<vmem>>, %arg7: memref<256x1536xbf16, #tpu.memory_space<vmem>>) attributes {dimension_semantics = [#tpu.dimension_semantics<parallel>, #tpu.dimension_semantics<arbitrary>], iteration_bounds = array<i64: 2, 1>, scalar_prefetch = 0 : i64, scratch_operands = 1 : i64, tpu.core_type = #tpu.core_type<tc>, window_params = [{transform_indices = @transform_0, window_bounds = array<i64: 1, 256, 512>}, {pipeline_mode = #tpu.pipeline_mode<synchronous>, transform_indices = @transform_1, window_bounds = array<i64: 512, 1536>}, {pipeline_mode = #tpu.pipeline_mode<synchronous>, transform_indices = @transform_2, window_bounds = array<i64: 1, 1536>}, {transform_indices = @transform_3, window_bounds = array<i64: 1, 256, 512>}, {transform_indices = @transform_4, window_bounds = array<i64: 1, 256, 256>}]} {
    %c0_i32 = arith.constant 0 : i32
    %0 = arith.cmpi eq, %arg1, %c0_i32 : i32
    %1 = arith.extui %0 : i1 to i32
    %c0_i32_0 = arith.constant 0 : i32
    %2 = arith.cmpi ne, %1, %c0_i32_0 : i32
    scf.if %2 {
      %c0_15 = arith.constant 0 : index
      %c0_16 = arith.constant 0 : index
      %c0_17 = arith.constant 0 : index
      %30 = vector.load %arg2[%c0_15, %c0_16, %c0_17] : memref<1x256x512xbf16, #tpu.memory_space<vmem>>, vector<1x256x512xbf16>
      %31 = vector.shape_cast %30 : vector<1x256x512xbf16> to vector<256x512xbf16>
      %c0_18 = arith.constant 0 : index
      %c0_19 = arith.constant 0 : index
      %32 = vector.load %arg3[%c0_18, %c0_19] : memref<512x1536xbf16, #tpu.memory_space<vmem>>, vector<512x1536xbf16>
      %cst_20 = arith.constant dense<0.000000e+00> : vector<256x1536xf32>
      %33 = tpu.matmul %31, %32, %cst_20 {dimension_numbers = #tpu.dot_dimension_numbers<[1], [0], [0], [1], [0, 0, 1, 1], [], []>} : vector<256x512xbf16>, vector<512x1536xbf16>, vector<256x1536xf32> -> vector<256x1536xf32>
      %c0_21 = arith.constant 0 : index
      %c0_22 = arith.constant 0 : index
      %34 = vector.load %arg4[%c0_21, %c0_22] : memref<1x1536xf32, #tpu.memory_space<vmem>>, vector<1x1536xf32>
      %35 = vector.broadcast %34 : vector<1x1536xf32> to vector<256x1536xf32>
      %36 = arith.addf %33, %35 : vector<256x1536xf32>
      %37 = arith.truncf %36 : vector<256x1536xf32> to vector<256x1536xbf16>
      %c0_23 = arith.constant 0 : index
      %c0_24 = arith.constant 0 : index
      %38 = vector.load %arg7[%c0_23, %c0_24] : memref<256x1536xbf16, #tpu.memory_space<vmem>>, vector<256x1536xbf16>
      tpu.vector_store %arg7[%c0_23, %c0_24], %37 {strides = array<i32>} : memref<256x1536xbf16, #tpu.memory_space<vmem>>, vector<256x1536xbf16>,
    } else {
    }
    %c256_i32 = arith.constant 256 : i32
    %3 = arith.muli %arg1, %c256_i32 : i32
    %4 = tpu.assume_multiple %3, 256 : i32
    %5 = arith.index_cast %4 : i32 to index
    %c0 = arith.constant 0 : index
    %6 = vector.load %arg7[%5, %c0] : memref<256x1536xbf16, #tpu.memory_space<vmem>>, vector<256x512xbf16>
    %c0_1 = arith.constant 0 : index
    %c512 = arith.constant 512 : index
    %7 = vector.load %arg7[%c0_1, %c512] : memref<256x1536xbf16, #tpu.memory_space<vmem>>, vector<256x512xbf16>
    %c0_2 = arith.constant 0 : index
    %c1024 = arith.constant 1024 : index
    %8 = vector.load %arg7[%c0_2, %c1024] : memref<256x1536xbf16, #tpu.memory_space<vmem>>, vector<256x512xbf16>
    %cst = arith.constant dense<0.000000e+00> : vector<256x256xf32>
    %9 = tpu.matmul %6, %7, %cst {dimension_numbers = #tpu.dot_dimension_numbers<[1], [1], [0], [0], [0, 0, 1, 0], [], []>} : vector<256x512xbf16>, vector<256x512xbf16>, vector<256x256xf32> -> vector<256x256xf32>
    %cst_3 = arith.constant dense<0xFF800000> : vector<256xf32>
    %10 = vector.multi_reduction <maximumf>, %9, %cst_3 [1] : vector<256x256xf32> to vector<256xf32>
    %11 = vector.shape_cast %10 : vector<256xf32> to vector<256x1xf32>
    %12 = vector.broadcast %11 : vector<256x1xf32> to vector<256x256xf32>
    %13 = arith.subf %9, %12 : vector<256x256xf32>
    %14 = math.exp %13 : vector<256x256xf32>
    %cst_4 = arith.constant dense<0.000000e+00> : vector<256xf32>
    %15 = vector.multi_reduction <add>, %14, %cst_4 [1] : vector<256x256xf32> to vector<256xf32>
    %16 = vector.shape_cast %15 : vector<256xf32> to vector<256x1xf32>
    %17 = tpu.reciprocal %16 : vector<256x1xf32> -> vector<256x1xf32>
    %18 = vector.broadcast %17 : vector<256x1xf32> to vector<256x256xf32>
    %19 = arith.mulf %14, %18 : vector<256x256xf32>
    %c0_5 = arith.constant 0 : index
    %c0_6 = arith.constant 0 : index
    %c0_7 = arith.constant 0 : index
    %20 = vector.load %arg6[%c0_5, %c0_6, %c0_7] : memref<1x256x256xf32, #tpu.memory_space<vmem>>, vector<1x256x256xf32>
    %21 = vector.shape_cast %20 : vector<1x256x256xf32> to vector<256x256xf32>
    %22 = vector.shape_cast %19 : vector<256x256xf32> to vector<1x256x256xf32>
    tpu.vector_store %arg6[%c0_5, %c0_6, %c0_7], %22 {strides = array<i32>} : memref<1x256x256xf32, #tpu.memory_space<vmem>>, vector<1x256x256xf32>,
    %c0_8 = arith.constant 0 : index
    %c0_9 = arith.constant 0 : index
    %c0_10 = arith.constant 0 : index
    %23 = vector.load %arg6[%c0_8, %c0_9, %c0_10] : memref<1x256x256xf32, #tpu.memory_space<vmem>>, vector<1x256x256xf32>
    %24 = vector.shape_cast %23 : vector<1x256x256xf32> to vector<256x256xf32>
    %25 = arith.truncf %24 : vector<256x256xf32> to vector<256x256xbf16>
    %cst_11 = arith.constant dense<0.000000e+00> : vector<256x512xf32>
    %26 = tpu.matmul %25, %8, %cst_11 {dimension_numbers = #tpu.dot_dimension_numbers<[1], [0], [0], [1], [0, 0, 1, 1], [], []>} : vector<256x256xbf16>, vector<256x512xbf16>, vector<256x512xf32> -> vector<256x512xf32>
    %c0_12 = arith.constant 0 : index
    %c0_13 = arith.constant 0 : index
    %c0_14 = arith.constant 0 : index
    %27 = vector.load %arg5[%c0_12, %c0_13, %c0_14] : memref<1x256x512xf32, #tpu.memory_space<vmem>>, vector<1x256x512xf32>
    %28 = vector.shape_cast %27 : vector<1x256x512xf32> to vector<256x512xf32>
    %29 = vector.shape_cast %26 : vector<256x512xf32> to vector<1x256x512xf32>
    tpu.vector_store %arg5[%c0_12, %c0_13, %c0_14], %29 {strides = array<i32>} : memref<1x256x512xf32, #tpu.memory_space<vmem>>, vector<1x256x512xf32>,
    return
  }
  func.func @transform_0(%arg0: i32, %arg1: i32) -> (i32, i32, i32) {
    %c0_i32 = arith.constant 0 : i32
    %c0_i32_0 = arith.constant 0 : i32
    %c0_i32_1 = arith.constant 0 : i32
    return %arg0, %c0_i32, %c0_i32_0 : i32, i32, i32
  }
  func.func @transform_1(%arg0: i32, %arg1: i32) -> (i32, i32) {
    %c0_i32 = arith.constant 0 : i32
    %c0_i32_0 = arith.constant 0 : i32
    %c0_i32_1 = arith.constant 0 : i32
    return %c0_i32, %c0_i32_0 : i32, i32
  }
  func.func @transform_2(%arg0: i32, %arg1: i32) -> (i32, i32) {
    %c0_i32 = arith.constant 0 : i32
    %c0_i32_0 = arith.constant 0 : i32
    %c0_i32_1 = arith.constant 0 : i32
    return %c0_i32, %c0_i32_0 : i32, i32
  }
  func.func @transform_3(%arg0: i32, %arg1: i32) -> (i32, i32, i32) {
    %c0_i32 = arith.constant 0 : i32
    %c0_i32_0 = arith.constant 0 : i32
    return %arg0, %arg1, %c0_i32 : i32, i32, i32
  }
  func.func @transform_4(%arg0: i32, %arg1: i32) -> (i32, i32, i32) {
    %c0_i32 = arith.constant 0 : i32
    %c0_i32_0 = arith.constant 0 : i32
    return %arg0, %arg1, %c0_i32 : i32, i32, i32
  }
}

</mosaic_0001>

<llo_original>
// kernel: tpu_custom_call.1
$region0: #{tpu_custom_call.1}
  #allocation0 [shape = 'u32[]', space=smem, size = 0x4, offset = 0x4, fixed_abs, tag = 'smem constant byte address 0x4 - core index']
  #allocation1 [shape = 'u32[72,128]{1,0:T(1,128)}', space=vmem, size = 0x9000, scoped, tag = 'internal scratch']
  #allocation2 [shape = 'bf16[256,1536]{1,0:T(8,128)(2,1)}', space=vmem, size = 0xc0000, scoped, tag = 'scratch operand']
  %s0 = inlined_call_operand.hbm [shape: bf16[2,256,512], index: 0, kind: input, shape index: {}]
  %s1 = inlined_call_operand.hbm [shape: bf16[512,1536], index: 1, kind: input, shape index: {}]
  %s2 = inlined_call_operand.hbm [shape: f32[1,1536], index: 2, kind: input, shape index: {}]
  %s3 = inlined_call_operand.hbm [shape: f32[2,256,512], index: 3, kind: output, shape index: {0}]
  %s4 = inlined_call_operand.hbm [shape: f32[2,256,256], index: 4, kind: output, shape index: {1}]
  %5 = xla_tuple %s3, %s4
  %s6 = sld [smem:[#allocation0]]
  $region69: #{tpu_custom_call.1} parent=0
    _
  %s8 = ssub.s32 1, %s6
  %s9 = scalar_select 0, %s8, %s6
  $region1: #{tpu_custom_call.1} parent=0
    #allocation3 [shape = 'u8[524288]{0}', space=vmem, size = 0x80000, scoped, tag = 'input window, operand 0']
    #allocation4 [shape = 's32[2]{0}', space=sflag, size = 0x8, scoped, tag = 'scoped memory for tpu_custom_call.1']
    #allocation5 [shape = 's32[2]{0}', space=sflag, size = 0x8, scoped, tag = 'scoped memory for tpu_custom_call.1']
    #allocation6 [shape = 'u8[1572864]{0}', space=vmem, size = 0x180000, scoped, tag = 'input window, operand 1, single buffered']
    #allocation7 [shape = 's32[1]{0}', space=sflag, size = 0x4, scoped, tag = 'scoped memory for tpu_custom_call.1']
    #allocation8 [shape = 'u8[6144]{0}', space=vmem, size = 0x1800, scoped, tag = 'input window, operand 2, single buffered']
    #allocation9 [shape = 'u8[1048576]{0}', space=vmem, size = 0x100000, scoped, tag = 'output window, operand 0']
    #allocation10 [shape = 'u8[524288]{0}', space=vmem, size = 0x80000, scoped, tag = 'output window, operand 1']
    #allocation11 [shape = 's32[2]{0}', space=sflag, size = 0x8, scoped, tag = 'scoped memory for tpu_custom_call.1']
    %10 = vsyncpa [#allocation4], 0
    %s11 = scalar_lea.sflag [#allocation4], 1
    %12 = vsyncpa %s11, 0
    %13 = vsyncpa [#allocation7], 0
    %14 = vsyncpa [#allocation5], 0
    %s15 = scalar_lea.sflag [#allocation5], 1
    %16 = vsyncpa %s15, 0
    %17 = vsyncpa [#allocation11], 0
    %s18 = scalar_lea.sflag [#allocation11], 1
    %19 = vsyncpa %s18, 0
    loop: start=0, step=1, limit=4
    $region2: #{tpu_custom_call.1} parent=1 // loop_pre_header
      _
    $region3: #{tpu_custom_call.1} parent=1 // loop_header
      %s21 = sphi 0, %s25
      %p22 = scmp.ge.s32.totalorder %s21, 4
      %s28 = sphi 0, %s40
      %s29 = sphi 0, %s36
      %s30 = sphi 0, %s28
      %s31 = sphi 0, %s29
      %s32 = sphi 0, %s30
      %s33 = sphi 0, %s31
      %s43 = sphi 0, %s45
      %s46 = sphi 0, %s43
      %s47 = sphi 0, %s46
      %s63 = sphi 0, %s47
      %s67 = sphi 0, %s67
      %s69 = sphi 0, %s67
      %s70 = sphi 0, %s69
      %s84 = sphi 0, %s70
      %s88 = sphi 0, %s88
      %s90 = sphi 0, %s88
      %s91 = sphi 0, %s90
      %s105 = sphi 0, %s91
      %s113 = sphi 0, %s115
      %s116 = sphi 0, %s113
      %s117 = sphi 0, %s116
      %s133 = sphi 0, %s117
      %s141 = sphi 0, %s143
      %s144 = sphi 0, %s141
      %s145 = sphi 0, %s144
      %s161 = sphi 0, %s145
    $region4: #{tpu_custom_call.1} parent=1 // loop_header_branch
      %24 = sbr.rel (%p22) target = $region8
    $region5: #{tpu_custom_call.1} parent=1 // loop_body
      %s26 = ssub.s32 %s21, 1
      %s27 = ssub.s32 %s21, 2
      %s34 = sadd.s32 1, %s29
      %p35 = scmp.ge.s32.totalorder %s34, 1
      %s36 = scalar_select %p35, 0, %s34
      %s37 = sadd.s32 1, %s28
      %s38 = scalar_select %p35, %s37, %s28
      %p39 = scmp.ge.s32.totalorder %s38, 2
      %s40 = scalar_select %p39, 0, %s38
      %s41 = ssub.s32 %s28, %s40
      %p42 = scmp.eq.s32.totalorder %s41, 0
      %s44 = sadd.s32 %s43, 1
      %s45 = scalar_select %p42, %s43, %s44
      %p48 = pneg %p42
      %p49 = scmp.eq.s32.totalorder %s21, 1
      %p50 = por %p48, %p49
      %p51 = scmp.ne.s32.totalorder %s43, %s46
      %p52 = scmp.eq.s32.totalorder %s21, 0
      %p53 = por %p51, %p52
      %p54 = scmp.ne.s32.totalorder %s43, %s46
      %p55 = scmp.eq.s32.totalorder %s26, 1
      %p56 = por %p54, %p55
      %p57 = scmp.ne.s32.totalorder %s46, %s47
      %p58 = scmp.eq.s32.totalorder %s26, 0
      %p59 = por %p57, %p58
      %p60 = scmp.ne.s32.totalorder %s46, %s47
      %p61 = scmp.eq.s32.totalorder %s27, 1
      %p62 = por %p60, %p61
      %p64 = scmp.ne.s32.totalorder %s47, %s63
      %p65 = scmp.eq.s32.totalorder %s27, 0
      %p66 = por %p64, %p65
      %s68 = sadd.s32 %s67, 1
      %p71 = scmp.eq.s32.totalorder %s21, 1
      %p72 = scmp.ne.s32.totalorder %s67, %s69
      %p73 = scmp.eq.s32.totalorder %s21, 0
      %p74 = por %p72, %p73
      %p75 = scmp.ne.s32.totalorder %s67, %s69
      %p76 = scmp.eq.s32.totalorder %s26, 1
      %p77 = por %p75, %p76
      %p78 = scmp.ne.s32.totalorder %s69, %s70
      %p79 = scmp.eq.s32.totalorder %s26, 0
      %p80 = por %p78, %p79
      %p81 = scmp.ne.s32.totalorder %s69, %s70
      %p82 = scmp.eq.s32.totalorder %s27, 1
      %p83 = por %p81, %p82
      %p85 = scmp.ne.s32.totalorder %s70, %s84
      %p86 = scmp.eq.s32.totalorder %s27, 0
      %p87 = por %p85, %p86
      %s89 = sadd.s32 %s88, 1
      %p92 = scmp.eq.s32.totalorder %s21, 1
      %p93 = scmp.ne.s32.totalorder %s88, %s90
      %p94 = scmp.eq.s32.totalorder %s21, 0
      %p95 = por %p93, %p94
      %p96 = scmp.ne.s32.totalorder %s88, %s90
      %p97 = scmp.eq.s32.totalorder %s26, 1
      %p98 = por %p96, %p97
      %p99 = scmp.ne.s32.totalorder %s90, %s91
      %p100 = scmp.eq.s32.totalorder %s26, 0
      %p101 = por %p99, %p100
      %p102 = scmp.ne.s32.totalorder %s90, %s91
      %p103 = scmp.eq.s32.totalorder %s27, 1
      %p104 = por %p102, %p103
      %p106 = scmp.ne.s32.totalorder %s91, %s105
      %p107 = scmp.eq.s32.totalorder %s27, 0
      %p108 = por %p106, %p107
      %s109 = ssub.s32 %s28, %s40
      %s110 = ssub.s32 %s29, %s36
      %s111 = sor.u32 %s109, %s110
      %p112 = scmp.eq.s32.totalorder %s111, 0
      %s114 = sadd.s32 %s113, 1
      %s115 = scalar_select %p112, %s113, %s114
      %p118 = pneg %p112
      %p119 = scmp.eq.s32.totalorder %s21, 1
      %p120 = por %p118, %p119
      %p121 = scmp.ne.s32.totalorder %s113, %s116
      %p122 = scmp.eq.s32.totalorder %s21, 0
      %p123 = por %p121, %p122
      %p124 = scmp.ne.s32.totalorder %s113, %s116
      %p125 = scmp.eq.s32.totalorder %s26, 1
      %p126 = por %p124, %p125
      %p127 = scmp.ne.s32.totalorder %s116, %s117
      %p128 = scmp.eq.s32.totalorder %s26, 0
      %p129 = por %p127, %p128
      %p130 = scmp.ne.s32.totalorder %s116, %s117
      %p131 = scmp.eq.s32.totalorder %s27, 1
      %p132 = por %p130, %p131
      %p134 = scmp.ne.s32.totalorder %s117, %s133
      %p135 = scmp.eq.s32.totalorder %s27, 0
      %p136 = por %p134, %p135
      %s137 = ssub.s32 %s28, %s40
      %s138 = ssub.s32 %s29, %s36
      %s139 = sor.u32 %s137, %s138
      %p140 = scmp.eq.s32.totalorder %s139, 0
      %s142 = sadd.s32 %s141, 1
      %s143 = scalar_select %p140, %s141, %s142
      %p146 = pneg %p140
      %p147 = scmp.eq.s32.totalorder %s21, 1
      %p148 = por %p146, %p147
      %p149 = scmp.ne.s32.totalorder %s141, %s144
      %p150 = scmp.eq.s32.totalorder %s21, 0
      %p151 = por %p149, %p150
      %p152 = scmp.ne.s32.totalorder %s141, %s144
      %p153 = scmp.eq.s32.totalorder %s26, 1
      %p154 = por %p152, %p153
      %p155 = scmp.ne.s32.totalorder %s144, %s145
      %p156 = scmp.eq.s32.totalorder %s26, 0
      %p157 = por %p155, %p156
      %p158 = scmp.ne.s32.totalorder %s144, %s145
      %p159 = scmp.eq.s32.totalorder %s27, 1
      %p160 = por %p158, %p159
      %p162 = scmp.ne.s32.totalorder %s145, %s161
      %p163 = scmp.eq.s32.totalorder %s27, 0
      %p164 = por %p162, %p163
      %p165 = scmp.le.s32.totalorder 1, %s21
      %p166 = scmp.lt.s32.totalorder %s21, 3
      %p167 = pnand %p165, %p166
      %p168 = pneg %p167
      // Predicated region
      $region9: #{tpu_custom_call.1} parent=5 // pred_check
        _
      $region10: #{tpu_custom_call.1} parent=5 // pred_check_branch
        %170 = sbr.rel (%p167) target = $region12
      $region11: #{tpu_custom_call.1} parent=5 // pred_region
        %s171 = ssub.s32 %s21, 1
        // Predicated region
        $region13: #{tpu_custom_call.1} parent=11 // pred_check
          %p172 = pneg %p80
        $region14: #{tpu_custom_call.1} parent=11 // pred_check_branch
          %174 = sbr.rel (%p172) target = $region16
        $region15: #{tpu_custom_call.1} parent=11 // pred_region
          %176 = vsyncadd [#allocation7], 0
          %s177 = sshll.u32 %s1, 4
          %s178 = int_to_ptr.hbm [resolvable:$true] %s177
          %s179 = sshll.u32 [#allocation6], 4
          %s180 = int_to_ptr.vmem [resolvable:$true] %s179
          %185 = dma.hbm_to_vmem [thread:$0]  %s178, 49152, %s180, [#allocation7], 768, 768, 48
        $region16: #{tpu_custom_call.1} parent=11 // pred_fallthru
          _
        // Predicated region
        $region17: #{tpu_custom_call.1} parent=11 // pred_check
          %p186 = pneg %p101
        $region18: #{tpu_custom_call.1} parent=11 // pred_check_branch
          %188 = sbr.rel (%p186) target = $region20
        $region19: #{tpu_custom_call.1} parent=11 // pred_region
          %190 = vsyncadd [#allocation7], 0
          %s192 = sshll.u32 %s2, 4
          %s193 = int_to_ptr.hbm [resolvable:$true] %s192
          %s194 = sshll.u32 [#allocation8], 4
          %s195 = int_to_ptr.vmem [resolvable:$true] %s194
          %197 = dma.hbm_to_vmem [thread:$0]  %s193, 192, %s195, [#allocation7]
        $region20: #{tpu_custom_call.1} parent=11 // pred_fallthru
          _
      $region12: #{tpu_custom_call.1} parent=5 // pred_fallthru
        _
      %p198 = scmp.lt.s32.totalorder %s21, 2
      // Predicated region
      $region21: #{tpu_custom_call.1} parent=5 // pred_check
        %p199 = pneg %p198
      $region22: #{tpu_custom_call.1} parent=5 // pred_check_branch
        %201 = sbr.rel (%p199) target = $region24
      $region23: #{tpu_custom_call.1} parent=5 // pred_region
        // Predicated region
        $region25: #{tpu_custom_call.1} parent=23 // pred_check
          %p202 = pneg %p53
        $region26: #{tpu_custom_call.1} parent=23 // pred_check_branch
          %204 = sbr.rel (%p202) target = $region28
        $region27: #{tpu_custom_call.1} parent=23 // pred_region
          %s205 = sand.u32 %s43, 1
          %s206 = scalar_lea.sflag [#allocation4], %s205
          %s207 = sand.u32 %s43, 1
          %s208 = smul.addr %s207, 512
          %s209 = scalar_lea.vmem [#allocation3], %s208
          %211 = vsyncadd %s206, 0
          %s212 = smul.addr %s28, 128
          %s213 = smul.addr %s212, 4
          %s214 = scalar_lea.hbm %s0, %s213
          %s215 = sshll.u32 %s214, 4
          %s216 = int_to_ptr.hbm [resolvable:$true] %s215
          %s217 = sshll.u32 %s209, 4
          %s218 = int_to_ptr.vmem [resolvable:$true] %s217
          %223 = dma.hbm_to_vmem [thread:$0]  %s216, 8192, %s218, %s206, 256, 256, 16
        $region28: #{tpu_custom_call.1} parent=23 // pred_fallthru
          _
      $region24: #{tpu_custom_call.1} parent=5 // pred_fallthru
        _
      %p224 = scmp.le.s32.totalorder 1, %s21
      %p225 = scmp.lt.s32.totalorder %s21, 3
      %p226 = pnand %p224, %p225
      %p227 = pneg %p226
      // Predicated region
      $region29: #{tpu_custom_call.1} parent=5 // pred_check
        _
      $region30: #{tpu_custom_call.1} parent=5 // pred_check_branch
        %229 = sbr.rel (%p226) target = $region32
      $region31: #{tpu_custom_call.1} parent=5 // pred_region
        %s230 = ssub.s32 %s21, 1
        %s231 = sand.u32 %s46, 1
        %s232 = scalar_lea.sflag [#allocation4], %s231
        %s233 = sand.u32 %s46, 1
        %s234 = smul.addr %s233, 512
        %s235 = scalar_lea.vmem [#allocation3], %s234
        // Predicated region
        $region33: #{tpu_custom_call.1} parent=31 // pred_check
          %p236 = pneg %p59
        $region34: #{tpu_custom_call.1} parent=31 // pred_check_branch
          %238 = sbr.rel (%p236) target = $region36
        $region35: #{tpu_custom_call.1} parent=31 // pred_region
          %240 = dma.done %s232, 8192
        $region36: #{tpu_custom_call.1} parent=31 // pred_fallthru
          _
        // Predicated region
        $region37: #{tpu_custom_call.1} parent=31 // pred_check
          %p241 = pneg %p80
        $region38: #{tpu_custom_call.1} parent=31 // pred_check_branch
          %243 = sbr.rel (%p241) target = $region40
        $region39: #{tpu_custom_call.1} parent=31 // pred_region
          %245 = dma.done [#allocation7], 49152
        $region40: #{tpu_custom_call.1} parent=31 // pred_fallthru
          _
        // Predicated region
        $region41: #{tpu_custom_call.1} parent=31 // pred_check
          %p246 = pneg %p101
        $region42: #{tpu_custom_call.1} parent=31 // pred_check_branch
          %248 = sbr.rel (%p246) target = $region44
        $region43: #{tpu_custom_call.1} parent=31 // pred_region
          %250 = dma.done [#allocation7], 192
        $region44: #{tpu_custom_call.1} parent=31 // pred_fallthru
          _
        %s251 = sand.u32 %s46, 1
        %s252 = scalar_lea.sflag [#allocation4], %s251
        %s253 = sand.u32 %s46, 1
        %s254 = smul.addr %s253, 512
        %s255 = scalar_lea.vmem [#allocation3], %s254
        %p256 = pneg %p59
        %p257 = pneg %p56
        %p258 = pneg %p80
        %p259 = pneg %p77
        %p260 = pneg %p101
        %p261 = pneg %p98
        %p262 = pneg %p129
        %p263 = pneg %p126
        %s264 = sand.u32 %s116, 1
        %s265 = scalar_lea.sflag [#allocation5], %s264
        %s266 = sand.u32 %s116, 1
        %s267 = smul.addr %s266, 1024
        %s268 = scalar_lea.vmem [#allocation9], %s267
        %p269 = pneg %p157
        %p270 = pneg %p154
        %s271 = sand.u32 %s144, 1
        %s272 = scalar_lea.sflag [#allocation11], %s271
        %s273 = sand.u32 %s144, 1
        %s274 = smul.addr %s273, 512
        %s275 = scalar_lea.vmem [#allocation10], %s274
        %s276 = smul.u32 32, %s31
        %s277 = smul.u32 32, %s31
        %p278 = scmp.eq.s32.totalorder %s31, 0
        // Predicated region
        $region45: #{tpu_custom_call.1} parent=31 // pred_check
          %p279 = pneg %p278
        $region46: #{tpu_custom_call.1} parent=31 // pred_check_branch
          %281 = sbr.rel (%p279) target = $region48
        $region47: #{tpu_custom_call.1} parent=31 // pred_region
          %v282 = vld [vmem:[%s235] sm:$0xff]
          %v283 = vld [vmem:[%s235 + $0x8] sm:$0xff]
          %v284 = vld [vmem:[%s235 + $0x10] sm:$0xff]
          %v285 = vld [vmem:[%s235 + $0x18] sm:$0xff]
          %v286 = vld [vmem:[%s235 + $0x20] sm:$0xff]
          %v287 = vld [vmem:[%s235 + $0x28] sm:$0xff]
          %v288 = vld [vmem:[%s235 + $0x30] sm:$0xff]
          %v289 = vld [vmem:[%s235 + $0x38] sm:$0xff]
          %v290 = vld [vmem:[%s235 + $0x40] sm:$0xff]
          %v291 = vld [vmem:[%s235 + $0x48] sm:$0xff]
          %v292 = vld [vmem:[%s235 + $0x50] sm:$0xff]
          %v293 = vld [vmem:[%s235 + $0x58] sm:$0xff]
          %v294 = vld [vmem:[%s235 + $0x60] sm:$0xff]
          %v295 = vld [vmem:[%s235 + $0x68] sm:$0xff]
          %v296 = vld [vmem:[%s235 + $0x70] sm:$0xff]
          %v297 = vld [vmem:[%s235 + $0x78] sm:$0xff]
          %v298 = vld [vmem:[%s235 + $0x80] sm:$0xff]
          %v299 = vld [vmem:[%s235 + $0x88] sm:$0xff]
          %v300 = vld [vmem:[%s235 + $0x90] sm:$0xff]
          %v301 = vld [vmem:[%s235 + $0x98] sm:$0xff]
          %v302 = vld [vmem:[%s235 + $0xa0] sm:$0xff]
          %v303 = vld [vmem:[%s235 + $0xa8] sm:$0xff]
          %v304 = vld [vmem:[%s235 + $0xb0] sm:$0xff]
          %v305 = vld [vmem:[%s235 + $0xb8] sm:$0xff]
          %v306 = vld [vmem:[%s235 + $0xc0] sm:$0xff]
          %v307 = vld [vmem:[%s235 + $0xc8] sm:$0xff]
          %v308 = vld [vmem:[%s235 + $0xd0] sm:$0xff]
          %v309 = vld [vmem:[%s235 + $0xd8] sm:$0xff]
          %v310 = vld [vmem:[%s235 + $0xe0] sm:$0xff]
          %v311 = vld [vmem:[%s235 + $0xe8] sm:$0xff]
          %v312 = vld [vmem:[%s235 + $0xf0] sm:$0xff]
          %v313 = vld [vmem:[%s235 + $0xf8] sm:$0xff]
          %v314 = vld [vmem:[%s235 + $0x100] sm:$0xff]
          %v315 = vld [vmem:[%s235 + $0x108] sm:$0xff]
          %v316 = vld [vmem:[%s235 + $0x110] sm:$0xff]
          %v317 = vld [vmem:[%s235 + $0x118] sm:$0xff]
          %v318 = vld [vmem:[%s235 + $0x120] sm:$0xff]
          %v319 = vld [vmem:[%s235 + $0x128] sm:$0xff]
          %v320 = vld [vmem:[%s235 + $0x130] sm:$0xff]
          %v321 = vld [vmem:[%s235 + $0x138] sm:$0xff]
          %v322 = vld [vmem:[%s235 + $0x140] sm:$0xff]
          %v323 = vld [vmem:[%s235 + $0x148] sm:$0xff]
          %v324 = vld [vmem:[%s235 + $0x150] sm:$0xff]
          %v325 = vld [vmem:[%s235 + $0x158] sm:$0xff]
          %v326 = vld [vmem:[%s235 + $0x160] sm:$0xff]
          %v327 = vld [vmem:[%s235 + $0x168] sm:$0xff]
          %v328 = vld [vmem:[%s235 + $0x170] sm:$0xff]
          %v329 = vld [vmem:[%s235 + $0x178] sm:$0xff]
          %v330 = vld [vmem:[%s235 + $0x180] sm:$0xff]
          %v331 = vld [vmem:[%s235 + $0x188] sm:$0xff]
          %v332 = vld [vmem:[%s235 + $0x190] sm:$0xff]
          %v333 = vld [vmem:[%s235 + $0x198] sm:$0xff]
          %v334 = vld [vmem:[%s235 + $0x1a0] sm:$0xff]
          %v335 = vld [vmem:[%s235 + $0x1a8] sm:$0xff]
          %v336 = vld [vmem:[%s235 + $0x1b0] sm:$0xff]
          %v337 = vld [vmem:[%s235 + $0x1b8] sm:$0xff]
          %v338 = vld [vmem:[%s235 + $0x1c0] sm:$0xff]
          %v339 = vld [vmem:[%s235 + $0x1c8] sm:$0xff]
          %v340 = vld [vmem:[%s235 + $0x1d0] sm:$0xff]
          %v341 = vld [vmem:[%s235 + $0x1d8] sm:$0xff]
          %v342 = vld [vmem:[%s235 + $0x1e0] sm:$0xff]
          %v343 = vld [vmem:[%s235 + $0x1e8] sm:$0xff]
          %v344 = vld [vmem:[%s235 + $0x1f0] sm:$0xff]
          %v345 = vld [vmem:[%s235 + $0x1f8] sm:$0xff]
          %v346 = vld [vmem:[#allocation6] sm:$0xff]
          %v347 = vld [vmem:[#allocation6 + $0x8] sm:$0xff]
          %v348 = vld [vmem:[#allocation6 + $0x10] sm:$0xff]
          %v349 = vld [vmem:[#allocation6 + $0x18] sm:$0xff]
          %v350 = vld [vmem:[#allocation6 + $0x20] sm:$0xff]
          %v351 = vld [vmem:[#allocation6 + $0x28] sm:$0xff]
          %v352 = vld [vmem:[#allocation6 + $0x30] sm:$0xff]
          %v353 = vld [vmem:[#allocation6 + $0x38] sm:$0xff]
          %v354 = vld [vmem:[#allocation6 + $0x40] sm:$0xff]
          %v355 = vld [vmem:[#allocation6 + $0x48] sm:$0xff]
          %v356 = vld [vmem:[#allocation6 + $0x50] sm:$0xff]
          %v357 = vld [vmem:[#allocation6 + $0x58] sm:$0xff]
          %v358 = vld [vmem:[#allocation6 + $0x60] sm:$0xff]
          %v359 = vld [vmem:[#allocation6 + $0x68] sm:$0xff]
          %v360 = vld [vmem:[#allocation6 + $0x70] sm:$0xff]
          %v361 = vld [vmem:[#allocation6 + $0x78] sm:$0xff]
          %v362 = vld [vmem:[#allocation6 + $0x80] sm:$0xff]
          %v363 = vld [vmem:[#allocation6 + $0x88] sm:$0xff]
          %v364 = vld [vmem:[#allocation6 + $0x90] sm:$0xff]
          %v365 = vld [vmem:[#allocation6 + $0x98] sm:$0xff]
          %v366 = vld [vmem:[#allocation6 + $0xa0] sm:$0xff]
          %v367 = vld [vmem:[#allocation6 + $0xa8] sm:$0xff]
          %v368 = vld [vmem:[#allocation6 + $0xb0] sm:$0xff]
          %v369 = vld [vmem:[#allocation6 + $0xb8] sm:$0xff]
          %v370 = vld [vmem:[#allocation6 + $0xc0] sm:$0xff]
          %v371 = vld [vmem:[#allocation6 + $0xc8] sm:$0xff]
          %v372 = vld [vmem:[#allocation6 + $0xd0] sm:$0xff]
          %v373 = vld [vmem:[#allocation6 + $0xd8] sm:$0xff]
          %v374 = vld [vmem:[#allocation6 + $0xe0] sm:$0xff]
          %v375 = vld [vmem:[#allocation6 + $0xe8] sm:$0xff]
          %v376 = vld [vmem:[#allocation6 + $0xf0] sm:$0xff]
          %v377 = vld [vmem:[#allocation6 + $0xf8] sm:$0xff]
          %v378 = vld [vmem:[#allocation6 + $0x100] sm:$0xff]
          %v379 = vld [vmem:[#allocation6 + $0x108] sm:$0xff]
          %v380 = vld [vmem:[#allocation6 + $0x110] sm:$0xff]
          %v381 = vld [vmem:[#allocation6 + $0x118] sm:$0xff]
          %v382 = vld [vmem:[#allocation6 + $0x120] sm:$0xff]
          %v383 = vld [vmem:[#allocation6 + $0x128] sm:$0xff]
          %v384 = vld [vmem:[#allocation6 + $0x130] sm:$0xff]
          %v385 = vld [vmem:[#allocation6 + $0x138] sm:$0xff]
          %v386 = vld [vmem:[#allocation6 + $0x140] sm:$0xff]
          %v387 = vld [vmem:[#allocation6 + $0x148] sm:$0xff]
          %v388 = vld [vmem:[#allocation6 + $0x150] sm:$0xff]
          %v389 = vld [vmem:[#allocation6 + $0x158] sm:$0xff]
          %v390 = vld [vmem:[#allocation6 + $0x160] sm:$0xff]
          %v391 = vld [vmem:[#allocation6 + $0x168] sm:$0xff]
          %v392 = vld [vmem:[#allocation6 + $0x170] sm:$0xff]
          %v393 = vld [vmem:[#allocation6 + $0x178] sm:$0xff]
          %v394 = vld [vmem:[#allocation6 + $0x180] sm:$0xff]
          %v395 = vld [vmem:[#allocation6 + $0x188] sm:$0xff]
          %v396 = vld [vmem:[#allocation6 + $0x190] sm:$0xff]
          %v397 = vld [vmem:[#allocation6 + $0x198] sm:$0xff]
          %v398 = vld [vmem:[#allocation6 + $0x1a0] sm:$0xff]
          %v399 = vld [vmem:[#allocation6 + $0x1a8] sm:$0xff]
          %v400 = vld [vmem:[#allocation6 + $0x1b0] sm:$0xff]
          %v401 = vld [vmem:[#allocation6 + $0x1b8] sm:$0xff]
          %v402 = vld [vmem:[#allocation6 + $0x1c0] sm:$0xff]
          %v403 = vld [vmem:[#allocation6 + $0x1c8] sm:$0xff]
          %v404 = vld [vmem:[#allocation6 + $0x1d0] sm:$0xff]
          %v405 = vld [vmem:[#allocation6 + $0x1d8] sm:$0xff]
          %v406 = vld [vmem:[#allocation6 + $0x1e0] sm:$0xff]
          %v407 = vld [vmem:[#allocation6 + $0x1e8] sm:$0xff]
          %v408 = vld [vmem:[#allocation6 + $0x1f0] sm:$0xff]
          %v409 = vld [vmem:[#allocation6 + $0x1f8] sm:$0xff]
          %v410 = vld [vmem:[#allocation6 + $0x200] sm:$0xff]
          %v411 = vld [vmem:[#allocation6 + $0x208] sm:$0xff]
          %v412 = vld [vmem:[#allocation6 + $0x210] sm:$0xff]
          %v413 = vld [vmem:[#allocation6 + $0x218] sm:$0xff]
          %v414 = vld [vmem:[#allocation6 + $0x220] sm:$0xff]
          %v415 = vld [vmem:[#allocation6 + $0x228] sm:$0xff]
          %v416 = vld [vmem:[#allocation6 + $0x230] sm:$0xff]
          %v417 = vld [vmem:[#allocation6 + $0x238] sm:$0xff]
          %v418 = vld [vmem:[#allocation6 + $0x240] sm:$0xff]
          %v419 = vld [vmem:[#allocation6 + $0x248] sm:$0xff]
          %v420 = vld [vmem:[#allocation6 + $0x250] sm:$0xff]
          %v421 = vld [vmem:[#allocation6 + $0x258] sm:$0xff]
          %v422 = vld [vmem:[#allocation6 + $0x260] sm:$0xff]
          %v423 = vld [vmem:[#allocation6 + $0x268] sm:$0xff]
          %v424 = vld [vmem:[#allocation6 + $0x270] sm:$0xff]
          %v425 = vld [vmem:[#allocation6 + $0x278] sm:$0xff]
          %v426 = vld [vmem:[#allocation6 + $0x280] sm:$0xff]
          %v427 = vld [vmem:[#allocation6 + $0x288] sm:$0xff]
          %v428 = vld [vmem:[#allocation6 + $0x290] sm:$0xff]
          %v429 = vld [vmem:[#allocation6 + $0x298] sm:$0xff]
          %v430 = vld [vmem:[#allocation6 + $0x2a0] sm:$0xff]
          %v431 = vld [vmem:[#allocation6 + $0x2a8] sm:$0xff]
          %v432 = vld [vmem:[#allocation6 + $0x2b0] sm:$0xff]
          %v433 = vld [vmem:[#allocation6 + $0x2b8] sm:$0xff]
          %v434 = vld [vmem:[#allocation6 + $0x2c0] sm:$0xff]
          %v435 = vld [vmem:[#allocation6 + $0x2c8] sm:$0xff]
          %v436 = vld [vmem:[#allocation6 + $0x2d0] sm:$0xff]
          %v437 = vld [vmem:[#allocation6 + $0x2d8] sm:$0xff]
          %v438 = vld [vmem:[#allocation6 + $0x2e0] sm:$0xff]
          %v439 = vld [vmem:[#allocation6 + $0x2e8] sm:$0xff]
          %v440 = vld [vmem:[#allocation6 + $0x2f0] sm:$0xff]
          %v441 = vld [vmem:[#allocation6 + $0x2f8] sm:$0xff]
          %v442 = vld [vmem:[#allocation6 + $0x300] sm:$0xff]
          %v443 = vld [vmem:[#allocation6 + $0x308] sm:$0xff]
          %v444 = vld [vmem:[#allocation6 + $0x310] sm:$0xff]
          %v445 = vld [vmem:[#allocation6 + $0x318] sm:$0xff]
          %v446 = vld [vmem:[#allocation6 + $0x320] sm:$0xff]
          %v447 = vld [vmem:[#allocation6 + $0x328] sm:$0xff]
          %v448 = vld [vmem:[#allocation6 + $0x330] sm:$0xff]
          %v449 = vld [vmem:[#allocation6 + $0x338] sm:$0xff]
          %v450 = vld [vmem:[#allocation6 + $0x340] sm:$0xff]
          %v451 = vld [vmem:[#allocation6 + $0x348] sm:$0xff]
          %v452 = vld [vmem:[#allocation6 + $0x350] sm:$0xff]
          %v453 = vld [vmem:[#allocation6 + $0x358] sm:$0xff]
          %v454 = vld [vmem:[#allocation6 + $0x360] sm:$0xff]
          %v455 = vld [vmem:[#allocation6 + $0x368] sm:$0xff]
          %v456 = vld [vmem:[#allocation6 + $0x370] sm:$0xff]
          %v457 = vld [vmem:[#allocation6 + $0x378] sm:$0xff]
          %v458 = vld [vmem:[#allocation6 + $0x380] sm:$0xff]
          %v459 = vld [vmem:[#allocation6 + $0x388] sm:$0xff]
          %v460 = vld [vmem:[#allocation6 + $0x390] sm:$0xff]
          %v461 = vld [vmem:[#allocation6 + $0x398] sm:$0xff]
          %v462 = vld [vmem:[#allocation6 + $0x3a0] sm:$0xff]
          %v463 = vld [vmem:[#allocation6 + $0x3a8] sm:$0xff]
          %v464 = vld [vmem:[#allocation6 + $0x3b0] sm:$0xff]
          %v465 = vld [vmem:[#allocation6 + $0x3b8] sm:$0xff]
          %v466 = vld [vmem:[#allocation6 + $0x3c0] sm:$0xff]
          %v467 = vld [vmem:[#allocation6 + $0x3c8] sm:$0xff]
          %v468 = vld [vmem:[#allocation6 + $0x3d0] sm:$0xff]
          %v469 = vld [vmem:[#allocation6 + $0x3d8] sm:$0xff]
          %v470 = vld [vmem:[#allocation6 + $0x3e0] sm:$0xff]
          %v471 = vld [vmem:[#allocation6 + $0x3e8] sm:$0xff]
          %v472 = vld [vmem:[#allocation6 + $0x3f0] sm:$0xff]
          %v473 = vld [vmem:[#allocation6 + $0x3f8] sm:$0xff]
          %v474 = vld [vmem:[#allocation6 + $0x400] sm:$0xff]
          %v475 = vld [vmem:[#allocation6 + $0x408] sm:$0xff]
          %v476 = vld [vmem:[#allocation6 + $0x410] sm:$0xff]
          %v477 = vld [vmem:[#allocation6 + $0x418] sm:$0xff]
          %v478 = vld [vmem:[#allocation6 + $0x420] sm:$0xff]
          %v479 = vld [vmem:[#allocation6 + $0x428] sm:$0xff]
          %v480 = vld [vmem:[#allocation6 + $0x430] sm:$0xff]
          %v481 = vld [vmem:[#allocation6 + $0x438] sm:$0xff]
          %v482 = vld [vmem:[#allocation6 + $0x440] sm:$0xff]
          %v483 = vld [vmem:[#allocation6 + $0x448] sm:$0xff]
          %v484 = vld [vmem:[#allocation6 + $0x450] sm:$0xff]
          %v485 = vld [vmem:[#allocation6 + $0x458] sm:$0xff]
          %v486 = vld [vmem:[#allocation6 + $0x460] sm:$0xff]
          %v487 = vld [vmem:[#allocation6 + $0x468] sm:$0xff]
          %v488 = vld [vmem:[#allocation6 + $0x470] sm:$0xff]
          %v489 = vld [vmem:[#allocation6 + $0x478] sm:$0xff]
          %v490 = vld [vmem:[#allocation6 + $0x480] sm:$0xff]
          %v491 = vld [vmem:[#allocation6 + $0x488] sm:$0xff]
          %v492 = vld [vmem:[#allocation6 + $0x490] sm:$0xff]
          %v493 = vld [vmem:[#allocation6 + $0x498] sm:$0xff]
          %v494 = vld [vmem:[#allocation6 + $0x4a0] sm:$0xff]
          %v495 = vld [vmem:[#allocation6 + $0x4a8] sm:$0xff]
          %v496 = vld [vmem:[#allocation6 + $0x4b0] sm:$0xff]
          %v497 = vld [vmem:[#allocation6 + $0x4b8] sm:$0xff]
          %v498 = vld [vmem:[#allocation6 + $0x4c0] sm:$0xff]
          %v499 = vld [vmem:[#allocation6 + $0x4c8] sm:$0xff]
          %v500 = vld [vmem:[#allocation6 + $0x4d0] sm:$0xff]
          %v501 = vld [vmem:[#allocation6 + $0x4d8] sm:$0xff]
          %v502 = vld [vmem:[#allocation6 + $0x4e0] sm:$0xff]
          %v503 = vld [vmem:[#allocation6 + $0x4e8] sm:$0xff]
          %v504 = vld [vmem:[#allocation6 + $0x4f0] sm:$0xff]
          %v505 = vld [vmem:[#allocation6 + $0x4f8] sm:$0xff]
          %v506 = vld [vmem:[#allocation6 + $0x500] sm:$0xff]
          %v507 = vld [vmem:[#allocation6 + $0x508] sm:$0xff]
          %v508 = vld [vmem:[#allocation6 + $0x510] sm:$0xff]
          %v509 = vld [vmem:[#allocation6 + $0x518] sm:$0xff]
          %v510 = vld [vmem:[#allocation6 + $0x520] sm:$0xff]
          %v511 = vld [vmem:[#allocation6 + $0x528] sm:$0xff]
          %v512 = vld [vmem:[#allocation6 + $0x530] sm:$0xff]
          %v513 = vld [vmem:[#allocation6 + $0x538] sm:$0xff]
          %v514 = vld [vmem:[#allocation6 + $0x540] sm:$0xff]
          %v515 = vld [vmem:[#allocation6 + $0x548] sm:$0xff]
          %v516 = vld [vmem:[#allocation6 + $0x550] sm:$0xff]
          %v517 = vld [vmem:[#allocation6 + $0x558] sm:$0xff]
          %v518 = vld [vmem:[#allocation6 + $0x560] sm:$0xff]
          %v519 = vld [vmem:[#allocation6 + $0x568] sm:$0xff]
          %v520 = vld [vmem:[#allocation6 + $0x570] sm:$0xff]
          %v521 = vld [vmem:[#allocation6 + $0x578] sm:$0xff]
          %v522 = vld [vmem:[#allocation6 + $0x580] sm:$0xff]
          %v523 = vld [vmem:[#allocation6 + $0x588] sm:$0xff]
          %v524 = vld [vmem:[#allocation6 + $0x590] sm:$0xff]
          %v525 = vld [vmem:[#allocation6 + $0x598] sm:$0xff]
          %v526 = vld [vmem:[#allocation6 + $0x5a0] sm:$0xff]
          %v527 = vld [vmem:[#allocation6 + $0x5a8] sm:$0xff]
          %v528 = vld [vmem:[#allocation6 + $0x5b0] sm:$0xff]
          %v529 = vld [vmem:[#allocation6 + $0x5b8] sm:$0xff]
          %v530 = vld [vmem:[#allocation6 + $0x5c0] sm:$0xff]
          %v531 = vld [vmem:[#allocation6 + $0x5c8] sm:$0xff]
          %v532 = vld [vmem:[#allocation6 + $0x5d0] sm:$0xff]
          %v533 = vld [vmem:[#allocation6 + $0x5d8] sm:$0xff]
          %v534 = vld [vmem:[#allocation6 + $0x5e0] sm:$0xff]
          %v535 = vld [vmem:[#allocation6 + $0x5e8] sm:$0xff]
          %v536 = vld [vmem:[#allocation6 + $0x5f0] sm:$0xff]
          %v537 = vld [vmem:[#allocation6 + $0x5f8] sm:$0xff]
          %v538 = vld [vmem:[#allocation6 + $0x600] sm:$0xff]
          %v539 = vld [vmem:[#allocation6 + $0x608] sm:$0xff]
          %v540 = vld [vmem:[#allocation6 + $0x610] sm:$0xff]
          %v541 = vld [vmem:[#allocation6 + $0x618] sm:$0xff]
          %v542 = vld [vmem:[#allocation6 + $0x620] sm:$0xff]
          %v543 = vld [vmem:[#allocation6 + $0x628] sm:$0xff]
          %v544 = vld [vmem:[#allocation6 + $0x630] sm:$0xff]
          %v545 = vld [vmem:[#allocation6 + $0x638] sm:$0xff]
          %v546 = vld [vmem:[#allocation6 + $0x640] sm:$0xff]
          %v547 = vld [vmem:[#allocation6 + $0x648] sm:$0xff]
          %v548 = vld [vmem:[#allocation6 + $0x650] sm:$0xff]
          %v549 = vld [vmem:[#allocation6 + $0x658] sm:$0xff]
          %v550 = vld [vmem:[#allocation6 + $0x660] sm:$0xff]
          %v551 = vld [vmem:[#allocation6 + $0x668] sm:$0xff]
          %v552 = vld [vmem:[#allocation6 + $0x670] sm:$0xff]
          %v553 = vld [vmem:[#allocation6 + $0x678] sm:$0xff]
          %v554 = vld [vmem:[#allocation6 + $0x680] sm:$0xff]
          %v555 = vld [vmem:[#allocation6 + $0x688] sm:$0xff]
          %v556 = vld [vmem:[#allocation6 + $0x690] sm:$0xff]
          %v557 = vld [vmem:[#allocation6 + $0x698] sm:$0xff]
          %v558 = vld [vmem:[#allocation6 + $0x6a0] sm:$0xff]
          %v559 = vld [vmem:[#allocation6 + $0x6a8] sm:$0xff]
          %v560 = vld [vmem:[#allocation6 + $0x6b0] sm:$0xff]
          %v561 = vld [vmem:[#allocation6 + $0x6b8] sm:$0xff]
          %v562 = vld [vmem:[#allocation6 + $0x6c0] sm:$0xff]
          %v563 = vld [vmem:[#allocation6 + $0x6c8] sm:$0xff]
          %v564 = vld [vmem:[#allocation6 + $0x6d0] sm:$0xff]
          %v565 = vld [vmem:[#allocation6 + $0x6d8] sm:$0xff]
          %v566 = vld [vmem:[#allocation6 + $0x6e0] sm:$0xff]
          %v567 = vld [vmem:[#allocation6 + $0x6e8] sm:$0xff]
          %v568 = vld [vmem:[#allocation6 + $0x6f0] sm:$0xff]
          %v569 = vld [vmem:[#allocation6 + $0x6f8] sm:$0xff]
          %v570 = vld [vmem:[#allocation6 + $0x700] sm:$0xff]
          %v571 = vld [vmem:[#allocation6 + $0x708] sm:$0xff]
          %v572 = vld [vmem:[#allocation6 + $0x710] sm:$0xff]
          %v573 = vld [vmem:[#allocation6 + $0x718] sm:$0xff]
          %v574 = vld [vmem:[#allocation6 + $0x720] sm:$0xff]
          %v575 = vld [vmem:[#allocation6 + $0x728] sm:$0xff]
          %v576 = vld [vmem:[#allocation6 + $0x730] sm:$0xff]
          %v577 = vld [vmem:[#allocation6 + $0x738] sm:$0xff]
          %v578 = vld [vmem:[#allocation6 + $0x740] sm:$0xff]
          %v579 = vld [vmem:[#allocation6 + $0x748] sm:$0xff]
          %v580 = vld [vmem:[#allocation6 + $0x750] sm:$0xff]
          %v581 = vld [vmem:[#allocation6 + $0x758] sm:$0xff]
          %v582 = vld [vmem:[#allocation6 + $0x760] sm:$0xff]
          %v583 = vld [vmem:[#allocation6 + $0x768] sm:$0xff]
          %v584 = vld [vmem:[#allocation6 + $0x770] sm:$0xff]
          %v585 = vld [vmem:[#allocation6 + $0x778] sm:$0xff]
          %v586 = vld [vmem:[#allocation6 + $0x780] sm:$0xff]
          %v587 = vld [vmem:[#allocation6 + $0x788] sm:$0xff]
          %v588 = vld [vmem:[#allocation6 + $0x790] sm:$0xff]
          %v589 = vld [vmem:[#allocation6 + $0x798] sm:$0xff]
          %v590 = vld [vmem:[#allocation6 + $0x7a0] sm:$0xff]
          %v591 = vld [vmem:[#allocation6 + $0x7a8] sm:$0xff]
          %v592 = vld [vmem:[#allocation6 + $0x7b0] sm:$0xff]
          %v593 = vld [vmem:[#allocation6 + $0x7b8] sm:$0xff]
          %v594 = vld [vmem:[#allocation6 + $0x7c0] sm:$0xff]
          %v595 = vld [vmem:[#allocation6 + $0x7c8] sm:$0xff]
          %v596 = vld [vmem:[#allocation6 + $0x7d0] sm:$0xff]
          %v597 = vld [vmem:[#allocation6 + $0x7d8] sm:$0xff]
          %v598 = vld [vmem:[#allocation6 + $0x7e0] sm:$0xff]
          %v599 = vld [vmem:[#allocation6 + $0x7e8] sm:$0xff]
          %v600 = vld [vmem:[#allocation6 + $0x7f0] sm:$0xff]
          %v601 = vld [vmem:[#allocation6 + $0x7f8] sm:$0xff]
          %v602 = vld [vmem:[#allocation6 + $0x800] sm:$0xff]
          %v603 = vld [vmem:[#allocation6 + $0x808] sm:$0xff]
          %v604 = vld [vmem:[#allocation6 + $0x810] sm:$0xff]
          %v605 = vld [vmem:[#allocation6 + $0x818] sm:$0xff]
          %v606 = vld [vmem:[#allocation6 + $0x820] sm:$0xff]
          %v607 = vld [vmem:[#allocation6 + $0x828] sm:$0xff]
          %v608 = vld [vmem:[#allocation6 + $0x830] sm:$0xff]
          %v609 = vld [vmem:[#allocation6 + $0x838] sm:$0xff]
          %v610 = vld [vmem:[#allocation6 + $0x840] sm:$0xff]
          %v611 = vld [vmem:[#allocation6 + $0x848] sm:$0xff]
          %v612 = vld [vmem:[#allocation6 + $0x850] sm:$0xff]
          %v613 = vld [vmem:[#allocation6 + $0x858] sm:$0xff]
          %v614 = vld [vmem:[#allocation6 + $0x860] sm:$0xff]
          %v615 = vld [vmem:[#allocation6 + $0x868] sm:$0xff]
          %v616 = vld [vmem:[#allocation6 + $0x870] sm:$0xff]
          %v617 = vld [vmem:[#allocation6 + $0x878] sm:$0xff]
          %v618 = vld [vmem:[#allocation6 + $0x880] sm:$0xff]
          %v619 = vld [vmem:[#allocation6 + $0x888] sm:$0xff]
          %v620 = vld [vmem:[#allocation6 + $0x890] sm:$0xff]
          %v621 = vld [vmem:[#allocation6 + $0x898] sm:$0xff]
          %v622 = vld [vmem:[#allocation6 + $0x8a0] sm:$0xff]
          %v623 = vld [vmem:[#allocation6 + $0x8a8] sm:$0xff]
          %v624 = vld [vmem:[#allocation6 + $0x8b0] sm:$0xff]
          %v625 = vld [vmem:[#allocation6 + $0x8b8] sm:$0xff]
          %v626 = vld [vmem:[#allocation6 + $0x8c0] sm:$0xff]
          %v627 = vld [vmem:[#allocation6 + $0x8c8] sm:$0xff]
          %v628 = vld [vmem:[#allocation6 + $0x8d0] sm:$0xff]
          %v629 = vld [vmem:[#allocation6 + $0x8d8] sm:$0xff]
          %v630 = vld [vmem:[#allocation6 + $0x8e0] sm:$0xff]
          %v631 = vld [vmem:[#allocation6 + $0x8e8] sm:$0xff]
          %v632 = vld [vmem:[#allocation6 + $0x8f0] sm:$0xff]
          %v633 = vld [vmem:[#allocation6 + $0x8f8] sm:$0xff]
          %v634 = vld [vmem:[#allocation6 + $0x900] sm:$0xff]
          %v635 = vld [vmem:[#allocation6 + $0x908] sm:$0xff]
          %v636 = vld [vmem:[#allocation6 + $0x910] sm:$0xff]
          %v637 = vld [vmem:[#allocation6 + $0x918] sm:$0xff]
          %v638 = vld [vmem:[#allocation6 + $0x920] sm:$0xff]
          %v639 = vld [vmem:[#allocation6 + $0x928] sm:$0xff]
          %v640 = vld [vmem:[#allocation6 + $0x930] sm:$0xff]
          %v641 = vld [vmem:[#allocation6 + $0x938] sm:$0xff]
          %v642 = vld [vmem:[#allocation6 + $0x940] sm:$0xff]
          %v643 = vld [vmem:[#allocation6 + $0x948] sm:$0xff]
          %v644 = vld [vmem:[#allocation6 + $0x950] sm:$0xff]
          %v645 = vld [vmem:[#allocation6 + $0x958] sm:$0xff]
          %v646 = vld [vmem:[#allocation6 + $0x960] sm:$0xff]
          %v647 = vld [vmem:[#allocation6 + $0x968] sm:$0xff]
          %v648 = vld [vmem:[#allocation6 + $0x970] sm:$0xff]
          %v649 = vld [vmem:[#allocation6 + $0x978] sm:$0xff]
          %v650 = vld [vmem:[#allocation6 + $0x980] sm:$0xff]
          %v651 = vld [vmem:[#allocation6 + $0x988] sm:$0xff]
          %v652 = vld [vmem:[#allocation6 + $0x990] sm:$0xff]
          %v653 = vld [vmem:[#allocation6 + $0x998] sm:$0xff]
          %v654 = vld [vmem:[#allocation6 + $0x9a0] sm:$0xff]
          %v655 = vld [vmem:[#allocation6 + $0x9a8] sm:$0xff]
          %v656 = vld [vmem:[#allocation6 + $0x9b0] sm:$0xff]
          %v657 = vld [vmem:[#allocation6 + $0x9b8] sm:$0xff]
          %v658 = vld [vmem:[#allocation6 + $0x9c0] sm:$0xff]
          %v659 = vld [vmem:[#allocation6 + $0x9c8] sm:$0xff]
          %v660 = vld [vmem:[#allocation6 + $0x9d0] sm:$0xff]
          %v661 = vld [vmem:[#allocation6 + $0x9d8] sm:$0xff]
          %v662 = vld [vmem:[#allocation6 + $0x9e0] sm:$0xff]
          %v663 = vld [vmem:[#allocation6 + $0x9e8] sm:$0xff]
          %v664 = vld [vmem:[#allocation6 + $0x9f0] sm:$0xff]
          %v665 = vld [vmem:[#allocation6 + $0x9f8] sm:$0xff]
          %v666 = vld [vmem:[#allocation6 + $0xa00] sm:$0xff]
          %v667 = vld [vmem:[#allocation6 + $0xa08] sm:$0xff]
          %v668 = vld [vmem:[#allocation6 + $0xa10] sm:$0xff]
          %v669 = vld [vmem:[#allocation6 + $0xa18] sm:$0xff]
          %v670 = vld [vmem:[#allocation6 + $0xa20] sm:$0xff]
          %v671 = vld [vmem:[#allocation6 + $0xa28] sm:$0xff]
          %v672 = vld [vmem:[#allocation6 + $0xa30] sm:$0xff]
          %v673 = vld [vmem:[#allocation6 + $0xa38] sm:$0xff]
          %v674 = vld [vmem:[#allocation6 + $0xa40] sm:$0xff]
          %v675 = vld [vmem:[#allocation6 + $0xa48] sm:$0xff]
          %v676 = vld [vmem:[#allocation6 + $0xa50] sm:$0xff]
          %v677 = vld [vmem:[#allocation6 + $0xa58] sm:$0xff]
          %v678 = vld [vmem:[#allocation6 + $0xa60] sm:$0xff]
          %v679 = vld [vmem:[#allocation6 + $0xa68] sm:$0xff]
          %v680 = vld [vmem:[#allocation6 + $0xa70] sm:$0xff]
          %v681 = vld [vmem:[#allocation6 + $0xa78] sm:$0xff]
          %v682 = vld [vmem:[#allocation6 + $0xa80] sm:$0xff]
          %v683 = vld [vmem:[#allocation6 + $0xa88] sm:$0xff]
          %v684 = vld [vmem:[#allocation6 + $0xa90] sm:$0xff]
          %v685 = vld [vmem:[#allocation6 + $0xa98] sm:$0xff]
          %v686 = vld [vmem:[#allocation6 + $0xaa0] sm:$0xff]
          %v687 = vld [vmem:[#allocation6 + $0xaa8] sm:$0xff]
          %v688 = vld [vmem:[#allocation6 + $0xab0] sm:$0xff]
          %v689 = vld [vmem:[#allocation6 + $0xab8] sm:$0xff]
          %v690 = vld [vmem:[#allocation6 + $0xac0] sm:$0xff]
          %v691 = vld [vmem:[#allocation6 + $0xac8] sm:$0xff]
          %v692 = vld [vmem:[#allocation6 + $0xad0] sm:$0xff]
          %v693 = vld [vmem:[#allocation6 + $0xad8] sm:$0xff]
          %v694 = vld [vmem:[#allocation6 + $0xae0] sm:$0xff]
          %v695 = vld [vmem:[#allocation6 + $0xae8] sm:$0xff]
          %v696 = vld [vmem:[#allocation6 + $0xaf0] sm:$0xff]
          %v697 = vld [vmem:[#allocation6 + $0xaf8] sm:$0xff]
          %v698 = vld [vmem:[#allocation6 + $0xb00] sm:$0xff]
          %v699 = vld [vmem:[#allocation6 + $0xb08] sm:$0xff]
          %v700 = vld [vmem:[#allocation6 + $0xb10] sm:$0xff]
          %v701 = vld [vmem:[#allocation6 + $0xb18] sm:$0xff]
          %v702 = vld [vmem:[#allocation6 + $0xb20] sm:$0xff]
          %v703 = vld [vmem:[#allocation6 + $0xb28] sm:$0xff]
          %v704 = vld [vmem:[#allocation6 + $0xb30] sm:$0xff]
          %v705 = vld [vmem:[#allocation6 + $0xb38] sm:$0xff]
          %v706 = vld [vmem:[#allocation6 + $0xb40] sm:$0xff]
          %v707 = vld [vmem:[#allocation6 + $0xb48] sm:$0xff]
          %v708 = vld [vmem:[#allocation6 + $0xb50] sm:$0xff]
          %v709 = vld [vmem:[#allocation6 + $0xb58] sm:$0xff]
          %v710 = vld [vmem:[#allocation6 + $0xb60] sm:$0xff]
          %v711 = vld [vmem:[#allocation6 + $0xb68] sm:$0xff]
          %v712 = vld [vmem:[#allocation6 + $0xb70] sm:$0xff]
          %v713 = vld [vmem:[#allocation6 + $0xb78] sm:$0xff]
          %v714 = vld [vmem:[#allocation6 + $0xb80] sm:$0xff]
          %v715 = vld [vmem:[#allocation6 + $0xb88] sm:$0xff]
          %v716 = vld [vmem:[#allocation6 + $0xb90] sm:$0xff]
          %v717 = vld [vmem:[#allocation6 + $0xb98] sm:$0xff]
          %v718 = vld [vmem:[#allocation6 + $0xba0] sm:$0xff]
          %v719 = vld [vmem:[#allocation6 + $0xba8] sm:$0xff]
          %v720 = vld [vmem:[#allocation6 + $0xbb0] sm:$0xff]
          %v721 = vld [vmem:[#allocation6 + $0xbb8] sm:$0xff]
          %v722 = vld [vmem:[#allocation6 + $0xbc0] sm:$0xff]
          %v723 = vld [vmem:[#allocation6 + $0xbc8] sm:$0xff]
          %v724 = vld [vmem:[#allocation6 + $0xbd0] sm:$0xff]
          %v725 = vld [vmem:[#allocation6 + $0xbd8] sm:$0xff]
          %v726 = vld [vmem:[#allocation6 + $0xbe0] sm:$0xff]
          %v727 = vld [vmem:[#allocation6 + $0xbe8] sm:$0xff]
          %v728 = vld [vmem:[#allocation6 + $0xbf0] sm:$0xff]
          %v729 = vld [vmem:[#allocation6 + $0xbf8] sm:$0xff]
          %v730 = vld [vmem:[#allocation8] sm:$0xff]
          %v731 = vld [vmem:[#allocation8 + $0x8] sm:$0xf]
          %v734 = vperm.slane %v730, 0
          %v735 = vperm.slane %v730, 1
          %v736 = vperm.slane %v730, 2
          %v737 = vperm.slane %v730, 3
          %v738 = vperm.slane %v730, 4
          %v739 = vperm.slane %v730, 5
          %v740 = vperm.slane %v730, 6
          %v741 = vperm.slane %v730, 7
          %v742 = vperm.slane %v731, 0
          %v743 = vperm.slane %v731, 1
          %v744 = vperm.slane %v731, 2
          %v745 = vperm.slane %v731, 3
          %v822 = vunpack.c.l.b16 %v282
          %v823 = vunpack.c.h.b16 %v282
          %v824 = vunpack.c.l.b16 %v283
          %v825 = vunpack.c.h.b16 %v283
          %v826 = vunpack.c.l.b16 %v284
          %v827 = vunpack.c.h.b16 %v284
          %v828 = vunpack.c.l.b16 %v285
          %v829 = vunpack.c.h.b16 %v285
          %v830 = vunpack.c.l.b16 %v286
          %v831 = vunpack.c.h.b16 %v286
          %v832 = vunpack.c.l.b16 %v287
          %v833 = vunpack.c.h.b16 %v287
          %v834 = vunpack.c.l.b16 %v288
          %v835 = vunpack.c.h.b16 %v288
          %v836 = vunpack.c.l.b16 %v289
          %v837 = vunpack.c.h.b16 %v289
          %v838 = vunpack.c.l.b16 %v290
          %v839 = vunpack.c.h.b16 %v290
          %v840 = vunpack.c.l.b16 %v291
          %v841 = vunpack.c.h.b16 %v291
          %v842 = vunpack.c.l.b16 %v292
          %v843 = vunpack.c.h.b16 %v292
          %v844 = vunpack.c.l.b16 %v293
          %v845 = vunpack.c.h.b16 %v293
          %v846 = vunpack.c.l.b16 %v294
          %v847 = vunpack.c.h.b16 %v294
          %v848 = vunpack.c.l.b16 %v295
          %v849 = vunpack.c.h.b16 %v295
          %v850 = vunpack.c.l.b16 %v296
          %v851 = vunpack.c.h.b16 %v296
          %v852 = vunpack.c.l.b16 %v297
          %v853 = vunpack.c.h.b16 %v297
          %v854 = vunpack.c.l.b16 %v298
          %v855 = vunpack.c.h.b16 %v298
          %v856 = vunpack.c.l.b16 %v299
          %v857 = vunpack.c.h.b16 %v299
          %v858 = vunpack.c.l.b16 %v300
          %v859 = vunpack.c.h.b16 %v300
          %v860 = vunpack.c.l.b16 %v301
          %v861 = vunpack.c.h.b16 %v301
          %v862 = vunpack.c.l.b16 %v302
          %v863 = vunpack.c.h.b16 %v302
          %v864 = vunpack.c.l.b16 %v303
          %v865 = vunpack.c.h.b16 %v303
          %v866 = vunpack.c.l.b16 %v304
          %v867 = vunpack.c.h.b16 %v304
          %v868 = vunpack.c.l.b16 %v305
          %v869 = vunpack.c.h.b16 %v305
          %v870 = vunpack.c.l.b16 %v306
          %v871 = vunpack.c.h.b16 %v306
          %v872 = vunpack.c.l.b16 %v307
          %v873 = vunpack.c.h.b16 %v307
          %v874 = vunpack.c.l.b16 %v308
          %v875 = vunpack.c.h.b16 %v308
          %v876 = vunpack.c.l.b16 %v309
          %v877 = vunpack.c.h.b16 %v309
          %v878 = vunpack.c.l.b16 %v310
          %v879 = vunpack.c.h.b16 %v310
          %v880 = vunpack.c.l.b16 %v311
          %v881 = vunpack.c.h.b16 %v311
          %v882 = vunpack.c.l.b16 %v312
          %v883 = vunpack.c.h.b16 %v312
          %v884 = vunpack.c.l.b16 %v313
          %v885 = vunpack.c.h.b16 %v313
          %v886 = vunpack.c.l.b16 %v314
          %v887 = vunpack.c.h.b16 %v314
          %v888 = vunpack.c.l.b16 %v315
          %v889 = vunpack.c.h.b16 %v315
          %v890 = vunpack.c.l.b16 %v316
          %v891 = vunpack.c.h.b16 %v316
          %v892 = vunpack.c.l.b16 %v317
          %v893 = vunpack.c.h.b16 %v317
          %v894 = vunpack.c.l.b16 %v318
          %v895 = vunpack.c.h.b16 %v318
          %v896 = vunpack.c.l.b16 %v319
          %v897 = vunpack.c.h.b16 %v319
          %v898 = vunpack.c.l.b16 %v320
          %v899 = vunpack.c.h.b16 %v320
          %v900 = vunpack.c.l.b16 %v321
          %v901 = vunpack.c.h.b16 %v321
          %v902 = vunpack.c.l.b16 %v322
          %v903 = vunpack.c.h.b16 %v322
          %v904 = vunpack.c.l.b16 %v323
          %v905 = vunpack.c.h.b16 %v323
          %v906 = vunpack.c.l.b16 %v324
          %v907 = vunpack.c.h.b16 %v324
          %v908 = vunpack.c.l.b16 %v325
          %v909 = vunpack.c.h.b16 %v325
          %v910 = vunpack.c.l.b16 %v326
          %v911 = vunpack.c.h.b16 %v326
          %v912 = vunpack.c.l.b16 %v327
          %v913 = vunpack.c.h.b16 %v327
          %v914 = vunpack.c.l.b16 %v328
          %v915 = vunpack.c.h.b16 %v328
          %v916 = vunpack.c.l.b16 %v329
          %v917 = vunpack.c.h.b16 %v329
          %v918 = vunpack.c.l.b16 %v330
          %v919 = vunpack.c.h.b16 %v330
          %v920 = vunpack.c.l.b16 %v331
          %v921 = vunpack.c.h.b16 %v331
          %v922 = vunpack.c.l.b16 %v332
          %v923 = vunpack.c.h.b16 %v332
          %v924 = vunpack.c.l.b16 %v333
          %v925 = vunpack.c.h.b16 %v333
          %v926 = vunpack.c.l.b16 %v334
          %v927 = vunpack.c.h.b16 %v334
          %v928 = vunpack.c.l.b16 %v335
          %v929 = vunpack.c.h.b16 %v335
          %v930 = vunpack.c.l.b16 %v336
          %v931 = vunpack.c.h.b16 %v336
          %v932 = vunpack.c.l.b16 %v337
          %v933 = vunpack.c.h.b16 %v337
          %v934 = vunpack.c.l.b16 %v338
          %v935 = vunpack.c.h.b16 %v338
          %v936 = vunpack.c.l.b16 %v339
          %v937 = vunpack.c.h.b16 %v339
          %v938 = vunpack.c.l.b16 %v340
          %v939 = vunpack.c.h.b16 %v340
          %v940 = vunpack.c.l.b16 %v341
          %v941 = vunpack.c.h.b16 %v341
          %v942 = vunpack.c.l.b16 %v342
          %v943 = vunpack.c.h.b16 %v342
          %v944 = vunpack.c.l.b16 %v343
          %v945 = vunpack.c.h.b16 %v343
          %v946 = vunpack.c.l.b16 %v344
          %v947 = vunpack.c.h.b16 %v344
          %v948 = vunpack.c.l.b16 %v345
          %v949 = vunpack.c.h.b16 %v345
          %v950 = vpack.c.b16 %v826, %v822
          %v951 = vpack.c.b16 %v827, %v823
          %v952 = vpack.c.b16 %v828, %v824
          %v953 = vpack.c.b16 %v829, %v825
          %v954 = vpack.c.b16 %v834, %v830
          %v955 = vpack.c.b16 %v835, %v831
          %v956 = vpack.c.b16 %v836, %v832
          %v957 = vpack.c.b16 %v837, %v833
          %v958 = vpack.c.b16 %v842, %v838
          %v959 = vpack.c.b16 %v843, %v839
          %v960 = vpack.c.b16 %v844, %v840
          %v961 = vpack.c.b16 %v845, %v841
          %v962 = vpack.c.b16 %v850, %v846
          %v963 = vpack.c.b16 %v851, %v847
          %v964 = vpack.c.b16 %v852, %v848
          %v965 = vpack.c.b16 %v853, %v849
          %v966 = vpack.c.b16 %v858, %v854
          %v967 = vpack.c.b16 %v859, %v855
          %v968 = vpack.c.b16 %v860, %v856
          %v969 = vpack.c.b16 %v861, %v857
          %v970 = vpack.c.b16 %v866, %v862
          %v971 = vpack.c.b16 %v867, %v863
          %v972 = vpack.c.b16 %v868, %v864
          %v973 = vpack.c.b16 %v869, %v865
          %v974 = vpack.c.b16 %v874, %v870
          %v975 = vpack.c.b16 %v875, %v871
          %v976 = vpack.c.b16 %v876, %v872
          %v977 = vpack.c.b16 %v877, %v873
          %v978 = vpack.c.b16 %v882, %v878
          %v979 = vpack.c.b16 %v883, %v879
          %v980 = vpack.c.b16 %v884, %v880
          %v981 = vpack.c.b16 %v885, %v881
          %v982 = vpack.c.b16 %v890, %v886
          %v983 = vpack.c.b16 %v891, %v887
          %v984 = vpack.c.b16 %v892, %v888
          %v985 = vpack.c.b16 %v893, %v889
          %v986 = vpack.c.b16 %v898, %v894
          %v987 = vpack.c.b16 %v899, %v895
          %v988 = vpack.c.b16 %v900, %v896
          %v989 = vpack.c.b16 %v901, %v897
          %v990 = vpack.c.b16 %v906, %v902
          %v991 = vpack.c.b16 %v907, %v903
          %v992 = vpack.c.b16 %v908, %v904
          %v993 = vpack.c.b16 %v909, %v905
          %v994 = vpack.c.b16 %v914, %v910
          %v995 = vpack.c.b16 %v915, %v911
          %v996 = vpack.c.b16 %v916, %v912
          %v997 = vpack.c.b16 %v917, %v913
          %v998 = vpack.c.b16 %v922, %v918
          %v999 = vpack.c.b16 %v923, %v919
          %v1000 = vpack.c.b16 %v924, %v920
          %v1001 = vpack.c.b16 %v925, %v921
          %v1002 = vpack.c.b16 %v930, %v926
          %v1003 = vpack.c.b16 %v931, %v927
          %v1004 = vpack.c.b16 %v932, %v928
          %v1005 = vpack.c.b16 %v933, %v929
          %v1006 = vpack.c.b16 %v938, %v934
          %v1007 = vpack.c.b16 %v939, %v935
          %v1008 = vpack.c.b16 %v940, %v936
          %v1009 = vpack.c.b16 %v941, %v937
          %v1010 = vpack.c.b16 %v946, %v942
          %v1011 = vpack.c.b16 %v947, %v943
          %v1012 = vpack.c.b16 %v948, %v944
          %v1013 = vpack.c.b16 %v949, %v945
          %v1462 = vunpack.c.l.b16 %v346
          %v1463 = vunpack.c.h.b16 %v346
          %v1464 = vunpack.c.l.b16 %v347
          %v1465 = vunpack.c.h.b16 %v347
          %v1466 = vunpack.c.l.b16 %v348
          %v1467 = vunpack.c.h.b16 %v348
          %v1468 = vunpack.c.l.b16 %v349
          %v1469 = vunpack.c.h.b16 %v349
          %v1470 = vunpack.c.l.b16 %v350
          %v1471 = vunpack.c.h.b16 %v350
          %v1472 = vunpack.c.l.b16 %v351
          %v1473 = vunpack.c.h.b16 %v351
          %v1474 = vunpack.c.l.b16 %v352
          %v1475 = vunpack.c.h.b16 %v352
          %v1476 = vunpack.c.l.b16 %v353
          %v1477 = vunpack.c.h.b16 %v353
          %v1478 = vunpack.c.l.b16 %v354
          %v1479 = vunpack.c.h.b16 %v354
          %v1480 = vunpack.c.l.b16 %v355
          %v1481 = vunpack.c.h.b16 %v355
          %v1482 = vunpack.c.l.b16 %v356
          %v1483 = vunpack.c.h.b16 %v356
          %v1484 = vunpack.c.l.b16 %v357
          %v1485 = vunpack.c.h.b16 %v357
          %v1486 = vunpack.c.l.b16 %v358
          %v1487 = vunpack.c.h.b16 %v358
          %v1488 = vunpack.c.l.b16 %v359
          %v1489 = vunpack.c.h.b16 %v359
          %v1490 = vunpack.c.l.b16 %v360
          %v1491 = vunpack.c.h.b16 %v360
          %v1492 = vunpack.c.l.b16 %v361
          %v1493 = vunpack.c.h.b16 %v361
          %v1494 = vunpack.c.l.b16 %v362
          %v1495 = vunpack.c.h.b16 %v362
          %v1496 = vunpack.c.l.b16 %v363
          %v1497 = vunpack.c.h.b16 %v363
          %v1498 = vunpack.c.l.b16 %v364
          %v1499 = vunpack.c.h.b16 %v364
          %v1500 = vunpack.c.l.b16 %v365
          %v1501 = vunpack.c.h.b16 %v365
          %v1502 = vunpack.c.l.b16 %v366
          %v1503 = vunpack.c.h.b16 %v366
          %v1504 = vunpack.c.l.b16 %v367
          %v1505 = vunpack.c.h.b16 %v367
          %v1506 = vunpack.c.l.b16 %v368
          %v1507 = vunpack.c.h.b16 %v368
          %v1508 = vunpack.c.l.b16 %v369
          %v1509 = vunpack.c.h.b16 %v369
          %v1510 = vunpack.c.l.b16 %v370
          %v1511 = vunpack.c.h.b16 %v370
          %v1512 = vunpack.c.l.b16 %v371
          %v1513 = vunpack.c.h.b16 %v371
          %v1514 = vunpack.c.l.b16 %v372
          %v1515 = vunpack.c.h.b16 %v372
          %v1516 = vunpack.c.l.b16 %v373
          %v1517 = vunpack.c.h.b16 %v373
          %v1518 = vunpack.c.l.b16 %v374
          %v1519 = vunpack.c.h.b16 %v374
          %v1520 = vunpack.c.l.b16 %v375
          %v1521 = vunpack.c.h.b16 %v375
          %v1522 = vunpack.c.l.b16 %v376
          %v1523 = vunpack.c.h.b16 %v376
          %v1524 = vunpack.c.l.b16 %v377
          %v1525 = vunpack.c.h.b16 %v377
          %v1526 = vunpack.c.l.b16 %v378
          %v1527 = vunpack.c.h.b16 %v378
          %v1528 = vunpack.c.l.b16 %v379
          %v1529 = vunpack.c.h.b16 %v379
          %v1530 = vunpack.c.l.b16 %v380
          %v1531 = vunpack.c.h.b16 %v380
          %v1532 = vunpack.c.l.b16 %v381
          %v1533 = vunpack.c.h.b16 %v381
          %v1534 = vunpack.c.l.b16 %v382
          %v1535 = vunpack.c.h.b16 %v382
          %v1536 = vunpack.c.l.b16 %v383
          %v1537 = vunpack.c.h.b16 %v383
          %v1538 = vunpack.c.l.b16 %v384
          %v1539 = vunpack.c.h.b16 %v384
          %v1540 = vunpack.c.l.b16 %v385
          %v1541 = vunpack.c.h.b16 %v385
          %v1542 = vunpack.c.l.b16 %v386
          %v1543 = vunpack.c.h.b16 %v386
          %v1544 = vunpack.c.l.b16 %v387
          %v1545 = vunpack.c.h.b16 %v387
          %v1546 = vunpack.c.l.b16 %v388
          %v1547 = vunpack.c.h.b16 %v388
          %v1548 = vunpack.c.l.b16 %v389
          %v1549 = vunpack.c.h.b16 %v389
          %v1550 = vunpack.c.l.b16 %v390
          %v1551 = vunpack.c.h.b16 %v390
          %v1552 = vunpack.c.l.b16 %v391
          %v1553 = vunpack.c.h.b16 %v391
          %v1554 = vunpack.c.l.b16 %v392
          %v1555 = vunpack.c.h.b16 %v392
          %v1556 = vunpack.c.l.b16 %v393
          %v1557 = vunpack.c.h.b16 %v393
          %v1558 = vunpack.c.l.b16 %v394
          %v1559 = vunpack.c.h.b16 %v394
          %v1560 = vunpack.c.l.b16 %v395
          %v1561 = vunpack.c.h.b16 %v395
          %v1562 = vunpack.c.l.b16 %v396
          %v1563 = vunpack.c.h.b16 %v396
          %v1564 = vunpack.c.l.b16 %v397
          %v1565 = vunpack.c.h.b16 %v397
          %v1566 = vunpack.c.l.b16 %v398
          %v1567 = vunpack.c.h.b16 %v398
          %v1568 = vunpack.c.l.b16 %v399
          %v1569 = vunpack.c.h.b16 %v399
          %v1570 = vunpack.c.l.b16 %v400
          %v1571 = vunpack.c.h.b16 %v400
          %v1572 = vunpack.c.l.b16 %v401
          %v1573 = vunpack.c.h.b16 %v401
          %v1574 = vunpack.c.l.b16 %v402
          %v1575 = vunpack.c.h.b16 %v402
          %v1576 = vunpack.c.l.b16 %v403
          %v1577 = vunpack.c.h.b16 %v403
          %v1578 = vunpack.c.l.b16 %v404
          %v1579 = vunpack.c.h.b16 %v404
          %v1580 = vunpack.c.l.b16 %v405
          %v1581 = vunpack.c.h.b16 %v405
          %v1582 = vunpack.c.l.b16 %v406
          %v1583 = vunpack.c.h.b16 %v406
          %v1584 = vunpack.c.l.b16 %v407
          %v1585 = vunpack.c.h.b16 %v407
          %v1586 = vunpack.c.l.b16 %v408
          %v1587 = vunpack.c.h.b16 %v408
          %v1588 = vunpack.c.l.b16 %v409
          %v1589 = vunpack.c.h.b16 %v409
          %v1590 = vunpack.c.l.b16 %v410
          %v1591 = vunpack.c.h.b16 %v410
          %v1592 = vunpack.c.l.b16 %v411
          %v1593 = vunpack.c.h.b16 %v411
          %v1594 = vunpack.c.l.b16 %v412
          %v1595 = vunpack.c.h.b16 %v412
          %v1596 = vunpack.c.l.b16 %v413
          %v1597 = vunpack.c.h.b16 %v413
          %v1598 = vunpack.c.l.b16 %v414
          %v1599 = vunpack.c.h.b16 %v414
          %v1600 = vunpack.c.l.b16 %v415
          %v1601 = vunpack.c.h.b16 %v415
          %v1602 = vunpack.c.l.b16 %v416
          %v1603 = vunpack.c.h.b16 %v416
          %v1604 = vunpack.c.l.b16 %v417
          %v1605 = vunpack.c.h.b16 %v417
          %v1606 = vunpack.c.l.b16 %v418
          %v1607 = vunpack.c.h.b16 %v418
          %v1608 = vunpack.c.l.b16 %v419
          %v1609 = vunpack.c.h.b16 %v419
          %v1610 = vunpack.c.l.b16 %v420
          %v1611 = vunpack.c.h.b16 %v420
          %v1612 = vunpack.c.l.b16 %v421
          %v1613 = vunpack.c.h.b16 %v421
          %v1614 = vunpack.c.l.b16 %v422
          %v1615 = vunpack.c.h.b16 %v422
          %v1616 = vunpack.c.l.b16 %v423
          %v1617 = vunpack.c.h.b16 %v423
          %v1618 = vunpack.c.l.b16 %v424
          %v1619 = vunpack.c.h.b16 %v424
          %v1620 = vunpack.c.l.b16 %v425
          %v1621 = vunpack.c.h.b16 %v425
          %v1622 = vunpack.c.l.b16 %v426
          %v1623 = vunpack.c.h.b16 %v426
          %v1624 = vunpack.c.l.b16 %v427
          %v1625 = vunpack.c.h.b16 %v427
          %v1626 = vunpack.c.l.b16 %v428
          %v1627 = vunpack.c.h.b16 %v428
          %v1628 = vunpack.c.l.b16 %v429
          %v1629 = vunpack.c.h.b16 %v429
          %v1630 = vunpack.c.l.b16 %v430
          %v1631 = vunpack.c.h.b16 %v430
          %v1632 = vunpack.c.l.b16 %v431
          %v1633 = vunpack.c.h.b16 %v431
          %v1634 = vunpack.c.l.b16 %v432
          %v1635 = vunpack.c.h.b16 %v432
          %v1636 = vunpack.c.l.b16 %v433
          %v1637 = vunpack.c.h.b16 %v433
          %v1638 = vunpack.c.l.b16 %v434
          %v1639 = vunpack.c.h.b16 %v434
          %v1640 = vunpack.c.l.b16 %v435
          %v1641 = vunpack.c.h.b16 %v435
          %v1642 = vunpack.c.l.b16 %v436
          %v1643 = vunpack.c.h.b16 %v436
          %v1644 = vunpack.c.l.b16 %v437
          %v1645 = vunpack.c.h.b16 %v437
          %v1646 = vunpack.c.l.b16 %v438
          %v1647 = vunpack.c.h.b16 %v438
          %v1648 = vunpack.c.l.b16 %v439
          %v1649 = vunpack.c.h.b16 %v439
          %v1650 = vunpack.c.l.b16 %v440
          %v1651 = vunpack.c.h.b16 %v440
          %v1652 = vunpack.c.l.b16 %v441
          %v1653 = vunpack.c.h.b16 %v441
          %v1654 = vunpack.c.l.b16 %v442
          %v1655 = vunpack.c.h.b16 %v442
          %v1656 = vunpack.c.l.b16 %v443
          %v1657 = vunpack.c.h.b16 %v443
          %v1658 = vunpack.c.l.b16 %v444
          %v1659 = vunpack.c.h.b16 %v444
          %v1660 = vunpack.c.l.b16 %v445
          %v1661 = vunpack.c.h.b16 %v445
          %v1662 = vunpack.c.l.b16 %v446
          %v1663 = vunpack.c.h.b16 %v446
          %v1664 = vunpack.c.l.b16 %v447
          %v1665 = vunpack.c.h.b16 %v447
          %v1666 = vunpack.c.l.b16 %v448
          %v1667 = vunpack.c.h.b16 %v448
          %v1668 = vunpack.c.l.b16 %v449
          %v1669 = vunpack.c.h.b16 %v449
          %v1670 = vunpack.c.l.b16 %v450
          %v1671 = vunpack.c.h.b16 %v450
          %v1672 = vunpack.c.l.b16 %v451
          %v1673 = vunpack.c.h.b16 %v451
          %v1674 = vunpack.c.l.b16 %v452
          %v1675 = vunpack.c.h.b16 %v452
          %v1676 = vunpack.c.l.b16 %v453
          %v1677 = vunpack.c.h.b16 %v453
          %v1678 = vunpack.c.l.b16 %v454
          %v1679 = vunpack.c.h.b16 %v454
          %v1680 = vunpack.c.l.b16 %v455
          %v1681 = vunpack.c.h.b16 %v455
          %v1682 = vunpack.c.l.b16 %v456
          %v1683 = vunpack.c.h.b16 %v456
          %v1684 = vunpack.c.l.b16 %v457
          %v1685 = vunpack.c.h.b16 %v457
          %v1686 = vunpack.c.l.b16 %v458
          %v1687 = vunpack.c.h.b16 %v458
          %v1688 = vunpack.c.l.b16 %v459
          %v1689 = vunpack.c.h.b16 %v459
          %v1690 = vunpack.c.l.b16 %v460
          %v1691 = vunpack.c.h.b16 %v460
          %v1692 = vunpack.c.l.b16 %v461
          %v1693 = vunpack.c.h.b16 %v461
          %v1694 = vunpack.c.l.b16 %v462
          %v1695 = vunpack.c.h.b16 %v462
          %v1696 = vunpack.c.l.b16 %v463
          %v1697 = vunpack.c.h.b16 %v463
          %v1698 = vunpack.c.l.b16 %v464
          %v1699 = vunpack.c.h.b16 %v464
          %v1700 = vunpack.c.l.b16 %v465
          %v1701 = vunpack.c.h.b16 %v465
          %v1702 = vunpack.c.l.b16 %v466
          %v1703 = vunpack.c.h.b16 %v466
          %v1704 = vunpack.c.l.b16 %v467
          %v1705 = vunpack.c.h.b16 %v467
          %v1706 = vunpack.c.l.b16 %v468
          %v1707 = vunpack.c.h.b16 %v468
          %v1708 = vunpack.c.l.b16 %v469
          %v1709 = vunpack.c.h.b16 %v469
          %v1710 = vunpack.c.l.b16 %v470
          %v1711 = vunpack.c.h.b16 %v470
          %v1712 = vunpack.c.l.b16 %v471
          %v1713 = vunpack.c.h.b16 %v471
          %v1714 = vunpack.c.l.b16 %v472
          %v1715 = vunpack.c.h.b16 %v472
          %v1716 = vunpack.c.l.b16 %v473
          %v1717 = vunpack.c.h.b16 %v473
          %v1718 = vunpack.c.l.b16 %v474
          %v1719 = vunpack.c.h.b16 %v474
          %v1720 = vunpack.c.l.b16 %v475
          %v1721 = vunpack.c.h.b16 %v475
          %v1722 = vunpack.c.l.b16 %v476
          %v1723 = vunpack.c.h.b16 %v476
          %v1724 = vunpack.c.l.b16 %v477
          %v1725 = vunpack.c.h.b16 %v477
          %v1726 = vunpack.c.l.b16 %v478
          %v1727 = vunpack.c.h.b16 %v478
          %v1728 = vunpack.c.l.b16 %v479
          %v1729 = vunpack.c.h.b16 %v479
          %v1730 = vunpack.c.l.b16 %v480
          %v1731 = vunpack.c.h.b16 %v480
          %v1732 = vunpack.c.l.b16 %v481
          %v1733 = vunpack.c.h.b16 %v481
          %v1734 = vunpack.c.l.b16 %v482
          %v1735 = vunpack.c.h.b16 %v482
          %v1736 = vunpack.c.l.b16 %v483
          %v1737 = vunpack.c.h.b16 %v483
          %v1738 = vunpack.c.l.b16 %v484
          %v1739 = vunpack.c.h.b16 %v484
          %v1740 = vunpack.c.l.b16 %v485
          %v1741 = vunpack.c.h.b16 %v485
          %v1742 = vunpack.c.l.b16 %v486
          %v1743 = vunpack.c.h.b16 %v486
          %v1744 = vunpack.c.l.b16 %v487
          %v1745 = vunpack.c.h.b16 %v487
          %v1746 = vunpack.c.l.b16 %v488
          %v1747 = vunpack.c.h.b16 %v488
          %v1748 = vunpack.c.l.b16 %v489
          %v1749 = vunpack.c.h.b16 %v489
          %v1750 = vunpack.c.l.b16 %v490
          %v1751 = vunpack.c.h.b16 %v490
          %v1752 = vunpack.c.l.b16 %v491
          %v1753 = vunpack.c.h.b16 %v491
          %v1754 = vunpack.c.l.b16 %v492
          %v1755 = vunpack.c.h.b16 %v492
          %v1756 = vunpack.c.l.b16 %v493
          %v1757 = vunpack.c.h.b16 %v493
          %v1758 = vunpack.c.l.b16 %v494
          %v1759 = vunpack.c.h.b16 %v494
          %v1760 = vunpack.c.l.b16 %v495
          %v1761 = vunpack.c.h.b16 %v495
          %v1762 = vunpack.c.l.b16 %v496
          %v1763 = vunpack.c.h.b16 %v496
          %v1764 = vunpack.c.l.b16 %v497
          %v1765 = vunpack.c.h.b16 %v497
          %v1766 = vunpack.c.l.b16 %v498
          %v1767 = vunpack.c.h.b16 %v498
          %v1768 = vunpack.c.l.b16 %v499
          %v1769 = vunpack.c.h.b16 %v499
          %v1770 = vunpack.c.l.b16 %v500
          %v1771 = vunpack.c.h.b16 %v500
          %v1772 = vunpack.c.l.b16 %v501
          %v1773 = vunpack.c.h.b16 %v501
          %v1774 = vunpack.c.l.b16 %v502
          %v1775 = vunpack.c.h.b16 %v502
          %v1776 = vunpack.c.l.b16 %v503
          %v1777 = vunpack.c.h.b16 %v503
          %v1778 = vunpack.c.l.b16 %v504
          %v1779 = vunpack.c.h.b16 %v504
          %v1780 = vunpack.c.l.b16 %v505
          %v1781 = vunpack.c.h.b16 %v505
          %v1782 = vunpack.c.l.b16 %v506
          %v1783 = vunpack.c.h.b16 %v506
          %v1784 = vunpack.c.l.b16 %v507
          %v1785 = vunpack.c.h.b16 %v507
          %v1786 = vunpack.c.l.b16 %v508
          %v1787 = vunpack.c.h.b16 %v508
          %v1788 = vunpack.c.l.b16 %v509
          %v1789 = vunpack.c.h.b16 %v509
          %v1790 = vunpack.c.l.b16 %v510
          %v1791 = vunpack.c.h.b16 %v510
          %v1792 = vunpack.c.l.b16 %v511
          %v1793 = vunpack.c.h.b16 %v511
          %v1794 = vunpack.c.l.b16 %v512
          %v1795 = vunpack.c.h.b16 %v512
          %v1796 = vunpack.c.l.b16 %v513
          %v1797 = vunpack.c.h.b16 %v513
          %v1798 = vunpack.c.l.b16 %v514
          %v1799 = vunpack.c.h.b16 %v514
          %v1800 = vunpack.c.l.b16 %v515
          %v1801 = vunpack.c.h.b16 %v515
          %v1802 = vunpack.c.l.b16 %v516
          %v1803 = vunpack.c.h.b16 %v516
          %v1804 = vunpack.c.l.b16 %v517
          %v1805 = vunpack.c.h.b16 %v517
          %v1806 = vunpack.c.l.b16 %v518
          %v1807 = vunpack.c.h.b16 %v518
          %v1808 = vunpack.c.l.b16 %v519
          %v1809 = vunpack.c.h.b16 %v519
          %v1810 = vunpack.c.l.b16 %v520
          %v1811 = vunpack.c.h.b16 %v520
          %v1812 = vunpack.c.l.b16 %v521
          %v1813 = vunpack.c.h.b16 %v521
          %v1814 = vunpack.c.l.b16 %v522
          %v1815 = vunpack.c.h.b16 %v522
          %v1816 = vunpack.c.l.b16 %v523
          %v1817 = vunpack.c.h.b16 %v523
          %v1818 = vunpack.c.l.b16 %v524
          %v1819 = vunpack.c.h.b16 %v524
          %v1820 = vunpack.c.l.b16 %v525
          %v1821 = vunpack.c.h.b16 %v525
          %v1822 = vunpack.c.l.b16 %v526
          %v1823 = vunpack.c.h.b16 %v526
          %v1824 = vunpack.c.l.b16 %v527
          %v1825 = vunpack.c.h.b16 %v527
          %v1826 = vunpack.c.l.b16 %v528
          %v1827 = vunpack.c.h.b16 %v528
          %v1828 = vunpack.c.l.b16 %v529
          %v1829 = vunpack.c.h.b16 %v529
          %v1830 = vunpack.c.l.b16 %v530
          %v1831 = vunpack.c.h.b16 %v530
          %v1832 = vunpack.c.l.b16 %v531
          %v1833 = vunpack.c.h.b16 %v531
          %v1834 = vunpack.c.l.b16 %v532
          %v1835 = vunpack.c.h.b16 %v532
          %v1836 = vunpack.c.l.b16 %v533
          %v1837 = vunpack.c.h.b16 %v533
          %v1838 = vunpack.c.l.b16 %v534
          %v1839 = vunpack.c.h.b16 %v534
          %v1840 = vunpack.c.l.b16 %v535
          %v1841 = vunpack.c.h.b16 %v535
          %v1842 = vunpack.c.l.b16 %v536
          %v1843 = vunpack.c.h.b16 %v536
          %v1844 = vunpack.c.l.b16 %v537
          %v1845 = vunpack.c.h.b16 %v537
          %v1846 = vunpack.c.l.b16 %v538
          %v1847 = vunpack.c.h.b16 %v538
          %v1848 = vunpack.c.l.b16 %v539
          %v1849 = vunpack.c.h.b16 %v539
          %v1850 = vunpack.c.l.b16 %v540
          %v1851 = vunpack.c.h.b16 %v540
          %v1852 = vunpack.c.l.b16 %v541
          %v1853 = vunpack.c.h.b16 %v541
          %v1854 = vunpack.c.l.b16 %v542
          %v1855 = vunpack.c.h.b16 %v542
          %v1856 = vunpack.c.l.b16 %v543
          %v1857 = vunpack.c.h.b16 %v543
          %v1858 = vunpack.c.l.b16 %v544
          %v1859 = vunpack.c.h.b16 %v544
          %v1860 = vunpack.c.l.b16 %v545
          %v1861 = vunpack.c.h.b16 %v545
          %v1862 = vunpack.c.l.b16 %v546
          %v1863 = vunpack.c.h.b16 %v546
          %v1864 = vunpack.c.l.b16 %v547
          %v1865 = vunpack.c.h.b16 %v547
          %v1866 = vunpack.c.l.b16 %v548
          %v1867 = vunpack.c.h.b16 %v548
          %v1868 = vunpack.c.l.b16 %v549
          %v1869 = vunpack.c.h.b16 %v549
          %v1870 = vunpack.c.l.b16 %v550
          %v1871 = vunpack.c.h.b16 %v550
          %v1872 = vunpack.c.l.b16 %v551
          %v1873 = vunpack.c.h.b16 %v551
          %v1874 = vunpack.c.l.b16 %v552
          %v1875 = vunpack.c.h.b16 %v552
          %v1876 = vunpack.c.l.b16 %v553
          %v1877 = vunpack.c.h.b16 %v553
          %v1878 = vunpack.c.l.b16 %v554
          %v1879 = vunpack.c.h.b16 %v554
          %v1880 = vunpack.c.l.b16 %v555
          %v1881 = vunpack.c.h.b16 %v555
          %v1882 = vunpack.c.l.b16 %v556
          %v1883 = vunpack.c.h.b16 %v556
          %v1884 = vunpack.c.l.b16 %v557
          %v1885 = vunpack.c.h.b16 %v557
          %v1886 = vunpack.c.l.b16 %v558
          %v1887 = vunpack.c.h.b16 %v558
          %v1888 = vunpack.c.l.b16 %v559
          %v1889 = vunpack.c.h.b16 %v559
          %v1890 = vunpack.c.l.b16 %v560
          %v1891 = vunpack.c.h.b16 %v560
          %v1892 = vunpack.c.l.b16 %v561
          %v1893 = vunpack.c.h.b16 %v561
          %v1894 = vunpack.c.l.b16 %v562
          %v1895 = vunpack.c.h.b16 %v562
          %v1896 = vunpack.c.l.b16 %v563
          %v1897 = vunpack.c.h.b16 %v563
          %v1898 = vunpack.c.l.b16 %v564
          %v1899 = vunpack.c.h.b16 %v564
          %v1900 = vunpack.c.l.b16 %v565
          %v1901 = vunpack.c.h.b16 %v565
          %v1902 = vunpack.c.l.b16 %v566
          %v1903 = vunpack.c.h.b16 %v566
          %v1904 = vunpack.c.l.b16 %v567
          %v1905 = vunpack.c.h.b16 %v567
          %v1906 = vunpack.c.l.b16 %v568
          %v1907 = vunpack.c.h.b16 %v568
          %v1908 = vunpack.c.l.b16 %v569
          %v1909 = vunpack.c.h.b16 %v569
          %v1910 = vunpack.c.l.b16 %v570
          %v1911 = vunpack.c.h.b16 %v570
          %v1912 = vunpack.c.l.b16 %v571
          %v1913 = vunpack.c.h.b16 %v571
          %v1914 = vunpack.c.l.b16 %v572
          %v1915 = vunpack.c.h.b16 %v572
          %v1916 = vunpack.c.l.b16 %v573
          %v1917 = vunpack.c.h.b16 %v573
          %v1918 = vunpack.c.l.b16 %v574
          %v1919 = vunpack.c.h.b16 %v574
          %v1920 = vunpack.c.l.b16 %v575
          %v1921 = vunpack.c.h.b16 %v575
          %v1922 = vunpack.c.l.b16 %v576
          %v1923 = vunpack.c.h.b16 %v576
          %v1924 = vunpack.c.l.b16 %v577
          %v1925 = vunpack.c.h.b16 %v577
          %v1926 = vunpack.c.l.b16 %v578
          %v1927 = vunpack.c.h.b16 %v578
          %v1928 = vunpack.c.l.b16 %v579
          %v1929 = vunpack.c.h.b16 %v579
          %v1930 = vunpack.c.l.b16 %v580
          %v1931 = vunpack.c.h.b16 %v580
          %v1932 = vunpack.c.l.b16 %v581
          %v1933 = vunpack.c.h.b16 %v581
          %v1934 = vunpack.c.l.b16 %v582
          %v1935 = vunpack.c.h.b16 %v582
          %v1936 = vunpack.c.l.b16 %v583
          %v1937 = vunpack.c.h.b16 %v583
          %v1938 = vunpack.c.l.b16 %v584
          %v1939 = vunpack.c.h.b16 %v584
          %v1940 = vunpack.c.l.b16 %v585
          %v1941 = vunpack.c.h.b16 %v585
          %v1942 = vunpack.c.l.b16 %v586
          %v1943 = vunpack.c.h.b16 %v586
          %v1944 = vunpack.c.l.b16 %v587
          %v1945 = vunpack.c.h.b16 %v587
          %v1946 = vunpack.c.l.b16 %v588
          %v1947 = vunpack.c.h.b16 %v588
          %v1948 = vunpack.c.l.b16 %v589
          %v1949 = vunpack.c.h.b16 %v589
          %v1950 = vunpack.c.l.b16 %v590
          %v1951 = vunpack.c.h.b16 %v590
          %v1952 = vunpack.c.l.b16 %v591
          %v1953 = vunpack.c.h.b16 %v591
          %v1954 = vunpack.c.l.b16 %v592
          %v1955 = vunpack.c.h.b16 %v592
          %v1956 = vunpack.c.l.b16 %v593
          %v1957 = vunpack.c.h.b16 %v593
          %v1958 = vunpack.c.l.b16 %v594
          %v1959 = vunpack.c.h.b16 %v594
          %v1960 = vunpack.c.l.b16 %v595
          %v1961 = vunpack.c.h.b16 %v595
          %v1962 = vunpack.c.l.b16 %v596
          %v1963 = vunpack.c.h.b16 %v596
          %v1964 = vunpack.c.l.b16 %v597
          %v1965 = vunpack.c.h.b16 %v597
          %v1966 = vunpack.c.l.b16 %v598
          %v1967 = vunpack.c.h.b16 %v598
          %v1968 = vunpack.c.l.b16 %v599
          %v1969 = vunpack.c.h.b16 %v599
          %v1970 = vunpack.c.l.b16 %v600
          %v1971 = vunpack.c.h.b16 %v600
          %v1972 = vunpack.c.l.b16 %v601
          %v1973 = vunpack.c.h.b16 %v601
          %v1974 = vunpack.c.l.b16 %v602
          %v1975 = vunpack.c.h.b16 %v602
          %v1976 = vunpack.c.l.b16 %v603
          %v1977 = vunpack.c.h.b16 %v603
          %v1978 = vunpack.c.l.b16 %v604
          %v1979 = vunpack.c.h.b16 %v604
          %v1980 = vunpack.c.l.b16 %v605
          %v1981 = vunpack.c.h.b16 %v605
          %v1982 = vunpack.c.l.b16 %v606
          %v1983 = vunpack.c.h.b16 %v606
          %v1984 = vunpack.c.l.b16 %v607
          %v1985 = vunpack.c.h.b16 %v607
          %v1986 = vunpack.c.l.b16 %v608
          %v1987 = vunpack.c.h.b16 %v608
          %v1988 = vunpack.c.l.b16 %v609
          %v1989 = vunpack.c.h.b16 %v609
          %v1990 = vunpack.c.l.b16 %v610
          %v1991 = vunpack.c.h.b16 %v610
          %v1992 = vunpack.c.l.b16 %v611
          %v1993 = vunpack.c.h.b16 %v611
          %v1994 = vunpack.c.l.b16 %v612
          %v1995 = vunpack.c.h.b16 %v612
          %v1996 = vunpack.c.l.b16 %v613
          %v1997 = vunpack.c.h.b16 %v613
          %v1998 = vunpack.c.l.b16 %v614
          %v1999 = vunpack.c.h.b16 %v614
          %v2000 = vunpack.c.l.b16 %v615
          %v2001 = vunpack.c.h.b16 %v615
          %v2002 = vunpack.c.l.b16 %v616
          %v2003 = vunpack.c.h.b16 %v616
          %v2004 = vunpack.c.l.b16 %v617
          %v2005 = vunpack.c.h.b16 %v617
          %v2006 = vunpack.c.l.b16 %v618
          %v2007 = vunpack.c.h.b16 %v618
          %v2008 = vunpack.c.l.b16 %v619
          %v2009 = vunpack.c.h.b16 %v619
          %v2010 = vunpack.c.l.b16 %v620
          %v2011 = vunpack.c.h.b16 %v620
          %v2012 = vunpack.c.l.b16 %v621
          %v2013 = vunpack.c.h.b16 %v621
          %v2014 = vunpack.c.l.b16 %v622
          %v2015 = vunpack.c.h.b16 %v622
          %v2016 = vunpack.c.l.b16 %v623
          %v2017 = vunpack.c.h.b16 %v623
          %v2018 = vunpack.c.l.b16 %v624
          %v2019 = vunpack.c.h.b16 %v624
          %v2020 = vunpack.c.l.b16 %v625
          %v2021 = vunpack.c.h.b16 %v625
          %v2022 = vunpack.c.l.b16 %v626
          %v2023 = vunpack.c.h.b16 %v626
          %v2024 = vunpack.c.l.b16 %v627
          %v2025 = vunpack.c.h.b16 %v627
          %v2026 = vunpack.c.l.b16 %v628
          %v2027 = vunpack.c.h.b16 %v628
          %v2028 = vunpack.c.l.b16 %v629
          %v2029 = vunpack.c.h.b16 %v629
          %v2030 = vunpack.c.l.b16 %v630
          %v2031 = vunpack.c.h.b16 %v630
          %v2032 = vunpack.c.l.b16 %v631
          %v2033 = vunpack.c.h.b16 %v631
          %v2034 = vunpack.c.l.b16 %v632
          %v2035 = vunpack.c.h.b16 %v632
          %v2036 = vunpack.c.l.b16 %v633
          %v2037 = vunpack.c.h.b16 %v633
          %v2038 = vunpack.c.l.b16 %v634
          %v2039 = vunpack.c.h.b16 %v634
          %v2040 = vunpack.c.l.b16 %v635
          %v2041 = vunpack.c.h.b16 %v635
          %v2042 = vunpack.c.l.b16 %v636
          %v2043 = vunpack.c.h.b16 %v636
          %v2044 = vunpack.c.l.b16 %v637
          %v2045 = vunpack.c.h.b16 %v637
          %v2046 = vunpack.c.l.b16 %v638
          %v2047 = vunpack.c.h.b16 %v638
          %v2048 = vunpack.c.l.b16 %v639
          %v2049 = vunpack.c.h.b16 %v639
          %v2050 = vunpack.c.l.b16 %v640
          %v2051 = vunpack.c.h.b16 %v640
          %v2052 = vunpack.c.l.b16 %v641
          %v2053 = vunpack.c.h.b16 %v641
          %v2054 = vunpack.c.l.b16 %v642
          %v2055 = vunpack.c.h.b16 %v642
          %v2056 = vunpack.c.l.b16 %v643
          %v2057 = vunpack.c.h.b16 %v643
          %v2058 = vunpack.c.l.b16 %v644
          %v2059 = vunpack.c.h.b16 %v644
          %v2060 = vunpack.c.l.b16 %v645
          %v2061 = vunpack.c.h.b16 %v645
          %v2062 = vunpack.c.l.b16 %v646
          %v2063 = vunpack.c.h.b16 %v646
          %v2064 = vunpack.c.l.b16 %v647
          %v2065 = vunpack.c.h.b16 %v647
          %v2066 = vunpack.c.l.b16 %v648
          %v2067 = vunpack.c.h.b16 %v648
          %v2068 = vunpack.c.l.b16 %v649
          %v2069 = vunpack.c.h.b16 %v649
          %v2070 = vunpack.c.l.b16 %v650
          %v2071 = vunpack.c.h.b16 %v650
          %v2072 = vunpack.c.l.b16 %v651
          %v2073 = vunpack.c.h.b16 %v651
          %v2074 = vunpack.c.l.b16 %v652
          %v2075 = vunpack.c.h.b16 %v652
          %v2076 = vunpack.c.l.b16 %v653
          %v2077 = vunpack.c.h.b16 %v653
          %v2078 = vunpack.c.l.b16 %v654
          %v2079 = vunpack.c.h.b16 %v654
          %v2080 = vunpack.c.l.b16 %v655
          %v2081 = vunpack.c.h.b16 %v655
          %v2082 = vunpack.c.l.b16 %v656
          %v2083 = vunpack.c.h.b16 %v656
          %v2084 = vunpack.c.l.b16 %v657
          %v2085 = vunpack.c.h.b16 %v657
          %v2086 = vunpack.c.l.b16 %v658
          %v2087 = vunpack.c.h.b16 %v658
          %v2088 = vunpack.c.l.b16 %v659
          %v2089 = vunpack.c.h.b16 %v659
          %v2090 = vunpack.c.l.b16 %v660
          %v2091 = vunpack.c.h.b16 %v660
          %v2092 = vunpack.c.l.b16 %v661
          %v2093 = vunpack.c.h.b16 %v661
          %v2094 = vunpack.c.l.b16 %v662
          %v2095 = vunpack.c.h.b16 %v662
          %v2096 = vunpack.c.l.b16 %v663
          %v2097 = vunpack.c.h.b16 %v663
          %v2098 = vunpack.c.l.b16 %v664
          %v2099 = vunpack.c.h.b16 %v664
          %v2100 = vunpack.c.l.b16 %v665
          %v2101 = vunpack.c.h.b16 %v665
          %v2102 = vunpack.c.l.b16 %v666
          %v2103 = vunpack.c.h.b16 %v666
          %v2104 = vunpack.c.l.b16 %v667
          %v2105 = vunpack.c.h.b16 %v667
          %v2106 = vunpack.c.l.b16 %v668
          %v2107 = vunpack.c.h.b16 %v668
          %v2108 = vunpack.c.l.b16 %v669
          %v2109 = vunpack.c.h.b16 %v669
          %v2110 = vunpack.c.l.b16 %v670
          %v2111 = vunpack.c.h.b16 %v670
          %v2112 = vunpack.c.l.b16 %v671
          %v2113 = vunpack.c.h.b16 %v671
          %v2114 = vunpack.c.l.b16 %v672
          %v2115 = vunpack.c.h.b16 %v672
          %v2116 = vunpack.c.l.b16 %v673
          %v2117 = vunpack.c.h.b16 %v673
          %v2118 = vunpack.c.l.b16 %v674
          %v2119 = vunpack.c.h.b16 %v674
          %v2120 = vunpack.c.l.b16 %v675
          %v2121 = vunpack.c.h.b16 %v675
          %v2122 = vunpack.c.l.b16 %v676
          %v2123 = vunpack.c.h.b16 %v676
          %v2124 = vunpack.c.l.b16 %v677
          %v2125 = vunpack.c.h.b16 %v677
          %v2126 = vunpack.c.l.b16 %v678
          %v2127 = vunpack.c.h.b16 %v678
          %v2128 = vunpack.c.l.b16 %v679
          %v2129 = vunpack.c.h.b16 %v679
          %v2130 = vunpack.c.l.b16 %v680
          %v2131 = vunpack.c.h.b16 %v680
          %v2132 = vunpack.c.l.b16 %v681
          %v2133 = vunpack.c.h.b16 %v681
          %v2134 = vunpack.c.l.b16 %v682
          %v2135 = vunpack.c.h.b16 %v682
          %v2136 = vunpack.c.l.b16 %v683
          %v2137 = vunpack.c.h.b16 %v683
          %v2138 = vunpack.c.l.b16 %v684
          %v2139 = vunpack.c.h.b16 %v684
          %v2140 = vunpack.c.l.b16 %v685
          %v2141 = vunpack.c.h.b16 %v685
          %v2142 = vunpack.c.l.b16 %v686
          %v2143 = vunpack.c.h.b16 %v686
          %v2144 = vunpack.c.l.b16 %v687
          %v2145 = vunpack.c.h.b16 %v687
          %v2146 = vunpack.c.l.b16 %v688
          %v2147 = vunpack.c.h.b16 %v688
          %v2148 = vunpack.c.l.b16 %v689
          %v2149 = vunpack.c.h.b16 %v689
          %v2150 = vunpack.c.l.b16 %v690
          %v2151 = vunpack.c.h.b16 %v690
          %v2152 = vunpack.c.l.b16 %v691
          %v2153 = vunpack.c.h.b16 %v691
          %v2154 = vunpack.c.l.b16 %v692
          %v2155 = vunpack.c.h.b16 %v692
          %v2156 = vunpack.c.l.b16 %v693
          %v2157 = vunpack.c.h.b16 %v693
          %v2158 = vunpack.c.l.b16 %v694
          %v2159 = vunpack.c.h.b16 %v694
          %v2160 = vunpack.c.l.b16 %v695
          %v2161 = vunpack.c.h.b16 %v695
          %v2162 = vunpack.c.l.b16 %v696
          %v2163 = vunpack.c.h.b16 %v696
          %v2164 = vunpack.c.l.b16 %v697
          %v2165 = vunpack.c.h.b16 %v697
          %v2166 = vunpack.c.l.b16 %v698
          %v2167 = vunpack.c.h.b16 %v698
          %v2168 = vunpack.c.l.b16 %v699
          %v2169 = vunpack.c.h.b16 %v699
          %v2170 = vunpack.c.l.b16 %v700
          %v2171 = vunpack.c.h.b16 %v700
          %v2172 = vunpack.c.l.b16 %v701
          %v2173 = vunpack.c.h.b16 %v701
          %v2174 = vunpack.c.l.b16 %v702
          %v2175 = vunpack.c.h.b16 %v702
          %v2176 = vunpack.c.l.b16 %v703
          %v2177 = vunpack.c.h.b16 %v703
          %v2178 = vunpack.c.l.b16 %v704
          %v2179 = vunpack.c.h.b16 %v704
          %v2180 = vunpack.c.l.b16 %v705
          %v2181 = vunpack.c.h.b16 %v705
          %v2182 = vunpack.c.l.b16 %v706
          %v2183 = vunpack.c.h.b16 %v706
          %v2184 = vunpack.c.l.b16 %v707
          %v2185 = vunpack.c.h.b16 %v707
          %v2186 = vunpack.c.l.b16 %v708
          %v2187 = vunpack.c.h.b16 %v708
          %v2188 = vunpack.c.l.b16 %v709
          %v2189 = vunpack.c.h.b16 %v709
          %v2190 = vunpack.c.l.b16 %v710
          %v2191 = vunpack.c.h.b16 %v710
          %v2192 = vunpack.c.l.b16 %v711
          %v2193 = vunpack.c.h.b16 %v711
          %v2194 = vunpack.c.l.b16 %v712
          %v2195 = vunpack.c.h.b16 %v712
          %v2196 = vunpack.c.l.b16 %v713
          %v2197 = vunpack.c.h.b16 %v713
          %v2198 = vunpack.c.l.b16 %v714
          %v2199 = vunpack.c.h.b16 %v714
          %v2200 = vunpack.c.l.b16 %v715
          %v2201 = vunpack.c.h.b16 %v715
          %v2202 = vunpack.c.l.b16 %v716
          %v2203 = vunpack.c.h.b16 %v716
          %v2204 = vunpack.c.l.b16 %v717
          %v2205 = vunpack.c.h.b16 %v717
          %v2206 = vunpack.c.l.b16 %v718
          %v2207 = vunpack.c.h.b16 %v718
          %v2208 = vunpack.c.l.b16 %v719
          %v2209 = vunpack.c.h.b16 %v719
          %v2210 = vunpack.c.l.b16 %v720
          %v2211 = vunpack.c.h.b16 %v720
          %v2212 = vunpack.c.l.b16 %v721
          %v2213 = vunpack.c.h.b16 %v721
          %v2214 = vunpack.c.l.b16 %v722
          %v2215 = vunpack.c.h.b16 %v722
          %v2216 = vunpack.c.l.b16 %v723
          %v2217 = vunpack.c.h.b16 %v723
          %v2218 = vunpack.c.l.b16 %v724
          %v2219 = vunpack.c.h.b16 %v724
          %v2220 = vunpack.c.l.b16 %v725
          %v2221 = vunpack.c.h.b16 %v725
          %v2222 = vunpack.c.l.b16 %v726
          %v2223 = vunpack.c.h.b16 %v726
          %v2224 = vunpack.c.l.b16 %v727
          %v2225 = vunpack.c.h.b16 %v727
          %v2226 = vunpack.c.l.b16 %v728
          %v2227 = vunpack.c.h.b16 %v728
          %v2228 = vunpack.c.l.b16 %v729
          %v2229 = vunpack.c.h.b16 %v729
          %v2230 = vpack.c.b16 %v1474, %v1462
          %v2231 = vpack.c.b16 %v1475, %v1463
          %v2232 = vpack.c.b16 %v1476, %v1464
          %v2233 = vpack.c.b16 %v1477, %v1465
          %v2234 = vpack.c.b16 %v1478, %v1466
          %v2235 = vpack.c.b16 %v1479, %v1467
          %v2236 = vpack.c.b16 %v1480, %v1468
          %v2237 = vpack.c.b16 %v1481, %v1469
          %v2238 = vpack.c.b16 %v1482, %v1470
          %v2239 = vpack.c.b16 %v1483, %v1471
          %v2240 = vpack.c.b16 %v1484, %v1472
          %v2241 = vpack.c.b16 %v1485, %v1473
          %v2242 = vpack.c.b16 %v1498, %v1486
          %v2243 = vpack.c.b16 %v1499, %v1487
          %v2244 = vpack.c.b16 %v1500, %v1488
          %v2245 = vpack.c.b16 %v1501, %v1489
          %v2246 = vpack.c.b16 %v1502, %v1490
          %v2247 = vpack.c.b16 %v1503, %v1491
          %v2248 = vpack.c.b16 %v1504, %v1492
          %v2249 = vpack.c.b16 %v1505, %v1493
          %v2250 = vpack.c.b16 %v1506, %v1494
          %v2251 = vpack.c.b16 %v1507, %v1495
          %v2252 = vpack.c.b16 %v1508, %v1496
          %v2253 = vpack.c.b16 %v1509, %v1497
          %v2254 = vpack.c.b16 %v1522, %v1510
          %v2255 = vpack.c.b16 %v1523, %v1511
          %v2256 = vpack.c.b16 %v1524, %v1512
          %v2257 = vpack.c.b16 %v1525, %v1513
          %v2258 = vpack.c.b16 %v1526, %v1514
          %v2259 = vpack.c.b16 %v1527, %v1515
          %v2260 = vpack.c.b16 %v1528, %v1516
          %v2261 = vpack.c.b16 %v1529, %v1517
          %v2262 = vpack.c.b16 %v1530, %v1518
          %v2263 = vpack.c.b16 %v1531, %v1519
          %v2264 = vpack.c.b16 %v1532, %v1520
          %v2265 = vpack.c.b16 %v1533, %v1521
          %v2266 = vpack.c.b16 %v1546, %v1534
          %v2267 = vpack.c.b16 %v1547, %v1535
          %v2268 = vpack.c.b16 %v1548, %v1536
          %v2269 = vpack.c.b16 %v1549, %v1537
          %v2270 = vpack.c.b16 %v1550, %v1538
          %v2271 = vpack.c.b16 %v1551, %v1539
          %v2272 = vpack.c.b16 %v1552, %v1540
          %v2273 = vpack.c.b16 %v1553, %v1541
          %v2274 = vpack.c.b16 %v1554, %v1542
          %v2275 = vpack.c.b16 %v1555, %v1543
          %v2276 = vpack.c.b16 %v1556, %v1544
          %v2277 = vpack.c.b16 %v1557, %v1545
          %v2278 = vpack.c.b16 %v1570, %v1558
          %v2279 = vpack.c.b16 %v1571, %v1559
          %v2280 = vpack.c.b16 %v1572, %v1560
          %v2281 = vpack.c.b16 %v1573, %v1561
          %v2282 = vpack.c.b16 %v1574, %v1562
          %v2283 = vpack.c.b16 %v1575, %v1563
          %v2284 = vpack.c.b16 %v1576, %v1564
          %v2285 = vpack.c.b16 %v1577, %v1565
          %v2286 = vpack.c.b16 %v1578, %v1566
          %v2287 = vpack.c.b16 %v1579, %v1567
          %v2288 = vpack.c.b16 %v1580, %v1568
          %v2289 = vpack.c.b16 %v1581, %v1569
          %v2290 = vpack.c.b16 %v1594, %v1582
          %v2291 = vpack.c.b16 %v1595, %v1583
          %v2292 = vpack.c.b16 %v1596, %v1584
          %v2293 = vpack.c.b16 %v1597, %v1585
          %v2294 = vpack.c.b16 %v1598, %v1586
          %v2295 = vpack.c.b16 %v1599, %v1587
          %v2296 = vpack.c.b16 %v1600, %v1588
          %v2297 = vpack.c.b16 %v1601, %v1589
          %v2298 = vpack.c.b16 %v1602, %v1590
          %v2299 = vpack.c.b16 %v1603, %v1591
          %v2300 = vpack.c.b16 %v1604, %v1592
          %v2301 = vpack.c.b16 %v1605, %v1593
          %v2302 = vpack.c.b16 %v1618, %v1606
          %v2303 = vpack.c.b16 %v1619, %v1607
          %v2304 = vpack.c.b16 %v1620, %v1608
          %v2305 = vpack.c.b16 %v1621, %v1609
          %v2306 = vpack.c.b16 %v1622, %v1610
          %v2307 = vpack.c.b16 %v1623, %v1611
          %v2308 = vpack.c.b16 %v1624, %v1612
          %v2309 = vpack.c.b16 %v1625, %v1613
          %v2310 = vpack.c.b16 %v1626, %v1614
          %v2311 = vpack.c.b16 %v1627, %v1615
          %v2312 = vpack.c.b16 %v1628, %v1616
          %v2313 = vpack.c.b16 %v1629, %v1617
          %v2314 = vpack.c.b16 %v1642, %v1630
          %v2315 = vpack.c.b16 %v1643, %v1631
          %v2316 = vpack.c.b16 %v1644, %v1632
          %v2317 = vpack.c.b16 %v1645, %v1633
          %v2318 = vpack.c.b16 %v1646, %v1634
          %v2319 = vpack.c.b16 %v1647, %v1635
          %v2320 = vpack.c.b16 %v1648, %v1636
          %v2321 = vpack.c.b16 %v1649, %v1637
          %v2322 = vpack.c.b16 %v1650, %v1638
          %v2323 = vpack.c.b16 %v1651, %v1639
          %v2324 = vpack.c.b16 %v1652, %v1640
          %v2325 = vpack.c.b16 %v1653, %v1641
          %v2326 = vpack.c.b16 %v1666, %v1654
          %v2327 = vpack.c.b16 %v1667, %v1655
          %v2328 = vpack.c.b16 %v1668, %v1656
          %v2329 = vpack.c.b16 %v1669, %v1657
          %v2330 = vpack.c.b16 %v1670, %v1658
          %v2331 = vpack.c.b16 %v1671, %v1659
          %v2332 = vpack.c.b16 %v1672, %v1660
          %v2333 = vpack.c.b16 %v1673, %v1661
          %v2334 = vpack.c.b16 %v1674, %v1662
          %v2335 = vpack.c.b16 %v1675, %v1663
          %v2336 = vpack.c.b16 %v1676, %v1664
          %v2337 = vpack.c.b16 %v1677, %v1665
          %v2338 = vpack.c.b16 %v1690, %v1678
          %v2339 = vpack.c.b16 %v1691, %v1679
          %v2340 = vpack.c.b16 %v1692, %v1680
          %v2341 = vpack.c.b16 %v1693, %v1681
          %v2342 = vpack.c.b16 %v1694, %v1682
          %v2343 = vpack.c.b16 %v1695, %v1683
          %v2344 = vpack.c.b16 %v1696, %v1684
          %v2345 = vpack.c.b16 %v1697, %v1685
          %v2346 = vpack.c.b16 %v1698, %v1686
          %v2347 = vpack.c.b16 %v1699, %v1687
          %v2348 = vpack.c.b16 %v1700, %v1688
          %v2349 = vpack.c.b16 %v1701, %v1689
          %v2350 = vpack.c.b16 %v1714, %v1702
          %v2351 = vpack.c.b16 %v1715, %v1703
          %v2352 = vpack.c.b16 %v1716, %v1704
          %v2353 = vpack.c.b16 %v1717, %v1705
          %v2354 = vpack.c.b16 %v1718, %v1706
          %v2355 = vpack.c.b16 %v1719, %v1707
          %v2356 = vpack.c.b16 %v1720, %v1708
          %v2357 = vpack.c.b16 %v1721, %v1709
          %v2358 = vpack.c.b16 %v1722, %v1710
          %v2359 = vpack.c.b16 %v1723, %v1711
          %v2360 = vpack.c.b16 %v1724, %v1712
          %v2361 = vpack.c.b16 %v1725, %v1713
          %v2362 = vpack.c.b16 %v1738, %v1726
          %v2363 = vpack.c.b16 %v1739, %v1727
          %v2364 = vpack.c.b16 %v1740, %v1728
          %v2365 = vpack.c.b16 %v1741, %v1729
          %v2366 = vpack.c.b16 %v1742, %v1730
          %v2367 = vpack.c.b16 %v1743, %v1731
          %v2368 = vpack.c.b16 %v1744, %v1732
          %v2369 = vpack.c.b16 %v1745, %v1733
          %v2370 = vpack.c.b16 %v1746, %v1734
          %v2371 = vpack.c.b16 %v1747, %v1735
          %v2372 = vpack.c.b16 %v1748, %v1736
          %v2373 = vpack.c.b16 %v1749, %v1737
          %v2374 = vpack.c.b16 %v1762, %v1750
          %v2375 = vpack.c.b16 %v1763, %v1751
          %v2376 = vpack.c.b16 %v1764, %v1752
          %v2377 = vpack.c.b16 %v1765, %v1753
          %v2378 = vpack.c.b16 %v1766, %v1754
          %v2379 = vpack.c.b16 %v1767, %v1755
          %v2380 = vpack.c.b16 %v1768, %v1756
          %v2381 = vpack.c.b16 %v1769, %v1757
          %v2382 = vpack.c.b16 %v1770, %v1758
          %v2383 = vpack.c.b16 %v1771, %v1759
          %v2384 = vpack.c.b16 %v1772, %v1760
          %v2385 = vpack.c.b16 %v1773, %v1761
          %v2386 = vpack.c.b16 %v1786, %v1774
          %v2387 = vpack.c.b16 %v1787, %v1775
          %v2388 = vpack.c.b16 %v1788, %v1776
          %v2389 = vpack.c.b16 %v1789, %v1777
          %v2390 = vpack.c.b16 %v1790, %v1778
          %v2391 = vpack.c.b16 %v1791, %v1779
          %v2392 = vpack.c.b16 %v1792, %v1780
          %v2393 = vpack.c.b16 %v1793, %v1781
          %v2394 = vpack.c.b16 %v1794, %v1782
          %v2395 = vpack.c.b16 %v1795, %v1783
          %v2396 = vpack.c.b16 %v1796, %v1784
          %v2397 = vpack.c.b16 %v1797, %v1785
          %v2398 = vpack.c.b16 %v1810, %v1798
          %v2399 = vpack.c.b16 %v1811, %v1799
          %v2400 = vpack.c.b16 %v1812, %v1800
          %v2401 = vpack.c.b16 %v1813, %v1801
          %v2402 = vpack.c.b16 %v1814, %v1802
          %v2403 = vpack.c.b16 %v1815, %v1803
          %v2404 = vpack.c.b16 %v1816, %v1804
          %v2405 = vpack.c.b16 %v1817, %v1805
          %v2406 = vpack.c.b16 %v1818, %v1806
          %v2407 = vpack.c.b16 %v1819, %v1807
          %v2408 = vpack.c.b16 %v1820, %v1808
          %v2409 = vpack.c.b16 %v1821, %v1809
          %v2410 = vpack.c.b16 %v1834, %v1822
          %v2411 = vpack.c.b16 %v1835, %v1823
          %v2412 = vpack.c.b16 %v1836, %v1824
          %v2413 = vpack.c.b16 %v1837, %v1825
          %v2414 = vpack.c.b16 %v1838, %v1826
          %v2415 = vpack.c.b16 %v1839, %v1827
          %v2416 = vpack.c.b16 %v1840, %v1828
          %v2417 = vpack.c.b16 %v1841, %v1829
          %v2418 = vpack.c.b16 %v1842, %v1830
          %v2419 = vpack.c.b16 %v1843, %v1831
          %v2420 = vpack.c.b16 %v1844, %v1832
          %v2421 = vpack.c.b16 %v1845, %v1833
          %v2422 = vpack.c.b16 %v1858, %v1846
          %v2423 = vpack.c.b16 %v1859, %v1847
          %v2424 = vpack.c.b16 %v1860, %v1848
          %v2425 = vpack.c.b16 %v1861, %v1849
          %v2426 = vpack.c.b16 %v1862, %v1850
          %v2427 = vpack.c.b16 %v1863, %v1851
          %v2428 = vpack.c.b16 %v1864, %v1852
          %v2429 = vpack.c.b16 %v1865, %v1853
          %v2430 = vpack.c.b16 %v1866, %v1854
          %v2431 = vpack.c.b16 %v1867, %v1855
          %v2432 = vpack.c.b16 %v1868, %v1856
          %v2433 = vpack.c.b16 %v1869, %v1857
          %v2434 = vpack.c.b16 %v1882, %v1870
          %v2435 = vpack.c.b16 %v1883, %v1871
          %v2436 = vpack.c.b16 %v1884, %v1872
          %v2437 = vpack.c.b16 %v1885, %v1873
          %v2438 = vpack.c.b16 %v1886, %v1874
          %v2439 = vpack.c.b16 %v1887, %v1875
          %v2440 = vpack.c.b16 %v1888, %v1876
          %v2441 = vpack.c.b16 %v1889, %v1877
          %v2442 = vpack.c.b16 %v1890, %v1878
          %v2443 = vpack.c.b16 %v1891, %v1879
          %v2444 = vpack.c.b16 %v1892, %v1880
          %v2445 = vpack.c.b16 %v1893, %v1881
          %v2446 = vpack.c.b16 %v1906, %v1894
          %v2447 = vpack.c.b16 %v1907, %v1895
          %v2448 = vpack.c.b16 %v1908, %v1896
          %v2449 = vpack.c.b16 %v1909, %v1897
          %v2450 = vpack.c.b16 %v1910, %v1898
          %v2451 = vpack.c.b16 %v1911, %v1899
          %v2452 = vpack.c.b16 %v1912, %v1900
          %v2453 = vpack.c.b16 %v1913, %v1901
          %v2454 = vpack.c.b16 %v1914, %v1902
          %v2455 = vpack.c.b16 %v1915, %v1903
          %v2456 = vpack.c.b16 %v1916, %v1904
          %v2457 = vpack.c.b16 %v1917, %v1905
          %v2458 = vpack.c.b16 %v1930, %v1918
          %v2459 = vpack.c.b16 %v1931, %v1919
          %v2460 = vpack.c.b16 %v1932, %v1920
          %v2461 = vpack.c.b16 %v1933, %v1921
          %v2462 = vpack.c.b16 %v1934, %v1922
          %v2463 = vpack.c.b16 %v1935, %v1923
          %v2464 = vpack.c.b16 %v1936, %v1924
          %v2465 = vpack.c.b16 %v1937, %v1925
          %v2466 = vpack.c.b16 %v1938, %v1926
          %v2467 = vpack.c.b16 %v1939, %v1927
          %v2468 = vpack.c.b16 %v1940, %v1928
          %v2469 = vpack.c.b16 %v1941, %v1929
          %v2470 = vpack.c.b16 %v1954, %v1942
          %v2471 = vpack.c.b16 %v1955, %v1943
          %v2472 = vpack.c.b16 %v1956, %v1944
          %v2473 = vpack.c.b16 %v1957, %v1945
          %v2474 = vpack.c.b16 %v1958, %v1946
          %v2475 = vpack.c.b16 %v1959, %v1947
          %v2476 = vpack.c.b16 %v1960, %v1948
          %v2477 = vpack.c.b16 %v1961, %v1949
          %v2478 = vpack.c.b16 %v1962, %v1950
          %v2479 = vpack.c.b16 %v1963, %v1951
          %v2480 = vpack.c.b16 %v1964, %v1952
          %v2481 = vpack.c.b16 %v1965, %v1953
          %v2482 = vpack.c.b16 %v1978, %v1966
          %v2483 = vpack.c.b16 %v1979, %v1967
          %v2484 = vpack.c.b16 %v1980, %v1968
          %v2485 = vpack.c.b16 %v1981, %v1969
          %v2486 = vpack.c.b16 %v1982, %v1970
          %v2487 = vpack.c.b16 %v1983, %v1971
          %v2488 = vpack.c.b16 %v1984, %v1972
          %v2489 = vpack.c.b16 %v1985, %v1973
          %v2490 = vpack.c.b16 %v1986, %v1974
          %v2491 = vpack.c.b16 %v1987, %v1975
          %v2492 = vpack.c.b16 %v1988, %v1976
          %v2493 = vpack.c.b16 %v1989, %v1977
          %v2494 = vpack.c.b16 %v2002, %v1990
          %v2495 = vpack.c.b16 %v2003, %v1991
          %v2496 = vpack.c.b16 %v2004, %v1992
          %v2497 = vpack.c.b16 %v2005, %v1993
          %v2498 = vpack.c.b16 %v2006, %v1994
          %v2499 = vpack.c.b16 %v2007, %v1995
          %v2500 = vpack.c.b16 %v2008, %v1996
          %v2501 = vpack.c.b16 %v2009, %v1997
          %v2502 = vpack.c.b16 %v2010, %v1998
          %v2503 = vpack.c.b16 %v2011, %v1999
          %v2504 = vpack.c.b16 %v2012, %v2000
          %v2505 = vpack.c.b16 %v2013, %v2001
          %v2506 = vpack.c.b16 %v2026, %v2014
          %v2507 = vpack.c.b16 %v2027, %v2015
          %v2508 = vpack.c.b16 %v2028, %v2016
          %v2509 = vpack.c.b16 %v2029, %v2017
          %v2510 = vpack.c.b16 %v2030, %v2018
          %v2511 = vpack.c.b16 %v2031, %v2019
          %v2512 = vpack.c.b16 %v2032, %v2020
          %v2513 = vpack.c.b16 %v2033, %v2021
          %v2514 = vpack.c.b16 %v2034, %v2022
          %v2515 = vpack.c.b16 %v2035, %v2023
          %v2516 = vpack.c.b16 %v2036, %v2024
          %v2517 = vpack.c.b16 %v2037, %v2025
          %v2518 = vpack.c.b16 %v2050, %v2038
          %v2519 = vpack.c.b16 %v2051, %v2039
          %v2520 = vpack.c.b16 %v2052, %v2040
          %v2521 = vpack.c.b16 %v2053, %v2041
          %v2522 = vpack.c.b16 %v2054, %v2042
          %v2523 = vpack.c.b16 %v2055, %v2043
          %v2524 = vpack.c.b16 %v2056, %v2044
          %v2525 = vpack.c.b16 %v2057, %v2045
          %v2526 = vpack.c.b16 %v2058, %v2046
          %v2527 = vpack.c.b16 %v2059, %v2047
          %v2528 = vpack.c.b16 %v2060, %v2048
          %v2529 = vpack.c.b16 %v2061, %v2049
          %v2530 = vpack.c.b16 %v2074, %v2062
          %v2531 = vpack.c.b16 %v2075, %v2063
          %v2532 = vpack.c.b16 %v2076, %v2064
          %v2533 = vpack.c.b16 %v2077, %v2065
          %v2534 = vpack.c.b16 %v2078, %v2066
          %v2535 = vpack.c.b16 %v2079, %v2067
          %v2536 = vpack.c.b16 %v2080, %v2068
          %v2537 = vpack.c.b16 %v2081, %v2069
          %v2538 = vpack.c.b16 %v2082, %v2070
          %v2539 = vpack.c.b16 %v2083, %v2071
          %v2540 = vpack.c.b16 %v2084, %v2072
          %v2541 = vpack.c.b16 %v2085, %v2073
          %v2542 = vpack.c.b16 %v2098, %v2086
          %v2543 = vpack.c.b16 %v2099, %v2087
          %v2544 = vpack.c.b16 %v2100, %v2088
          %v2545 = vpack.c.b16 %v2101, %v2089
          %v2546 = vpack.c.b16 %v2102, %v2090
          %v2547 = vpack.c.b16 %v2103, %v2091
          %v2548 = vpack.c.b16 %v2104, %v2092
          %v2549 = vpack.c.b16 %v2105, %v2093
          %v2550 = vpack.c.b16 %v2106, %v2094
          %v2551 = vpack.c.b16 %v2107, %v2095
          %v2552 = vpack.c.b16 %v2108, %v2096
          %v2553 = vpack.c.b16 %v2109, %v2097
          %v2554 = vpack.c.b16 %v2122, %v2110
          %v2555 = vpack.c.b16 %v2123, %v2111
          %v2556 = vpack.c.b16 %v2124, %v2112
          %v2557 = vpack.c.b16 %v2125, %v2113
          %v2558 = vpack.c.b16 %v2126, %v2114
          %v2559 = vpack.c.b16 %v2127, %v2115
          %v2560 = vpack.c.b16 %v2128, %v2116
          %v2561 = vpack.c.b16 %v2129, %v2117
          %v2562 = vpack.c.b16 %v2130, %v2118
          %v2563 = vpack.c.b16 %v2131, %v2119
          %v2564 = vpack.c.b16 %v2132, %v2120
          %v2565 = vpack.c.b16 %v2133, %v2121
          %v2566 = vpack.c.b16 %v2146, %v2134
          %v2567 = vpack.c.b16 %v2147, %v2135
          %v2568 = vpack.c.b16 %v2148, %v2136
          %v2569 = vpack.c.b16 %v2149, %v2137
          %v2570 = vpack.c.b16 %v2150, %v2138
          %v2571 = vpack.c.b16 %v2151, %v2139
          %v2572 = vpack.c.b16 %v2152, %v2140
          %v2573 = vpack.c.b16 %v2153, %v2141
          %v2574 = vpack.c.b16 %v2154, %v2142
          %v2575 = vpack.c.b16 %v2155, %v2143
          %v2576 = vpack.c.b16 %v2156, %v2144
          %v2577 = vpack.c.b16 %v2157, %v2145
          %v2578 = vpack.c.b16 %v2170, %v2158
          %v2579 = vpack.c.b16 %v2171, %v2159
          %v2580 = vpack.c.b16 %v2172, %v2160
          %v2581 = vpack.c.b16 %v2173, %v2161
          %v2582 = vpack.c.b16 %v2174, %v2162
          %v2583 = vpack.c.b16 %v2175, %v2163
          %v2584 = vpack.c.b16 %v2176, %v2164
          %v2585 = vpack.c.b16 %v2177, %v2165
          %v2586 = vpack.c.b16 %v2178, %v2166
          %v2587 = vpack.c.b16 %v2179, %v2167
          %v2588 = vpack.c.b16 %v2180, %v2168
          %v2589 = vpack.c.b16 %v2181, %v2169
          %v2590 = vpack.c.b16 %v2194, %v2182
          %v2591 = vpack.c.b16 %v2195, %v2183
          %v2592 = vpack.c.b16 %v2196, %v2184
          %v2593 = vpack.c.b16 %v2197, %v2185
          %v2594 = vpack.c.b16 %v2198, %v2186
          %v2595 = vpack.c.b16 %v2199, %v2187
          %v2596 = vpack.c.b16 %v2200, %v2188
          %v2597 = vpack.c.b16 %v2201, %v2189
          %v2598 = vpack.c.b16 %v2202, %v2190
          %v2599 = vpack.c.b16 %v2203, %v2191
          %v2600 = vpack.c.b16 %v2204, %v2192
          %v2601 = vpack.c.b16 %v2205, %v2193
          %v2602 = vpack.c.b16 %v2218, %v2206
          %v2603 = vpack.c.b16 %v2219, %v2207
          %v2604 = vpack.c.b16 %v2220, %v2208
          %v2605 = vpack.c.b16 %v2221, %v2209
          %v2606 = vpack.c.b16 %v2222, %v2210
          %v2607 = vpack.c.b16 %v2223, %v2211
          %v2608 = vpack.c.b16 %v2224, %v2212
          %v2609 = vpack.c.b16 %v2225, %v2213
          %v2610 = vpack.c.b16 %v2226, %v2214
          %v2611 = vpack.c.b16 %v2227, %v2215
          %v2612 = vpack.c.b16 %v2228, %v2216
          %v2613 = vpack.c.b16 %v2229, %v2217
          %2998 = vmatpush.bf16.msra.mxu0 %v2314
          %2999 = vmatpush.bf16.msra.mxu0 %v2302
          %3000 = vmatpush.bf16.msra.mxu0 %v2290
          %3001 = vmatpush.bf16.msra.mxu0 %v2278
          %3002 = vmatpush.bf16.msra.mxu0 %v2266
          %3003 = vmatpush.bf16.msra.mxu0 %v2254
          %3004 = vmatpush.bf16.msra.mxu0 %v2242
          %3005 = vmatpush.bf16.msra.mxu0 %v2230
          %3006 = vmatmul.bf16.gmra.mxu0 %v950
          %v3007 = vpop.f32.mrf.mxu0
          %v3008 = vadd.f32 %v734, %v3007
          %v3009 = vpop.f32.mrf.mxu0
          %v3010 = vadd.f32 %v734, %v3009
          %3011 = vmatmul.bf16.gmra.mxu0 %v954
          %v3012 = vpop.f32.mrf.mxu0
          %v3013 = vadd.f32 %v734, %v3012
          %v3014 = vpop.f32.mrf.mxu0
          %v3015 = vadd.f32 %v734, %v3014
          %3016 = vmatmul.bf16.gmra.mxu0 %v958
          %v3017 = vpop.f32.mrf.mxu0
          %v3018 = vadd.f32 %v734, %v3017
          %v3019 = vpop.f32.mrf.mxu0
          %v3020 = vadd.f32 %v734, %v3019
          %3021 = vmatmul.bf16.gmra.mxu0 %v962
          %v3022 = vpop.f32.mrf.mxu0
          %v3023 = vadd.f32 %v734, %v3022
          %v3024 = vpop.f32.mrf.mxu0
          %v3025 = vadd.f32 %v734, %v3024
          %3026 = vmatmul.bf16.gmra.mxu0 %v966
          %v3027 = vpop.f32.mrf.mxu0
          %v3028 = vadd.f32 %v734, %v3027
          %v3029 = vpop.f32.mrf.mxu0
          %v3030 = vadd.f32 %v734, %v3029
          %3031 = vmatmul.bf16.gmra.mxu0 %v970
          %v3032 = vpop.f32.mrf.mxu0
          %v3033 = vadd.f32 %v734, %v3032
          %v3034 = vpop.f32.mrf.mxu0
          %v3035 = vadd.f32 %v734, %v3034
          %3036 = vmatmul.bf16.gmra.mxu0 %v974
          %v3037 = vpop.f32.mrf.mxu0
          %v3038 = vadd.f32 %v734, %v3037
          %v3039 = vpop.f32.mrf.mxu0
          %v3040 = vadd.f32 %v734, %v3039
          %3041 = vmatmul.bf16.gmra.mxu0 %v978
          %v3042 = vpop.f32.mrf.mxu0
          %v3043 = vadd.f32 %v734, %v3042
          %v3044 = vpop.f32.mrf.mxu0
          %v3045 = vadd.f32 %v734, %v3044
          %3046 = vmatmul.bf16.gmra.mxu0 %v982
          %v3047 = vpop.f32.mrf.mxu0
          %v3048 = vadd.f32 %v734, %v3047
          %v3049 = vpop.f32.mrf.mxu0
          %v3050 = vadd.f32 %v734, %v3049
          %3051 = vmatmul.bf16.gmra.mxu0 %v986
          %v3052 = vpop.f32.mrf.mxu0
          %v3053 = vadd.f32 %v734, %v3052
          %v3054 = vpop.f32.mrf.mxu0
          %v3055 = vadd.f32 %v734, %v3054
          %3056 = vmatmul.bf16.gmra.mxu0 %v990
          %v3057 = vpop.f32.mrf.mxu0
          %v3058 = vadd.f32 %v734, %v3057
          %v3059 = vpop.f32.mrf.mxu0
          %v3060 = vadd.f32 %v734, %v3059
          %3061 = vmatmul.bf16.gmra.mxu0 %v994
          %v3062 = vpop.f32.mrf.mxu0
          %v3063 = vadd.f32 %v734, %v3062
          %v3064 = vpop.f32.mrf.mxu0
          %v3065 = vadd.f32 %v734, %v3064
          %3066 = vmatmul.bf16.gmra.mxu0 %v998
          %v3067 = vpop.f32.mrf.mxu0
          %v3068 = vadd.f32 %v734, %v3067
          %v3069 = vpop.f32.mrf.mxu0
          %v3070 = vadd.f32 %v734, %v3069
          %3071 = vmatmul.bf16.gmra.mxu0 %v1002
          %v3072 = vpop.f32.mrf.mxu0
          %v3073 = vadd.f32 %v734, %v3072
          %v3074 = vpop.f32.mrf.mxu0
          %v3075 = vadd.f32 %v734, %v3074
          %3076 = vmatmul.bf16.gmra.mxu0 %v1006
          %v3077 = vpop.f32.mrf.mxu0
          %v3078 = vadd.f32 %v734, %v3077
          %v3079 = vpop.f32.mrf.mxu0
          %v3080 = vadd.f32 %v734, %v3079
          %3081 = vmatmul.bf16.gmra.mxu0 %v1010
          %v3082 = vpop.f32.mrf.mxu0
          %v3083 = vadd.f32 %v734, %v3082
          %v3084 = vpop.f32.mrf.mxu0
          %v3085 = vadd.f32 %v734, %v3084
          %3086 = vdwg.mxu0
          %3087 = vmatpush.bf16.msra.mxu0 %v2410
          %3088 = vmatpush.bf16.msra.mxu0 %v2398
          %3089 = vmatpush.bf16.msra.mxu0 %v2386
          %3090 = vmatpush.bf16.msra.mxu0 %v2374
          %3091 = vmatpush.bf16.msra.mxu0 %v2362
          %3092 = vmatpush.bf16.msra.mxu0 %v2350
          %3093 = vmatpush.bf16.msra.mxu0 %v2338
          %3094 = vmatpush.bf16.msra.mxu0 %v2326
          %3095 = vmatmul.bf16.gmra.mxu0 %v951
          %v3096 = vpop.f32.mrf.mxu0
          %v3097 = vadd.f32 %v3008, %v3096
          %v3098 = vpop.f32.mrf.mxu0
          %v3099 = vadd.f32 %v3010, %v3098
          %3100 = vmatmul.bf16.gmra.mxu0 %v955
          %v3101 = vpop.f32.mrf.mxu0
          %v3102 = vadd.f32 %v3013, %v3101
          %v3103 = vpop.f32.mrf.mxu0
          %v3104 = vadd.f32 %v3015, %v3103
          %3105 = vmatmul.bf16.gmra.mxu0 %v959
          %v3106 = vpop.f32.mrf.mxu0
          %v3107 = vadd.f32 %v3018, %v3106
          %v3108 = vpop.f32.mrf.mxu0
          %v3109 = vadd.f32 %v3020, %v3108
          %3110 = vmatmul.bf16.gmra.mxu0 %v963
          %v3111 = vpop.f32.mrf.mxu0
          %v3112 = vadd.f32 %v3023, %v3111
          %v3113 = vpop.f32.mrf.mxu0
          %v3114 = vadd.f32 %v3025, %v3113
          %3115 = vmatmul.bf16.gmra.mxu0 %v967
          %v3116 = vpop.f32.mrf.mxu0
          %v3117 = vadd.f32 %v3028, %v3116
          %v3118 = vpop.f32.mrf.mxu0
          %v3119 = vadd.f32 %v3030, %v3118
          %3120 = vmatmul.bf16.gmra.mxu0 %v971
          %v3121 = vpop.f32.mrf.mxu0
          %v3122 = vadd.f32 %v3033, %v3121
          %v3123 = vpop.f32.mrf.mxu0
          %v3124 = vadd.f32 %v3035, %v3123
          %3125 = vmatmul.bf16.gmra.mxu0 %v975
          %v3126 = vpop.f32.mrf.mxu0
          %v3127 = vadd.f32 %v3038, %v3126
          %v3128 = vpop.f32.mrf.mxu0
          %v3129 = vadd.f32 %v3040, %v3128
          %3130 = vmatmul.bf16.gmra.mxu0 %v979
          %v3131 = vpop.f32.mrf.mxu0
          %v3132 = vadd.f32 %v3043, %v3131
          %v3133 = vpop.f32.mrf.mxu0
          %v3134 = vadd.f32 %v3045, %v3133
          %3135 = vmatmul.bf16.gmra.mxu0 %v983
          %v3136 = vpop.f32.mrf.mxu0
          %v3137 = vadd.f32 %v3048, %v3136
          %v3138 = vpop.f32.mrf.mxu0
          %v3139 = vadd.f32 %v3050, %v3138
          %3140 = vmatmul.bf16.gmra.mxu0 %v987
          %v3141 = vpop.f32.mrf.mxu0
          %v3142 = vadd.f32 %v3053, %v3141
          %v3143 = vpop.f32.mrf.mxu0
          %v3144 = vadd.f32 %v3055, %v3143
          %3145 = vmatmul.bf16.gmra.mxu0 %v991
          %v3146 = vpop.f32.mrf.mxu0
          %v3147 = vadd.f32 %v3058, %v3146
          %v3148 = vpop.f32.mrf.mxu0
          %v3149 = vadd.f32 %v3060, %v3148
          %3150 = vmatmul.bf16.gmra.mxu0 %v995
          %v3151 = vpop.f32.mrf.mxu0
          %v3152 = vadd.f32 %v3063, %v3151
          %v3153 = vpop.f32.mrf.mxu0
          %v3154 = vadd.f32 %v3065, %v3153
          %3155 = vmatmul.bf16.gmra.mxu0 %v999
          %v3156 = vpop.f32.mrf.mxu0
          %v3157 = vadd.f32 %v3068, %v3156
          %v3158 = vpop.f32.mrf.mxu0
          %v3159 = vadd.f32 %v3070, %v3158
          %3160 = vmatmul.bf16.gmra.mxu0 %v1003
          %v3161 = vpop.f32.mrf.mxu0
          %v3162 = vadd.f32 %v3073, %v3161
          %v3163 = vpop.f32.mrf.mxu0
          %v3164 = vadd.f32 %v3075, %v3163
          %3165 = vmatmul.bf16.gmra.mxu0 %v1007
          %v3166 = vpop.f32.mrf.mxu0
          %v3167 = vadd.f32 %v3078, %v3166
          %v3168 = vpop.f32.mrf.mxu0
          %v3169 = vadd.f32 %v3080, %v3168
          %3170 = vmatmul.bf16.gmra.mxu0 %v1011
          %v3171 = vpop.f32.mrf.mxu0
          %v3172 = vadd.f32 %v3083, %v3171
          %v3173 = vpop.f32.mrf.mxu0
          %v3174 = vadd.f32 %v3085, %v3173
          %3175 = vdwg.mxu0
          %3176 = vmatpush.bf16.msra.mxu0 %v2506
          %3177 = vmatpush.bf16.msra.mxu0 %v2494
          %3178 = vmatpush.bf16.msra.mxu0 %v2482
          %3179 = vmatpush.bf16.msra.mxu0 %v2470
          %3180 = vmatpush.bf16.msra.mxu0 %v2458
          %3181 = vmatpush.bf16.msra.mxu0 %v2446
          %3182 = vmatpush.bf16.msra.mxu0 %v2434
          %3183 = vmatpush.bf16.msra.mxu0 %v2422
          %3184 = vmatmul.bf16.gmra.mxu0 %v952
          %v3185 = vpop.f32.mrf.mxu0
          %v3186 = vadd.f32 %v3097, %v3185
          %v3187 = vpop.f32.mrf.mxu0
          %v3188 = vadd.f32 %v3099, %v3187
          %3189 = vmatmul.bf16.gmra.mxu0 %v956
          %v3190 = vpop.f32.mrf.mxu0
          %v3191 = vadd.f32 %v3102, %v3190
          %v3192 = vpop.f32.mrf.mxu0
          %v3193 = vadd.f32 %v3104, %v3192
          %3194 = vmatmul.bf16.gmra.mxu0 %v960
          %v3195 = vpop.f32.mrf.mxu0
          %v3196 = vadd.f32 %v3107, %v3195
          %v3197 = vpop.f32.mrf.mxu0
          %v3198 = vadd.f32 %v3109, %v3197
          %3199 = vmatmul.bf16.gmra.mxu0 %v964
          %v3200 = vpop.f32.mrf.mxu0
          %v3201 = vadd.f32 %v3112, %v3200
          %v3202 = vpop.f32.mrf.mxu0
          %v3203 = vadd.f32 %v3114, %v3202
          %3204 = vmatmul.bf16.gmra.mxu0 %v968
          %v3205 = vpop.f32.mrf.mxu0
          %v3206 = vadd.f32 %v3117, %v3205
          %v3207 = vpop.f32.mrf.mxu0
          %v3208 = vadd.f32 %v3119, %v3207
          %3209 = vmatmul.bf16.gmra.mxu0 %v972
          %v3210 = vpop.f32.mrf.mxu0
          %v3211 = vadd.f32 %v3122, %v3210
          %v3212 = vpop.f32.mrf.mxu0
          %v3213 = vadd.f32 %v3124, %v3212
          %3214 = vmatmul.bf16.gmra.mxu0 %v976
          %v3215 = vpop.f32.mrf.mxu0
          %v3216 = vadd.f32 %v3127, %v3215
          %v3217 = vpop.f32.mrf.mxu0
          %v3218 = vadd.f32 %v3129, %v3217
          %3219 = vmatmul.bf16.gmra.mxu0 %v980
          %v3220 = vpop.f32.mrf.mxu0
          %v3221 = vadd.f32 %v3132, %v3220
          %v3222 = vpop.f32.mrf.mxu0
          %v3223 = vadd.f32 %v3134, %v3222
          %3224 = vmatmul.bf16.gmra.mxu0 %v984
          %v3225 = vpop.f32.mrf.mxu0
          %v3226 = vadd.f32 %v3137, %v3225
          %v3227 = vpop.f32.mrf.mxu0
          %v3228 = vadd.f32 %v3139, %v3227
          %3229 = vmatmul.bf16.gmra.mxu0 %v988
          %v3230 = vpop.f32.mrf.mxu0
          %v3231 = vadd.f32 %v3142, %v3230
          %v3232 = vpop.f32.mrf.mxu0
          %v3233 = vadd.f32 %v3144, %v3232
          %3234 = vmatmul.bf16.gmra.mxu0 %v992
          %v3235 = vpop.f32.mrf.mxu0
          %v3236 = vadd.f32 %v3147, %v3235
          %v3237 = vpop.f32.mrf.mxu0
          %v3238 = vadd.f32 %v3149, %v3237
          %3239 = vmatmul.bf16.gmra.mxu0 %v996
          %v3240 = vpop.f32.mrf.mxu0
          %v3241 = vadd.f32 %v3152, %v3240
          %v3242 = vpop.f32.mrf.mxu0
          %v3243 = vadd.f32 %v3154, %v3242
          %3244 = vmatmul.bf16.gmra.mxu0 %v1000
          %v3245 = vpop.f32.mrf.mxu0
          %v3246 = vadd.f32 %v3157, %v3245
          %v3247 = vpop.f32.mrf.mxu0
          %v3248 = vadd.f32 %v3159, %v3247
          %3249 = vmatmul.bf16.gmra.mxu0 %v1004
          %v3250 = vpop.f32.mrf.mxu0
          %v3251 = vadd.f32 %v3162, %v3250
          %v3252 = vpop.f32.mrf.mxu0
          %v3253 = vadd.f32 %v3164, %v3252
          %3254 = vmatmul.bf16.gmra.mxu0 %v1008
          %v3255 = vpop.f32.mrf.mxu0
          %v3256 = vadd.f32 %v3167, %v3255
          %v3257 = vpop.f32.mrf.mxu0
          %v3258 = vadd.f32 %v3169, %v3257
          %3259 = vmatmul.bf16.gmra.mxu0 %v1012
          %v3260 = vpop.f32.mrf.mxu0
          %v3261 = vadd.f32 %v3172, %v3260
          %v3262 = vpop.f32.mrf.mxu0
          %v3263 = vadd.f32 %v3174, %v3262
          %3264 = vdwg.mxu0
          %3265 = vmatpush.bf16.msra.mxu0 %v2602
          %3266 = vmatpush.bf16.msra.mxu0 %v2590
          %3267 = vmatpush.bf16.msra.mxu0 %v2578
          %3268 = vmatpush.bf16.msra.mxu0 %v2566
          %3269 = vmatpush.bf16.msra.mxu0 %v2554
          %3270 = vmatpush.bf16.msra.mxu0 %v2542
          %3271 = vmatpush.bf16.msra.mxu0 %v2530
          %3272 = vmatpush.bf16.msra.mxu0 %v2518
          %3273 = vmatmul.bf16.gmra.mxu0 %v953
          %v3274 = vpop.f32.mrf.mxu0
          %v3275 = vadd.f32 %v3186, %v3274
          %v3276 = vpop.f32.mrf.mxu0
          %v3277 = vadd.f32 %v3188, %v3276
          %3278 = vmatmul.bf16.gmra.mxu0 %v957
          %v3279 = vpop.f32.mrf.mxu0
          %v3280 = vadd.f32 %v3191, %v3279
          %v3281 = vpop.f32.mrf.mxu0
          %v3282 = vadd.f32 %v3193, %v3281
          %3283 = vmatmul.bf16.gmra.mxu0 %v961
          %v3284 = vpop.f32.mrf.mxu0
          %v3285 = vadd.f32 %v3196, %v3284
          %v3286 = vpop.f32.mrf.mxu0
          %v3287 = vadd.f32 %v3198, %v3286
          %3288 = vmatmul.bf16.gmra.mxu0 %v965
          %v3289 = vpop.f32.mrf.mxu0
          %v3290 = vadd.f32 %v3201, %v3289
          %v3291 = vpop.f32.mrf.mxu0
          %v3292 = vadd.f32 %v3203, %v3291
          %3293 = vmatmul.bf16.gmra.mxu0 %v969
          %v3294 = vpop.f32.mrf.mxu0
          %v3295 = vadd.f32 %v3206, %v3294
          %v3296 = vpop.f32.mrf.mxu0
          %v3297 = vadd.f32 %v3208, %v3296
          %3298 = vmatmul.bf16.gmra.mxu0 %v973
          %v3299 = vpop.f32.mrf.mxu0
          %v3300 = vadd.f32 %v3211, %v3299
          %v3301 = vpop.f32.mrf.mxu0
          %v3302 = vadd.f32 %v3213, %v3301
          %3303 = vmatmul.bf16.gmra.mxu0 %v977
          %v3304 = vpop.f32.mrf.mxu0
          %v3305 = vadd.f32 %v3216, %v3304
          %v3306 = vpop.f32.mrf.mxu0
          %v3307 = vadd.f32 %v3218, %v3306
          %3308 = vmatmul.bf16.gmra.mxu0 %v981
          %v3309 = vpop.f32.mrf.mxu0
          %v3310 = vadd.f32 %v3221, %v3309
          %v3311 = vpop.f32.mrf.mxu0
          %v3312 = vadd.f32 %v3223, %v3311
          %3313 = vmatmul.bf16.gmra.mxu0 %v985
          %v3314 = vpop.f32.mrf.mxu0
          %v3315 = vadd.f32 %v3226, %v3314
          %v3316 = vpop.f32.mrf.mxu0
          %v3317 = vadd.f32 %v3228, %v3316
          %3318 = vmatmul.bf16.gmra.mxu0 %v989
          %v3319 = vpop.f32.mrf.mxu0
          %v3320 = vadd.f32 %v3231, %v3319
          %v3321 = vpop.f32.mrf.mxu0
          %v3322 = vadd.f32 %v3233, %v3321
          %3323 = vmatmul.bf16.gmra.mxu0 %v993
          %v3324 = vpop.f32.mrf.mxu0
          %v3325 = vadd.f32 %v3236, %v3324
          %v3326 = vpop.f32.mrf.mxu0
          %v3327 = vadd.f32 %v3238, %v3326
          %3328 = vmatmul.bf16.gmra.mxu0 %v997
          %v3329 = vpop.f32.mrf.mxu0
          %v3330 = vadd.f32 %v3241, %v3329
          %v3331 = vpop.f32.mrf.mxu0
          %v3332 = vadd.f32 %v3243, %v3331
          %3333 = vmatmul.bf16.gmra.mxu0 %v1001
          %v3334 = vpop.f32.mrf.mxu0
          %v3335 = vadd.f32 %v3246, %v3334
          %v3336 = vpop.f32.mrf.mxu0
          %v3337 = vadd.f32 %v3248, %v3336
          %3338 = vmatmul.bf16.gmra.mxu0 %v1005
          %v3339 = vpop.f32.mrf.mxu0
          %v3340 = vadd.f32 %v3251, %v3339
          %v3341 = vpop.f32.mrf.mxu0
          %v3342 = vadd.f32 %v3253, %v3341
          %3343 = vmatmul.bf16.gmra.mxu0 %v1009
          %v3344 = vpop.f32.mrf.mxu0
          %v3345 = vadd.f32 %v3256, %v3344
          %v3346 = vpop.f32.mrf.mxu0
          %v3347 = vadd.f32 %v3258, %v3346
          %3348 = vmatmul.bf16.gmra.mxu0 %v1013
          %v3349 = vpop.f32.mrf.mxu0
          %v3350 = vadd.f32 %v3261, %v3349
          %v3351 = vpop.f32.mrf.mxu0
          %v3352 = vadd.f32 %v3263, %v3351
          %3353 = vdwg.mxu0
          %3354 = vmatpush.bf16.msra.mxu0 %v2315
          %3355 = vmatpush.bf16.msra.mxu0 %v2303
          %3356 = vmatpush.bf16.msra.mxu0 %v2291
          %3357 = vmatpush.bf16.msra.mxu0 %v2279
          %3358 = vmatpush.bf16.msra.mxu0 %v2267
          %3359 = vmatpush.bf16.msra.mxu0 %v2255
          %3360 = vmatpush.bf16.msra.mxu0 %v2243
          %3361 = vmatpush.bf16.msra.mxu0 %v2231
          %3362 = vmatmul.bf16.gmra.mxu0 %v950
          %v3363 = vpop.f32.mrf.mxu0
          %v3364 = vadd.f32 %v735, %v3363
          %v3365 = vpop.f32.mrf.mxu0
          %v3366 = vadd.f32 %v735, %v3365
          %3367 = vmatmul.bf16.gmra.mxu0 %v954
          %v3368 = vpop.f32.mrf.mxu0
          %v3369 = vadd.f32 %v735, %v3368
          %v3370 = vpop.f32.mrf.mxu0
          %v3371 = vadd.f32 %v735, %v3370
          %3372 = vmatmul.bf16.gmra.mxu0 %v958
          %v3373 = vpop.f32.mrf.mxu0
          %v3374 = vadd.f32 %v735, %v3373
          %v3375 = vpop.f32.mrf.mxu0
          %v3376 = vadd.f32 %v735, %v3375
          %3377 = vmatmul.bf16.gmra.mxu0 %v962
          %v3378 = vpop.f32.mrf.mxu0
          %v3379 = vadd.f32 %v735, %v3378
          %v3380 = vpop.f32.mrf.mxu0
          %v3381 = vadd.f32 %v735, %v3380
          %3382 = vmatmul.bf16.gmra.mxu0 %v966
          %v3383 = vpop.f32.mrf.mxu0
          %v3384 = vadd.f32 %v735, %v3383
          %v3385 = vpop.f32.mrf.mxu0
          %v3386 = vadd.f32 %v735, %v3385
          %3387 = vmatmul.bf16.gmra.mxu0 %v970
          %v3388 = vpop.f32.mrf.mxu0
          %v3389 = vadd.f32 %v735, %v3388
          %v3390 = vpop.f32.mrf.mxu0
          %v3391 = vadd.f32 %v735, %v3390
          %3392 = vmatmul.bf16.gmra.mxu0 %v974
          %v3393 = vpop.f32.mrf.mxu0
          %v3394 = vadd.f32 %v735, %v3393
          %v3395 = vpop.f32.mrf.mxu0
          %v3396 = vadd.f32 %v735, %v3395
          %3397 = vmatmul.bf16.gmra.mxu0 %v978
          %v3398 = vpop.f32.mrf.mxu0
          %v3399 = vadd.f32 %v735, %v3398
          %v3400 = vpop.f32.mrf.mxu0
          %v3401 = vadd.f32 %v735, %v3400
          %3402 = vmatmul.bf16.gmra.mxu0 %v982
          %v3403 = vpop.f32.mrf.mxu0
          %v3404 = vadd.f32 %v735, %v3403
          %v3405 = vpop.f32.mrf.mxu0
          %v3406 = vadd.f32 %v735, %v3405
          %3407 = vmatmul.bf16.gmra.mxu0 %v986
          %v3408 = vpop.f32.mrf.mxu0
          %v3409 = vadd.f32 %v735, %v3408
          %v3410 = vpop.f32.mrf.mxu0
          %v3411 = vadd.f32 %v735, %v3410
          %3412 = vmatmul.bf16.gmra.mxu0 %v990
          %v3413 = vpop.f32.mrf.mxu0
          %v3414 = vadd.f32 %v735, %v3413
          %v3415 = vpop.f32.mrf.mxu0
          %v3416 = vadd.f32 %v735, %v3415
          %3417 = vmatmul.bf16.gmra.mxu0 %v994
          %v3418 = vpop.f32.mrf.mxu0
          %v3419 = vadd.f32 %v735, %v3418
          %v3420 = vpop.f32.mrf.mxu0
          %v3421 = vadd.f32 %v735, %v3420
          %3422 = vmatmul.bf16.gmra.mxu0 %v998
          %v3423 = vpop.f32.mrf.mxu0
          %v3424 = vadd.f32 %v735, %v3423
          %v3425 = vpop.f32.mrf.mxu0
          %v3426 = vadd.f32 %v735, %v3425
          %3427 = vmatmul.bf16.gmra.mxu0 %v1002
          %v3428 = vpop.f32.mrf.mxu0
          %v3429 = vadd.f32 %v735, %v3428
          %v3430 = vpop.f32.mrf.mxu0
          %v3431 = vadd.f32 %v735, %v3430
          %3432 = vmatmul.bf16.gmra.mxu0 %v1006
          %v3433 = vpop.f32.mrf.mxu0
          %v3434 = vadd.f32 %v735, %v3433
          %v3435 = vpop.f32.mrf.mxu0
          %v3436 = vadd.f32 %v735, %v3435
          %3437 = vmatmul.bf16.gmra.mxu0 %v1010
          %v3438 = vpop.f32.mrf.mxu0
          %v3439 = vadd.f32 %v735, %v3438
          %v3440 = vpop.f32.mrf.mxu0
          %v3441 = vadd.f32 %v735, %v3440
          %3442 = vdwg.mxu0
          %3443 = vmatpush.bf16.msra.mxu0 %v2411
          %3444 = vmatpush.bf16.msra.mxu0 %v2399
          %3445 = vmatpush.bf16.msra.mxu0 %v2387
          %3446 = vmatpush.bf16.msra.mxu0 %v2375
          %3447 = vmatpush.bf16.msra.mxu0 %v2363
          %3448 = vmatpush.bf16.msra.mxu0 %v2351
          %3449 = vmatpush.bf16.msra.mxu0 %v2339
          %3450 = vmatpush.bf16.msra.mxu0 %v2327
          %3451 = vmatmul.bf16.gmra.mxu0 %v951
          %v3452 = vpop.f32.mrf.mxu0
          %v3453 = vadd.f32 %v3364, %v3452
          %v3454 = vpop.f32.mrf.mxu0
          %v3455 = vadd.f32 %v3366, %v3454
          %3456 = vmatmul.bf16.gmra.mxu0 %v955
          %v3457 = vpop.f32.mrf.mxu0
          %v3458 = vadd.f32 %v3369, %v3457
          %v3459 = vpop.f32.mrf.mxu0
          %v3460 = vadd.f32 %v3371, %v3459
          %3461 = vmatmul.bf16.gmra.mxu0 %v959
          %v3462 = vpop.f32.mrf.mxu0
          %v3463 = vadd.f32 %v3374, %v3462
          %v3464 = vpop.f32.mrf.mxu0
          %v3465 = vadd.f32 %v3376, %v3464
          %3466 = vmatmul.bf16.gmra.mxu0 %v963
          %v3467 = vpop.f32.mrf.mxu0
          %v3468 = vadd.f32 %v3379, %v3467
          %v3469 = vpop.f32.mrf.mxu0
          %v3470 = vadd.f32 %v3381, %v3469
          %3471 = vmatmul.bf16.gmra.mxu0 %v967
          %v3472 = vpop.f32.mrf.mxu0
          %v3473 = vadd.f32 %v3384, %v3472
          %v3474 = vpop.f32.mrf.mxu0
          %v3475 = vadd.f32 %v3386, %v3474
          %3476 = vmatmul.bf16.gmra.mxu0 %v971
          %v3477 = vpop.f32.mrf.mxu0
          %v3478 = vadd.f32 %v3389, %v3477
          %v3479 = vpop.f32.mrf.mxu0
          %v3480 = vadd.f32 %v3391, %v3479
          %3481 = vmatmul.bf16.gmra.mxu0 %v975
          %v3482 = vpop.f32.mrf.mxu0
          %v3483 = vadd.f32 %v3394, %v3482
          %v3484 = vpop.f32.mrf.mxu0
          %v3485 = vadd.f32 %v3396, %v3484
          %3486 = vmatmul.bf16.gmra.mxu0 %v979
          %v3487 = vpop.f32.mrf.mxu0
          %v3488 = vadd.f32 %v3399, %v3487
          %v3489 = vpop.f32.mrf.mxu0
          %v3490 = vadd.f32 %v3401, %v3489
          %3491 = vmatmul.bf16.gmra.mxu0 %v983
          %v3492 = vpop.f32.mrf.mxu0
          %v3493 = vadd.f32 %v3404, %v3492
          %v3494 = vpop.f32.mrf.mxu0
          %v3495 = vadd.f32 %v3406, %v3494
          %3496 = vmatmul.bf16.gmra.mxu0 %v987
          %v3497 = vpop.f32.mrf.mxu0
          %v3498 = vadd.f32 %v3409, %v3497
          %v3499 = vpop.f32.mrf.mxu0
          %v3500 = vadd.f32 %v3411, %v3499
          %3501 = vmatmul.bf16.gmra.mxu0 %v991
          %v3502 = vpop.f32.mrf.mxu0
          %v3503 = vadd.f32 %v3414, %v3502
          %v3504 = vpop.f32.mrf.mxu0
          %v3505 = vadd.f32 %v3416, %v3504
          %3506 = vmatmul.bf16.gmra.mxu0 %v995
          %v3507 = vpop.f32.mrf.mxu0
          %v3508 = vadd.f32 %v3419, %v3507
          %v3509 = vpop.f32.mrf.mxu0
          %v3510 = vadd.f32 %v3421, %v3509
          %3511 = vmatmul.bf16.gmra.mxu0 %v999
          %v3512 = vpop.f32.mrf.mxu0
          %v3513 = vadd.f32 %v3424, %v3512
          %v3514 = vpop.f32.mrf.mxu0
          %v3515 = vadd.f32 %v3426, %v3514
          %3516 = vmatmul.bf16.gmra.mxu0 %v1003
          %v3517 = vpop.f32.mrf.mxu0
          %v3518 = vadd.f32 %v3429, %v3517
          %v3519 = vpop.f32.mrf.mxu0
          %v3520 = vadd.f32 %v3431, %v3519
          %3521 = vmatmul.bf16.gmra.mxu0 %v1007
          %v3522 = vpop.f32.mrf.mxu0
          %v3523 = vadd.f32 %v3434, %v3522
          %v3524 = vpop.f32.mrf.mxu0
          %v3525 = vadd.f32 %v3436, %v3524
          %3526 = vmatmul.bf16.gmra.mxu0 %v1011
          %v3527 = vpop.f32.mrf.mxu0
          %v3528 = vadd.f32 %v3439, %v3527
          %v3529 = vpop.f32.mrf.mxu0
          %v3530 = vadd.f32 %v3441, %v3529
          %3531 = vdwg.mxu0
          %3532 = vmatpush.bf16.msra.mxu0 %v2507
          %3533 = vmatpush.bf16.msra.mxu0 %v2495
          %3534 = vmatpush.bf16.msra.mxu0 %v2483
          %3535 = vmatpush.bf16.msra.mxu0 %v2471
          %3536 = vmatpush.bf16.msra.mxu0 %v2459
          %3537 = vmatpush.bf16.msra.mxu0 %v2447
          %3538 = vmatpush.bf16.msra.mxu0 %v2435
          %3539 = vmatpush.bf16.msra.mxu0 %v2423
          %3540 = vmatmul.bf16.gmra.mxu0 %v952
          %v3541 = vpop.f32.mrf.mxu0
          %v3542 = vadd.f32 %v3453, %v3541
          %v3543 = vpop.f32.mrf.mxu0
          %v3544 = vadd.f32 %v3455, %v3543
          %3545 = vmatmul.bf16.gmra.mxu0 %v956
          %v3546 = vpop.f32.mrf.mxu0
          %v3547 = vadd.f32 %v3458, %v3546
          %v3548 = vpop.f32.mrf.mxu0
          %v3549 = vadd.f32 %v3460, %v3548
          %3550 = vmatmul.bf16.gmra.mxu0 %v960
          %v3551 = vpop.f32.mrf.mxu0
          %v3552 = vadd.f32 %v3463, %v3551
          %v3553 = vpop.f32.mrf.mxu0
          %v3554 = vadd.f32 %v3465, %v3553
          %3555 = vmatmul.bf16.gmra.mxu0 %v964
          %v3556 = vpop.f32.mrf.mxu0
          %v3557 = vadd.f32 %v3468, %v3556
          %v3558 = vpop.f32.mrf.mxu0
          %v3559 = vadd.f32 %v3470, %v3558
          %3560 = vmatmul.bf16.gmra.mxu0 %v968
          %v3561 = vpop.f32.mrf.mxu0
          %v3562 = vadd.f32 %v3473, %v3561
          %v3563 = vpop.f32.mrf.mxu0
          %v3564 = vadd.f32 %v3475, %v3563
          %3565 = vmatmul.bf16.gmra.mxu0 %v972
          %v3566 = vpop.f32.mrf.mxu0
          %v3567 = vadd.f32 %v3478, %v3566
          %v3568 = vpop.f32.mrf.mxu0
          %v3569 = vadd.f32 %v3480, %v3568
          %3570 = vmatmul.bf16.gmra.mxu0 %v976
          %v3571 = vpop.f32.mrf.mxu0
          %v3572 = vadd.f32 %v3483, %v3571
          %v3573 = vpop.f32.mrf.mxu0
          %v3574 = vadd.f32 %v3485, %v3573
          %3575 = vmatmul.bf16.gmra.mxu0 %v980
          %v3576 = vpop.f32.mrf.mxu0
          %v3577 = vadd.f32 %v3488, %v3576
          %v3578 = vpop.f32.mrf.mxu0
          %v3579 = vadd.f32 %v3490, %v3578
          %3580 = vmatmul.bf16.gmra.mxu0 %v984
          %v3581 = vpop.f32.mrf.mxu0
          %v3582 = vadd.f32 %v3493, %v3581
          %v3583 = vpop.f32.mrf.mxu0
          %v3584 = vadd.f32 %v3495, %v3583
          %3585 = vmatmul.bf16.gmra.mxu0 %v988
          %v3586 = vpop.f32.mrf.mxu0
          %v3587 = vadd.f32 %v3498, %v3586
          %v3588 = vpop.f32.mrf.mxu0
          %v3589 = vadd.f32 %v3500, %v3588
          %3590 = vmatmul.bf16.gmra.mxu0 %v992
          %v3591 = vpop.f32.mrf.mxu0
          %v3592 = vadd.f32 %v3503, %v3591
          %v3593 = vpop.f32.mrf.mxu0
          %v3594 = vadd.f32 %v3505, %v3593
          %3595 = vmatmul.bf16.gmra.mxu0 %v996
          %v3596 = vpop.f32.mrf.mxu0
          %v3597 = vadd.f32 %v3508, %v3596
          %v3598 = vpop.f32.mrf.mxu0
          %v3599 = vadd.f32 %v3510, %v3598
          %3600 = vmatmul.bf16.gmra.mxu0 %v1000
          %v3601 = vpop.f32.mrf.mxu0
          %v3602 = vadd.f32 %v3513, %v3601
          %v3603 = vpop.f32.mrf.mxu0
          %v3604 = vadd.f32 %v3515, %v3603
          %3605 = vmatmul.bf16.gmra.mxu0 %v1004
          %v3606 = vpop.f32.mrf.mxu0
          %v3607 = vadd.f32 %v3518, %v3606
          %v3608 = vpop.f32.mrf.mxu0
          %v3609 = vadd.f32 %v3520, %v3608
          %3610 = vmatmul.bf16.gmra.mxu0 %v1008
          %v3611 = vpop.f32.mrf.mxu0
          %v3612 = vadd.f32 %v3523, %v3611
          %v3613 = vpop.f32.mrf.mxu0
          %v3614 = vadd.f32 %v3525, %v3613
          %3615 = vmatmul.bf16.gmra.mxu0 %v1012
          %v3616 = vpop.f32.mrf.mxu0
          %v3617 = vadd.f32 %v3528, %v3616
          %v3618 = vpop.f32.mrf.mxu0
          %v3619 = vadd.f32 %v3530, %v3618
          %3620 = vdwg.mxu0
          %3621 = vmatpush.bf16.msra.mxu0 %v2603
          %3622 = vmatpush.bf16.msra.mxu0 %v2591
          %3623 = vmatpush.bf16.msra.mxu0 %v2579
          %3624 = vmatpush.bf16.msra.mxu0 %v2567
          %3625 = vmatpush.bf16.msra.mxu0 %v2555
          %3626 = vmatpush.bf16.msra.mxu0 %v2543
          %3627 = vmatpush.bf16.msra.mxu0 %v2531
          %3628 = vmatpush.bf16.msra.mxu0 %v2519
          %3629 = vmatmul.bf16.gmra.mxu0 %v953
          %v3630 = vpop.f32.mrf.mxu0
          %v3631 = vadd.f32 %v3542, %v3630
          %v3632 = vpop.f32.mrf.mxu0
          %v3633 = vadd.f32 %v3544, %v3632
          %3634 = vmatmul.bf16.gmra.mxu0 %v957
          %v3635 = vpop.f32.mrf.mxu0
          %v3636 = vadd.f32 %v3547, %v3635
          %v3637 = vpop.f32.mrf.mxu0
          %v3638 = vadd.f32 %v3549, %v3637
          %3639 = vmatmul.bf16.gmra.mxu0 %v961
          %v3640 = vpop.f32.mrf.mxu0
          %v3641 = vadd.f32 %v3552, %v3640
          %v3642 = vpop.f32.mrf.mxu0
          %v3643 = vadd.f32 %v3554, %v3642
          %3644 = vmatmul.bf16.gmra.mxu0 %v965
          %v3645 = vpop.f32.mrf.mxu0
          %v3646 = vadd.f32 %v3557, %v3645
          %v3647 = vpop.f32.mrf.mxu0
          %v3648 = vadd.f32 %v3559, %v3647
          %3649 = vmatmul.bf16.gmra.mxu0 %v969
          %v3650 = vpop.f32.mrf.mxu0
          %v3651 = vadd.f32 %v3562, %v3650
          %v3652 = vpop.f32.mrf.mxu0
          %v3653 = vadd.f32 %v3564, %v3652
          %3654 = vmatmul.bf16.gmra.mxu0 %v973
          %v3655 = vpop.f32.mrf.mxu0
          %v3656 = vadd.f32 %v3567, %v3655
          %v3657 = vpop.f32.mrf.mxu0
          %v3658 = vadd.f32 %v3569, %v3657
          %3659 = vmatmul.bf16.gmra.mxu0 %v977
          %v3660 = vpop.f32.mrf.mxu0
          %v3661 = vadd.f32 %v3572, %v3660
          %v3662 = vpop.f32.mrf.mxu0
          %v3663 = vadd.f32 %v3574, %v3662
          %3664 = vmatmul.bf16.gmra.mxu0 %v981
          %v3665 = vpop.f32.mrf.mxu0
          %v3666 = vadd.f32 %v3577, %v3665
          %v3667 = vpop.f32.mrf.mxu0
          %v3668 = vadd.f32 %v3579, %v3667
          %3669 = vmatmul.bf16.gmra.mxu0 %v985
          %v3670 = vpop.f32.mrf.mxu0
          %v3671 = vadd.f32 %v3582, %v3670
          %v3672 = vpop.f32.mrf.mxu0
          %v3673 = vadd.f32 %v3584, %v3672
          %3674 = vmatmul.bf16.gmra.mxu0 %v989
          %v3675 = vpop.f32.mrf.mxu0
          %v3676 = vadd.f32 %v3587, %v3675
          %v3677 = vpop.f32.mrf.mxu0
          %v3678 = vadd.f32 %v3589, %v3677
          %3679 = vmatmul.bf16.gmra.mxu0 %v993
          %v3680 = vpop.f32.mrf.mxu0
          %v3681 = vadd.f32 %v3592, %v3680
          %v3682 = vpop.f32.mrf.mxu0
          %v3683 = vadd.f32 %v3594, %v3682
          %3684 = vmatmul.bf16.gmra.mxu0 %v997
          %v3685 = vpop.f32.mrf.mxu0
          %v3686 = vadd.f32 %v3597, %v3685
          %v3687 = vpop.f32.mrf.mxu0
          %v3688 = vadd.f32 %v3599, %v3687
          %3689 = vmatmul.bf16.gmra.mxu0 %v1001
          %v3690 = vpop.f32.mrf.mxu0
          %v3691 = vadd.f32 %v3602, %v3690
          %v3692 = vpop.f32.mrf.mxu0
          %v3693 = vadd.f32 %v3604, %v3692
          %3694 = vmatmul.bf16.gmra.mxu0 %v1005
          %v3695 = vpop.f32.mrf.mxu0
          %v3696 = vadd.f32 %v3607, %v3695
          %v3697 = vpop.f32.mrf.mxu0
          %v3698 = vadd.f32 %v3609, %v3697
          %3699 = vmatmul.bf16.gmra.mxu0 %v1009
          %v3700 = vpop.f32.mrf.mxu0
          %v3701 = vadd.f32 %v3612, %v3700
          %v3702 = vpop.f32.mrf.mxu0
          %v3703 = vadd.f32 %v3614, %v3702
          %3704 = vmatmul.bf16.gmra.mxu0 %v1013
          %v3705 = vpop.f32.mrf.mxu0
          %v3706 = vadd.f32 %v3617, %v3705
          %v3707 = vpop.f32.mrf.mxu0
          %v3708 = vadd.f32 %v3619, %v3707
          %3709 = vdwg.mxu0
          %3710 = vmatpush.bf16.msra.mxu0 %v2316
          %3711 = vmatpush.bf16.msra.mxu0 %v2304
          %3712 = vmatpush.bf16.msra.mxu0 %v2292
          %3713 = vmatpush.bf16.msra.mxu0 %v2280
          %3714 = vmatpush.bf16.msra.mxu0 %v2268
          %3715 = vmatpush.bf16.msra.mxu0 %v2256
          %3716 = vmatpush.bf16.msra.mxu0 %v2244
          %3717 = vmatpush.bf16.msra.mxu0 %v2232
          %3718 = vmatmul.bf16.gmra.mxu0 %v950
          %v3719 = vpop.f32.mrf.mxu0
          %v3720 = vadd.f32 %v736, %v3719
          %v3721 = vpop.f32.mrf.mxu0
          %v3722 = vadd.f32 %v736, %v3721
          %3723 = vmatmul.bf16.gmra.mxu0 %v954
          %v3724 = vpop.f32.mrf.mxu0
          %v3725 = vadd.f32 %v736, %v3724
          %v3726 = vpop.f32.mrf.mxu0
          %v3727 = vadd.f32 %v736, %v3726
          %3728 = vmatmul.bf16.gmra.mxu0 %v958
          %v3729 = vpop.f32.mrf.mxu0
          %v3730 = vadd.f32 %v736, %v3729
          %v3731 = vpop.f32.mrf.mxu0
          %v3732 = vadd.f32 %v736, %v3731
          %3733 = vmatmul.bf16.gmra.mxu0 %v962
          %v3734 = vpop.f32.mrf.mxu0
          %v3735 = vadd.f32 %v736, %v3734
          %v3736 = vpop.f32.mrf.mxu0
          %v3737 = vadd.f32 %v736, %v3736
          %3738 = vmatmul.bf16.gmra.mxu0 %v966
          %v3739 = vpop.f32.mrf.mxu0
          %v3740 = vadd.f32 %v736, %v3739
          %v3741 = vpop.f32.mrf.mxu0
          %v3742 = vadd.f32 %v736, %v3741
          %3743 = vmatmul.bf16.gmra.mxu0 %v970
          %v3744 = vpop.f32.mrf.mxu0
          %v3745 = vadd.f32 %v736, %v3744
          %v3746 = vpop.f32.mrf.mxu0
          %v3747 = vadd.f32 %v736, %v3746
          %3748 = vmatmul.bf16.gmra.mxu0 %v974
          %v3749 = vpop.f32.mrf.mxu0
          %v3750 = vadd.f32 %v736, %v3749
          %v3751 = vpop.f32.mrf.mxu0
          %v3752 = vadd.f32 %v736, %v3751
          %3753 = vmatmul.bf16.gmra.mxu0 %v978
          %v3754 = vpop.f32.mrf.mxu0
          %v3755 = vadd.f32 %v736, %v3754
          %v3756 = vpop.f32.mrf.mxu0
          %v3757 = vadd.f32 %v736, %v3756
          %3758 = vmatmul.bf16.gmra.mxu0 %v982
          %v3759 = vpop.f32.mrf.mxu0
          %v3760 = vadd.f32 %v736, %v3759
          %v3761 = vpop.f32.mrf.mxu0
          %v3762 = vadd.f32 %v736, %v3761
          %3763 = vmatmul.bf16.gmra.mxu0 %v986
          %v3764 = vpop.f32.mrf.mxu0
          %v3765 = vadd.f32 %v736, %v3764
          %v3766 = vpop.f32.mrf.mxu0
          %v3767 = vadd.f32 %v736, %v3766
          %3768 = vmatmul.bf16.gmra.mxu0 %v990
          %v3769 = vpop.f32.mrf.mxu0
          %v3770 = vadd.f32 %v736, %v3769
          %v3771 = vpop.f32.mrf.mxu0
          %v3772 = vadd.f32 %v736, %v3771
          %3773 = vmatmul.bf16.gmra.mxu0 %v994
          %v3774 = vpop.f32.mrf.mxu0
          %v3775 = vadd.f32 %v736, %v3774
          %v3776 = vpop.f32.mrf.mxu0
          %v3777 = vadd.f32 %v736, %v3776
          %3778 = vmatmul.bf16.gmra.mxu0 %v998
          %v3779 = vpop.f32.mrf.mxu0
          %v3780 = vadd.f32 %v736, %v3779
          %v3781 = vpop.f32.mrf.mxu0
          %v3782 = vadd.f32 %v736, %v3781
          %3783 = vmatmul.bf16.gmra.mxu0 %v1002
          %v3784 = vpop.f32.mrf.mxu0
          %v3785 = vadd.f32 %v736, %v3784
          %v3786 = vpop.f32.mrf.mxu0
          %v3787 = vadd.f32 %v736, %v3786
          %3788 = vmatmul.bf16.gmra.mxu0 %v1006
          %v3789 = vpop.f32.mrf.mxu0
          %v3790 = vadd.f32 %v736, %v3789
          %v3791 = vpop.f32.mrf.mxu0
          %v3792 = vadd.f32 %v736, %v3791
          %3793 = vmatmul.bf16.gmra.mxu0 %v1010
          %v3794 = vpop.f32.mrf.mxu0
          %v3795 = vadd.f32 %v736, %v3794
          %v3796 = vpop.f32.mrf.mxu0
          %v3797 = vadd.f32 %v736, %v3796
          %3798 = vdwg.mxu0
          %3799 = vmatpush.bf16.msra.mxu0 %v2412
          %3800 = vmatpush.bf16.msra.mxu0 %v2400
          %3801 = vmatpush.bf16.msra.mxu0 %v2388
          %3802 = vmatpush.bf16.msra.mxu0 %v2376
          %3803 = vmatpush.bf16.msra.mxu0 %v2364
          %3804 = vmatpush.bf16.msra.mxu0 %v2352
          %3805 = vmatpush.bf16.msra.mxu0 %v2340
          %3806 = vmatpush.bf16.msra.mxu0 %v2328
          %3807 = vmatmul.bf16.gmra.mxu0 %v951
          %v3808 = vpop.f32.mrf.mxu0
          %v3809 = vadd.f32 %v3720, %v3808
          %v3810 = vpop.f32.mrf.mxu0
          %v3811 = vadd.f32 %v3722, %v3810
          %3812 = vmatmul.bf16.gmra.mxu0 %v955
          %v3813 = vpop.f32.mrf.mxu0
          %v3814 = vadd.f32 %v3725, %v3813
          %v3815 = vpop.f32.mrf.mxu0
          %v3816 = vadd.f32 %v3727, %v3815
          %3817 = vmatmul.bf16.gmra.mxu0 %v959
          %v3818 = vpop.f32.mrf.mxu0
          %v3819 = vadd.f32 %v3730, %v3818
          %v3820 = vpop.f32.mrf.mxu0
          %v3821 = vadd.f32 %v3732, %v3820
          %3822 = vmatmul.bf16.gmra.mxu0 %v963
          %v3823 = vpop.f32.mrf.mxu0
          %v3824 = vadd.f32 %v3735, %v3823
          %v3825 = vpop.f32.mrf.mxu0
          %v3826 = vadd.f32 %v3737, %v3825
          %3827 = vmatmul.bf16.gmra.mxu0 %v967
          %v3828 = vpop.f32.mrf.mxu0
          %v3829 = vadd.f32 %v3740, %v3828
          %v3830 = vpop.f32.mrf.mxu0
          %v3831 = vadd.f32 %v3742, %v3830
          %3832 = vmatmul.bf16.gmra.mxu0 %v971
          %v3833 = vpop.f32.mrf.mxu0
          %v3834 = vadd.f32 %v3745, %v3833
          %v3835 = vpop.f32.mrf.mxu0
          %v3836 = vadd.f32 %v3747, %v3835
          %3837 = vmatmul.bf16.gmra.mxu0 %v975
          %v3838 = vpop.f32.mrf.mxu0
          %v3839 = vadd.f32 %v3750, %v3838
          %v3840 = vpop.f32.mrf.mxu0
          %v3841 = vadd.f32 %v3752, %v3840
          %3842 = vmatmul.bf16.gmra.mxu0 %v979
          %v3843 = vpop.f32.mrf.mxu0
          %v3844 = vadd.f32 %v3755, %v3843
          %v3845 = vpop.f32.mrf.mxu0
          %v3846 = vadd.f32 %v3757, %v3845
          %3847 = vmatmul.bf16.gmra.mxu0 %v983
          %v3848 = vpop.f32.mrf.mxu0
          %v3849 = vadd.f32 %v3760, %v3848
          %v3850 = vpop.f32.mrf.mxu0
          %v3851 = vadd.f32 %v3762, %v3850
          %3852 = vmatmul.bf16.gmra.mxu0 %v987
          %v3853 = vpop.f32.mrf.mxu0
          %v3854 = vadd.f32 %v3765, %v3853
          %v3855 = vpop.f32.mrf.mxu0
          %v3856 = vadd.f32 %v3767, %v3855
          %3857 = vmatmul.bf16.gmra.mxu0 %v991
          %v3858 = vpop.f32.mrf.mxu0
          %v3859 = vadd.f32 %v3770, %v3858
          %v3860 = vpop.f32.mrf.mxu0
          %v3861 = vadd.f32 %v3772, %v3860
          %3862 = vmatmul.bf16.gmra.mxu0 %v995
          %v3863 = vpop.f32.mrf.mxu0
          %v3864 = vadd.f32 %v3775, %v3863
          %v3865 = vpop.f32.mrf.mxu0
          %v3866 = vadd.f32 %v3777, %v3865
          %3867 = vmatmul.bf16.gmra.mxu0 %v999
          %v3868 = vpop.f32.mrf.mxu0
          %v3869 = vadd.f32 %v3780, %v3868
          %v3870 = vpop.f32.mrf.mxu0
          %v3871 = vadd.f32 %v3782, %v3870
          %3872 = vmatmul.bf16.gmra.mxu0 %v1003
          %v3873 = vpop.f32.mrf.mxu0
          %v3874 = vadd.f32 %v3785, %v3873
          %v3875 = vpop.f32.mrf.mxu0
          %v3876 = vadd.f32 %v3787, %v3875
          %3877 = vmatmul.bf16.gmra.mxu0 %v1007
          %v3878 = vpop.f32.mrf.mxu0
          %v3879 = vadd.f32 %v3790, %v3878
          %v3880 = vpop.f32.mrf.mxu0
          %v3881 = vadd.f32 %v3792, %v3880
          %3882 = vmatmul.bf16.gmra.mxu0 %v1011
          %v3883 = vpop.f32.mrf.mxu0
          %v3884 = vadd.f32 %v3795, %v3883
          %v3885 = vpop.f32.mrf.mxu0
          %v3886 = vadd.f32 %v3797, %v3885
          %3887 = vdwg.mxu0
          %3888 = vmatpush.bf16.msra.mxu0 %v2508
          %3889 = vmatpush.bf16.msra.mxu0 %v2496
          %3890 = vmatpush.bf16.msra.mxu0 %v2484
          %3891 = vmatpush.bf16.msra.mxu0 %v2472
          %3892 = vmatpush.bf16.msra.mxu0 %v2460
          %3893 = vmatpush.bf16.msra.mxu0 %v2448
          %3894 = vmatpush.bf16.msra.mxu0 %v2436
          %3895 = vmatpush.bf16.msra.mxu0 %v2424
          %3896 = vmatmul.bf16.gmra.mxu0 %v952
          %v3897 = vpop.f32.mrf.mxu0
          %v3898 = vadd.f32 %v3809, %v3897
          %v3899 = vpop.f32.mrf.mxu0
          %v3900 = vadd.f32 %v3811, %v3899
          %3901 = vmatmul.bf16.gmra.mxu0 %v956
          %v3902 = vpop.f32.mrf.mxu0
          %v3903 = vadd.f32 %v3814, %v3902
          %v3904 = vpop.f32.mrf.mxu0
          %v3905 = vadd.f32 %v3816, %v3904
          %3906 = vmatmul.bf16.gmra.mxu0 %v960
          %v3907 = vpop.f32.mrf.mxu0
          %v3908 = vadd.f32 %v3819, %v3907
          %v3909 = vpop.f32.mrf.mxu0
          %v3910 = vadd.f32 %v3821, %v3909
          %3911 = vmatmul.bf16.gmra.mxu0 %v964
          %v3912 = vpop.f32.mrf.mxu0
          %v3913 = vadd.f32 %v3824, %v3912
          %v3914 = vpop.f32.mrf.mxu0
          %v3915 = vadd.f32 %v3826, %v3914
          %3916 = vmatmul.bf16.gmra.mxu0 %v968
          %v3917 = vpop.f32.mrf.mxu0
          %v3918 = vadd.f32 %v3829, %v3917
          %v3919 = vpop.f32.mrf.mxu0
          %v3920 = vadd.f32 %v3831, %v3919
          %3921 = vmatmul.bf16.gmra.mxu0 %v972
          %v3922 = vpop.f32.mrf.mxu0
          %v3923 = vadd.f32 %v3834, %v3922
          %v3924 = vpop.f32.mrf.mxu0
          %v3925 = vadd.f32 %v3836, %v3924
          %3926 = vmatmul.bf16.gmra.mxu0 %v976
          %v3927 = vpop.f32.mrf.mxu0
          %v3928 = vadd.f32 %v3839, %v3927
          %v3929 = vpop.f32.mrf.mxu0
          %v3930 = vadd.f32 %v3841, %v3929
          %3931 = vmatmul.bf16.gmra.mxu0 %v980
          %v3932 = vpop.f32.mrf.mxu0
          %v3933 = vadd.f32 %v3844, %v3932
          %v3934 = vpop.f32.mrf.mxu0
          %v3935 = vadd.f32 %v3846, %v3934
          %3936 = vmatmul.bf16.gmra.mxu0 %v984
          %v3937 = vpop.f32.mrf.mxu0
          %v3938 = vadd.f32 %v3849, %v3937
          %v3939 = vpop.f32.mrf.mxu0
          %v3940 = vadd.f32 %v3851, %v3939
          %3941 = vmatmul.bf16.gmra.mxu0 %v988
          %v3942 = vpop.f32.mrf.mxu0
          %v3943 = vadd.f32 %v3854, %v3942
          %v3944 = vpop.f32.mrf.mxu0
          %v3945 = vadd.f32 %v3856, %v3944
          %3946 = vmatmul.bf16.gmra.mxu0 %v992
          %v3947 = vpop.f32.mrf.mxu0
          %v3948 = vadd.f32 %v3859, %v3947
          %v3949 = vpop.f32.mrf.mxu0
          %v3950 = vadd.f32 %v3861, %v3949
          %3951 = vmatmul.bf16.gmra.mxu0 %v996
          %v3952 = vpop.f32.mrf.mxu0
          %v3953 = vadd.f32 %v3864, %v3952
          %v3954 = vpop.f32.mrf.mxu0
          %v3955 = vadd.f32 %v3866, %v3954
          %3956 = vmatmul.bf16.gmra.mxu0 %v1000
          %v3957 = vpop.f32.mrf.mxu0
          %v3958 = vadd.f32 %v3869, %v3957
          %v3959 = vpop.f32.mrf.mxu0
          %v3960 = vadd.f32 %v3871, %v3959
          %3961 = vmatmul.bf16.gmra.mxu0 %v1004
          %v3962 = vpop.f32.mrf.mxu0
          %v3963 = vadd.f32 %v3874, %v3962
          %v3964 = vpop.f32.mrf.mxu0
          %v3965 = vadd.f32 %v3876, %v3964
          %3966 = vmatmul.bf16.gmra.mxu0 %v1008
          %v3967 = vpop.f32.mrf.mxu0
          %v3968 = vadd.f32 %v3879, %v3967
          %v3969 = vpop.f32.mrf.mxu0
          %v3970 = vadd.f32 %v3881, %v3969
          %3971 = vmatmul.bf16.gmra.mxu0 %v1012
          %v3972 = vpop.f32.mrf.mxu0
          %v3973 = vadd.f32 %v3884, %v3972
          %v3974 = vpop.f32.mrf.mxu0
          %v3975 = vadd.f32 %v3886, %v3974
          %3976 = vdwg.mxu0
          %3977 = vmatpush.bf16.msra.mxu0 %v2604
          %3978 = vmatpush.bf16.msra.mxu0 %v2592
          %3979 = vmatpush.bf16.msra.mxu0 %v2580
          %3980 = vmatpush.bf16.msra.mxu0 %v2568
          %3981 = vmatpush.bf16.msra.mxu0 %v2556
          %3982 = vmatpush.bf16.msra.mxu0 %v2544
          %3983 = vmatpush.bf16.msra.mxu0 %v2532
          %3984 = vmatpush.bf16.msra.mxu0 %v2520
          %3985 = vmatmul.bf16.gmra.mxu0 %v953
          %v3986 = vpop.f32.mrf.mxu0
          %v3987 = vadd.f32 %v3898, %v3986
          %v3988 = vpop.f32.mrf.mxu0
          %v3989 = vadd.f32 %v3900, %v3988
          %3990 = vmatmul.bf16.gmra.mxu0 %v957
          %v3991 = vpop.f32.mrf.mxu0
          %v3992 = vadd.f32 %v3903, %v3991
          %v3993 = vpop.f32.mrf.mxu0
          %v3994 = vadd.f32 %v3905, %v3993
          %3995 = vmatmul.bf16.gmra.mxu0 %v961
          %v3996 = vpop.f32.mrf.mxu0
          %v3997 = vadd.f32 %v3908, %v3996
          %v3998 = vpop.f32.mrf.mxu0
          %v3999 = vadd.f32 %v3910, %v3998
          %4000 = vmatmul.bf16.gmra.mxu0 %v965
          %v4001 = vpop.f32.mrf.mxu0
          %v4002 = vadd.f32 %v3913, %v4001
          %v4003 = vpop.f32.mrf.mxu0
          %v4004 = vadd.f32 %v3915, %v4003
          %4005 = vmatmul.bf16.gmra.mxu0 %v969
          %v4006 = vpop.f32.mrf.mxu0
          %v4007 = vadd.f32 %v3918, %v4006
          %v4008 = vpop.f32.mrf.mxu0
          %v4009 = vadd.f32 %v3920, %v4008
          %4010 = vmatmul.bf16.gmra.mxu0 %v973
          %v4011 = vpop.f32.mrf.mxu0
          %v4012 = vadd.f32 %v3923, %v4011
          %v4013 = vpop.f32.mrf.mxu0
          %v4014 = vadd.f32 %v3925, %v4013
          %4015 = vmatmul.bf16.gmra.mxu0 %v977
          %v4016 = vpop.f32.mrf.mxu0
          %v4017 = vadd.f32 %v3928, %v4016
          %v4018 = vpop.f32.mrf.mxu0
          %v4019 = vadd.f32 %v3930, %v4018
          %4020 = vmatmul.bf16.gmra.mxu0 %v981
          %v4021 = vpop.f32.mrf.mxu0
          %v4022 = vadd.f32 %v3933, %v4021
          %v4023 = vpop.f32.mrf.mxu0
          %v4024 = vadd.f32 %v3935, %v4023
          %4025 = vmatmul.bf16.gmra.mxu0 %v985
          %v4026 = vpop.f32.mrf.mxu0
          %v4027 = vadd.f32 %v3938, %v4026
          %v4028 = vpop.f32.mrf.mxu0
          %v4029 = vadd.f32 %v3940, %v4028
          %4030 = vmatmul.bf16.gmra.mxu0 %v989
          %v4031 = vpop.f32.mrf.mxu0
          %v4032 = vadd.f32 %v3943, %v4031
          %v4033 = vpop.f32.mrf.mxu0
          %v4034 = vadd.f32 %v3945, %v4033
          %4035 = vmatmul.bf16.gmra.mxu0 %v993
          %v4036 = vpop.f32.mrf.mxu0
          %v4037 = vadd.f32 %v3948, %v4036
          %v4038 = vpop.f32.mrf.mxu0
          %v4039 = vadd.f32 %v3950, %v4038
          %4040 = vmatmul.bf16.gmra.mxu0 %v997
          %v4041 = vpop.f32.mrf.mxu0
          %v4042 = vadd.f32 %v3953, %v4041
          %v4043 = vpop.f32.mrf.mxu0
          %v4044 = vadd.f32 %v3955, %v4043
          %4045 = vmatmul.bf16.gmra.mxu0 %v1001
          %v4046 = vpop.f32.mrf.mxu0
          %v4047 = vadd.f32 %v3958, %v4046
          %v4048 = vpop.f32.mrf.mxu0
          %v4049 = vadd.f32 %v3960, %v4048
          %4050 = vmatmul.bf16.gmra.mxu0 %v1005
          %v4051 = vpop.f32.mrf.mxu0
          %v4052 = vadd.f32 %v3963, %v4051
          %v4053 = vpop.f32.mrf.mxu0
          %v4054 = vadd.f32 %v3965, %v4053
          %4055 = vmatmul.bf16.gmra.mxu0 %v1009
          %v4056 = vpop.f32.mrf.mxu0
          %v4057 = vadd.f32 %v3968, %v4056
          %v4058 = vpop.f32.mrf.mxu0
          %v4059 = vadd.f32 %v3970, %v4058
          %4060 = vmatmul.bf16.gmra.mxu0 %v1013
          %v4061 = vpop.f32.mrf.mxu0
          %v4062 = vadd.f32 %v3973, %v4061
          %v4063 = vpop.f32.mrf.mxu0
          %v4064 = vadd.f32 %v3975, %v4063
          %4065 = vdwg.mxu0
          %4066 = vmatpush.bf16.msra.mxu0 %v2317
          %4067 = vmatpush.bf16.msra.mxu0 %v2305
          %4068 = vmatpush.bf16.msra.mxu0 %v2293
          %4069 = vmatpush.bf16.msra.mxu0 %v2281
          %4070 = vmatpush.bf16.msra.mxu0 %v2269
          %4071 = vmatpush.bf16.msra.mxu0 %v2257
          %4072 = vmatpush.bf16.msra.mxu0 %v2245
          %4073 = vmatpush.bf16.msra.mxu0 %v2233
          %4074 = vmatmul.bf16.gmra.mxu0 %v950
          %v4075 = vpop.f32.mrf.mxu0
          %v4076 = vadd.f32 %v737, %v4075
          %v4077 = vpop.f32.mrf.mxu0
          %v4078 = vadd.f32 %v737, %v4077
          %4079 = vmatmul.bf16.gmra.mxu0 %v954
          %v4080 = vpop.f32.mrf.mxu0
          %v4081 = vadd.f32 %v737, %v4080
          %v4082 = vpop.f32.mrf.mxu0
          %v4083 = vadd.f32 %v737, %v4082
          %4084 = vmatmul.bf16.gmra.mxu0 %v958
          %v4085 = vpop.f32.mrf.mxu0
          %v4086 = vadd.f32 %v737, %v4085
          %v4087 = vpop.f32.mrf.mxu0
          %v4088 = vadd.f32 %v737, %v4087
          %4089 = vmatmul.bf16.gmra.mxu0 %v962
          %v4090 = vpop.f32.mrf.mxu0
          %v4091 = vadd.f32 %v737, %v4090
          %v4092 = vpop.f32.mrf.mxu0
          %v4093 = vadd.f32 %v737, %v4092
          %4094 = vmatmul.bf16.gmra.mxu0 %v966
          %v4095 = vpop.f32.mrf.mxu0
          %v4096 = vadd.f32 %v737, %v4095
          %v4097 = vpop.f32.mrf.mxu0
          %v4098 = vadd.f32 %v737, %v4097
          %4099 = vmatmul.bf16.gmra.mxu0 %v970
          %v4100 = vpop.f32.mrf.mxu0
          %v4101 = vadd.f32 %v737, %v4100
          %v4102 = vpop.f32.mrf.mxu0
          %v4103 = vadd.f32 %v737, %v4102
          %4104 = vmatmul.bf16.gmra.mxu0 %v974
          %v4105 = vpop.f32.mrf.mxu0
          %v4106 = vadd.f32 %v737, %v4105
          %v4107 = vpop.f32.mrf.mxu0
          %v4108 = vadd.f32 %v737, %v4107
          %4109 = vmatmul.bf16.gmra.mxu0 %v978
          %v4110 = vpop.f32.mrf.mxu0
          %v4111 = vadd.f32 %v737, %v4110
          %v4112 = vpop.f32.mrf.mxu0
          %v4113 = vadd.f32 %v737, %v4112
          %4114 = vmatmul.bf16.gmra.mxu0 %v982
          %v4115 = vpop.f32.mrf.mxu0
          %v4116 = vadd.f32 %v737, %v4115
          %v4117 = vpop.f32.mrf.mxu0
          %v4118 = vadd.f32 %v737, %v4117
          %4119 = vmatmul.bf16.gmra.mxu0 %v986
          %v4120 = vpop.f32.mrf.mxu0
          %v4121 = vadd.f32 %v737, %v4120
          %v4122 = vpop.f32.mrf.mxu0
          %v4123 = vadd.f32 %v737, %v4122
          %4124 = vmatmul.bf16.gmra.mxu0 %v990
          %v4125 = vpop.f32.mrf.mxu0
          %v4126 = vadd.f32 %v737, %v4125
          %v4127 = vpop.f32.mrf.mxu0
          %v4128 = vadd.f32 %v737, %v4127
          %4129 = vmatmul.bf16.gmra.mxu0 %v994
          %v4130 = vpop.f32.mrf.mxu0
          %v4131 = vadd.f32 %v737, %v4130
          %v4132 = vpop.f32.mrf.mxu0
          %v4133 = vadd.f32 %v737, %v4132
          %4134 = vmatmul.bf16.gmra.mxu0 %v998
          %v4135 = vpop.f32.mrf.mxu0
          %v4136 = vadd.f32 %v737, %v4135
          %v4137 = vpop.f32.mrf.mxu0
          %v4138 = vadd.f32 %v737, %v4137
          %4139 = vmatmul.bf16.gmra.mxu0 %v1002
          %v4140 = vpop.f32.mrf.mxu0
          %v4141 = vadd.f32 %v737, %v4140
          %v4142 = vpop.f32.mrf.mxu0
          %v4143 = vadd.f32 %v737, %v4142
          %4144 = vmatmul.bf16.gmra.mxu0 %v1006
          %v4145 = vpop.f32.mrf.mxu0
          %v4146 = vadd.f32 %v737, %v4145
          %v4147 = vpop.f32.mrf.mxu0
          %v4148 = vadd.f32 %v737, %v4147
          %4149 = vmatmul.bf16.gmra.mxu0 %v1010
          %v4150 = vpop.f32.mrf.mxu0
          %v4151 = vadd.f32 %v737, %v4150
          %v4152 = vpop.f32.mrf.mxu0
          %v4153 = vadd.f32 %v737, %v4152
          %4154 = vdwg.mxu0
          %4155 = vmatpush.bf16.msra.mxu0 %v2413
          %4156 = vmatpush.bf16.msra.mxu0 %v2401
          %4157 = vmatpush.bf16.msra.mxu0 %v2389
          %4158 = vmatpush.bf16.msra.mxu0 %v2377
          %4159 = vmatpush.bf16.msra.mxu0 %v2365
          %4160 = vmatpush.bf16.msra.mxu0 %v2353
          %4161 = vmatpush.bf16.msra.mxu0 %v2341
          %4162 = vmatpush.bf16.msra.mxu0 %v2329
          %4163 = vmatmul.bf16.gmra.mxu0 %v951
          %v4164 = vpop.f32.mrf.mxu0
          %v4165 = vadd.f32 %v4076, %v4164
          %v4166 = vpop.f32.mrf.mxu0
          %v4167 = vadd.f32 %v4078, %v4166
          %4168 = vmatmul.bf16.gmra.mxu0 %v955
          %v4169 = vpop.f32.mrf.mxu0
          %v4170 = vadd.f32 %v4081, %v4169
          %v4171 = vpop.f32.mrf.mxu0
          %v4172 = vadd.f32 %v4083, %v4171
          %4173 = vmatmul.bf16.gmra.mxu0 %v959
          %v4174 = vpop.f32.mrf.mxu0
          %v4175 = vadd.f32 %v4086, %v4174
          %v4176 = vpop.f32.mrf.mxu0
          %v4177 = vadd.f32 %v4088, %v4176
          %4178 = vmatmul.bf16.gmra.mxu0 %v963
          %v4179 = vpop.f32.mrf.mxu0
          %v4180 = vadd.f32 %v4091, %v4179
          %v4181 = vpop.f32.mrf.mxu0
          %v4182 = vadd.f32 %v4093, %v4181
          %4183 = vmatmul.bf16.gmra.mxu0 %v967
          %v4184 = vpop.f32.mrf.mxu0
          %v4185 = vadd.f32 %v4096, %v4184
          %v4186 = vpop.f32.mrf.mxu0
          %v4187 = vadd.f32 %v4098, %v4186
          %4188 = vmatmul.bf16.gmra.mxu0 %v971
          %v4189 = vpop.f32.mrf.mxu0
          %v4190 = vadd.f32 %v4101, %v4189
          %v4191 = vpop.f32.mrf.mxu0
          %v4192 = vadd.f32 %v4103, %v4191
          %4193 = vmatmul.bf16.gmra.mxu0 %v975
          %v4194 = vpop.f32.mrf.mxu0
          %v4195 = vadd.f32 %v4106, %v4194
          %v4196 = vpop.f32.mrf.mxu0
          %v4197 = vadd.f32 %v4108, %v4196
          %4198 = vmatmul.bf16.gmra.mxu0 %v979
          %v4199 = vpop.f32.mrf.mxu0
          %v4200 = vadd.f32 %v4111, %v4199
          %v4201 = vpop.f32.mrf.mxu0
          %v4202 = vadd.f32 %v4113, %v4201
          %4203 = vmatmul.bf16.gmra.mxu0 %v983
          %v4204 = vpop.f32.mrf.mxu0
          %v4205 = vadd.f32 %v4116, %v4204
          %v4206 = vpop.f32.mrf.mxu0
          %v4207 = vadd.f32 %v4118, %v4206
          %4208 = vmatmul.bf16.gmra.mxu0 %v987
          %v4209 = vpop.f32.mrf.mxu0
          %v4210 = vadd.f32 %v4121, %v4209
          %v4211 = vpop.f32.mrf.mxu0
          %v4212 = vadd.f32 %v4123, %v4211
          %4213 = vmatmul.bf16.gmra.mxu0 %v991
          %v4214 = vpop.f32.mrf.mxu0
          %v4215 = vadd.f32 %v4126, %v4214
          %v4216 = vpop.f32.mrf.mxu0
          %v4217 = vadd.f32 %v4128, %v4216
          %4218 = vmatmul.bf16.gmra.mxu0 %v995
          %v4219 = vpop.f32.mrf.mxu0
          %v4220 = vadd.f32 %v4131, %v4219
          %v4221 = vpop.f32.mrf.mxu0
          %v4222 = vadd.f32 %v4133, %v4221
          %4223 = vmatmul.bf16.gmra.mxu0 %v999
          %v4224 = vpop.f32.mrf.mxu0
          %v4225 = vadd.f32 %v4136, %v4224
          %v4226 = vpop.f32.mrf.mxu0
          %v4227 = vadd.f32 %v4138, %v4226
          %4228 = vmatmul.bf16.gmra.mxu0 %v1003
          %v4229 = vpop.f32.mrf.mxu0
          %v4230 = vadd.f32 %v4141, %v4229
          %v4231 = vpop.f32.mrf.mxu0
          %v4232 = vadd.f32 %v4143, %v4231
          %4233 = vmatmul.bf16.gmra.mxu0 %v1007
          %v4234 = vpop.f32.mrf.mxu0
          %v4235 = vadd.f32 %v4146, %v4234
          %v4236 = vpop.f32.mrf.mxu0
          %v4237 = vadd.f32 %v4148, %v4236
          %4238 = vmatmul.bf16.gmra.mxu0 %v1011
          %v4239 = vpop.f32.mrf.mxu0
          %v4240 = vadd.f32 %v4151, %v4239
          %v4241 = vpop.f32.mrf.mxu0
          %v4242 = vadd.f32 %v4153, %v4241
          %4243 = vdwg.mxu0
          %4244 = vmatpush.bf16.msra.mxu0 %v2509
          %4245 = vmatpush.bf16.msra.mxu0 %v2497
          %4246 = vmatpush.bf16.msra.mxu0 %v2485
          %4247 = vmatpush.bf16.msra.mxu0 %v2473
          %4248 = vmatpush.bf16.msra.mxu0 %v2461
          %4249 = vmatpush.bf16.msra.mxu0 %v2449
          %4250 = vmatpush.bf16.msra.mxu0 %v2437
          %4251 = vmatpush.bf16.msra.mxu0 %v2425
          %4252 = vmatmul.bf16.gmra.mxu0 %v952
          %v4253 = vpop.f32.mrf.mxu0
          %v4254 = vadd.f32 %v4165, %v4253
          %v4255 = vpop.f32.mrf.mxu0
          %v4256 = vadd.f32 %v4167, %v4255
          %4257 = vmatmul.bf16.gmra.mxu0 %v956
          %v4258 = vpop.f32.mrf.mxu0
          %v4259 = vadd.f32 %v4170, %v4258
          %v4260 = vpop.f32.mrf.mxu0
          %v4261 = vadd.f32 %v4172, %v4260
          %4262 = vmatmul.bf16.gmra.mxu0 %v960
          %v4263 = vpop.f32.mrf.mxu0
          %v4264 = vadd.f32 %v4175, %v4263
          %v4265 = vpop.f32.mrf.mxu0
          %v4266 = vadd.f32 %v4177, %v4265
          %4267 = vmatmul.bf16.gmra.mxu0 %v964
          %v4268 = vpop.f32.mrf.mxu0
          %v4269 = vadd.f32 %v4180, %v4268
          %v4270 = vpop.f32.mrf.mxu0
          %v4271 = vadd.f32 %v4182, %v4270
          %4272 = vmatmul.bf16.gmra.mxu0 %v968
          %v4273 = vpop.f32.mrf.mxu0
          %v4274 = vadd.f32 %v4185, %v4273
          %v4275 = vpop.f32.mrf.mxu0
          %v4276 = vadd.f32 %v4187, %v4275
          %4277 = vmatmul.bf16.gmra.mxu0 %v972
          %v4278 = vpop.f32.mrf.mxu0
          %v4279 = vadd.f32 %v4190, %v4278
          %v4280 = vpop.f32.mrf.mxu0
          %v4281 = vadd.f32 %v4192, %v4280
          %4282 = vmatmul.bf16.gmra.mxu0 %v976
          %v4283 = vpop.f32.mrf.mxu0
          %v4284 = vadd.f32 %v4195, %v4283
          %v4285 = vpop.f32.mrf.mxu0
          %v4286 = vadd.f32 %v4197, %v4285
          %4287 = vmatmul.bf16.gmra.mxu0 %v980
          %v4288 = vpop.f32.mrf.mxu0
          %v4289 = vadd.f32 %v4200, %v4288
          %v4290 = vpop.f32.mrf.mxu0
          %v4291 = vadd.f32 %v4202, %v4290
          %4292 = vmatmul.bf16.gmra.mxu0 %v984
          %v4293 = vpop.f32.mrf.mxu0
          %v4294 = vadd.f32 %v4205, %v4293
          %v4295 = vpop.f32.mrf.mxu0
          %v4296 = vadd.f32 %v4207, %v4295
          %4297 = vmatmul.bf16.gmra.mxu0 %v988
          %v4298 = vpop.f32.mrf.mxu0
          %v4299 = vadd.f32 %v4210, %v4298
          %v4300 = vpop.f32.mrf.mxu0
          %v4301 = vadd.f32 %v4212, %v4300
          %4302 = vmatmul.bf16.gmra.mxu0 %v992
          %v4303 = vpop.f32.mrf.mxu0
          %v4304 = vadd.f32 %v4215, %v4303
          %v4305 = vpop.f32.mrf.mxu0
          %v4306 = vadd.f32 %v4217, %v4305
          %4307 = vmatmul.bf16.gmra.mxu0 %v996
          %v4308 = vpop.f32.mrf.mxu0
          %v4309 = vadd.f32 %v4220, %v4308
          %v4310 = vpop.f32.mrf.mxu0
          %v4311 = vadd.f32 %v4222, %v4310
          %4312 = vmatmul.bf16.gmra.mxu0 %v1000
          %v4313 = vpop.f32.mrf.mxu0
          %v4314 = vadd.f32 %v4225, %v4313
          %v4315 = vpop.f32.mrf.mxu0
          %v4316 = vadd.f32 %v4227, %v4315
          %4317 = vmatmul.bf16.gmra.mxu0 %v1004
          %v4318 = vpop.f32.mrf.mxu0
          %v4319 = vadd.f32 %v4230, %v4318
          %v4320 = vpop.f32.mrf.mxu0
          %v4321 = vadd.f32 %v4232, %v4320
          %4322 = vmatmul.bf16.gmra.mxu0 %v1008
          %v4323 = vpop.f32.mrf.mxu0
          %v4324 = vadd.f32 %v4235, %v4323
          %v4325 = vpop.f32.mrf.mxu0
          %v4326 = vadd.f32 %v4237, %v4325
          %4327 = vmatmul.bf16.gmra.mxu0 %v1012
          %v4328 = vpop.f32.mrf.mxu0
          %v4329 = vadd.f32 %v4240, %v4328
          %v4330 = vpop.f32.mrf.mxu0
          %v4331 = vadd.f32 %v4242, %v4330
          %4332 = vdwg.mxu0
          %4333 = vmatpush.bf16.msra.mxu0 %v2605
          %4334 = vmatpush.bf16.msra.mxu0 %v2593
          %4335 = vmatpush.bf16.msra.mxu0 %v2581
          %4336 = vmatpush.bf16.msra.mxu0 %v2569
          %4337 = vmatpush.bf16.msra.mxu0 %v2557
          %4338 = vmatpush.bf16.msra.mxu0 %v2545
          %4339 = vmatpush.bf16.msra.mxu0 %v2533
          %4340 = vmatpush.bf16.msra.mxu0 %v2521
          %4341 = vmatmul.bf16.gmra.mxu0 %v953
          %v4342 = vpop.f32.mrf.mxu0
          %v4343 = vadd.f32 %v4254, %v4342
          %v4344 = vpop.f32.mrf.mxu0
          %v4345 = vadd.f32 %v4256, %v4344
          %4346 = vmatmul.bf16.gmra.mxu0 %v957
          %v4347 = vpop.f32.mrf.mxu0
          %v4348 = vadd.f32 %v4259, %v4347
          %v4349 = vpop.f32.mrf.mxu0
          %v4350 = vadd.f32 %v4261, %v4349
          %4351 = vmatmul.bf16.gmra.mxu0 %v961
          %v4352 = vpop.f32.mrf.mxu0
          %v4353 = vadd.f32 %v4264, %v4352
          %v4354 = vpop.f32.mrf.mxu0
          %v4355 = vadd.f32 %v4266, %v4354
          %4356 = vmatmul.bf16.gmra.mxu0 %v965
          %v4357 = vpop.f32.mrf.mxu0
          %v4358 = vadd.f32 %v4269, %v4357
          %v4359 = vpop.f32.mrf.mxu0
          %v4360 = vadd.f32 %v4271, %v4359
          %4361 = vmatmul.bf16.gmra.mxu0 %v969
          %v4362 = vpop.f32.mrf.mxu0
          %v4363 = vadd.f32 %v4274, %v4362
          %v4364 = vpop.f32.mrf.mxu0
          %v4365 = vadd.f32 %v4276, %v4364
          %4366 = vmatmul.bf16.gmra.mxu0 %v973
          %v4367 = vpop.f32.mrf.mxu0
          %v4368 = vadd.f32 %v4279, %v4367
          %v4369 = vpop.f32.mrf.mxu0
          %v4370 = vadd.f32 %v4281, %v4369
          %4371 = vmatmul.bf16.gmra.mxu0 %v977
          %v4372 = vpop.f32.mrf.mxu0
          %v4373 = vadd.f32 %v4284, %v4372
          %v4374 = vpop.f32.mrf.mxu0
          %v4375 = vadd.f32 %v4286, %v4374
          %4376 = vmatmul.bf16.gmra.mxu0 %v981
          %v4377 = vpop.f32.mrf.mxu0
          %v4378 = vadd.f32 %v4289, %v4377
          %v4379 = vpop.f32.mrf.mxu0
          %v4380 = vadd.f32 %v4291, %v4379
          %4381 = vmatmul.bf16.gmra.mxu0 %v985
          %v4382 = vpop.f32.mrf.mxu0
          %v4383 = vadd.f32 %v4294, %v4382
          %v4384 = vpop.f32.mrf.mxu0
          %v4385 = vadd.f32 %v4296, %v4384
          %4386 = vmatmul.bf16.gmra.mxu0 %v989
          %v4387 = vpop.f32.mrf.mxu0
          %v4388 = vadd.f32 %v4299, %v4387
          %v4389 = vpop.f32.mrf.mxu0
          %v4390 = vadd.f32 %v4301, %v4389
          %4391 = vmatmul.bf16.gmra.mxu0 %v993
          %v4392 = vpop.f32.mrf.mxu0
          %v4393 = vadd.f32 %v4304, %v4392
          %v4394 = vpop.f32.mrf.mxu0
          %v4395 = vadd.f32 %v4306, %v4394
          %4396 = vmatmul.bf16.gmra.mxu0 %v997
          %v4397 = vpop.f32.mrf.mxu0
          %v4398 = vadd.f32 %v4309, %v4397
          %v4399 = vpop.f32.mrf.mxu0
          %v4400 = vadd.f32 %v4311, %v4399
          %4401 = vmatmul.bf16.gmra.mxu0 %v1001
          %v4402 = vpop.f32.mrf.mxu0
          %v4403 = vadd.f32 %v4314, %v4402
          %v4404 = vpop.f32.mrf.mxu0
          %v4405 = vadd.f32 %v4316, %v4404
          %4406 = vmatmul.bf16.gmra.mxu0 %v1005
          %v4407 = vpop.f32.mrf.mxu0
          %v4408 = vadd.f32 %v4319, %v4407
          %v4409 = vpop.f32.mrf.mxu0
          %v4410 = vadd.f32 %v4321, %v4409
          %4411 = vmatmul.bf16.gmra.mxu0 %v1009
          %v4412 = vpop.f32.mrf.mxu0
          %v4413 = vadd.f32 %v4324, %v4412
          %v4414 = vpop.f32.mrf.mxu0
          %v4415 = vadd.f32 %v4326, %v4414
          %4416 = vmatmul.bf16.gmra.mxu0 %v1013
          %v4417 = vpop.f32.mrf.mxu0
          %v4418 = vadd.f32 %v4329, %v4417
          %v4419 = vpop.f32.mrf.mxu0
          %v4420 = vadd.f32 %v4331, %v4419
          %4421 = vdwg.mxu0
          %4422 = vmatpush.bf16.msra.mxu0 %v2318
          %4423 = vmatpush.bf16.msra.mxu0 %v2306
          %4424 = vmatpush.bf16.msra.mxu0 %v2294
          %4425 = vmatpush.bf16.msra.mxu0 %v2282
          %4426 = vmatpush.bf16.msra.mxu0 %v2270
          %4427 = vmatpush.bf16.msra.mxu0 %v2258
          %4428 = vmatpush.bf16.msra.mxu0 %v2246
          %4429 = vmatpush.bf16.msra.mxu0 %v2234
          %4430 = vmatmul.bf16.gmra.mxu0 %v950
          %v4431 = vpop.f32.mrf.mxu0
          %v4432 = vadd.f32 %v738, %v4431
          %v4433 = vpop.f32.mrf.mxu0
          %v4434 = vadd.f32 %v738, %v4433
          %4435 = vmatmul.bf16.gmra.mxu0 %v954
          %v4436 = vpop.f32.mrf.mxu0
          %v4437 = vadd.f32 %v738, %v4436
          %v4438 = vpop.f32.mrf.mxu0
          %v4439 = vadd.f32 %v738, %v4438
          %4440 = vmatmul.bf16.gmra.mxu0 %v958
          %v4441 = vpop.f32.mrf.mxu0
          %v4442 = vadd.f32 %v738, %v4441
          %v4443 = vpop.f32.mrf.mxu0
          %v4444 = vadd.f32 %v738, %v4443
          %4445 = vmatmul.bf16.gmra.mxu0 %v962
          %v4446 = vpop.f32.mrf.mxu0
          %v4447 = vadd.f32 %v738, %v4446
          %v4448 = vpop.f32.mrf.mxu0
          %v4449 = vadd.f32 %v738, %v4448
          %4450 = vmatmul.bf16.gmra.mxu0 %v966
          %v4451 = vpop.f32.mrf.mxu0
          %v4452 = vadd.f32 %v738, %v4451
          %v4453 = vpop.f32.mrf.mxu0
          %v4454 = vadd.f32 %v738, %v4453
          %4455 = vmatmul.bf16.gmra.mxu0 %v970
          %v4456 = vpop.f32.mrf.mxu0
          %v4457 = vadd.f32 %v738, %v4456
          %v4458 = vpop.f32.mrf.mxu0
          %v4459 = vadd.f32 %v738, %v4458
          %4460 = vmatmul.bf16.gmra.mxu0 %v974
          %v4461 = vpop.f32.mrf.mxu0
          %v4462 = vadd.f32 %v738, %v4461
          %v4463 = vpop.f32.mrf.mxu0
          %v4464 = vadd.f32 %v738, %v4463
          %4465 = vmatmul.bf16.gmra.mxu0 %v978
          %v4466 = vpop.f32.mrf.mxu0
          %v4467 = vadd.f32 %v738, %v4466
          %v4468 = vpop.f32.mrf.mxu0
          %v4469 = vadd.f32 %v738, %v4468
          %4470 = vmatmul.bf16.gmra.mxu0 %v982
          %v4471 = vpop.f32.mrf.mxu0
          %v4472 = vadd.f32 %v738, %v4471
          %v4473 = vpop.f32.mrf.mxu0
          %v4474 = vadd.f32 %v738, %v4473
          %4475 = vmatmul.bf16.gmra.mxu0 %v986
          %v4476 = vpop.f32.mrf.mxu0
          %v4477 = vadd.f32 %v738, %v4476
          %v4478 = vpop.f32.mrf.mxu0
          %v4479 = vadd.f32 %v738, %v4478
          %4480 = vmatmul.bf16.gmra.mxu0 %v990
          %v4481 = vpop.f32.mrf.mxu0
          %v4482 = vadd.f32 %v738, %v4481
          %v4483 = vpop.f32.mrf.mxu0
          %v4484 = vadd.f32 %v738, %v4483
          %4485 = vmatmul.bf16.gmra.mxu0 %v994
          %v4486 = vpop.f32.mrf.mxu0
          %v4487 = vadd.f32 %v738, %v4486
          %v4488 = vpop.f32.mrf.mxu0
          %v4489 = vadd.f32 %v738, %v4488
          %4490 = vmatmul.bf16.gmra.mxu0 %v998
          %v4491 = vpop.f32.mrf.mxu0
          %v4492 = vadd.f32 %v738, %v4491
          %v4493 = vpop.f32.mrf.mxu0
          %v4494 = vadd.f32 %v738, %v4493
          %4495 = vmatmul.bf16.gmra.mxu0 %v1002
          %v4496 = vpop.f32.mrf.mxu0
          %v4497 = vadd.f32 %v738, %v4496
          %v4498 = vpop.f32.mrf.mxu0
          %v4499 = vadd.f32 %v738, %v4498
          %4500 = vmatmul.bf16.gmra.mxu0 %v1006
          %v4501 = vpop.f32.mrf.mxu0
          %v4502 = vadd.f32 %v738, %v4501
          %v4503 = vpop.f32.mrf.mxu0
          %v4504 = vadd.f32 %v738, %v4503
          %4505 = vmatmul.bf16.gmra.mxu0 %v1010
          %v4506 = vpop.f32.mrf.mxu0
          %v4507 = vadd.f32 %v738, %v4506
          %v4508 = vpop.f32.mrf.mxu0
          %v4509 = vadd.f32 %v738, %v4508
          %4510 = vdwg.mxu0
          %4511 = vmatpush.bf16.msra.mxu0 %v2414
          %4512 = vmatpush.bf16.msra.mxu0 %v2402
          %4513 = vmatpush.bf16.msra.mxu0 %v2390
          %4514 = vmatpush.bf16.msra.mxu0 %v2378
          %4515 = vmatpush.bf16.msra.mxu0 %v2366
          %4516 = vmatpush.bf16.msra.mxu0 %v2354
          %4517 = vmatpush.bf16.msra.mxu0 %v2342
          %4518 = vmatpush.bf16.msra.mxu0 %v2330
          %4519 = vmatmul.bf16.gmra.mxu0 %v951
          %v4520 = vpop.f32.mrf.mxu0
          %v4521 = vadd.f32 %v4432, %v4520
          %v4522 = vpop.f32.mrf.mxu0
          %v4523 = vadd.f32 %v4434, %v4522
          %4524 = vmatmul.bf16.gmra.mxu0 %v955
          %v4525 = vpop.f32.mrf.mxu0
          %v4526 = vadd.f32 %v4437, %v4525
          %v4527 = vpop.f32.mrf.mxu0
          %v4528 = vadd.f32 %v4439, %v4527
          %4529 = vmatmul.bf16.gmra.mxu0 %v959
          %v4530 = vpop.f32.mrf.mxu0
          %v4531 = vadd.f32 %v4442, %v4530
          %v4532 = vpop.f32.mrf.mxu0
          %v4533 = vadd.f32 %v4444, %v4532
          %4534 = vmatmul.bf16.gmra.mxu0 %v963
          %v4535 = vpop.f32.mrf.mxu0
          %v4536 = vadd.f32 %v4447, %v4535
          %v4537 = vpop.f32.mrf.mxu0
          %v4538 = vadd.f32 %v4449, %v4537
          %4539 = vmatmul.bf16.gmra.mxu0 %v967
          %v4540 = vpop.f32.mrf.mxu0
          %v4541 = vadd.f32 %v4452, %v4540
          %v4542 = vpop.f32.mrf.mxu0
          %v4543 = vadd.f32 %v4454, %v4542
          %4544 = vmatmul.bf16.gmra.mxu0 %v971
          %v4545 = vpop.f32.mrf.mxu0
          %v4546 = vadd.f32 %v4457, %v4545
          %v4547 = vpop.f32.mrf.mxu0
          %v4548 = vadd.f32 %v4459, %v4547
          %4549 = vmatmul.bf16.gmra.mxu0 %v975
          %v4550 = vpop.f32.mrf.mxu0
          %v4551 = vadd.f32 %v4462, %v4550
          %v4552 = vpop.f32.mrf.mxu0
          %v4553 = vadd.f32 %v4464, %v4552
          %4554 = vmatmul.bf16.gmra.mxu0 %v979
          %v4555 = vpop.f32.mrf.mxu0
          %v4556 = vadd.f32 %v4467, %v4555
          %v4557 = vpop.f32.mrf.mxu0
          %v4558 = vadd.f32 %v4469, %v4557
          %4559 = vmatmul.bf16.gmra.mxu0 %v983
          %v4560 = vpop.f32.mrf.mxu0
          %v4561 = vadd.f32 %v4472, %v4560
          %v4562 = vpop.f32.mrf.mxu0
          %v4563 = vadd.f32 %v4474, %v4562
          %4564 = vmatmul.bf16.gmra.mxu0 %v987
          %v4565 = vpop.f32.mrf.mxu0
          %v4566 = vadd.f32 %v4477, %v4565
          %v4567 = vpop.f32.mrf.mxu0
          %v4568 = vadd.f32 %v4479, %v4567
          %4569 = vmatmul.bf16.gmra.mxu0 %v991
          %v4570 = vpop.f32.mrf.mxu0
          %v4571 = vadd.f32 %v4482, %v4570
          %v4572 = vpop.f32.mrf.mxu0
          %v4573 = vadd.f32 %v4484, %v4572
          %4574 = vmatmul.bf16.gmra.mxu0 %v995
          %v4575 = vpop.f32.mrf.mxu0
          %v4576 = vadd.f32 %v4487, %v4575
          %v4577 = vpop.f32.mrf.mxu0
          %v4578 = vadd.f32 %v4489, %v4577
          %4579 = vmatmul.bf16.gmra.mxu0 %v999
          %v4580 = vpop.f32.mrf.mxu0
          %v4581 = vadd.f32 %v4492, %v4580
          %v4582 = vpop.f32.mrf.mxu0
          %v4583 = vadd.f32 %v4494, %v4582
          %4584 = vmatmul.bf16.gmra.mxu0 %v1003
          %v4585 = vpop.f32.mrf.mxu0
          %v4586 = vadd.f32 %v4497, %v4585
          %v4587 = vpop.f32.mrf.mxu0
          %v4588 = vadd.f32 %v4499, %v4587
          %4589 = vmatmul.bf16.gmra.mxu0 %v1007
          %v4590 = vpop.f32.mrf.mxu0
          %v4591 = vadd.f32 %v4502, %v4590
          %v4592 = vpop.f32.mrf.mxu0
          %v4593 = vadd.f32 %v4504, %v4592
          %4594 = vmatmul.bf16.gmra.mxu0 %v1011
          %v4595 = vpop.f32.mrf.mxu0
          %v4596 = vadd.f32 %v4507, %v4595
          %v4597 = vpop.f32.mrf.mxu0
          %v4598 = vadd.f32 %v4509, %v4597
          %4599 = vdwg.mxu0
          %4600 = vmatpush.bf16.msra.mxu0 %v2510
          %4601 = vmatpush.bf16.msra.mxu0 %v2498
          %4602 = vmatpush.bf16.msra.mxu0 %v2486
          %4603 = vmatpush.bf16.msra.mxu0 %v2474
          %4604 = vmatpush.bf16.msra.mxu0 %v2462
          %4605 = vmatpush.bf16.msra.mxu0 %v2450
          %4606 = vmatpush.bf16.msra.mxu0 %v2438
          %4607 = vmatpush.bf16.msra.mxu0 %v2426
          %4608 = vmatmul.bf16.gmra.mxu0 %v952
          %v4609 = vpop.f32.mrf.mxu0
          %v4610 = vadd.f32 %v4521, %v4609
          %v4611 = vpop.f32.mrf.mxu0
          %v4612 = vadd.f32 %v4523, %v4611
          %4613 = vmatmul.bf16.gmra.mxu0 %v956
          %v4614 = vpop.f32.mrf.mxu0
          %v4615 = vadd.f32 %v4526, %v4614
          %v4616 = vpop.f32.mrf.mxu0
          %v4617 = vadd.f32 %v4528, %v4616
          %4618 = vmatmul.bf16.gmra.mxu0 %v960
          %v4619 = vpop.f32.mrf.mxu0
          %v4620 = vadd.f32 %v4531, %v4619
          %v4621 = vpop.f32.mrf.mxu0
          %v4622 = vadd.f32 %v4533, %v4621
          %4623 = vmatmul.bf16.gmra.mxu0 %v964
          %v4624 = vpop.f32.mrf.mxu0
          %v4625 = vadd.f32 %v4536, %v4624
          %v4626 = vpop.f32.mrf.mxu0
          %v4627 = vadd.f32 %v4538, %v4626
          %4628 = vmatmul.bf16.gmra.mxu0 %v968
          %v4629 = vpop.f32.mrf.mxu0
          %v4630 = vadd.f32 %v4541, %v4629
          %v4631 = vpop.f32.mrf.mxu0
          %v4632 = vadd.f32 %v4543, %v4631
          %4633 = vmatmul.bf16.gmra.mxu0 %v972
          %v4634 = vpop.f32.mrf.mxu0
          %v4635 = vadd.f32 %v4546, %v4634
          %v4636 = vpop.f32.mrf.mxu0
          %v4637 = vadd.f32 %v4548, %v4636
          %4638 = vmatmul.bf16.gmra.mxu0 %v976
          %v4639 = vpop.f32.mrf.mxu0
          %v4640 = vadd.f32 %v4551, %v4639
          %v4641 = vpop.f32.mrf.mxu0
          %v4642 = vadd.f32 %v4553, %v4641
          %4643 = vmatmul.bf16.gmra.mxu0 %v980
          %v4644 = vpop.f32.mrf.mxu0
          %v4645 = vadd.f32 %v4556, %v4644
          %v4646 = vpop.f32.mrf.mxu0
          %v4647 = vadd.f32 %v4558, %v4646
          %4648 = vmatmul.bf16.gmra.mxu0 %v984
          %v4649 = vpop.f32.mrf.mxu0
          %v4650 = vadd.f32 %v4561, %v4649
          %v4651 = vpop.f32.mrf.mxu0
          %v4652 = vadd.f32 %v4563, %v4651
          %4653 = vmatmul.bf16.gmra.mxu0 %v988
          %v4654 = vpop.f32.mrf.mxu0
          %v4655 = vadd.f32 %v4566, %v4654
          %v4656 = vpop.f32.mrf.mxu0
          %v4657 = vadd.f32 %v4568, %v4656
          %4658 = vmatmul.bf16.gmra.mxu0 %v992
          %v4659 = vpop.f32.mrf.mxu0
          %v4660 = vadd.f32 %v4571, %v4659
          %v4661 = vpop.f32.mrf.mxu0
          %v4662 = vadd.f32 %v4573, %v4661
          %4663 = vmatmul.bf16.gmra.mxu0 %v996
          %v4664 = vpop.f32.mrf.mxu0
          %v4665 = vadd.f32 %v4576, %v4664
          %v4666 = vpop.f32.mrf.mxu0
          %v4667 = vadd.f32 %v4578, %v4666
          %4668 = vmatmul.bf16.gmra.mxu0 %v1000
          %v4669 = vpop.f32.mrf.mxu0
          %v4670 = vadd.f32 %v4581, %v4669
          %v4671 = vpop.f32.mrf.mxu0
          %v4672 = vadd.f32 %v4583, %v4671
          %4673 = vmatmul.bf16.gmra.mxu0 %v1004
          %v4674 = vpop.f32.mrf.mxu0
          %v4675 = vadd.f32 %v4586, %v4674
          %v4676 = vpop.f32.mrf.mxu0
          %v4677 = vadd.f32 %v4588, %v4676
          %4678 = vmatmul.bf16.gmra.mxu0 %v1008
          %v4679 = vpop.f32.mrf.mxu0
          %v4680 = vadd.f32 %v4591, %v4679
          %v4681 = vpop.f32.mrf.mxu0
          %v4682 = vadd.f32 %v4593, %v4681
          %4683 = vmatmul.bf16.gmra.mxu0 %v1012
          %v4684 = vpop.f32.mrf.mxu0
          %v4685 = vadd.f32 %v4596, %v4684
          %v4686 = vpop.f32.mrf.mxu0
          %v4687 = vadd.f32 %v4598, %v4686
          %4688 = vdwg.mxu0
          %4689 = vmatpush.bf16.msra.mxu0 %v2606
          %4690 = vmatpush.bf16.msra.mxu0 %v2594
          %4691 = vmatpush.bf16.msra.mxu0 %v2582
          %4692 = vmatpush.bf16.msra.mxu0 %v2570
          %4693 = vmatpush.bf16.msra.mxu0 %v2558
          %4694 = vmatpush.bf16.msra.mxu0 %v2546
          %4695 = vmatpush.bf16.msra.mxu0 %v2534
          %4696 = vmatpush.bf16.msra.mxu0 %v2522
          %4697 = vmatmul.bf16.gmra.mxu0 %v953
          %v4698 = vpop.f32.mrf.mxu0
          %v4699 = vadd.f32 %v4610, %v4698
          %v4700 = vpop.f32.mrf.mxu0
          %v4701 = vadd.f32 %v4612, %v4700
          %4702 = vmatmul.bf16.gmra.mxu0 %v957
          %v4703 = vpop.f32.mrf.mxu0
          %v4704 = vadd.f32 %v4615, %v4703
          %v4705 = vpop.f32.mrf.mxu0
          %v4706 = vadd.f32 %v4617, %v4705
          %4707 = vmatmul.bf16.gmra.mxu0 %v961
          %v4708 = vpop.f32.mrf.mxu0
          %v4709 = vadd.f32 %v4620, %v4708
          %v4710 = vpop.f32.mrf.mxu0
          %v4711 = vadd.f32 %v4622, %v4710
          %4712 = vmatmul.bf16.gmra.mxu0 %v965
          %v4713 = vpop.f32.mrf.mxu0
          %v4714 = vadd.f32 %v4625, %v4713
          %v4715 = vpop.f32.mrf.mxu0
          %v4716 = vadd.f32 %v4627, %v4715
          %4717 = vmatmul.bf16.gmra.mxu0 %v969
          %v4718 = vpop.f32.mrf.mxu0
          %v4719 = vadd.f32 %v4630, %v4718
          %v4720 = vpop.f32.mrf.mxu0
          %v4721 = vadd.f32 %v4632, %v4720
          %4722 = vmatmul.bf16.gmra.mxu0 %v973
          %v4723 = vpop.f32.mrf.mxu0
          %v4724 = vadd.f32 %v4635, %v4723
          %v4725 = vpop.f32.mrf.mxu0
          %v4726 = vadd.f32 %v4637, %v4725
          %4727 = vmatmul.bf16.gmra.mxu0 %v977
          %v4728 = vpop.f32.mrf.mxu0
          %v4729 = vadd.f32 %v4640, %v4728
          %v4730 = vpop.f32.mrf.mxu0
          %v4731 = vadd.f32 %v4642, %v4730
          %4732 = vmatmul.bf16.gmra.mxu0 %v981
          %v4733 = vpop.f32.mrf.mxu0
          %v4734 = vadd.f32 %v4645, %v4733
          %v4735 = vpop.f32.mrf.mxu0
          %v4736 = vadd.f32 %v4647, %v4735
          %4737 = vmatmul.bf16.gmra.mxu0 %v985
          %v4738 = vpop.f32.mrf.mxu0
          %v4739 = vadd.f32 %v4650, %v4738
          %v4740 = vpop.f32.mrf.mxu0
          %v4741 = vadd.f32 %v4652, %v4740
          %4742 = vmatmul.bf16.gmra.mxu0 %v989
          %v4743 = vpop.f32.mrf.mxu0
          %v4744 = vadd.f32 %v4655, %v4743
          %v4745 = vpop.f32.mrf.mxu0
          %v4746 = vadd.f32 %v4657, %v4745
          %4747 = vmatmul.bf16.gmra.mxu0 %v993
          %v4748 = vpop.f32.mrf.mxu0
          %v4749 = vadd.f32 %v4660, %v4748
          %v4750 = vpop.f32.mrf.mxu0
          %v4751 = vadd.f32 %v4662, %v4750
          %4752 = vmatmul.bf16.gmra.mxu0 %v997
          %v4753 = vpop.f32.mrf.mxu0
          %v4754 = vadd.f32 %v4665, %v4753
          %v4755 = vpop.f32.mrf.mxu0
          %v4756 = vadd.f32 %v4667, %v4755
          %4757 = vmatmul.bf16.gmra.mxu0 %v1001
          %v4758 = vpop.f32.mrf.mxu0
          %v4759 = vadd.f32 %v4670, %v4758
          %v4760 = vpop.f32.mrf.mxu0
          %v4761 = vadd.f32 %v4672, %v4760
          %4762 = vmatmul.bf16.gmra.mxu0 %v1005
          %v4763 = vpop.f32.mrf.mxu0
          %v4764 = vadd.f32 %v4675, %v4763
          %v4765 = vpop.f32.mrf.mxu0
          %v4766 = vadd.f32 %v4677, %v4765
          %4767 = vmatmul.bf16.gmra.mxu0 %v1009
          %v4768 = vpop.f32.mrf.mxu0
          %v4769 = vadd.f32 %v4680, %v4768
          %v4770 = vpop.f32.mrf.mxu0
          %v4771 = vadd.f32 %v4682, %v4770
          %4772 = vmatmul.bf16.gmra.mxu0 %v1013
          %v4773 = vpop.f32.mrf.mxu0
          %v4774 = vadd.f32 %v4685, %v4773
          %v4775 = vpop.f32.mrf.mxu0
          %v4776 = vadd.f32 %v4687, %v4775
          %4777 = vdwg.mxu0
          %4778 = vmatpush.bf16.msra.mxu0 %v2319
          %4779 = vmatpush.bf16.msra.mxu0 %v2307
          %4780 = vmatpush.bf16.msra.mxu0 %v2295
          %4781 = vmatpush.bf16.msra.mxu0 %v2283
          %4782 = vmatpush.bf16.msra.mxu0 %v2271
          %4783 = vmatpush.bf16.msra.mxu0 %v2259
          %4784 = vmatpush.bf16.msra.mxu0 %v2247
          %4785 = vmatpush.bf16.msra.mxu0 %v2235
          %4786 = vmatmul.bf16.gmra.mxu0 %v950
          %v4787 = vpop.f32.mrf.mxu0
          %v4788 = vadd.f32 %v739, %v4787
          %v4789 = vpop.f32.mrf.mxu0
          %v4790 = vadd.f32 %v739, %v4789
          %4791 = vmatmul.bf16.gmra.mxu0 %v954
          %v4792 = vpop.f32.mrf.mxu0
          %v4793 = vadd.f32 %v739, %v4792
          %v4794 = vpop.f32.mrf.mxu0
          %v4795 = vadd.f32 %v739, %v4794
          %4796 = vmatmul.bf16.gmra.mxu0 %v958
          %v4797 = vpop.f32.mrf.mxu0
          %v4798 = vadd.f32 %v739, %v4797
          %v4799 = vpop.f32.mrf.mxu0
          %v4800 = vadd.f32 %v739, %v4799
          %4801 = vmatmul.bf16.gmra.mxu0 %v962
          %v4802 = vpop.f32.mrf.mxu0
          %v4803 = vadd.f32 %v739, %v4802
          %v4804 = vpop.f32.mrf.mxu0
          %v4805 = vadd.f32 %v739, %v4804
          %4806 = vmatmul.bf16.gmra.mxu0 %v966
          %v4807 = vpop.f32.mrf.mxu0
          %v4808 = vadd.f32 %v739, %v4807
          %v4809 = vpop.f32.mrf.mxu0
          %v4810 = vadd.f32 %v739, %v4809
          %4811 = vmatmul.bf16.gmra.mxu0 %v970
          %v4812 = vpop.f32.mrf.mxu0
          %v4813 = vadd.f32 %v739, %v4812
          %v4814 = vpop.f32.mrf.mxu0
          %v4815 = vadd.f32 %v739, %v4814
          %4816 = vmatmul.bf16.gmra.mxu0 %v974
          %v4817 = vpop.f32.mrf.mxu0
          %v4818 = vadd.f32 %v739, %v4817
          %v4819 = vpop.f32.mrf.mxu0
          %v4820 = vadd.f32 %v739, %v4819
          %4821 = vmatmul.bf16.gmra.mxu0 %v978
          %v4822 = vpop.f32.mrf.mxu0
          %v4823 = vadd.f32 %v739, %v4822
          %v4824 = vpop.f32.mrf.mxu0
          %v4825 = vadd.f32 %v739, %v4824
          %4826 = vmatmul.bf16.gmra.mxu0 %v982
          %v4827 = vpop.f32.mrf.mxu0
          %v4828 = vadd.f32 %v739, %v4827
          %v4829 = vpop.f32.mrf.mxu0
          %v4830 = vadd.f32 %v739, %v4829
          %4831 = vmatmul.bf16.gmra.mxu0 %v986
          %v4832 = vpop.f32.mrf.mxu0
          %v4833 = vadd.f32 %v739, %v4832
          %v4834 = vpop.f32.mrf.mxu0
          %v4835 = vadd.f32 %v739, %v4834
          %4836 = vmatmul.bf16.gmra.mxu0 %v990
          %v4837 = vpop.f32.mrf.mxu0
          %v4838 = vadd.f32 %v739, %v4837
          %v4839 = vpop.f32.mrf.mxu0
          %v4840 = vadd.f32 %v739, %v4839
          %4841 = vmatmul.bf16.gmra.mxu0 %v994
          %v4842 = vpop.f32.mrf.mxu0
          %v4843 = vadd.f32 %v739, %v4842
          %v4844 = vpop.f32.mrf.mxu0
          %v4845 = vadd.f32 %v739, %v4844
          %4846 = vmatmul.bf16.gmra.mxu0 %v998
          %v4847 = vpop.f32.mrf.mxu0
          %v4848 = vadd.f32 %v739, %v4847
          %v4849 = vpop.f32.mrf.mxu0
          %v4850 = vadd.f32 %v739, %v4849
          %4851 = vmatmul.bf16.gmra.mxu0 %v1002
          %v4852 = vpop.f32.mrf.mxu0
          %v4853 = vadd.f32 %v739, %v4852
          %v4854 = vpop.f32.mrf.mxu0
          %v4855 = vadd.f32 %v739, %v4854
          %4856 = vmatmul.bf16.gmra.mxu0 %v1006
          %v4857 = vpop.f32.mrf.mxu0
          %v4858 = vadd.f32 %v739, %v4857
          %v4859 = vpop.f32.mrf.mxu0
          %v4860 = vadd.f32 %v739, %v4859
          %4861 = vmatmul.bf16.gmra.mxu0 %v1010
          %v4862 = vpop.f32.mrf.mxu0
          %v4863 = vadd.f32 %v739, %v4862
          %v4864 = vpop.f32.mrf.mxu0
          %v4865 = vadd.f32 %v739, %v4864
          %4866 = vdwg.mxu0
          %4867 = vmatpush.bf16.msra.mxu0 %v2415
          %4868 = vmatpush.bf16.msra.mxu0 %v2403
          %4869 = vmatpush.bf16.msra.mxu0 %v2391
          %4870 = vmatpush.bf16.msra.mxu0 %v2379
          %4871 = vmatpush.bf16.msra.mxu0 %v2367
          %4872 = vmatpush.bf16.msra.mxu0 %v2355
          %4873 = vmatpush.bf16.msra.mxu0 %v2343
          %4874 = vmatpush.bf16.msra.mxu0 %v2331
          %4875 = vmatmul.bf16.gmra.mxu0 %v951
          %v4876 = vpop.f32.mrf.mxu0
          %v4877 = vadd.f32 %v4788, %v4876
          %v4878 = vpop.f32.mrf.mxu0
          %v4879 = vadd.f32 %v4790, %v4878
          %4880 = vmatmul.bf16.gmra.mxu0 %v955
          %v4881 = vpop.f32.mrf.mxu0
          %v4882 = vadd.f32 %v4793, %v4881
          %v4883 = vpop.f32.mrf.mxu0
          %v4884 = vadd.f32 %v4795, %v4883
          %4885 = vmatmul.bf16.gmra.mxu0 %v959
          %v4886 = vpop.f32.mrf.mxu0
          %v4887 = vadd.f32 %v4798, %v4886
          %v4888 = vpop.f32.mrf.mxu0
          %v4889 = vadd.f32 %v4800, %v4888
          %4890 = vmatmul.bf16.gmra.mxu0 %v963
          %v4891 = vpop.f32.mrf.mxu0
          %v4892 = vadd.f32 %v4803, %v4891
          %v4893 = vpop.f32.mrf.mxu0
          %v4894 = vadd.f32 %v4805, %v4893
          %4895 = vmatmul.bf16.gmra.mxu0 %v967
          %v4896 = vpop.f32.mrf.mxu0
          %v4897 = vadd.f32 %v4808, %v4896
          %v4898 = vpop.f32.mrf.mxu0
          %v4899 = vadd.f32 %v4810, %v4898
          %4900 = vmatmul.bf16.gmra.mxu0 %v971
          %v4901 = vpop.f32.mrf.mxu0
          %v4902 = vadd.f32 %v4813, %v4901
          %v4903 = vpop.f32.mrf.mxu0
          %v4904 = vadd.f32 %v4815, %v4903
          %4905 = vmatmul.bf16.gmra.mxu0 %v975
          %v4906 = vpop.f32.mrf.mxu0
          %v4907 = vadd.f32 %v4818, %v4906
          %v4908 = vpop.f32.mrf.mxu0
          %v4909 = vadd.f32 %v4820, %v4908
          %4910 = vmatmul.bf16.gmra.mxu0 %v979
          %v4911 = vpop.f32.mrf.mxu0
          %v4912 = vadd.f32 %v4823, %v4911
          %v4913 = vpop.f32.mrf.mxu0
          %v4914 = vadd.f32 %v4825, %v4913
          %4915 = vmatmul.bf16.gmra.mxu0 %v983
          %v4916 = vpop.f32.mrf.mxu0
          %v4917 = vadd.f32 %v4828, %v4916
          %v4918 = vpop.f32.mrf.mxu0
          %v4919 = vadd.f32 %v4830, %v4918
          %4920 = vmatmul.bf16.gmra.mxu0 %v987
          %v4921 = vpop.f32.mrf.mxu0
          %v4922 = vadd.f32 %v4833, %v4921
          %v4923 = vpop.f32.mrf.mxu0
          %v4924 = vadd.f32 %v4835, %v4923
          %4925 = vmatmul.bf16.gmra.mxu0 %v991
          %v4926 = vpop.f32.mrf.mxu0
          %v4927 = vadd.f32 %v4838, %v4926
          %v4928 = vpop.f32.mrf.mxu0
          %v4929 = vadd.f32 %v4840, %v4928
          %4930 = vmatmul.bf16.gmra.mxu0 %v995
          %v4931 = vpop.f32.mrf.mxu0
          %v4932 = vadd.f32 %v4843, %v4931
          %v4933 = vpop.f32.mrf.mxu0
          %v4934 = vadd.f32 %v4845, %v4933
          %4935 = vmatmul.bf16.gmra.mxu0 %v999
          %v4936 = vpop.f32.mrf.mxu0
          %v4937 = vadd.f32 %v4848, %v4936
          %v4938 = vpop.f32.mrf.mxu0
          %v4939 = vadd.f32 %v4850, %v4938
          %4940 = vmatmul.bf16.gmra.mxu0 %v1003
          %v4941 = vpop.f32.mrf.mxu0
          %v4942 = vadd.f32 %v4853, %v4941
          %v4943 = vpop.f32.mrf.mxu0
          %v4944 = vadd.f32 %v4855, %v4943
          %4945 = vmatmul.bf16.gmra.mxu0 %v1007
          %v4946 = vpop.f32.mrf.mxu0
          %v4947 = vadd.f32 %v4858, %v4946
          %v4948 = vpop.f32.mrf.mxu0
          %v4949 = vadd.f32 %v4860, %v4948
          %4950 = vmatmul.bf16.gmra.mxu0 %v1011
          %v4951 = vpop.f32.mrf.mxu0
          %v4952 = vadd.f32 %v4863, %v4951
          %v4953 = vpop.f32.mrf.mxu0
          %v4954 = vadd.f32 %v4865, %v4953
          %4955 = vdwg.mxu0
          %4956 = vmatpush.bf16.msra.mxu0 %v2511
          %4957 = vmatpush.bf16.msra.mxu0 %v2499
          %4958 = vmatpush.bf16.msra.mxu0 %v2487
          %4959 = vmatpush.bf16.msra.mxu0 %v2475
          %4960 = vmatpush.bf16.msra.mxu0 %v2463
          %4961 = vmatpush.bf16.msra.mxu0 %v2451
          %4962 = vmatpush.bf16.msra.mxu0 %v2439
          %4963 = vmatpush.bf16.msra.mxu0 %v2427
          %4964 = vmatmul.bf16.gmra.mxu0 %v952
          %v4965 = vpop.f32.mrf.mxu0
          %v4966 = vadd.f32 %v4877, %v4965
          %v4967 = vpop.f32.mrf.mxu0
          %v4968 = vadd.f32 %v4879, %v4967
          %4969 = vmatmul.bf16.gmra.mxu0 %v956
          %v4970 = vpop.f32.mrf.mxu0
          %v4971 = vadd.f32 %v4882, %v4970
          %v4972 = vpop.f32.mrf.mxu0
          %v4973 = vadd.f32 %v4884, %v4972
          %4974 = vmatmul.bf16.gmra.mxu0 %v960
          %v4975 = vpop.f32.mrf.mxu0
          %v4976 = vadd.f32 %v4887, %v4975
          %v4977 = vpop.f32.mrf.mxu0
          %v4978 = vadd.f32 %v4889, %v4977
          %4979 = vmatmul.bf16.gmra.mxu0 %v964
          %v4980 = vpop.f32.mrf.mxu0
          %v4981 = vadd.f32 %v4892, %v4980
          %v4982 = vpop.f32.mrf.mxu0
          %v4983 = vadd.f32 %v4894, %v4982
          %4984 = vmatmul.bf16.gmra.mxu0 %v968
          %v4985 = vpop.f32.mrf.mxu0
          %v4986 = vadd.f32 %v4897, %v4985
          %v4987 = vpop.f32.mrf.mxu0
          %v4988 = vadd.f32 %v4899, %v4987
          %4989 = vmatmul.bf16.gmra.mxu0 %v972
          %v4990 = vpop.f32.mrf.mxu0
          %v4991 = vadd.f32 %v4902, %v4990
          %v4992 = vpop.f32.mrf.mxu0
          %v4993 = vadd.f32 %v4904, %v4992
          %4994 = vmatmul.bf16.gmra.mxu0 %v976
          %v4995 = vpop.f32.mrf.mxu0
          %v4996 = vadd.f32 %v4907, %v4995
          %v4997 = vpop.f32.mrf.mxu0
          %v4998 = vadd.f32 %v4909, %v4997
          %4999 = vmatmul.bf16.gmra.mxu0 %v980
          %v5000 = vpop.f32.mrf.mxu0
          %v5001 = vadd.f32 %v4912, %v5000
          %v5002 = vpop.f32.mrf.mxu0
          %v5003 = vadd.f32 %v4914, %v5002
          %5004 = vmatmul.bf16.gmra.mxu0 %v984
          %v5005 = vpop.f32.mrf.mxu0
          %v5006 = vadd.f32 %v4917, %v5005
          %v5007 = vpop.f32.mrf.mxu0
          %v5008 = vadd.f32 %v4919, %v5007
          %5009 = vmatmul.bf16.gmra.mxu0 %v988
          %v5010 = vpop.f32.mrf.mxu0
          %v5011 = vadd.f32 %v4922, %v5010
          %v5012 = vpop.f32.mrf.mxu0
          %v5013 = vadd.f32 %v4924, %v5012
          %5014 = vmatmul.bf16.gmra.mxu0 %v992
          %v5015 = vpop.f32.mrf.mxu0
          %v5016 = vadd.f32 %v4927, %v5015
          %v5017 = vpop.f32.mrf.mxu0
          %v5018 = vadd.f32 %v4929, %v5017
          %5019 = vmatmul.bf16.gmra.mxu0 %v996
          %v5020 = vpop.f32.mrf.mxu0
          %v5021 = vadd.f32 %v4932, %v5020
          %v5022 = vpop.f32.mrf.mxu0
          %v5023 = vadd.f32 %v4934, %v5022
          %5024 = vmatmul.bf16.gmra.mxu0 %v1000
          %v5025 = vpop.f32.mrf.mxu0
          %v5026 = vadd.f32 %v4937, %v5025
          %v5027 = vpop.f32.mrf.mxu0
          %v5028 = vadd.f32 %v4939, %v5027
          %5029 = vmatmul.bf16.gmra.mxu0 %v1004
          %v5030 = vpop.f32.mrf.mxu0
          %v5031 = vadd.f32 %v4942, %v5030
          %v5032 = vpop.f32.mrf.mxu0
          %v5033 = vadd.f32 %v4944, %v5032
          %5034 = vmatmul.bf16.gmra.mxu0 %v1008
          %v5035 = vpop.f32.mrf.mxu0
          %v5036 = vadd.f32 %v4947, %v5035
          %v5037 = vpop.f32.mrf.mxu0
          %v5038 = vadd.f32 %v4949, %v5037
          %5039 = vmatmul.bf16.gmra.mxu0 %v1012
          %v5040 = vpop.f32.mrf.mxu0
          %v5041 = vadd.f32 %v4952, %v5040
          %v5042 = vpop.f32.mrf.mxu0
          %v5043 = vadd.f32 %v4954, %v5042
          %5044 = vdwg.mxu0
          %5045 = vmatpush.bf16.msra.mxu0 %v2607
          %5046 = vmatpush.bf16.msra.mxu0 %v2595
          %5047 = vmatpush.bf16.msra.mxu0 %v2583
          %5048 = vmatpush.bf16.msra.mxu0 %v2571
          %5049 = vmatpush.bf16.msra.mxu0 %v2559
          %5050 = vmatpush.bf16.msra.mxu0 %v2547
          %5051 = vmatpush.bf16.msra.mxu0 %v2535
          %5052 = vmatpush.bf16.msra.mxu0 %v2523
          %5053 = vmatmul.bf16.gmra.mxu0 %v953
          %v5054 = vpop.f32.mrf.mxu0
          %v5055 = vadd.f32 %v4966, %v5054
          %v5056 = vpop.f32.mrf.mxu0
          %v5057 = vadd.f32 %v4968, %v5056
          %5058 = vmatmul.bf16.gmra.mxu0 %v957
          %v5059 = vpop.f32.mrf.mxu0
          %v5060 = vadd.f32 %v4971, %v5059
          %v5061 = vpop.f32.mrf.mxu0
          %v5062 = vadd.f32 %v4973, %v5061
          %5063 = vmatmul.bf16.gmra.mxu0 %v961
          %v5064 = vpop.f32.mrf.mxu0
          %v5065 = vadd.f32 %v4976, %v5064
          %v5066 = vpop.f32.mrf.mxu0
          %v5067 = vadd.f32 %v4978, %v5066
          %5068 = vmatmul.bf16.gmra.mxu0 %v965
          %v5069 = vpop.f32.mrf.mxu0
          %v5070 = vadd.f32 %v4981, %v5069
          %v5071 = vpop.f32.mrf.mxu0
          %v5072 = vadd.f32 %v4983, %v5071
          %5073 = vmatmul.bf16.gmra.mxu0 %v969
          %v5074 = vpop.f32.mrf.mxu0
          %v5075 = vadd.f32 %v4986, %v5074
          %v5076 = vpop.f32.mrf.mxu0
          %v5077 = vadd.f32 %v4988, %v5076
          %5078 = vmatmul.bf16.gmra.mxu0 %v973
          %v5079 = vpop.f32.mrf.mxu0
          %v5080 = vadd.f32 %v4991, %v5079
          %v5081 = vpop.f32.mrf.mxu0
          %v5082 = vadd.f32 %v4993, %v5081
          %5083 = vmatmul.bf16.gmra.mxu0 %v977
          %v5084 = vpop.f32.mrf.mxu0
          %v5085 = vadd.f32 %v4996, %v5084
          %v5086 = vpop.f32.mrf.mxu0
          %v5087 = vadd.f32 %v4998, %v5086
          %5088 = vmatmul.bf16.gmra.mxu0 %v981
          %v5089 = vpop.f32.mrf.mxu0
          %v5090 = vadd.f32 %v5001, %v5089
          %v5091 = vpop.f32.mrf.mxu0
          %v5092 = vadd.f32 %v5003, %v5091
          %5093 = vmatmul.bf16.gmra.mxu0 %v985
          %v5094 = vpop.f32.mrf.mxu0
          %v5095 = vadd.f32 %v5006, %v5094
          %v5096 = vpop.f32.mrf.mxu0
          %v5097 = vadd.f32 %v5008, %v5096
          %5098 = vmatmul.bf16.gmra.mxu0 %v989
          %v5099 = vpop.f32.mrf.mxu0
          %v5100 = vadd.f32 %v5011, %v5099
          %v5101 = vpop.f32.mrf.mxu0
          %v5102 = vadd.f32 %v5013, %v5101
          %5103 = vmatmul.bf16.gmra.mxu0 %v993
          %v5104 = vpop.f32.mrf.mxu0
          %v5105 = vadd.f32 %v5016, %v5104
          %v5106 = vpop.f32.mrf.mxu0
          %v5107 = vadd.f32 %v5018, %v5106
          %5108 = vmatmul.bf16.gmra.mxu0 %v997
          %v5109 = vpop.f32.mrf.mxu0
          %v5110 = vadd.f32 %v5021, %v5109
          %v5111 = vpop.f32.mrf.mxu0
          %v5112 = vadd.f32 %v5023, %v5111
          %5113 = vmatmul.bf16.gmra.mxu0 %v1001
          %v5114 = vpop.f32.mrf.mxu0
          %v5115 = vadd.f32 %v5026, %v5114
          %v5116 = vpop.f32.mrf.mxu0
          %v5117 = vadd.f32 %v5028, %v5116
          %5118 = vmatmul.bf16.gmra.mxu0 %v1005
          %v5119 = vpop.f32.mrf.mxu0
          %v5120 = vadd.f32 %v5031, %v5119
          %v5121 = vpop.f32.mrf.mxu0
          %v5122 = vadd.f32 %v5033, %v5121
          %5123 = vmatmul.bf16.gmra.mxu0 %v1009
          %v5124 = vpop.f32.mrf.mxu0
          %v5125 = vadd.f32 %v5036, %v5124
          %v5126 = vpop.f32.mrf.mxu0
          %v5127 = vadd.f32 %v5038, %v5126
          %5128 = vmatmul.bf16.gmra.mxu0 %v1013
          %v5129 = vpop.f32.mrf.mxu0
          %v5130 = vadd.f32 %v5041, %v5129
          %v5131 = vpop.f32.mrf.mxu0
          %v5132 = vadd.f32 %v5043, %v5131
          %5133 = vdwg.mxu0
          %5134 = vmatpush.bf16.msra.mxu0 %v2320
          %5135 = vmatpush.bf16.msra.mxu0 %v2308
          %5136 = vmatpush.bf16.msra.mxu0 %v2296
          %5137 = vmatpush.bf16.msra.mxu0 %v2284
          %5138 = vmatpush.bf16.msra.mxu0 %v2272
          %5139 = vmatpush.bf16.msra.mxu0 %v2260
          %5140 = vmatpush.bf16.msra.mxu0 %v2248
          %5141 = vmatpush.bf16.msra.mxu0 %v2236
          %5142 = vmatmul.bf16.gmra.mxu0 %v950
          %v5143 = vpop.f32.mrf.mxu0
          %v5144 = vadd.f32 %v740, %v5143
          %v5145 = vpop.f32.mrf.mxu0
          %v5146 = vadd.f32 %v740, %v5145
          %5147 = vmatmul.bf16.gmra.mxu0 %v954
          %v5148 = vpop.f32.mrf.mxu0
          %v5149 = vadd.f32 %v740, %v5148
          %v5150 = vpop.f32.mrf.mxu0
          %v5151 = vadd.f32 %v740, %v5150
          %5152 = vmatmul.bf16.gmra.mxu0 %v958
          %v5153 = vpop.f32.mrf.mxu0
          %v5154 = vadd.f32 %v740, %v5153
          %v5155 = vpop.f32.mrf.mxu0
          %v5156 = vadd.f32 %v740, %v5155
          %5157 = vmatmul.bf16.gmra.mxu0 %v962
          %v5158 = vpop.f32.mrf.mxu0
          %v5159 = vadd.f32 %v740, %v5158
          %v5160 = vpop.f32.mrf.mxu0
          %v5161 = vadd.f32 %v740, %v5160
          %5162 = vmatmul.bf16.gmra.mxu0 %v966
          %v5163 = vpop.f32.mrf.mxu0
          %v5164 = vadd.f32 %v740, %v5163
          %v5165 = vpop.f32.mrf.mxu0
          %v5166 = vadd.f32 %v740, %v5165
          %5167 = vmatmul.bf16.gmra.mxu0 %v970
          %v5168 = vpop.f32.mrf.mxu0
          %v5169 = vadd.f32 %v740, %v5168
          %v5170 = vpop.f32.mrf.mxu0
          %v5171 = vadd.f32 %v740, %v5170
          %5172 = vmatmul.bf16.gmra.mxu0 %v974
          %v5173 = vpop.f32.mrf.mxu0
          %v5174 = vadd.f32 %v740, %v5173
          %v5175 = vpop.f32.mrf.mxu0
          %v5176 = vadd.f32 %v740, %v5175
          %5177 = vmatmul.bf16.gmra.mxu0 %v978
          %v5178 = vpop.f32.mrf.mxu0
          %v5179 = vadd.f32 %v740, %v5178
          %v5180 = vpop.f32.mrf.mxu0
          %v5181 = vadd.f32 %v740, %v5180
          %5182 = vmatmul.bf16.gmra.mxu0 %v982
          %v5183 = vpop.f32.mrf.mxu0
          %v5184 = vadd.f32 %v740, %v5183
          %v5185 = vpop.f32.mrf.mxu0
          %v5186 = vadd.f32 %v740, %v5185
          %5187 = vmatmul.bf16.gmra.mxu0 %v986
          %v5188 = vpop.f32.mrf.mxu0
          %v5189 = vadd.f32 %v740, %v5188
          %v5190 = vpop.f32.mrf.mxu0
          %v5191 = vadd.f32 %v740, %v5190
          %5192 = vmatmul.bf16.gmra.mxu0 %v990
          %v5193 = vpop.f32.mrf.mxu0
          %v5194 = vadd.f32 %v740, %v5193
          %v5195 = vpop.f32.mrf.mxu0
          %v5196 = vadd.f32 %v740, %v5195
          %5197 = vmatmul.bf16.gmra.mxu0 %v994
          %v5198 = vpop.f32.mrf.mxu0
          %v5199 = vadd.f32 %v740, %v5198
          %v5200 = vpop.f32.mrf.mxu0
          %v5201 = vadd.f32 %v740, %v5200
          %5202 = vmatmul.bf16.gmra.mxu0 %v998
          %v5203 = vpop.f32.mrf.mxu0
          %v5204 = vadd.f32 %v740, %v5203
          %v5205 = vpop.f32.mrf.mxu0
          %v5206 = vadd.f32 %v740, %v5205
          %5207 = vmatmul.bf16.gmra.mxu0 %v1002
          %v5208 = vpop.f32.mrf.mxu0
          %v5209 = vadd.f32 %v740, %v5208
          %v5210 = vpop.f32.mrf.mxu0
          %v5211 = vadd.f32 %v740, %v5210
          %5212 = vmatmul.bf16.gmra.mxu0 %v1006
          %v5213 = vpop.f32.mrf.mxu0
          %v5214 = vadd.f32 %v740, %v5213
          %v5215 = vpop.f32.mrf.mxu0
          %v5216 = vadd.f32 %v740, %v5215
          %5217 = vmatmul.bf16.gmra.mxu0 %v1010
          %v5218 = vpop.f32.mrf.mxu0
          %v5219 = vadd.f32 %v740, %v5218
          %v5220 = vpop.f32.mrf.mxu0
          %v5221 = vadd.f32 %v740, %v5220
          %5222 = vdwg.mxu0
          %5223 = vmatpush.bf16.msra.mxu0 %v2416
          %5224 = vmatpush.bf16.msra.mxu0 %v2404
          %5225 = vmatpush.bf16.msra.mxu0 %v2392
          %5226 = vmatpush.bf16.msra.mxu0 %v2380
          %5227 = vmatpush.bf16.msra.mxu0 %v2368
          %5228 = vmatpush.bf16.msra.mxu0 %v2356
          %5229 = vmatpush.bf16.msra.mxu0 %v2344
          %5230 = vmatpush.bf16.msra.mxu0 %v2332
          %5231 = vmatmul.bf16.gmra.mxu0 %v951
          %v5232 = vpop.f32.mrf.mxu0
          %v5233 = vadd.f32 %v5144, %v5232
          %v5234 = vpop.f32.mrf.mxu0
          %v5235 = vadd.f32 %v5146, %v5234
          %5236 = vmatmul.bf16.gmra.mxu0 %v955
          %v5237 = vpop.f32.mrf.mxu0
          %v5238 = vadd.f32 %v5149, %v5237
          %v5239 = vpop.f32.mrf.mxu0
          %v5240 = vadd.f32 %v5151, %v5239
          %5241 = vmatmul.bf16.gmra.mxu0 %v959
          %v5242 = vpop.f32.mrf.mxu0
          %v5243 = vadd.f32 %v5154, %v5242
          %v5244 = vpop.f32.mrf.mxu0
          %v5245 = vadd.f32 %v5156, %v5244
          %5246 = vmatmul.bf16.gmra.mxu0 %v963
          %v5247 = vpop.f32.mrf.mxu0
          %v5248 = vadd.f32 %v5159, %v5247
          %v5249 = vpop.f32.mrf.mxu0
          %v5250 = vadd.f32 %v5161, %v5249
          %5251 = vmatmul.bf16.gmra.mxu0 %v967
          %v5252 = vpop.f32.mrf.mxu0
          %v5253 = vadd.f32 %v5164, %v5252
          %v5254 = vpop.f32.mrf.mxu0
          %v5255 = vadd.f32 %v5166, %v5254
          %5256 = vmatmul.bf16.gmra.mxu0 %v971
          %v5257 = vpop.f32.mrf.mxu0
          %v5258 = vadd.f32 %v5169, %v5257
          %v5259 = vpop.f32.mrf.mxu0
          %v5260 = vadd.f32 %v5171, %v5259
          %5261 = vmatmul.bf16.gmra.mxu0 %v975
          %v5262 = vpop.f32.mrf.mxu0
          %v5263 = vadd.f32 %v5174, %v5262
          %v5264 = vpop.f32.mrf.mxu0
          %v5265 = vadd.f32 %v5176, %v5264
          %5266 = vmatmul.bf16.gmra.mxu0 %v979
          %v5267 = vpop.f32.mrf.mxu0
          %v5268 = vadd.f32 %v5179, %v5267
          %v5269 = vpop.f32.mrf.mxu0
          %v5270 = vadd.f32 %v5181, %v5269
          %5271 = vmatmul.bf16.gmra.mxu0 %v983
          %v5272 = vpop.f32.mrf.mxu0
          %v5273 = vadd.f32 %v5184, %v5272
          %v5274 = vpop.f32.mrf.mxu0
          %v5275 = vadd.f32 %v5186, %v5274
          %5276 = vmatmul.bf16.gmra.mxu0 %v987
          %v5277 = vpop.f32.mrf.mxu0
          %v5278 = vadd.f32 %v5189, %v5277
          %v5279 = vpop.f32.mrf.mxu0
          %v5280 = vadd.f32 %v5191, %v5279
          %5281 = vmatmul.bf16.gmra.mxu0 %v991
          %v5282 = vpop.f32.mrf.mxu0
          %v5283 = vadd.f32 %v5194, %v5282
          %v5284 = vpop.f32.mrf.mxu0
          %v5285 = vadd.f32 %v5196, %v5284
          %5286 = vmatmul.bf16.gmra.mxu0 %v995
          %v5287 = vpop.f32.mrf.mxu0
          %v5288 = vadd.f32 %v5199, %v5287
          %v5289 = vpop.f32.mrf.mxu0
          %v5290 = vadd.f32 %v5201, %v5289
          %5291 = vmatmul.bf16.gmra.mxu0 %v999
          %v5292 = vpop.f32.mrf.mxu0
          %v5293 = vadd.f32 %v5204, %v5292
          %v5294 = vpop.f32.mrf.mxu0
          %v5295 = vadd.f32 %v5206, %v5294
          %5296 = vmatmul.bf16.gmra.mxu0 %v1003
          %v5297 = vpop.f32.mrf.mxu0
          %v5298 = vadd.f32 %v5209, %v5297
          %v5299 = vpop.f32.mrf.mxu0
          %v5300 = vadd.f32 %v5211, %v5299
          %5301 = vmatmul.bf16.gmra.mxu0 %v1007
          %v5302 = vpop.f32.mrf.mxu0
          %v5303 = vadd.f32 %v5214, %v5302
          %v5304 = vpop.f32.mrf.mxu0
          %v5305 = vadd.f32 %v5216, %v5304
          %5306 = vmatmul.bf16.gmra.mxu0 %v1011
          %v5307 = vpop.f32.mrf.mxu0
          %v5308 = vadd.f32 %v5219, %v5307
          %v5309 = vpop.f32.mrf.mxu0
          %v5310 = vadd.f32 %v5221, %v5309
          %5311 = vdwg.mxu0
          %5312 = vmatpush.bf16.msra.mxu0 %v2512
          %5313 = vmatpush.bf16.msra.mxu0 %v2500
          %5314 = vmatpush.bf16.msra.mxu0 %v2488
          %5315 = vmatpush.bf16.msra.mxu0 %v2476
          %5316 = vmatpush.bf16.msra.mxu0 %v2464
          %5317 = vmatpush.bf16.msra.mxu0 %v2452
          %5318 = vmatpush.bf16.msra.mxu0 %v2440
          %5319 = vmatpush.bf16.msra.mxu0 %v2428
          %5320 = vmatmul.bf16.gmra.mxu0 %v952
          %v5321 = vpop.f32.mrf.mxu0
          %v5322 = vadd.f32 %v5233, %v5321
          %v5323 = vpop.f32.mrf.mxu0
          %v5324 = vadd.f32 %v5235, %v5323
          %5325 = vmatmul.bf16.gmra.mxu0 %v956
          %v5326 = vpop.f32.mrf.mxu0
          %v5327 = vadd.f32 %v5238, %v5326
          %v5328 = vpop.f32.mrf.mxu0
          %v5329 = vadd.f32 %v5240, %v5328
          %5330 = vmatmul.bf16.gmra.mxu0 %v960
          %v5331 = vpop.f32.mrf.mxu0
          %v5332 = vadd.f32 %v5243, %v5331
          %v5333 = vpop.f32.mrf.mxu0
          %v5334 = vadd.f32 %v5245, %v5333
          %5335 = vmatmul.bf16.gmra.mxu0 %v964
          %v5336 = vpop.f32.mrf.mxu0
          %v5337 = vadd.f32 %v5248, %v5336
          %v5338 = vpop.f32.mrf.mxu0
          %v5339 = vadd.f32 %v5250, %v5338
          %5340 = vmatmul.bf16.gmra.mxu0 %v968
          %v5341 = vpop.f32.mrf.mxu0
          %v5342 = vadd.f32 %v5253, %v5341
          %v5343 = vpop.f32.mrf.mxu0
          %v5344 = vadd.f32 %v5255, %v5343
          %5345 = vmatmul.bf16.gmra.mxu0 %v972
          %v5346 = vpop.f32.mrf.mxu0
          %v5347 = vadd.f32 %v5258, %v5346
          %v5348 = vpop.f32.mrf.mxu0
          %v5349 = vadd.f32 %v5260, %v5348
          %5350 = vmatmul.bf16.gmra.mxu0 %v976
          %v5351 = vpop.f32.mrf.mxu0
          %v5352 = vadd.f32 %v5263, %v5351
          %v5353 = vpop.f32.mrf.mxu0
          %v5354 = vadd.f32 %v5265, %v5353
          %5355 = vmatmul.bf16.gmra.mxu0 %v980
          %v5356 = vpop.f32.mrf.mxu0
          %v5357 = vadd.f32 %v5268, %v5356
          %v5358 = vpop.f32.mrf.mxu0
          %v5359 = vadd.f32 %v5270, %v5358
          %5360 = vmatmul.bf16.gmra.mxu0 %v984
          %v5361 = vpop.f32.mrf.mxu0
          %v5362 = vadd.f32 %v5273, %v5361
          %v5363 = vpop.f32.mrf.mxu0
          %v5364 = vadd.f32 %v5275, %v5363
          %5365 = vmatmul.bf16.gmra.mxu0 %v988
          %v5366 = vpop.f32.mrf.mxu0
          %v5367 = vadd.f32 %v5278, %v5366
          %v5368 = vpop.f32.mrf.mxu0
          %v5369 = vadd.f32 %v5280, %v5368
          %5370 = vmatmul.bf16.gmra.mxu0 %v992
          %v5371 = vpop.f32.mrf.mxu0
          %v5372 = vadd.f32 %v5283, %v5371
          %v5373 = vpop.f32.mrf.mxu0
          %v5374 = vadd.f32 %v5285, %v5373
          %5375 = vmatmul.bf16.gmra.mxu0 %v996
          %v5376 = vpop.f32.mrf.mxu0
          %v5377 = vadd.f32 %v5288, %v5376
          %v5378 = vpop.f32.mrf.mxu0
          %v5379 = vadd.f32 %v5290, %v5378
          %5380 = vmatmul.bf16.gmra.mxu0 %v1000
          %v5381 = vpop.f32.mrf.mxu0
          %v5382 = vadd.f32 %v5293, %v5381
          %v5383 = vpop.f32.mrf.mxu0
          %v5384 = vadd.f32 %v5295, %v5383
          %5385 = vmatmul.bf16.gmra.mxu0 %v1004
          %v5386 = vpop.f32.mrf.mxu0
          %v5387 = vadd.f32 %v5298, %v5386
          %v5388 = vpop.f32.mrf.mxu0
          %v5389 = vadd.f32 %v5300, %v5388
          %5390 = vmatmul.bf16.gmra.mxu0 %v1008
          %v5391 = vpop.f32.mrf.mxu0
          %v5392 = vadd.f32 %v5303, %v5391
          %v5393 = vpop.f32.mrf.mxu0
          %v5394 = vadd.f32 %v5305, %v5393
          %5395 = vmatmul.bf16.gmra.mxu0 %v1012
          %v5396 = vpop.f32.mrf.mxu0
          %v5397 = vadd.f32 %v5308, %v5396
          %v5398 = vpop.f32.mrf.mxu0
          %v5399 = vadd.f32 %v5310, %v5398
          %5400 = vdwg.mxu0
          %5401 = vmatpush.bf16.msra.mxu0 %v2608
          %5402 = vmatpush.bf16.msra.mxu0 %v2596
          %5403 = vmatpush.bf16.msra.mxu0 %v2584
          %5404 = vmatpush.bf16.msra.mxu0 %v2572
          %5405 = vmatpush.bf16.msra.mxu0 %v2560
          %5406 = vmatpush.bf16.msra.mxu0 %v2548
          %5407 = vmatpush.bf16.msra.mxu0 %v2536
          %5408 = vmatpush.bf16.msra.mxu0 %v2524
          %5409 = vmatmul.bf16.gmra.mxu0 %v953
          %v5410 = vpop.f32.mrf.mxu0
          %v5411 = vadd.f32 %v5322, %v5410
          %v5412 = vpop.f32.mrf.mxu0
          %v5413 = vadd.f32 %v5324, %v5412
          %5414 = vmatmul.bf16.gmra.mxu0 %v957
          %v5415 = vpop.f32.mrf.mxu0
          %v5416 = vadd.f32 %v5327, %v5415
          %v5417 = vpop.f32.mrf.mxu0
          %v5418 = vadd.f32 %v5329, %v5417
          %5419 = vmatmul.bf16.gmra.mxu0 %v961
          %v5420 = vpop.f32.mrf.mxu0
          %v5421 = vadd.f32 %v5332, %v5420
          %v5422 = vpop.f32.mrf.mxu0
          %v5423 = vadd.f32 %v5334, %v5422
          %5424 = vmatmul.bf16.gmra.mxu0 %v965
          %v5425 = vpop.f32.mrf.mxu0
          %v5426 = vadd.f32 %v5337, %v5425
          %v5427 = vpop.f32.mrf.mxu0
          %v5428 = vadd.f32 %v5339, %v5427
          %5429 = vmatmul.bf16.gmra.mxu0 %v969
          %v5430 = vpop.f32.mrf.mxu0
          %v5431 = vadd.f32 %v5342, %v5430
          %v5432 = vpop.f32.mrf.mxu0
          %v5433 = vadd.f32 %v5344, %v5432
          %5434 = vmatmul.bf16.gmra.mxu0 %v973
          %v5435 = vpop.f32.mrf.mxu0
          %v5436 = vadd.f32 %v5347, %v5435
          %v5437 = vpop.f32.mrf.mxu0
          %v5438 = vadd.f32 %v5349, %v5437
          %5439 = vmatmul.bf16.gmra.mxu0 %v977
          %v5440 = vpop.f32.mrf.mxu0
          %v5441 = vadd.f32 %v5352, %v5440
          %v5442 = vpop.f32.mrf.mxu0
          %v5443 = vadd.f32 %v5354, %v5442
          %5444 = vmatmul.bf16.gmra.mxu0 %v981
          %v5445 = vpop.f32.mrf.mxu0
          %v5446 = vadd.f32 %v5357, %v5445
          %v5447 = vpop.f32.mrf.mxu0
          %v5448 = vadd.f32 %v5359, %v5447
          %5449 = vmatmul.bf16.gmra.mxu0 %v985
          %v5450 = vpop.f32.mrf.mxu0
          %v5451 = vadd.f32 %v5362, %v5450
          %v5452 = vpop.f32.mrf.mxu0
          %v5453 = vadd.f32 %v5364, %v5452
          %5454 = vmatmul.bf16.gmra.mxu0 %v989
          %v5455 = vpop.f32.mrf.mxu0
          %v5456 = vadd.f32 %v5367, %v5455
          %v5457 = vpop.f32.mrf.mxu0
          %v5458 = vadd.f32 %v5369, %v5457
          %5459 = vmatmul.bf16.gmra.mxu0 %v993
          %v5460 = vpop.f32.mrf.mxu0
          %v5461 = vadd.f32 %v5372, %v5460
          %v5462 = vpop.f32.mrf.mxu0
          %v5463 = vadd.f32 %v5374, %v5462
          %5464 = vmatmul.bf16.gmra.mxu0 %v997
          %v5465 = vpop.f32.mrf.mxu0
          %v5466 = vadd.f32 %v5377, %v5465
          %v5467 = vpop.f32.mrf.mxu0
          %v5468 = vadd.f32 %v5379, %v5467
          %5469 = vmatmul.bf16.gmra.mxu0 %v1001
          %v5470 = vpop.f32.mrf.mxu0
          %v5471 = vadd.f32 %v5382, %v5470
          %v5472 = vpop.f32.mrf.mxu0
          %v5473 = vadd.f32 %v5384, %v5472
          %5474 = vmatmul.bf16.gmra.mxu0 %v1005
          %v5475 = vpop.f32.mrf.mxu0
          %v5476 = vadd.f32 %v5387, %v5475
          %v5477 = vpop.f32.mrf.mxu0
          %v5478 = vadd.f32 %v5389, %v5477
          %5479 = vmatmul.bf16.gmra.mxu0 %v1009
          %v5480 = vpop.f32.mrf.mxu0
          %v5481 = vadd.f32 %v5392, %v5480
          %v5482 = vpop.f32.mrf.mxu0
          %v5483 = vadd.f32 %v5394, %v5482
          %5484 = vmatmul.bf16.gmra.mxu0 %v1013
          %v5485 = vpop.f32.mrf.mxu0
          %v5486 = vadd.f32 %v5397, %v5485
          %v5487 = vpop.f32.mrf.mxu0
          %v5488 = vadd.f32 %v5399, %v5487
          %5489 = vdwg.mxu0
          %5490 = vmatpush.bf16.msra.mxu0 %v2321
          %5491 = vmatpush.bf16.msra.mxu0 %v2309
          %5492 = vmatpush.bf16.msra.mxu0 %v2297
          %5493 = vmatpush.bf16.msra.mxu0 %v2285
          %5494 = vmatpush.bf16.msra.mxu0 %v2273
          %5495 = vmatpush.bf16.msra.mxu0 %v2261
          %5496 = vmatpush.bf16.msra.mxu0 %v2249
          %5497 = vmatpush.bf16.msra.mxu0 %v2237
          %5498 = vmatmul.bf16.gmra.mxu0 %v950
          %v5499 = vpop.f32.mrf.mxu0
          %v5500 = vadd.f32 %v741, %v5499
          %v5501 = vpop.f32.mrf.mxu0
          %v5502 = vadd.f32 %v741, %v5501
          %5503 = vmatmul.bf16.gmra.mxu0 %v954
          %v5504 = vpop.f32.mrf.mxu0
          %v5505 = vadd.f32 %v741, %v5504
          %v5506 = vpop.f32.mrf.mxu0
          %v5507 = vadd.f32 %v741, %v5506
          %5508 = vmatmul.bf16.gmra.mxu0 %v958
          %v5509 = vpop.f32.mrf.mxu0
          %v5510 = vadd.f32 %v741, %v5509
          %v5511 = vpop.f32.mrf.mxu0
          %v5512 = vadd.f32 %v741, %v5511
          %5513 = vmatmul.bf16.gmra.mxu0 %v962
          %v5514 = vpop.f32.mrf.mxu0
          %v5515 = vadd.f32 %v741, %v5514
          %v5516 = vpop.f32.mrf.mxu0
          %v5517 = vadd.f32 %v741, %v5516
          %5518 = vmatmul.bf16.gmra.mxu0 %v966
          %v5519 = vpop.f32.mrf.mxu0
          %v5520 = vadd.f32 %v741, %v5519
          %v5521 = vpop.f32.mrf.mxu0
          %v5522 = vadd.f32 %v741, %v5521
          %5523 = vmatmul.bf16.gmra.mxu0 %v970
          %v5524 = vpop.f32.mrf.mxu0
          %v5525 = vadd.f32 %v741, %v5524
          %v5526 = vpop.f32.mrf.mxu0
          %v5527 = vadd.f32 %v741, %v5526
          %5528 = vmatmul.bf16.gmra.mxu0 %v974
          %v5529 = vpop.f32.mrf.mxu0
          %v5530 = vadd.f32 %v741, %v5529
          %v5531 = vpop.f32.mrf.mxu0
          %v5532 = vadd.f32 %v741, %v5531
          %5533 = vmatmul.bf16.gmra.mxu0 %v978
          %v5534 = vpop.f32.mrf.mxu0
          %v5535 = vadd.f32 %v741, %v5534
          %v5536 = vpop.f32.mrf.mxu0
          %v5537 = vadd.f32 %v741, %v5536
          %5538 = vmatmul.bf16.gmra.mxu0 %v982
          %v5539 = vpop.f32.mrf.mxu0
          %v5540 = vadd.f32 %v741, %v5539
          %v5541 = vpop.f32.mrf.mxu0
          %v5542 = vadd.f32 %v741, %v5541
          %5543 = vmatmul.bf16.gmra.mxu0 %v986
          %v5544 = vpop.f32.mrf.mxu0
          %v5545 = vadd.f32 %v741, %v5544
          %v5546 = vpop.f32.mrf.mxu0
          %v5547 = vadd.f32 %v741, %v5546
          %5548 = vmatmul.bf16.gmra.mxu0 %v990
          %v5549 = vpop.f32.mrf.mxu0
          %v5550 = vadd.f32 %v741, %v5549
          %v5551 = vpop.f32.mrf.mxu0
          %v5552 = vadd.f32 %v741, %v5551
          %5553 = vmatmul.bf16.gmra.mxu0 %v994
          %v5554 = vpop.f32.mrf.mxu0
          %v5555 = vadd.f32 %v741, %v5554
          %v5556 = vpop.f32.mrf.mxu0
          %v5557 = vadd.f32 %v741, %v5556
          %5558 = vmatmul.bf16.gmra.mxu0 %v998
          %v5559 = vpop.f32.mrf.mxu0
          %v5560 = vadd.f32 %v741, %v5559
          %v5561 = vpop.f32.mrf.mxu0
          %v5562 = vadd.f32 %v741, %v5561
          %5563 = vmatmul.bf16.gmra.mxu0 %v1002
          %v5564 = vpop.f32.mrf.mxu0
          %v5565 = vadd.f32 %v741, %v5564
          %v5566 = vpop.f32.mrf.mxu0
          %v5567 = vadd.f32 %v741, %v5566
          %5568 = vmatmul.bf16.gmra.mxu0 %v1006
          %v5569 = vpop.f32.mrf.mxu0
          %v5570 = vadd.f32 %v741, %v5569
          %v5571 = vpop.f32.mrf.mxu0
          %v5572 = vadd.f32 %v741, %v5571
          %5573 = vmatmul.bf16.gmra.mxu0 %v1010
          %v5574 = vpop.f32.mrf.mxu0
          %v5575 = vadd.f32 %v741, %v5574
          %v5576 = vpop.f32.mrf.mxu0
          %v5577 = vadd.f32 %v741, %v5576
          %5578 = vdwg.mxu0
          %5579 = vmatpush.bf16.msra.mxu0 %v2417
          %5580 = vmatpush.bf16.msra.mxu0 %v2405
          %5581 = vmatpush.bf16.msra.mxu0 %v2393
          %5582 = vmatpush.bf16.msra.mxu0 %v2381
          %5583 = vmatpush.bf16.msra.mxu0 %v2369
          %5584 = vmatpush.bf16.msra.mxu0 %v2357
          %5585 = vmatpush.bf16.msra.mxu0 %v2345
          %5586 = vmatpush.bf16.msra.mxu0 %v2333
          %5587 = vmatmul.bf16.gmra.mxu0 %v951
          %v5588 = vpop.f32.mrf.mxu0
          %v5589 = vadd.f32 %v5500, %v5588
          %v5590 = vpop.f32.mrf.mxu0
          %v5591 = vadd.f32 %v5502, %v5590
          %5592 = vmatmul.bf16.gmra.mxu0 %v955
          %v5593 = vpop.f32.mrf.mxu0
          %v5594 = vadd.f32 %v5505, %v5593
          %v5595 = vpop.f32.mrf.mxu0
          %v5596 = vadd.f32 %v5507, %v5595
          %5597 = vmatmul.bf16.gmra.mxu0 %v959
          %v5598 = vpop.f32.mrf.mxu0
          %v5599 = vadd.f32 %v5510, %v5598
          %v5600 = vpop.f32.mrf.mxu0
          %v5601 = vadd.f32 %v5512, %v5600
          %5602 = vmatmul.bf16.gmra.mxu0 %v963
          %v5603 = vpop.f32.mrf.mxu0
          %v5604 = vadd.f32 %v5515, %v5603
          %v5605 = vpop.f32.mrf.mxu0
          %v5606 = vadd.f32 %v5517, %v5605
          %5607 = vmatmul.bf16.gmra.mxu0 %v967
          %v5608 = vpop.f32.mrf.mxu0
          %v5609 = vadd.f32 %v5520, %v5608
          %v5610 = vpop.f32.mrf.mxu0
          %v5611 = vadd.f32 %v5522, %v5610
          %5612 = vmatmul.bf16.gmra.mxu0 %v971
          %v5613 = vpop.f32.mrf.mxu0
          %v5614 = vadd.f32 %v5525, %v5613
          %v5615 = vpop.f32.mrf.mxu0
          %v5616 = vadd.f32 %v5527, %v5615
          %5617 = vmatmul.bf16.gmra.mxu0 %v975
          %v5618 = vpop.f32.mrf.mxu0
          %v5619 = vadd.f32 %v5530, %v5618
          %v5620 = vpop.f32.mrf.mxu0
          %v5621 = vadd.f32 %v5532, %v5620
          %5622 = vmatmul.bf16.gmra.mxu0 %v979
          %v5623 = vpop.f32.mrf.mxu0
          %v5624 = vadd.f32 %v5535, %v5623
          %v5625 = vpop.f32.mrf.mxu0
          %v5626 = vadd.f32 %v5537, %v5625
          %5627 = vmatmul.bf16.gmra.mxu0 %v983
          %v5628 = vpop.f32.mrf.mxu0
          %v5629 = vadd.f32 %v5540, %v5628
          %v5630 = vpop.f32.mrf.mxu0
          %v5631 = vadd.f32 %v5542, %v5630
          %5632 = vmatmul.bf16.gmra.mxu0 %v987
          %v5633 = vpop.f32.mrf.mxu0
          %v5634 = vadd.f32 %v5545, %v5633
          %v5635 = vpop.f32.mrf.mxu0
          %v5636 = vadd.f32 %v5547, %v5635
          %5637 = vmatmul.bf16.gmra.mxu0 %v991
          %v5638 = vpop.f32.mrf.mxu0
          %v5639 = vadd.f32 %v5550, %v5638
          %v5640 = vpop.f32.mrf.mxu0
          %v5641 = vadd.f32 %v5552, %v5640
          %5642 = vmatmul.bf16.gmra.mxu0 %v995
          %v5643 = vpop.f32.mrf.mxu0
          %v5644 = vadd.f32 %v5555, %v5643
          %v5645 = vpop.f32.mrf.mxu0
          %v5646 = vadd.f32 %v5557, %v5645
          %5647 = vmatmul.bf16.gmra.mxu0 %v999
          %v5648 = vpop.f32.mrf.mxu0
          %v5649 = vadd.f32 %v5560, %v5648
          %v5650 = vpop.f32.mrf.mxu0
          %v5651 = vadd.f32 %v5562, %v5650
          %5652 = vmatmul.bf16.gmra.mxu0 %v1003
          %v5653 = vpop.f32.mrf.mxu0
          %v5654 = vadd.f32 %v5565, %v5653
          %v5655 = vpop.f32.mrf.mxu0
          %v5656 = vadd.f32 %v5567, %v5655
          %5657 = vmatmul.bf16.gmra.mxu0 %v1007
          %v5658 = vpop.f32.mrf.mxu0
          %v5659 = vadd.f32 %v5570, %v5658
          %v5660 = vpop.f32.mrf.mxu0
          %v5661 = vadd.f32 %v5572, %v5660
          %5662 = vmatmul.bf16.gmra.mxu0 %v1011
          %v5663 = vpop.f32.mrf.mxu0
          %v5664 = vadd.f32 %v5575, %v5663
          %v5665 = vpop.f32.mrf.mxu0
          %v5666 = vadd.f32 %v5577, %v5665
          %5667 = vdwg.mxu0
          %5668 = vmatpush.bf16.msra.mxu0 %v2513
          %5669 = vmatpush.bf16.msra.mxu0 %v2501
          %5670 = vmatpush.bf16.msra.mxu0 %v2489
          %5671 = vmatpush.bf16.msra.mxu0 %v2477
          %5672 = vmatpush.bf16.msra.mxu0 %v2465
          %5673 = vmatpush.bf16.msra.mxu0 %v2453
          %5674 = vmatpush.bf16.msra.mxu0 %v2441
          %5675 = vmatpush.bf16.msra.mxu0 %v2429
          %5676 = vmatmul.bf16.gmra.mxu0 %v952
          %v5677 = vpop.f32.mrf.mxu0
          %v5678 = vadd.f32 %v5589, %v5677
          %v5679 = vpop.f32.mrf.mxu0
          %v5680 = vadd.f32 %v5591, %v5679
          %5681 = vmatmul.bf16.gmra.mxu0 %v956
          %v5682 = vpop.f32.mrf.mxu0
          %v5683 = vadd.f32 %v5594, %v5682
          %v5684 = vpop.f32.mrf.mxu0
          %v5685 = vadd.f32 %v5596, %v5684
          %5686 = vmatmul.bf16.gmra.mxu0 %v960
          %v5687 = vpop.f32.mrf.mxu0
          %v5688 = vadd.f32 %v5599, %v5687
          %v5689 = vpop.f32.mrf.mxu0
          %v5690 = vadd.f32 %v5601, %v5689
          %5691 = vmatmul.bf16.gmra.mxu0 %v964
          %v5692 = vpop.f32.mrf.mxu0
          %v5693 = vadd.f32 %v5604, %v5692
          %v5694 = vpop.f32.mrf.mxu0
          %v5695 = vadd.f32 %v5606, %v5694
          %5696 = vmatmul.bf16.gmra.mxu0 %v968
          %v5697 = vpop.f32.mrf.mxu0
          %v5698 = vadd.f32 %v5609, %v5697
          %v5699 = vpop.f32.mrf.mxu0
          %v5700 = vadd.f32 %v5611, %v5699
          %5701 = vmatmul.bf16.gmra.mxu0 %v972
          %v5702 = vpop.f32.mrf.mxu0
          %v5703 = vadd.f32 %v5614, %v5702
          %v5704 = vpop.f32.mrf.mxu0
          %v5705 = vadd.f32 %v5616, %v5704
          %5706 = vmatmul.bf16.gmra.mxu0 %v976
          %v5707 = vpop.f32.mrf.mxu0
          %v5708 = vadd.f32 %v5619, %v5707
          %v5709 = vpop.f32.mrf.mxu0
          %v5710 = vadd.f32 %v5621, %v5709
          %5711 = vmatmul.bf16.gmra.mxu0 %v980
          %v5712 = vpop.f32.mrf.mxu0
          %v5713 = vadd.f32 %v5624, %v5712
          %v5714 = vpop.f32.mrf.mxu0
          %v5715 = vadd.f32 %v5626, %v5714
          %5716 = vmatmul.bf16.gmra.mxu0 %v984
          %v5717 = vpop.f32.mrf.mxu0
          %v5718 = vadd.f32 %v5629, %v5717
          %v5719 = vpop.f32.mrf.mxu0
          %v5720 = vadd.f32 %v5631, %v5719
          %5721 = vmatmul.bf16.gmra.mxu0 %v988
          %v5722 = vpop.f32.mrf.mxu0
          %v5723 = vadd.f32 %v5634, %v5722
          %v5724 = vpop.f32.mrf.mxu0
          %v5725 = vadd.f32 %v5636, %v5724
          %5726 = vmatmul.bf16.gmra.mxu0 %v992
          %v5727 = vpop.f32.mrf.mxu0
          %v5728 = vadd.f32 %v5639, %v5727
          %v5729 = vpop.f32.mrf.mxu0
          %v5730 = vadd.f32 %v5641, %v5729
          %5731 = vmatmul.bf16.gmra.mxu0 %v996
          %v5732 = vpop.f32.mrf.mxu0
          %v5733 = vadd.f32 %v5644, %v5732
          %v5734 = vpop.f32.mrf.mxu0
          %v5735 = vadd.f32 %v5646, %v5734
          %5736 = vmatmul.bf16.gmra.mxu0 %v1000
          %v5737 = vpop.f32.mrf.mxu0
          %v5738 = vadd.f32 %v5649, %v5737
          %v5739 = vpop.f32.mrf.mxu0
          %v5740 = vadd.f32 %v5651, %v5739
          %5741 = vmatmul.bf16.gmra.mxu0 %v1004
          %v5742 = vpop.f32.mrf.mxu0
          %v5743 = vadd.f32 %v5654, %v5742
          %v5744 = vpop.f32.mrf.mxu0
          %v5745 = vadd.f32 %v5656, %v5744
          %5746 = vmatmul.bf16.gmra.mxu0 %v1008
          %v5747 = vpop.f32.mrf.mxu0
          %v5748 = vadd.f32 %v5659, %v5747
          %v5749 = vpop.f32.mrf.mxu0
          %v5750 = vadd.f32 %v5661, %v5749
          %5751 = vmatmul.bf16.gmra.mxu0 %v1012
          %v5752 = vpop.f32.mrf.mxu0
          %v5753 = vadd.f32 %v5664, %v5752
          %v5754 = vpop.f32.mrf.mxu0
          %v5755 = vadd.f32 %v5666, %v5754
          %5756 = vdwg.mxu0
          %5757 = vmatpush.bf16.msra.mxu0 %v2609
          %5758 = vmatpush.bf16.msra.mxu0 %v2597
          %5759 = vmatpush.bf16.msra.mxu0 %v2585
          %5760 = vmatpush.bf16.msra.mxu0 %v2573
          %5761 = vmatpush.bf16.msra.mxu0 %v2561
          %5762 = vmatpush.bf16.msra.mxu0 %v2549
          %5763 = vmatpush.bf16.msra.mxu0 %v2537
          %5764 = vmatpush.bf16.msra.mxu0 %v2525
          %5765 = vmatmul.bf16.gmra.mxu0 %v953
          %v5766 = vpop.f32.mrf.mxu0
          %v5767 = vadd.f32 %v5678, %v5766
          %v5768 = vpop.f32.mrf.mxu0
          %v5769 = vadd.f32 %v5680, %v5768
          %5770 = vmatmul.bf16.gmra.mxu0 %v957
          %v5771 = vpop.f32.mrf.mxu0
          %v5772 = vadd.f32 %v5683, %v5771
          %v5773 = vpop.f32.mrf.mxu0
          %v5774 = vadd.f32 %v5685, %v5773
          %5775 = vmatmul.bf16.gmra.mxu0 %v961
          %v5776 = vpop.f32.mrf.mxu0
          %v5777 = vadd.f32 %v5688, %v5776
          %v5778 = vpop.f32.mrf.mxu0
          %v5779 = vadd.f32 %v5690, %v5778
          %5780 = vmatmul.bf16.gmra.mxu0 %v965
          %v5781 = vpop.f32.mrf.mxu0
          %v5782 = vadd.f32 %v5693, %v5781
          %v5783 = vpop.f32.mrf.mxu0
          %v5784 = vadd.f32 %v5695, %v5783
          %5785 = vmatmul.bf16.gmra.mxu0 %v969
          %v5786 = vpop.f32.mrf.mxu0
          %v5787 = vadd.f32 %v5698, %v5786
          %v5788 = vpop.f32.mrf.mxu0
          %v5789 = vadd.f32 %v5700, %v5788
          %5790 = vmatmul.bf16.gmra.mxu0 %v973
          %v5791 = vpop.f32.mrf.mxu0
          %v5792 = vadd.f32 %v5703, %v5791
          %v5793 = vpop.f32.mrf.mxu0
          %v5794 = vadd.f32 %v5705, %v5793
          %5795 = vmatmul.bf16.gmra.mxu0 %v977
          %v5796 = vpop.f32.mrf.mxu0
          %v5797 = vadd.f32 %v5708, %v5796
          %v5798 = vpop.f32.mrf.mxu0
          %v5799 = vadd.f32 %v5710, %v5798
          %5800 = vmatmul.bf16.gmra.mxu0 %v981
          %v5801 = vpop.f32.mrf.mxu0
          %v5802 = vadd.f32 %v5713, %v5801
          %v5803 = vpop.f32.mrf.mxu0
          %v5804 = vadd.f32 %v5715, %v5803
          %5805 = vmatmul.bf16.gmra.mxu0 %v985
          %v5806 = vpop.f32.mrf.mxu0
          %v5807 = vadd.f32 %v5718, %v5806
          %v5808 = vpop.f32.mrf.mxu0
          %v5809 = vadd.f32 %v5720, %v5808
          %5810 = vmatmul.bf16.gmra.mxu0 %v989
          %v5811 = vpop.f32.mrf.mxu0
          %v5812 = vadd.f32 %v5723, %v5811
          %v5813 = vpop.f32.mrf.mxu0
          %v5814 = vadd.f32 %v5725, %v5813
          %5815 = vmatmul.bf16.gmra.mxu0 %v993
          %v5816 = vpop.f32.mrf.mxu0
          %v5817 = vadd.f32 %v5728, %v5816
          %v5818 = vpop.f32.mrf.mxu0
          %v5819 = vadd.f32 %v5730, %v5818
          %5820 = vmatmul.bf16.gmra.mxu0 %v997
          %v5821 = vpop.f32.mrf.mxu0
          %v5822 = vadd.f32 %v5733, %v5821
          %v5823 = vpop.f32.mrf.mxu0
          %v5824 = vadd.f32 %v5735, %v5823
          %5825 = vmatmul.bf16.gmra.mxu0 %v1001
          %v5826 = vpop.f32.mrf.mxu0
          %v5827 = vadd.f32 %v5738, %v5826
          %v5828 = vpop.f32.mrf.mxu0
          %v5829 = vadd.f32 %v5740, %v5828
          %5830 = vmatmul.bf16.gmra.mxu0 %v1005
          %v5831 = vpop.f32.mrf.mxu0
          %v5832 = vadd.f32 %v5743, %v5831
          %v5833 = vpop.f32.mrf.mxu0
          %v5834 = vadd.f32 %v5745, %v5833
          %5835 = vmatmul.bf16.gmra.mxu0 %v1009
          %v5836 = vpop.f32.mrf.mxu0
          %v5837 = vadd.f32 %v5748, %v5836
          %v5838 = vpop.f32.mrf.mxu0
          %v5839 = vadd.f32 %v5750, %v5838
          %5840 = vmatmul.bf16.gmra.mxu0 %v1013
          %v5841 = vpop.f32.mrf.mxu0
          %v5842 = vadd.f32 %v5753, %v5841
          %v5843 = vpop.f32.mrf.mxu0
          %v5844 = vadd.f32 %v5755, %v5843
          %5845 = vdwg.mxu0
          %5846 = vmatpush.bf16.msra.mxu0 %v2322
          %5847 = vmatpush.bf16.msra.mxu0 %v2310
          %5848 = vmatpush.bf16.msra.mxu0 %v2298
          %5849 = vmatpush.bf16.msra.mxu0 %v2286
          %5850 = vmatpush.bf16.msra.mxu0 %v2274
          %5851 = vmatpush.bf16.msra.mxu0 %v2262
          %5852 = vmatpush.bf16.msra.mxu0 %v2250
          %5853 = vmatpush.bf16.msra.mxu0 %v2238
          %5854 = vmatmul.bf16.gmra.mxu0 %v950
          %v5855 = vpop.f32.mrf.mxu0
          %v5856 = vadd.f32 %v742, %v5855
          %v5857 = vpop.f32.mrf.mxu0
          %v5858 = vadd.f32 %v742, %v5857
          %5859 = vmatmul.bf16.gmra.mxu0 %v954
          %v5860 = vpop.f32.mrf.mxu0
          %v5861 = vadd.f32 %v742, %v5860
          %v5862 = vpop.f32.mrf.mxu0
          %v5863 = vadd.f32 %v742, %v5862
          %5864 = vmatmul.bf16.gmra.mxu0 %v958
          %v5865 = vpop.f32.mrf.mxu0
          %v5866 = vadd.f32 %v742, %v5865
          %v5867 = vpop.f32.mrf.mxu0
          %v5868 = vadd.f32 %v742, %v5867
          %5869 = vmatmul.bf16.gmra.mxu0 %v962
          %v5870 = vpop.f32.mrf.mxu0
          %v5871 = vadd.f32 %v742, %v5870
          %v5872 = vpop.f32.mrf.mxu0
          %v5873 = vadd.f32 %v742, %v5872
          %5874 = vmatmul.bf16.gmra.mxu0 %v966
          %v5875 = vpop.f32.mrf.mxu0
          %v5876 = vadd.f32 %v742, %v5875
          %v5877 = vpop.f32.mrf.mxu0
          %v5878 = vadd.f32 %v742, %v5877
          %5879 = vmatmul.bf16.gmra.mxu0 %v970
          %v5880 = vpop.f32.mrf.mxu0
          %v5881 = vadd.f32 %v742, %v5880
          %v5882 = vpop.f32.mrf.mxu0
          %v5883 = vadd.f32 %v742, %v5882
          %5884 = vmatmul.bf16.gmra.mxu0 %v974
          %v5885 = vpop.f32.mrf.mxu0
          %v5886 = vadd.f32 %v742, %v5885
          %v5887 = vpop.f32.mrf.mxu0
          %v5888 = vadd.f32 %v742, %v5887
          %5889 = vmatmul.bf16.gmra.mxu0 %v978
          %v5890 = vpop.f32.mrf.mxu0
          %v5891 = vadd.f32 %v742, %v5890
          %v5892 = vpop.f32.mrf.mxu0
          %v5893 = vadd.f32 %v742, %v5892
          %5894 = vmatmul.bf16.gmra.mxu0 %v982
          %v5895 = vpop.f32.mrf.mxu0
          %v5896 = vadd.f32 %v742, %v5895
          %v5897 = vpop.f32.mrf.mxu0
          %v5898 = vadd.f32 %v742, %v5897
          %5899 = vmatmul.bf16.gmra.mxu0 %v986
          %v5900 = vpop.f32.mrf.mxu0
          %v5901 = vadd.f32 %v742, %v5900
          %v5902 = vpop.f32.mrf.mxu0
          %v5903 = vadd.f32 %v742, %v5902
          %5904 = vmatmul.bf16.gmra.mxu0 %v990
          %v5905 = vpop.f32.mrf.mxu0
          %v5906 = vadd.f32 %v742, %v5905
          %v5907 = vpop.f32.mrf.mxu0
          %v5908 = vadd.f32 %v742, %v5907
          %5909 = vmatmul.bf16.gmra.mxu0 %v994
          %v5910 = vpop.f32.mrf.mxu0
          %v5911 = vadd.f32 %v742, %v5910
          %v5912 = vpop.f32.mrf.mxu0
          %v5913 = vadd.f32 %v742, %v5912
          %5914 = vmatmul.bf16.gmra.mxu0 %v998
          %v5915 = vpop.f32.mrf.mxu0
          %v5916 = vadd.f32 %v742, %v5915
          %v5917 = vpop.f32.mrf.mxu0
          %v5918 = vadd.f32 %v742, %v5917
          %5919 = vmatmul.bf16.gmra.mxu0 %v1002
          %v5920 = vpop.f32.mrf.mxu0
          %v5921 = vadd.f32 %v742, %v5920
          %v5922 = vpop.f32.mrf.mxu0
          %v5923 = vadd.f32 %v742, %v5922
          %5924 = vmatmul.bf16.gmra.mxu0 %v1006
          %v5925 = vpop.f32.mrf.mxu0
          %v5926 = vadd.f32 %v742, %v5925
          %v5927 = vpop.f32.mrf.mxu0
          %v5928 = vadd.f32 %v742, %v5927
          %5929 = vmatmul.bf16.gmra.mxu0 %v1010
          %v5930 = vpop.f32.mrf.mxu0
          %v5931 = vadd.f32 %v742, %v5930
          %v5932 = vpop.f32.mrf.mxu0
          %v5933 = vadd.f32 %v742, %v5932
          %5934 = vdwg.mxu0
          %5935 = vmatpush.bf16.msra.mxu0 %v2418
          %5936 = vmatpush.bf16.msra.mxu0 %v2406
          %5937 = vmatpush.bf16.msra.mxu0 %v2394
          %5938 = vmatpush.bf16.msra.mxu0 %v2382
          %5939 = vmatpush.bf16.msra.mxu0 %v2370
          %5940 = vmatpush.bf16.msra.mxu0 %v2358
          %5941 = vmatpush.bf16.msra.mxu0 %v2346
          %5942 = vmatpush.bf16.msra.mxu0 %v2334
          %5943 = vmatmul.bf16.gmra.mxu0 %v951
          %v5944 = vpop.f32.mrf.mxu0
          %v5945 = vadd.f32 %v5856, %v5944
          %v5946 = vpop.f32.mrf.mxu0
          %v5947 = vadd.f32 %v5858, %v5946
          %5948 = vmatmul.bf16.gmra.mxu0 %v955
          %v5949 = vpop.f32.mrf.mxu0
          %v5950 = vadd.f32 %v5861, %v5949
          %v5951 = vpop.f32.mrf.mxu0
          %v5952 = vadd.f32 %v5863, %v5951
          %5953 = vmatmul.bf16.gmra.mxu0 %v959
          %v5954 = vpop.f32.mrf.mxu0
          %v5955 = vadd.f32 %v5866, %v5954
          %v5956 = vpop.f32.mrf.mxu0
          %v5957 = vadd.f32 %v5868, %v5956
          %5958 = vmatmul.bf16.gmra.mxu0 %v963
          %v5959 = vpop.f32.mrf.mxu0
          %v5960 = vadd.f32 %v5871, %v5959
          %v5961 = vpop.f32.mrf.mxu0
          %v5962 = vadd.f32 %v5873, %v5961
          %5963 = vmatmul.bf16.gmra.mxu0 %v967
          %v5964 = vpop.f32.mrf.mxu0
          %v5965 = vadd.f32 %v5876, %v5964
          %v5966 = vpop.f32.mrf.mxu0
          %v5967 = vadd.f32 %v5878, %v5966
          %5968 = vmatmul.bf16.gmra.mxu0 %v971
          %v5969 = vpop.f32.mrf.mxu0
          %v5970 = vadd.f32 %v5881, %v5969
          %v5971 = vpop.f32.mrf.mxu0
          %v5972 = vadd.f32 %v5883, %v5971
          %5973 = vmatmul.bf16.gmra.mxu0 %v975
          %v5974 = vpop.f32.mrf.mxu0
          %v5975 = vadd.f32 %v5886, %v5974
          %v5976 = vpop.f32.mrf.mxu0
          %v5977 = vadd.f32 %v5888, %v5976
          %5978 = vmatmul.bf16.gmra.mxu0 %v979
          %v5979 = vpop.f32.mrf.mxu0
          %v5980 = vadd.f32 %v5891, %v5979
          %v5981 = vpop.f32.mrf.mxu0
          %v5982 = vadd.f32 %v5893, %v5981
          %5983 = vmatmul.bf16.gmra.mxu0 %v983
          %v5984 = vpop.f32.mrf.mxu0
          %v5985 = vadd.f32 %v5896, %v5984
          %v5986 = vpop.f32.mrf.mxu0
          %v5987 = vadd.f32 %v5898, %v5986
          %5988 = vmatmul.bf16.gmra.mxu0 %v987
          %v5989 = vpop.f32.mrf.mxu0
          %v5990 = vadd.f32 %v5901, %v5989
          %v5991 = vpop.f32.mrf.mxu0
          %v5992 = vadd.f32 %v5903, %v5991
          %5993 = vmatmul.bf16.gmra.mxu0 %v991
          %v5994 = vpop.f32.mrf.mxu0
          %v5995 = vadd.f32 %v5906, %v5994
          %v5996 = vpop.f32.mrf.mxu0
          %v5997 = vadd.f32 %v5908, %v5996
          %5998 = vmatmul.bf16.gmra.mxu0 %v995
          %v5999 = vpop.f32.mrf.mxu0
          %v6000 = vadd.f32 %v5911, %v5999
          %v6001 = vpop.f32.mrf.mxu0
          %v6002 = vadd.f32 %v5913, %v6001
          %6003 = vmatmul.bf16.gmra.mxu0 %v999
          %v6004 = vpop.f32.mrf.mxu0
          %v6005 = vadd.f32 %v5916, %v6004
          %v6006 = vpop.f32.mrf.mxu0
          %v6007 = vadd.f32 %v5918, %v6006
          %6008 = vmatmul.bf16.gmra.mxu0 %v1003
          %v6009 = vpop.f32.mrf.mxu0
          %v6010 = vadd.f32 %v5921, %v6009
          %v6011 = vpop.f32.mrf.mxu0
          %v6012 = vadd.f32 %v5923, %v6011
          %6013 = vmatmul.bf16.gmra.mxu0 %v1007
          %v6014 = vpop.f32.mrf.mxu0
          %v6015 = vadd.f32 %v5926, %v6014
          %v6016 = vpop.f32.mrf.mxu0
          %v6017 = vadd.f32 %v5928, %v6016
          %6018 = vmatmul.bf16.gmra.mxu0 %v1011
          %v6019 = vpop.f32.mrf.mxu0
          %v6020 = vadd.f32 %v5931, %v6019
          %v6021 = vpop.f32.mrf.mxu0
          %v6022 = vadd.f32 %v5933, %v6021
          %6023 = vdwg.mxu0
          %6024 = vmatpush.bf16.msra.mxu0 %v2514
          %6025 = vmatpush.bf16.msra.mxu0 %v2502
          %6026 = vmatpush.bf16.msra.mxu0 %v2490
          %6027 = vmatpush.bf16.msra.mxu0 %v2478
          %6028 = vmatpush.bf16.msra.mxu0 %v2466
          %6029 = vmatpush.bf16.msra.mxu0 %v2454
          %6030 = vmatpush.bf16.msra.mxu0 %v2442
          %6031 = vmatpush.bf16.msra.mxu0 %v2430
          %6032 = vmatmul.bf16.gmra.mxu0 %v952
          %v6033 = vpop.f32.mrf.mxu0
          %v6034 = vadd.f32 %v5945, %v6033
          %v6035 = vpop.f32.mrf.mxu0
          %v6036 = vadd.f32 %v5947, %v6035
          %6037 = vmatmul.bf16.gmra.mxu0 %v956
          %v6038 = vpop.f32.mrf.mxu0
          %v6039 = vadd.f32 %v5950, %v6038
          %v6040 = vpop.f32.mrf.mxu0
          %v6041 = vadd.f32 %v5952, %v6040
          %6042 = vmatmul.bf16.gmra.mxu0 %v960
          %v6043 = vpop.f32.mrf.mxu0
          %v6044 = vadd.f32 %v5955, %v6043
          %v6045 = vpop.f32.mrf.mxu0
          %v6046 = vadd.f32 %v5957, %v6045
          %6047 = vmatmul.bf16.gmra.mxu0 %v964
          %v6048 = vpop.f32.mrf.mxu0
          %v6049 = vadd.f32 %v5960, %v6048
          %v6050 = vpop.f32.mrf.mxu0
          %v6051 = vadd.f32 %v5962, %v6050
          %6052 = vmatmul.bf16.gmra.mxu0 %v968
          %v6053 = vpop.f32.mrf.mxu0
          %v6054 = vadd.f32 %v5965, %v6053
          %v6055 = vpop.f32.mrf.mxu0
          %v6056 = vadd.f32 %v5967, %v6055
          %6057 = vmatmul.bf16.gmra.mxu0 %v972
          %v6058 = vpop.f32.mrf.mxu0
          %v6059 = vadd.f32 %v5970, %v6058
          %v6060 = vpop.f32.mrf.mxu0
          %v6061 = vadd.f32 %v5972, %v6060
          %6062 = vmatmul.bf16.gmra.mxu0 %v976
          %v6063 = vpop.f32.mrf.mxu0
          %v6064 = vadd.f32 %v5975, %v6063
          %v6065 = vpop.f32.mrf.mxu0
          %v6066 = vadd.f32 %v5977, %v6065
          %6067 = vmatmul.bf16.gmra.mxu0 %v980
          %v6068 = vpop.f32.mrf.mxu0
          %v6069 = vadd.f32 %v5980, %v6068
          %v6070 = vpop.f32.mrf.mxu0
          %v6071 = vadd.f32 %v5982, %v6070
          %6072 = vmatmul.bf16.gmra.mxu0 %v984
          %v6073 = vpop.f32.mrf.mxu0
          %v6074 = vadd.f32 %v5985, %v6073
          %v6075 = vpop.f32.mrf.mxu0
          %v6076 = vadd.f32 %v5987, %v6075
          %6077 = vmatmul.bf16.gmra.mxu0 %v988
          %v6078 = vpop.f32.mrf.mxu0
          %v6079 = vadd.f32 %v5990, %v6078
          %v6080 = vpop.f32.mrf.mxu0
          %v6081 = vadd.f32 %v5992, %v6080
          %6082 = vmatmul.bf16.gmra.mxu0 %v992
          %v6083 = vpop.f32.mrf.mxu0
          %v6084 = vadd.f32 %v5995, %v6083
          %v6085 = vpop.f32.mrf.mxu0
          %v6086 = vadd.f32 %v5997, %v6085
          %6087 = vmatmul.bf16.gmra.mxu0 %v996
          %v6088 = vpop.f32.mrf.mxu0
          %v6089 = vadd.f32 %v6000, %v6088
          %v6090 = vpop.f32.mrf.mxu0
          %v6091 = vadd.f32 %v6002, %v6090
          %6092 = vmatmul.bf16.gmra.mxu0 %v1000
          %v6093 = vpop.f32.mrf.mxu0
          %v6094 = vadd.f32 %v6005, %v6093
          %v6095 = vpop.f32.mrf.mxu0
          %v6096 = vadd.f32 %v6007, %v6095
          %6097 = vmatmul.bf16.gmra.mxu0 %v1004
          %v6098 = vpop.f32.mrf.mxu0
          %v6099 = vadd.f32 %v6010, %v6098
          %v6100 = vpop.f32.mrf.mxu0
          %v6101 = vadd.f32 %v6012, %v6100
          %6102 = vmatmul.bf16.gmra.mxu0 %v1008
          %v6103 = vpop.f32.mrf.mxu0
          %v6104 = vadd.f32 %v6015, %v6103
          %v6105 = vpop.f32.mrf.mxu0
          %v6106 = vadd.f32 %v6017, %v6105
          %6107 = vmatmul.bf16.gmra.mxu0 %v1012
          %v6108 = vpop.f32.mrf.mxu0
          %v6109 = vadd.f32 %v6020, %v6108
          %v6110 = vpop.f32.mrf.mxu0
          %v6111 = vadd.f32 %v6022, %v6110
          %6112 = vdwg.mxu0
          %6113 = vmatpush.bf16.msra.mxu0 %v2610
          %6114 = vmatpush.bf16.msra.mxu0 %v2598
          %6115 = vmatpush.bf16.msra.mxu0 %v2586
          %6116 = vmatpush.bf16.msra.mxu0 %v2574
          %6117 = vmatpush.bf16.msra.mxu0 %v2562
          %6118 = vmatpush.bf16.msra.mxu0 %v2550
          %6119 = vmatpush.bf16.msra.mxu0 %v2538
          %6120 = vmatpush.bf16.msra.mxu0 %v2526
          %6121 = vmatmul.bf16.gmra.mxu0 %v953
          %v6122 = vpop.f32.mrf.mxu0
          %v6123 = vadd.f32 %v6034, %v6122
          %v6124 = vpop.f32.mrf.mxu0
          %v6125 = vadd.f32 %v6036, %v6124
          %6126 = vmatmul.bf16.gmra.mxu0 %v957
          %v6127 = vpop.f32.mrf.mxu0
          %v6128 = vadd.f32 %v6039, %v6127
          %v6129 = vpop.f32.mrf.mxu0
          %v6130 = vadd.f32 %v6041, %v6129
          %6131 = vmatmul.bf16.gmra.mxu0 %v961
          %v6132 = vpop.f32.mrf.mxu0
          %v6133 = vadd.f32 %v6044, %v6132
          %v6134 = vpop.f32.mrf.mxu0
          %v6135 = vadd.f32 %v6046, %v6134
          %6136 = vmatmul.bf16.gmra.mxu0 %v965
          %v6137 = vpop.f32.mrf.mxu0
          %v6138 = vadd.f32 %v6049, %v6137
          %v6139 = vpop.f32.mrf.mxu0
          %v6140 = vadd.f32 %v6051, %v6139
          %6141 = vmatmul.bf16.gmra.mxu0 %v969
          %v6142 = vpop.f32.mrf.mxu0
          %v6143 = vadd.f32 %v6054, %v6142
          %v6144 = vpop.f32.mrf.mxu0
          %v6145 = vadd.f32 %v6056, %v6144
          %6146 = vmatmul.bf16.gmra.mxu0 %v973
          %v6147 = vpop.f32.mrf.mxu0
          %v6148 = vadd.f32 %v6059, %v6147
          %v6149 = vpop.f32.mrf.mxu0
          %v6150 = vadd.f32 %v6061, %v6149
          %6151 = vmatmul.bf16.gmra.mxu0 %v977
          %v6152 = vpop.f32.mrf.mxu0
          %v6153 = vadd.f32 %v6064, %v6152
          %v6154 = vpop.f32.mrf.mxu0
          %v6155 = vadd.f32 %v6066, %v6154
          %6156 = vmatmul.bf16.gmra.mxu0 %v981
          %v6157 = vpop.f32.mrf.mxu0
          %v6158 = vadd.f32 %v6069, %v6157
          %v6159 = vpop.f32.mrf.mxu0
          %v6160 = vadd.f32 %v6071, %v6159
          %6161 = vmatmul.bf16.gmra.mxu0 %v985
          %v6162 = vpop.f32.mrf.mxu0
          %v6163 = vadd.f32 %v6074, %v6162
          %v6164 = vpop.f32.mrf.mxu0
          %v6165 = vadd.f32 %v6076, %v6164
          %6166 = vmatmul.bf16.gmra.mxu0 %v989
          %v6167 = vpop.f32.mrf.mxu0
          %v6168 = vadd.f32 %v6079, %v6167
          %v6169 = vpop.f32.mrf.mxu0
          %v6170 = vadd.f32 %v6081, %v6169
          %6171 = vmatmul.bf16.gmra.mxu0 %v993
          %v6172 = vpop.f32.mrf.mxu0
          %v6173 = vadd.f32 %v6084, %v6172
          %v6174 = vpop.f32.mrf.mxu0
          %v6175 = vadd.f32 %v6086, %v6174
          %6176 = vmatmul.bf16.gmra.mxu0 %v997
          %v6177 = vpop.f32.mrf.mxu0
          %v6178 = vadd.f32 %v6089, %v6177
          %v6179 = vpop.f32.mrf.mxu0
          %v6180 = vadd.f32 %v6091, %v6179
          %6181 = vmatmul.bf16.gmra.mxu0 %v1001
          %v6182 = vpop.f32.mrf.mxu0
          %v6183 = vadd.f32 %v6094, %v6182
          %v6184 = vpop.f32.mrf.mxu0
          %v6185 = vadd.f32 %v6096, %v6184
          %6186 = vmatmul.bf16.gmra.mxu0 %v1005
          %v6187 = vpop.f32.mrf.mxu0
          %v6188 = vadd.f32 %v6099, %v6187
          %v6189 = vpop.f32.mrf.mxu0
          %v6190 = vadd.f32 %v6101, %v6189
          %6191 = vmatmul.bf16.gmra.mxu0 %v1009
          %v6192 = vpop.f32.mrf.mxu0
          %v6193 = vadd.f32 %v6104, %v6192
          %v6194 = vpop.f32.mrf.mxu0
          %v6195 = vadd.f32 %v6106, %v6194
          %6196 = vmatmul.bf16.gmra.mxu0 %v1013
          %v6197 = vpop.f32.mrf.mxu0
          %v6198 = vadd.f32 %v6109, %v6197
          %v6199 = vpop.f32.mrf.mxu0
          %v6200 = vadd.f32 %v6111, %v6199
          %6201 = vdwg.mxu0
          %6202 = vmatpush.bf16.msra.mxu0 %v2323
          %6203 = vmatpush.bf16.msra.mxu0 %v2311
          %6204 = vmatpush.bf16.msra.mxu0 %v2299
          %6205 = vmatpush.bf16.msra.mxu0 %v2287
          %6206 = vmatpush.bf16.msra.mxu0 %v2275
          %6207 = vmatpush.bf16.msra.mxu0 %v2263
          %6208 = vmatpush.bf16.msra.mxu0 %v2251
          %6209 = vmatpush.bf16.msra.mxu0 %v2239
          %6210 = vmatmul.bf16.gmra.mxu0 %v950
          %v6211 = vpop.f32.mrf.mxu0
          %v6212 = vadd.f32 %v743, %v6211
          %v6213 = vpop.f32.mrf.mxu0
          %v6214 = vadd.f32 %v743, %v6213
          %6215 = vmatmul.bf16.gmra.mxu0 %v954
          %v6216 = vpop.f32.mrf.mxu0
          %v6217 = vadd.f32 %v743, %v6216
          %v6218 = vpop.f32.mrf.mxu0
          %v6219 = vadd.f32 %v743, %v6218
          %6220 = vmatmul.bf16.gmra.mxu0 %v958
          %v6221 = vpop.f32.mrf.mxu0
          %v6222 = vadd.f32 %v743, %v6221
          %v6223 = vpop.f32.mrf.mxu0
          %v6224 = vadd.f32 %v743, %v6223
          %6225 = vmatmul.bf16.gmra.mxu0 %v962
          %v6226 = vpop.f32.mrf.mxu0
          %v6227 = vadd.f32 %v743, %v6226
          %v6228 = vpop.f32.mrf.mxu0
          %v6229 = vadd.f32 %v743, %v6228
          %6230 = vmatmul.bf16.gmra.mxu0 %v966
          %v6231 = vpop.f32.mrf.mxu0
          %v6232 = vadd.f32 %v743, %v6231
          %v6233 = vpop.f32.mrf.mxu0
          %v6234 = vadd.f32 %v743, %v6233
          %6235 = vmatmul.bf16.gmra.mxu0 %v970
          %v6236 = vpop.f32.mrf.mxu0
          %v6237 = vadd.f32 %v743, %v6236
          %v6238 = vpop.f32.mrf.mxu0
          %v6239 = vadd.f32 %v743, %v6238
          %6240 = vmatmul.bf16.gmra.mxu0 %v974
          %v6241 = vpop.f32.mrf.mxu0
          %v6242 = vadd.f32 %v743, %v6241
          %v6243 = vpop.f32.mrf.mxu0
          %v6244 = vadd.f32 %v743, %v6243
          %6245 = vmatmul.bf16.gmra.mxu0 %v978
          %v6246 = vpop.f32.mrf.mxu0
          %v6247 = vadd.f32 %v743, %v6246
          %v6248 = vpop.f32.mrf.mxu0
          %v6249 = vadd.f32 %v743, %v6248
          %6250 = vmatmul.bf16.gmra.mxu0 %v982
          %v6251 = vpop.f32.mrf.mxu0
          %v6252 = vadd.f32 %v743, %v6251
          %v6253 = vpop.f32.mrf.mxu0
          %v6254 = vadd.f32 %v743, %v6253
          %6255 = vmatmul.bf16.gmra.mxu0 %v986
          %v6256 = vpop.f32.mrf.mxu0
          %v6257 = vadd.f32 %v743, %v6256
          %v6258 = vpop.f32.mrf.mxu0
          %v6259 = vadd.f32 %v743, %v6258
          %6260 = vmatmul.bf16.gmra.mxu0 %v990
          %v6261 = vpop.f32.mrf.mxu0
          %v6262 = vadd.f32 %v743, %v6261
          %v6263 = vpop.f32.mrf.mxu0
          %v6264 = vadd.f32 %v743, %v6263
          %6265 = vmatmul.bf16.gmra.mxu0 %v994
          %v6266 = vpop.f32.mrf.mxu0
          %v6267 = vadd.f32 %v743, %v6266
          %v6268 = vpop.f32.mrf.mxu0
          %v6269 = vadd.f32 %v743, %v6268
          %6270 = vmatmul.bf16.gmra.mxu0 %v998
          %v6271 = vpop.f32.mrf.mxu0
          %v6272 = vadd.f32 %v743, %v6271
          %v6273 = vpop.f32.mrf.mxu0
          %v6274 = vadd.f32 %v743, %v6273
          %6275 = vmatmul.bf16.gmra.mxu0 %v1002
          %v6276 = vpop.f32.mrf.mxu0
          %v6277 = vadd.f32 %v743, %v6276
          %v6278 = vpop.f32.mrf.mxu0
          %v6279 = vadd.f32 %v743, %v6278
          %6280 = vmatmul.bf16.gmra.mxu0 %v1006
          %v6281 = vpop.f32.mrf.mxu0
          %v6282 = vadd.f32 %v743, %v6281
          %v6283 = vpop.f32.mrf.mxu0
          %v6284 = vadd.f32 %v743, %v6283
          %6285 = vmatmul.bf16.gmra.mxu0 %v1010
          %v6286 = vpop.f32.mrf.mxu0
          %v6287 = vadd.f32 %v743, %v6286
          %v6288 = vpop.f32.mrf.mxu0
          %v6289 = vadd.f32 %v743, %v6288
          %6290 = vdwg.mxu0
          %6291 = vmatpush.bf16.msra.mxu0 %v2419
          %6292 = vmatpush.bf16.msra.mxu0 %v2407
          %6293 = vmatpush.bf16.msra.mxu0 %v2395
          %6294 = vmatpush.bf16.msra.mxu0 %v2383
          %6295 = vmatpush.bf16.msra.mxu0 %v2371
          %6296 = vmatpush.bf16.msra.mxu0 %v2359
          %6297 = vmatpush.bf16.msra.mxu0 %v2347
          %6298 = vmatpush.bf16.msra.mxu0 %v2335
          %6299 = vmatmul.bf16.gmra.mxu0 %v951
          %v6300 = vpop.f32.mrf.mxu0
          %v6301 = vadd.f32 %v6212, %v6300
          %v6302 = vpop.f32.mrf.mxu0
          %v6303 = vadd.f32 %v6214, %v6302
          %6304 = vmatmul.bf16.gmra.mxu0 %v955
          %v6305 = vpop.f32.mrf.mxu0
          %v6306 = vadd.f32 %v6217, %v6305
          %v6307 = vpop.f32.mrf.mxu0
          %v6308 = vadd.f32 %v6219, %v6307
          %6309 = vmatmul.bf16.gmra.mxu0 %v959
          %v6310 = vpop.f32.mrf.mxu0
          %v6311 = vadd.f32 %v6222, %v6310
          %v6312 = vpop.f32.mrf.mxu0
          %v6313 = vadd.f32 %v6224, %v6312
          %6314 = vmatmul.bf16.gmra.mxu0 %v963
          %v6315 = vpop.f32.mrf.mxu0
          %v6316 = vadd.f32 %v6227, %v6315
          %v6317 = vpop.f32.mrf.mxu0
          %v6318 = vadd.f32 %v6229, %v6317
          %6319 = vmatmul.bf16.gmra.mxu0 %v967
          %v6320 = vpop.f32.mrf.mxu0
          %v6321 = vadd.f32 %v6232, %v6320
          %v6322 = vpop.f32.mrf.mxu0
          %v6323 = vadd.f32 %v6234, %v6322
          %6324 = vmatmul.bf16.gmra.mxu0 %v971
          %v6325 = vpop.f32.mrf.mxu0
          %v6326 = vadd.f32 %v6237, %v6325
          %v6327 = vpop.f32.mrf.mxu0
          %v6328 = vadd.f32 %v6239, %v6327
          %6329 = vmatmul.bf16.gmra.mxu0 %v975
          %v6330 = vpop.f32.mrf.mxu0
          %v6331 = vadd.f32 %v6242, %v6330
          %v6332 = vpop.f32.mrf.mxu0
          %v6333 = vadd.f32 %v6244, %v6332
          %6334 = vmatmul.bf16.gmra.mxu0 %v979
          %v6335 = vpop.f32.mrf.mxu0
          %v6336 = vadd.f32 %v6247, %v6335
          %v6337 = vpop.f32.mrf.mxu0
          %v6338 = vadd.f32 %v6249, %v6337
          %6339 = vmatmul.bf16.gmra.mxu0 %v983
          %v6340 = vpop.f32.mrf.mxu0
          %v6341 = vadd.f32 %v6252, %v6340
          %v6342 = vpop.f32.mrf.mxu0
          %v6343 = vadd.f32 %v6254, %v6342
          %6344 = vmatmul.bf16.gmra.mxu0 %v987
          %v6345 = vpop.f32.mrf.mxu0
          %v6346 = vadd.f32 %v6257, %v6345
          %v6347 = vpop.f32.mrf.mxu0
          %v6348 = vadd.f32 %v6259, %v6347
          %6349 = vmatmul.bf16.gmra.mxu0 %v991
          %v6350 = vpop.f32.mrf.mxu0
          %v6351 = vadd.f32 %v6262, %v6350
          %v6352 = vpop.f32.mrf.mxu0
          %v6353 = vadd.f32 %v6264, %v6352
          %6354 = vmatmul.bf16.gmra.mxu0 %v995
          %v6355 = vpop.f32.mrf.mxu0
          %v6356 = vadd.f32 %v6267, %v6355
          %v6357 = vpop.f32.mrf.mxu0
          %v6358 = vadd.f32 %v6269, %v6357
          %6359 = vmatmul.bf16.gmra.mxu0 %v999
          %v6360 = vpop.f32.mrf.mxu0
          %v6361 = vadd.f32 %v6272, %v6360
          %v6362 = vpop.f32.mrf.mxu0
          %v6363 = vadd.f32 %v6274, %v6362
          %6364 = vmatmul.bf16.gmra.mxu0 %v1003
          %v6365 = vpop.f32.mrf.mxu0
          %v6366 = vadd.f32 %v6277, %v6365
          %v6367 = vpop.f32.mrf.mxu0
          %v6368 = vadd.f32 %v6279, %v6367
          %6369 = vmatmul.bf16.gmra.mxu0 %v1007
          %v6370 = vpop.f32.mrf.mxu0
          %v6371 = vadd.f32 %v6282, %v6370
          %v6372 = vpop.f32.mrf.mxu0
          %v6373 = vadd.f32 %v6284, %v6372
          %6374 = vmatmul.bf16.gmra.mxu0 %v1011
          %v6375 = vpop.f32.mrf.mxu0
          %v6376 = vadd.f32 %v6287, %v6375
          %v6377 = vpop.f32.mrf.mxu0
          %v6378 = vadd.f32 %v6289, %v6377
          %6379 = vdwg.mxu0
          %6380 = vmatpush.bf16.msra.mxu0 %v2515
          %6381 = vmatpush.bf16.msra.mxu0 %v2503
          %6382 = vmatpush.bf16.msra.mxu0 %v2491
          %6383 = vmatpush.bf16.msra.mxu0 %v2479
          %6384 = vmatpush.bf16.msra.mxu0 %v2467
          %6385 = vmatpush.bf16.msra.mxu0 %v2455
          %6386 = vmatpush.bf16.msra.mxu0 %v2443
          %6387 = vmatpush.bf16.msra.mxu0 %v2431
          %6388 = vmatmul.bf16.gmra.mxu0 %v952
          %v6389 = vpop.f32.mrf.mxu0
          %v6390 = vadd.f32 %v6301, %v6389
          %v6391 = vpop.f32.mrf.mxu0
          %v6392 = vadd.f32 %v6303, %v6391
          %6393 = vmatmul.bf16.gmra.mxu0 %v956
          %v6394 = vpop.f32.mrf.mxu0
          %v6395 = vadd.f32 %v6306, %v6394
          %v6396 = vpop.f32.mrf.mxu0
          %v6397 = vadd.f32 %v6308, %v6396
          %6398 = vmatmul.bf16.gmra.mxu0 %v960
          %v6399 = vpop.f32.mrf.mxu0
          %v6400 = vadd.f32 %v6311, %v6399
          %v6401 = vpop.f32.mrf.mxu0
          %v6402 = vadd.f32 %v6313, %v6401
          %6403 = vmatmul.bf16.gmra.mxu0 %v964
          %v6404 = vpop.f32.mrf.mxu0
          %v6405 = vadd.f32 %v6316, %v6404
          %v6406 = vpop.f32.mrf.mxu0
          %v6407 = vadd.f32 %v6318, %v6406
          %6408 = vmatmul.bf16.gmra.mxu0 %v968
          %v6409 = vpop.f32.mrf.mxu0
          %v6410 = vadd.f32 %v6321, %v6409
          %v6411 = vpop.f32.mrf.mxu0
          %v6412 = vadd.f32 %v6323, %v6411
          %6413 = vmatmul.bf16.gmra.mxu0 %v972
          %v6414 = vpop.f32.mrf.mxu0
          %v6415 = vadd.f32 %v6326, %v6414
          %v6416 = vpop.f32.mrf.mxu0
          %v6417 = vadd.f32 %v6328, %v6416
          %6418 = vmatmul.bf16.gmra.mxu0 %v976
          %v6419 = vpop.f32.mrf.mxu0
          %v6420 = vadd.f32 %v6331, %v6419
          %v6421 = vpop.f32.mrf.mxu0
          %v6422 = vadd.f32 %v6333, %v6421
          %6423 = vmatmul.bf16.gmra.mxu0 %v980
          %v6424 = vpop.f32.mrf.mxu0
          %v6425 = vadd.f32 %v6336, %v6424
          %v6426 = vpop.f32.mrf.mxu0
          %v6427 = vadd.f32 %v6338, %v6426
          %6428 = vmatmul.bf16.gmra.mxu0 %v984
          %v6429 = vpop.f32.mrf.mxu0
          %v6430 = vadd.f32 %v6341, %v6429
          %v6431 = vpop.f32.mrf.mxu0
          %v6432 = vadd.f32 %v6343, %v6431
          %6433 = vmatmul.bf16.gmra.mxu0 %v988
          %v6434 = vpop.f32.mrf.mxu0
          %v6435 = vadd.f32 %v6346, %v6434
          %v6436 = vpop.f32.mrf.mxu0
          %v6437 = vadd.f32 %v6348, %v6436
          %6438 = vmatmul.bf16.gmra.mxu0 %v992
          %v6439 = vpop.f32.mrf.mxu0
          %v6440 = vadd.f32 %v6351, %v6439
          %v6441 = vpop.f32.mrf.mxu0
          %v6442 = vadd.f32 %v6353, %v6441
          %6443 = vmatmul.bf16.gmra.mxu0 %v996
          %v6444 = vpop.f32.mrf.mxu0
          %v6445 = vadd.f32 %v6356, %v6444
          %v6446 = vpop.f32.mrf.mxu0
          %v6447 = vadd.f32 %v6358, %v6446
          %6448 = vmatmul.bf16.gmra.mxu0 %v1000
          %v6449 = vpop.f32.mrf.mxu0
          %v6450 = vadd.f32 %v6361, %v6449
          %v6451 = vpop.f32.mrf.mxu0
          %v6452 = vadd.f32 %v6363, %v6451
          %6453 = vmatmul.bf16.gmra.mxu0 %v1004
          %v6454 = vpop.f32.mrf.mxu0
          %v6455 = vadd.f32 %v6366, %v6454
          %v6456 = vpop.f32.mrf.mxu0
          %v6457 = vadd.f32 %v6368, %v6456
          %6458 = vmatmul.bf16.gmra.mxu0 %v1008
          %v6459 = vpop.f32.mrf.mxu0
          %v6460 = vadd.f32 %v6371, %v6459
          %v6461 = vpop.f32.mrf.mxu0
          %v6462 = vadd.f32 %v6373, %v6461
          %6463 = vmatmul.bf16.gmra.mxu0 %v1012
          %v6464 = vpop.f32.mrf.mxu0
          %v6465 = vadd.f32 %v6376, %v6464
          %v6466 = vpop.f32.mrf.mxu0
          %v6467 = vadd.f32 %v6378, %v6466
          %6468 = vdwg.mxu0
          %6469 = vmatpush.bf16.msra.mxu0 %v2611
          %6470 = vmatpush.bf16.msra.mxu0 %v2599
          %6471 = vmatpush.bf16.msra.mxu0 %v2587
          %6472 = vmatpush.bf16.msra.mxu0 %v2575
          %6473 = vmatpush.bf16.msra.mxu0 %v2563
          %6474 = vmatpush.bf16.msra.mxu0 %v2551
          %6475 = vmatpush.bf16.msra.mxu0 %v2539
          %6476 = vmatpush.bf16.msra.mxu0 %v2527
          %6477 = vmatmul.bf16.gmra.mxu0 %v953
          %v6478 = vpop.f32.mrf.mxu0
          %v6479 = vadd.f32 %v6390, %v6478
          %v6480 = vpop.f32.mrf.mxu0
          %v6481 = vadd.f32 %v6392, %v6480
          %6482 = vmatmul.bf16.gmra.mxu0 %v957
          %v6483 = vpop.f32.mrf.mxu0
          %v6484 = vadd.f32 %v6395, %v6483
          %v6485 = vpop.f32.mrf.mxu0
          %v6486 = vadd.f32 %v6397, %v6485
          %6487 = vmatmul.bf16.gmra.mxu0 %v961
          %v6488 = vpop.f32.mrf.mxu0
          %v6489 = vadd.f32 %v6400, %v6488
          %v6490 = vpop.f32.mrf.mxu0
          %v6491 = vadd.f32 %v6402, %v6490
          %6492 = vmatmul.bf16.gmra.mxu0 %v965
          %v6493 = vpop.f32.mrf.mxu0
          %v6494 = vadd.f32 %v6405, %v6493
          %v6495 = vpop.f32.mrf.mxu0
          %v6496 = vadd.f32 %v6407, %v6495
          %6497 = vmatmul.bf16.gmra.mxu0 %v969
          %v6498 = vpop.f32.mrf.mxu0
          %v6499 = vadd.f32 %v6410, %v6498
          %v6500 = vpop.f32.mrf.mxu0
          %v6501 = vadd.f32 %v6412, %v6500
          %6502 = vmatmul.bf16.gmra.mxu0 %v973
          %v6503 = vpop.f32.mrf.mxu0
          %v6504 = vadd.f32 %v6415, %v6503
          %v6505 = vpop.f32.mrf.mxu0
          %v6506 = vadd.f32 %v6417, %v6505
          %6507 = vmatmul.bf16.gmra.mxu0 %v977
          %v6508 = vpop.f32.mrf.mxu0
          %v6509 = vadd.f32 %v6420, %v6508
          %v6510 = vpop.f32.mrf.mxu0
          %v6511 = vadd.f32 %v6422, %v6510
          %6512 = vmatmul.bf16.gmra.mxu0 %v981
          %v6513 = vpop.f32.mrf.mxu0
          %v6514 = vadd.f32 %v6425, %v6513
          %v6515 = vpop.f32.mrf.mxu0
          %v6516 = vadd.f32 %v6427, %v6515
          %6517 = vmatmul.bf16.gmra.mxu0 %v985
          %v6518 = vpop.f32.mrf.mxu0
          %v6519 = vadd.f32 %v6430, %v6518
          %v6520 = vpop.f32.mrf.mxu0
          %v6521 = vadd.f32 %v6432, %v6520
          %6522 = vmatmul.bf16.gmra.mxu0 %v989
          %v6523 = vpop.f32.mrf.mxu0
          %v6524 = vadd.f32 %v6435, %v6523
          %v6525 = vpop.f32.mrf.mxu0
          %v6526 = vadd.f32 %v6437, %v6525
          %6527 = vmatmul.bf16.gmra.mxu0 %v993
          %v6528 = vpop.f32.mrf.mxu0
          %v6529 = vadd.f32 %v6440, %v6528
          %v6530 = vpop.f32.mrf.mxu0
          %v6531 = vadd.f32 %v6442, %v6530
          %6532 = vmatmul.bf16.gmra.mxu0 %v997
          %v6533 = vpop.f32.mrf.mxu0
          %v6534 = vadd.f32 %v6445, %v6533
          %v6535 = vpop.f32.mrf.mxu0
          %v6536 = vadd.f32 %v6447, %v6535
          %6537 = vmatmul.bf16.gmra.mxu0 %v1001
          %v6538 = vpop.f32.mrf.mxu0
          %v6539 = vadd.f32 %v6450, %v6538
          %v6540 = vpop.f32.mrf.mxu0
          %v6541 = vadd.f32 %v6452, %v6540
          %6542 = vmatmul.bf16.gmra.mxu0 %v1005
          %v6543 = vpop.f32.mrf.mxu0
          %v6544 = vadd.f32 %v6455, %v6543
          %v6545 = vpop.f32.mrf.mxu0
          %v6546 = vadd.f32 %v6457, %v6545
          %6547 = vmatmul.bf16.gmra.mxu0 %v1009
          %v6548 = vpop.f32.mrf.mxu0
          %v6549 = vadd.f32 %v6460, %v6548
          %v6550 = vpop.f32.mrf.mxu0
          %v6551 = vadd.f32 %v6462, %v6550
          %6552 = vmatmul.bf16.gmra.mxu0 %v1013
          %v6553 = vpop.f32.mrf.mxu0
          %v6554 = vadd.f32 %v6465, %v6553
          %v6555 = vpop.f32.mrf.mxu0
          %v6556 = vadd.f32 %v6467, %v6555
          %6557 = vdwg.mxu0
          %6558 = vmatpush.bf16.msra.mxu0 %v2324
          %6559 = vmatpush.bf16.msra.mxu0 %v2312
          %6560 = vmatpush.bf16.msra.mxu0 %v2300
          %6561 = vmatpush.bf16.msra.mxu0 %v2288
          %6562 = vmatpush.bf16.msra.mxu0 %v2276
          %6563 = vmatpush.bf16.msra.mxu0 %v2264
          %6564 = vmatpush.bf16.msra.mxu0 %v2252
          %6565 = vmatpush.bf16.msra.mxu0 %v2240
          %6566 = vmatmul.bf16.gmra.mxu0 %v950
          %v6567 = vpop.f32.mrf.mxu0
          %v6568 = vadd.f32 %v744, %v6567
          %v6569 = vpop.f32.mrf.mxu0
          %v6570 = vadd.f32 %v744, %v6569
          %6571 = vmatmul.bf16.gmra.mxu0 %v954
          %v6572 = vpop.f32.mrf.mxu0
          %v6573 = vadd.f32 %v744, %v6572
          %v6574 = vpop.f32.mrf.mxu0
          %v6575 = vadd.f32 %v744, %v6574
          %6576 = vmatmul.bf16.gmra.mxu0 %v958
          %v6577 = vpop.f32.mrf.mxu0
          %v6578 = vadd.f32 %v744, %v6577
          %v6579 = vpop.f32.mrf.mxu0
          %v6580 = vadd.f32 %v744, %v6579
          %6581 = vmatmul.bf16.gmra.mxu0 %v962
          %v6582 = vpop.f32.mrf.mxu0
          %v6583 = vadd.f32 %v744, %v6582
          %v6584 = vpop.f32.mrf.mxu0
          %v6585 = vadd.f32 %v744, %v6584
          %6586 = vmatmul.bf16.gmra.mxu0 %v966
          %v6587 = vpop.f32.mrf.mxu0
          %v6588 = vadd.f32 %v744, %v6587
          %v6589 = vpop.f32.mrf.mxu0
          %v6590 = vadd.f32 %v744, %v6589
          %6591 = vmatmul.bf16.gmra.mxu0 %v970
          %v6592 = vpop.f32.mrf.mxu0
          %v6593 = vadd.f32 %v744, %v6592
          %v6594 = vpop.f32.mrf.mxu0
          %v6595 = vadd.f32 %v744, %v6594
          %6596 = vmatmul.bf16.gmra.mxu0 %v974
          %v6597 = vpop.f32.mrf.mxu0
          %v6598 = vadd.f32 %v744, %v6597
          %v6599 = vpop.f32.mrf.mxu0
          %v6600 = vadd.f32 %v744, %v6599
          %6601 = vmatmul.bf16.gmra.mxu0 %v978
          %v6602 = vpop.f32.mrf.mxu0
          %v6603 = vadd.f32 %v744, %v6602
          %v6604 = vpop.f32.mrf.mxu0
          %v6605 = vadd.f32 %v744, %v6604
          %6606 = vmatmul.bf16.gmra.mxu0 %v982
          %v6607 = vpop.f32.mrf.mxu0
          %v6608 = vadd.f32 %v744, %v6607
          %v6609 = vpop.f32.mrf.mxu0
          %v6610 = vadd.f32 %v744, %v6609
          %6611 = vmatmul.bf16.gmra.mxu0 %v986
          %v6612 = vpop.f32.mrf.mxu0
          %v6613 = vadd.f32 %v744, %v6612
          %v6614 = vpop.f32.mrf.mxu0
          %v6615 = vadd.f32 %v744, %v6614
          %6616 = vmatmul.bf16.gmra.mxu0 %v990
          %v6617 = vpop.f32.mrf.mxu0
          %v6618 = vadd.f32 %v744, %v6617
          %v6619 = vpop.f32.mrf.mxu0
          %v6620 = vadd.f32 %v744, %v6619
          %6621 = vmatmul.bf16.gmra.mxu0 %v994
          %v6622 = vpop.f32.mrf.mxu0
          %v6623 = vadd.f32 %v744, %v6622
          %v6624 = vpop.f32.mrf.mxu0
          %v6625 = vadd.f32 %v744, %v6624
          %6626 = vmatmul.bf16.gmra.mxu0 %v998
          %v6627 = vpop.f32.mrf.mxu0
          %v6628 = vadd.f32 %v744, %v6627
          %v6629 = vpop.f32.mrf.mxu0
          %v6630 = vadd.f32 %v744, %v6629
          %6631 = vmatmul.bf16.gmra.mxu0 %v1002
          %v6632 = vpop.f32.mrf.mxu0
          %v6633 = vadd.f32 %v744, %v6632
          %v6634 = vpop.f32.mrf.mxu0
          %v6635 = vadd.f32 %v744, %v6634
          %6636 = vmatmul.bf16.gmra.mxu0 %v1006
          %v6637 = vpop.f32.mrf.mxu0
          %v6638 = vadd.f32 %v744, %v6637
          %v6639 = vpop.f32.mrf.mxu0
          %v6640 = vadd.f32 %v744, %v6639
          %6641 = vmatmul.bf16.gmra.mxu0 %v1010
          %v6642 = vpop.f32.mrf.mxu0
          %v6643 = vadd.f32 %v744, %v6642
          %v6644 = vpop.f32.mrf.mxu0
          %v6645 = vadd.f32 %v744, %v6644
          %6646 = vdwg.mxu0
          %6647 = vmatpush.bf16.msra.mxu0 %v2420
          %6648 = vmatpush.bf16.msra.mxu0 %v2408
          %6649 = vmatpush.bf16.msra.mxu0 %v2396
          %6650 = vmatpush.bf16.msra.mxu0 %v2384
          %6651 = vmatpush.bf16.msra.mxu0 %v2372
          %6652 = vmatpush.bf16.msra.mxu0 %v2360
          %6653 = vmatpush.bf16.msra.mxu0 %v2348
          %6654 = vmatpush.bf16.msra.mxu0 %v2336
          %6655 = vmatmul.bf16.gmra.mxu0 %v951
          %v6656 = vpop.f32.mrf.mxu0
          %v6657 = vadd.f32 %v6568, %v6656
          %v6658 = vpop.f32.mrf.mxu0
          %v6659 = vadd.f32 %v6570, %v6658
          %6660 = vmatmul.bf16.gmra.mxu0 %v955
          %v6661 = vpop.f32.mrf.mxu0
          %v6662 = vadd.f32 %v6573, %v6661
          %v6663 = vpop.f32.mrf.mxu0
          %v6664 = vadd.f32 %v6575, %v6663
          %6665 = vmatmul.bf16.gmra.mxu0 %v959
          %v6666 = vpop.f32.mrf.mxu0
          %v6667 = vadd.f32 %v6578, %v6666
          %v6668 = vpop.f32.mrf.mxu0
          %v6669 = vadd.f32 %v6580, %v6668
          %6670 = vmatmul.bf16.gmra.mxu0 %v963
          %v6671 = vpop.f32.mrf.mxu0
          %v6672 = vadd.f32 %v6583, %v6671
          %v6673 = vpop.f32.mrf.mxu0
          %v6674 = vadd.f32 %v6585, %v6673
          %6675 = vmatmul.bf16.gmra.mxu0 %v967
          %v6676 = vpop.f32.mrf.mxu0
          %v6677 = vadd.f32 %v6588, %v6676
          %v6678 = vpop.f32.mrf.mxu0
          %v6679 = vadd.f32 %v6590, %v6678
          %6680 = vmatmul.bf16.gmra.mxu0 %v971
          %v6681 = vpop.f32.mrf.mxu0
          %v6682 = vadd.f32 %v6593, %v6681
          %v6683 = vpop.f32.mrf.mxu0
          %v6684 = vadd.f32 %v6595, %v6683
          %6685 = vmatmul.bf16.gmra.mxu0 %v975
          %v6686 = vpop.f32.mrf.mxu0
          %v6687 = vadd.f32 %v6598, %v6686
          %v6688 = vpop.f32.mrf.mxu0
          %v6689 = vadd.f32 %v6600, %v6688
          %6690 = vmatmul.bf16.gmra.mxu0 %v979
          %v6691 = vpop.f32.mrf.mxu0
          %v6692 = vadd.f32 %v6603, %v6691
          %v6693 = vpop.f32.mrf.mxu0
          %v6694 = vadd.f32 %v6605, %v6693
          %6695 = vmatmul.bf16.gmra.mxu0 %v983
          %v6696 = vpop.f32.mrf.mxu0
          %v6697 = vadd.f32 %v6608, %v6696
          %v6698 = vpop.f32.mrf.mxu0
          %v6699 = vadd.f32 %v6610, %v6698
          %6700 = vmatmul.bf16.gmra.mxu0 %v987
          %v6701 = vpop.f32.mrf.mxu0
          %v6702 = vadd.f32 %v6613, %v6701
          %v6703 = vpop.f32.mrf.mxu0
          %v6704 = vadd.f32 %v6615, %v6703
          %6705 = vmatmul.bf16.gmra.mxu0 %v991
          %v6706 = vpop.f32.mrf.mxu0
          %v6707 = vadd.f32 %v6618, %v6706
          %v6708 = vpop.f32.mrf.mxu0
          %v6709 = vadd.f32 %v6620, %v6708
          %6710 = vmatmul.bf16.gmra.mxu0 %v995
          %v6711 = vpop.f32.mrf.mxu0
          %v6712 = vadd.f32 %v6623, %v6711
          %v6713 = vpop.f32.mrf.mxu0
          %v6714 = vadd.f32 %v6625, %v6713
          %6715 = vmatmul.bf16.gmra.mxu0 %v999
          %v6716 = vpop.f32.mrf.mxu0
          %v6717 = vadd.f32 %v6628, %v6716
          %v6718 = vpop.f32.mrf.mxu0
          %v6719 = vadd.f32 %v6630, %v6718
          %6720 = vmatmul.bf16.gmra.mxu0 %v1003
          %v6721 = vpop.f32.mrf.mxu0
          %v6722 = vadd.f32 %v6633, %v6721
          %v6723 = vpop.f32.mrf.mxu0
          %v6724 = vadd.f32 %v6635, %v6723
          %6725 = vmatmul.bf16.gmra.mxu0 %v1007
          %v6726 = vpop.f32.mrf.mxu0
          %v6727 = vadd.f32 %v6638, %v6726
          %v6728 = vpop.f32.mrf.mxu0
          %v6729 = vadd.f32 %v6640, %v6728
          %6730 = vmatmul.bf16.gmra.mxu0 %v1011
          %v6731 = vpop.f32.mrf.mxu0
          %v6732 = vadd.f32 %v6643, %v6731
          %v6733 = vpop.f32.mrf.mxu0
          %v6734 = vadd.f32 %v6645, %v6733
          %6735 = vdwg.mxu0
          %6736 = vmatpush.bf16.msra.mxu0 %v2516
          %6737 = vmatpush.bf16.msra.mxu0 %v2504
          %6738 = vmatpush.bf16.msra.mxu0 %v2492
          %6739 = vmatpush.bf16.msra.mxu0 %v2480
          %6740 = vmatpush.bf16.msra.mxu0 %v2468
          %6741 = vmatpush.bf16.msra.mxu0 %v2456
          %6742 = vmatpush.bf16.msra.mxu0 %v2444
          %6743 = vmatpush.bf16.msra.mxu0 %v2432
          %6744 = vmatmul.bf16.gmra.mxu0 %v952
          %v6745 = vpop.f32.mrf.mxu0
          %v6746 = vadd.f32 %v6657, %v6745
          %v6747 = vpop.f32.mrf.mxu0
          %v6748 = vadd.f32 %v6659, %v6747
          %6749 = vmatmul.bf16.gmra.mxu0 %v956
          %v6750 = vpop.f32.mrf.mxu0
          %v6751 = vadd.f32 %v6662, %v6750
          %v6752 = vpop.f32.mrf.mxu0
          %v6753 = vadd.f32 %v6664, %v6752
          %6754 = vmatmul.bf16.gmra.mxu0 %v960
          %v6755 = vpop.f32.mrf.mxu0
          %v6756 = vadd.f32 %v6667, %v6755
          %v6757 = vpop.f32.mrf.mxu0
          %v6758 = vadd.f32 %v6669, %v6757
          %6759 = vmatmul.bf16.gmra.mxu0 %v964
          %v6760 = vpop.f32.mrf.mxu0
          %v6761 = vadd.f32 %v6672, %v6760
          %v6762 = vpop.f32.mrf.mxu0
          %v6763 = vadd.f32 %v6674, %v6762
          %6764 = vmatmul.bf16.gmra.mxu0 %v968
          %v6765 = vpop.f32.mrf.mxu0
          %v6766 = vadd.f32 %v6677, %v6765
          %v6767 = vpop.f32.mrf.mxu0
          %v6768 = vadd.f32 %v6679, %v6767
          %6769 = vmatmul.bf16.gmra.mxu0 %v972
          %v6770 = vpop.f32.mrf.mxu0
          %v6771 = vadd.f32 %v6682, %v6770
          %v6772 = vpop.f32.mrf.mxu0
          %v6773 = vadd.f32 %v6684, %v6772
          %6774 = vmatmul.bf16.gmra.mxu0 %v976
          %v6775 = vpop.f32.mrf.mxu0
          %v6776 = vadd.f32 %v6687, %v6775
          %v6777 = vpop.f32.mrf.mxu0
          %v6778 = vadd.f32 %v6689, %v6777
          %6779 = vmatmul.bf16.gmra.mxu0 %v980
          %v6780 = vpop.f32.mrf.mxu0
          %v6781 = vadd.f32 %v6692, %v6780
          %v6782 = vpop.f32.mrf.mxu0
          %v6783 = vadd.f32 %v6694, %v6782
          %6784 = vmatmul.bf16.gmra.mxu0 %v984
          %v6785 = vpop.f32.mrf.mxu0
          %v6786 = vadd.f32 %v6697, %v6785
          %v6787 = vpop.f32.mrf.mxu0
          %v6788 = vadd.f32 %v6699, %v6787
          %6789 = vmatmul.bf16.gmra.mxu0 %v988
          %v6790 = vpop.f32.mrf.mxu0
          %v6791 = vadd.f32 %v6702, %v6790
          %v6792 = vpop.f32.mrf.mxu0
          %v6793 = vadd.f32 %v6704, %v6792
          %6794 = vmatmul.bf16.gmra.mxu0 %v992
          %v6795 = vpop.f32.mrf.mxu0
          %v6796 = vadd.f32 %v6707, %v6795
          %v6797 = vpop.f32.mrf.mxu0
          %v6798 = vadd.f32 %v6709, %v6797
          %6799 = vmatmul.bf16.gmra.mxu0 %v996
          %v6800 = vpop.f32.mrf.mxu0
          %v6801 = vadd.f32 %v6712, %v6800
          %v6802 = vpop.f32.mrf.mxu0
          %v6803 = vadd.f32 %v6714, %v6802
          %6804 = vmatmul.bf16.gmra.mxu0 %v1000
          %v6805 = vpop.f32.mrf.mxu0
          %v6806 = vadd.f32 %v6717, %v6805
          %v6807 = vpop.f32.mrf.mxu0
          %v6808 = vadd.f32 %v6719, %v6807
          %6809 = vmatmul.bf16.gmra.mxu0 %v1004
          %v6810 = vpop.f32.mrf.mxu0
          %v6811 = vadd.f32 %v6722, %v6810
          %v6812 = vpop.f32.mrf.mxu0
          %v6813 = vadd.f32 %v6724, %v6812
          %6814 = vmatmul.bf16.gmra.mxu0 %v1008
          %v6815 = vpop.f32.mrf.mxu0
          %v6816 = vadd.f32 %v6727, %v6815
          %v6817 = vpop.f32.mrf.mxu0
          %v6818 = vadd.f32 %v6729, %v6817
          %6819 = vmatmul.bf16.gmra.mxu0 %v1012
          %v6820 = vpop.f32.mrf.mxu0
          %v6821 = vadd.f32 %v6732, %v6820
          %v6822 = vpop.f32.mrf.mxu0
          %v6823 = vadd.f32 %v6734, %v6822
          %6824 = vdwg.mxu0
          %6825 = vmatpush.bf16.msra.mxu0 %v2612
          %6826 = vmatpush.bf16.msra.mxu0 %v2600
          %6827 = vmatpush.bf16.msra.mxu0 %v2588
          %6828 = vmatpush.bf16.msra.mxu0 %v2576
          %6829 = vmatpush.bf16.msra.mxu0 %v2564
          %6830 = vmatpush.bf16.msra.mxu0 %v2552
          %6831 = vmatpush.bf16.msra.mxu0 %v2540
          %6832 = vmatpush.bf16.msra.mxu0 %v2528
          %6833 = vmatmul.bf16.gmra.mxu0 %v953
          %v6834 = vpop.f32.mrf.mxu0
          %v6835 = vadd.f32 %v6746, %v6834
          %v6836 = vpop.f32.mrf.mxu0
          %v6837 = vadd.f32 %v6748, %v6836
          %6838 = vmatmul.bf16.gmra.mxu0 %v957
          %v6839 = vpop.f32.mrf.mxu0
          %v6840 = vadd.f32 %v6751, %v6839
          %v6841 = vpop.f32.mrf.mxu0
          %v6842 = vadd.f32 %v6753, %v6841
          %6843 = vmatmul.bf16.gmra.mxu0 %v961
          %v6844 = vpop.f32.mrf.mxu0
          %v6845 = vadd.f32 %v6756, %v6844
          %v6846 = vpop.f32.mrf.mxu0
          %v6847 = vadd.f32 %v6758, %v6846
          %6848 = vmatmul.bf16.gmra.mxu0 %v965
          %v6849 = vpop.f32.mrf.mxu0
          %v6850 = vadd.f32 %v6761, %v6849
          %v6851 = vpop.f32.mrf.mxu0
          %v6852 = vadd.f32 %v6763, %v6851
          %6853 = vmatmul.bf16.gmra.mxu0 %v969
          %v6854 = vpop.f32.mrf.mxu0
          %v6855 = vadd.f32 %v6766, %v6854
          %v6856 = vpop.f32.mrf.mxu0
          %v6857 = vadd.f32 %v6768, %v6856
          %6858 = vmatmul.bf16.gmra.mxu0 %v973
          %v6859 = vpop.f32.mrf.mxu0
          %v6860 = vadd.f32 %v6771, %v6859
          %v6861 = vpop.f32.mrf.mxu0
          %v6862 = vadd.f32 %v6773, %v6861
          %6863 = vmatmul.bf16.gmra.mxu0 %v977
          %v6864 = vpop.f32.mrf.mxu0
          %v6865 = vadd.f32 %v6776, %v6864
          %v6866 = vpop.f32.mrf.mxu0
          %v6867 = vadd.f32 %v6778, %v6866
          %6868 = vmatmul.bf16.gmra.mxu0 %v981
          %v6869 = vpop.f32.mrf.mxu0
          %v6870 = vadd.f32 %v6781, %v6869
          %v6871 = vpop.f32.mrf.mxu0
          %v6872 = vadd.f32 %v6783, %v6871
          %6873 = vmatmul.bf16.gmra.mxu0 %v985
          %v6874 = vpop.f32.mrf.mxu0
          %v6875 = vadd.f32 %v6786, %v6874
          %v6876 = vpop.f32.mrf.mxu0
          %v6877 = vadd.f32 %v6788, %v6876
          %6878 = vmatmul.bf16.gmra.mxu0 %v989
          %v6879 = vpop.f32.mrf.mxu0
          %v6880 = vadd.f32 %v6791, %v6879
          %v6881 = vpop.f32.mrf.mxu0
          %v6882 = vadd.f32 %v6793, %v6881
          %6883 = vmatmul.bf16.gmra.mxu0 %v993
          %v6884 = vpop.f32.mrf.mxu0
          %v6885 = vadd.f32 %v6796, %v6884
          %v6886 = vpop.f32.mrf.mxu0
          %v6887 = vadd.f32 %v6798, %v6886
          %6888 = vmatmul.bf16.gmra.mxu0 %v997
          %v6889 = vpop.f32.mrf.mxu0
          %v6890 = vadd.f32 %v6801, %v6889
          %v6891 = vpop.f32.mrf.mxu0
          %v6892 = vadd.f32 %v6803, %v6891
          %6893 = vmatmul.bf16.gmra.mxu0 %v1001
          %v6894 = vpop.f32.mrf.mxu0
          %v6895 = vadd.f32 %v6806, %v6894
          %v6896 = vpop.f32.mrf.mxu0
          %v6897 = vadd.f32 %v6808, %v6896
          %6898 = vmatmul.bf16.gmra.mxu0 %v1005
          %v6899 = vpop.f32.mrf.mxu0
          %v6900 = vadd.f32 %v6811, %v6899
          %v6901 = vpop.f32.mrf.mxu0
          %v6902 = vadd.f32 %v6813, %v6901
          %6903 = vmatmul.bf16.gmra.mxu0 %v1009
          %v6904 = vpop.f32.mrf.mxu0
          %v6905 = vadd.f32 %v6816, %v6904
          %v6906 = vpop.f32.mrf.mxu0
          %v6907 = vadd.f32 %v6818, %v6906
          %6908 = vmatmul.bf16.gmra.mxu0 %v1013
          %v6909 = vpop.f32.mrf.mxu0
          %v6910 = vadd.f32 %v6821, %v6909
          %v6911 = vpop.f32.mrf.mxu0
          %v6912 = vadd.f32 %v6823, %v6911
          %6913 = vdwg.mxu0
          %6914 = vmatpush.bf16.msra.mxu0 %v2325
          %6915 = vmatpush.bf16.msra.mxu0 %v2313
          %6916 = vmatpush.bf16.msra.mxu0 %v2301
          %6917 = vmatpush.bf16.msra.mxu0 %v2289
          %6918 = vmatpush.bf16.msra.mxu0 %v2277
          %6919 = vmatpush.bf16.msra.mxu0 %v2265
          %6920 = vmatpush.bf16.msra.mxu0 %v2253
          %6921 = vmatpush.bf16.msra.mxu0 %v2241
          %6922 = vmatmul.bf16.gmra.mxu0 %v950
          %v6923 = vpop.f32.mrf.mxu0
          %v6924 = vadd.f32 %v745, %v6923
          %v6925 = vpop.f32.mrf.mxu0
          %v6926 = vadd.f32 %v745, %v6925
          %6927 = vmatmul.bf16.gmra.mxu0 %v954
          %v6928 = vpop.f32.mrf.mxu0
          %v6929 = vadd.f32 %v745, %v6928
          %v6930 = vpop.f32.mrf.mxu0
          %v6931 = vadd.f32 %v745, %v6930
          %6932 = vmatmul.bf16.gmra.mxu0 %v958
          %v6933 = vpop.f32.mrf.mxu0
          %v6934 = vadd.f32 %v745, %v6933
          %v6935 = vpop.f32.mrf.mxu0
          %v6936 = vadd.f32 %v745, %v6935
          %6937 = vmatmul.bf16.gmra.mxu0 %v962
          %v6938 = vpop.f32.mrf.mxu0
          %v6939 = vadd.f32 %v745, %v6938
          %v6940 = vpop.f32.mrf.mxu0
          %v6941 = vadd.f32 %v745, %v6940
          %6942 = vmatmul.bf16.gmra.mxu0 %v966
          %v6943 = vpop.f32.mrf.mxu0
          %v6944 = vadd.f32 %v745, %v6943
          %v6945 = vpop.f32.mrf.mxu0
          %v6946 = vadd.f32 %v745, %v6945
          %6947 = vmatmul.bf16.gmra.mxu0 %v970
          %v6948 = vpop.f32.mrf.mxu0
          %v6949 = vadd.f32 %v745, %v6948
          %v6950 = vpop.f32.mrf.mxu0
          %v6951 = vadd.f32 %v745, %v6950
          %6952 = vmatmul.bf16.gmra.mxu0 %v974
          %v6953 = vpop.f32.mrf.mxu0
          %v6954 = vadd.f32 %v745, %v6953
          %v6955 = vpop.f32.mrf.mxu0
          %v6956 = vadd.f32 %v745, %v6955
          %6957 = vmatmul.bf16.gmra.mxu0 %v978
          %v6958 = vpop.f32.mrf.mxu0
          %v6959 = vadd.f32 %v745, %v6958
          %v6960 = vpop.f32.mrf.mxu0
          %v6961 = vadd.f32 %v745, %v6960
          %6962 = vmatmul.bf16.gmra.mxu0 %v982
          %v6963 = vpop.f32.mrf.mxu0
          %v6964 = vadd.f32 %v745, %v6963
          %v6965 = vpop.f32.mrf.mxu0
          %v6966 = vadd.f32 %v745, %v6965
          %6967 = vmatmul.bf16.gmra.mxu0 %v986
          %v6968 = vpop.f32.mrf.mxu0
          %v6969 = vadd.f32 %v745, %v6968
          %v6970 = vpop.f32.mrf.mxu0
          %v6971 = vadd.f32 %v745, %v6970
          %6972 = vmatmul.bf16.gmra.mxu0 %v990
          %v6973 = vpop.f32.mrf.mxu0
          %v6974 = vadd.f32 %v745, %v6973
          %v6975 = vpop.f32.mrf.mxu0
          %v6976 = vadd.f32 %v745, %v6975
          %6977 = vmatmul.bf16.gmra.mxu0 %v994
          %v6978 = vpop.f32.mrf.mxu0
          %v6979 = vadd.f32 %v745, %v6978
          %v6980 = vpop.f32.mrf.mxu0
          %v6981 = vadd.f32 %v745, %v6980
          %6982 = vmatmul.bf16.gmra.mxu0 %v998
          %v6983 = vpop.f32.mrf.mxu0
          %v6984 = vadd.f32 %v745, %v6983
          %v6985 = vpop.f32.mrf.mxu0
          %v6986 = vadd.f32 %v745, %v6985
          %6987 = vmatmul.bf16.gmra.mxu0 %v1002
          %v6988 = vpop.f32.mrf.mxu0
          %v6989 = vadd.f32 %v745, %v6988
          %v6990 = vpop.f32.mrf.mxu0
          %v6991 = vadd.f32 %v745, %v6990
          %6992 = vmatmul.bf16.gmra.mxu0 %v1006
          %v6993 = vpop.f32.mrf.mxu0
          %v6994 = vadd.f32 %v745, %v6993
          %v6995 = vpop.f32.mrf.mxu0
          %v6996 = vadd.f32 %v745, %v6995
          %6997 = vmatmul.bf16.gmra.mxu0 %v1010
          %v6998 = vpop.f32.mrf.mxu0
          %v6999 = vadd.f32 %v745, %v6998
          %v7000 = vpop.f32.mrf.mxu0
          %v7001 = vadd.f32 %v745, %v7000
          %7002 = vdwg.mxu0
          %7003 = vmatpush.bf16.msra.mxu0 %v2421
          %7004 = vmatpush.bf16.msra.mxu0 %v2409
          %7005 = vmatpush.bf16.msra.mxu0 %v2397
          %7006 = vmatpush.bf16.msra.mxu0 %v2385
          %7007 = vmatpush.bf16.msra.mxu0 %v2373
          %7008 = vmatpush.bf16.msra.mxu0 %v2361
          %7009 = vmatpush.bf16.msra.mxu0 %v2349
          %7010 = vmatpush.bf16.msra.mxu0 %v2337
          %7011 = vmatmul.bf16.gmra.mxu0 %v951
          %v7012 = vpop.f32.mrf.mxu0
          %v7013 = vadd.f32 %v6924, %v7012
          %v7014 = vpop.f32.mrf.mxu0
          %v7015 = vadd.f32 %v6926, %v7014
          %7016 = vmatmul.bf16.gmra.mxu0 %v955
          %v7017 = vpop.f32.mrf.mxu0
          %v7018 = vadd.f32 %v6929, %v7017
          %v7019 = vpop.f32.mrf.mxu0
          %v7020 = vadd.f32 %v6931, %v7019
          %7021 = vmatmul.bf16.gmra.mxu0 %v959
          %v7022 = vpop.f32.mrf.mxu0
          %v7023 = vadd.f32 %v6934, %v7022
          %v7024 = vpop.f32.mrf.mxu0
          %v7025 = vadd.f32 %v6936, %v7024
          %7026 = vmatmul.bf16.gmra.mxu0 %v963
          %v7027 = vpop.f32.mrf.mxu0
          %v7028 = vadd.f32 %v6939, %v7027
          %v7029 = vpop.f32.mrf.mxu0
          %v7030 = vadd.f32 %v6941, %v7029
          %7031 = vmatmul.bf16.gmra.mxu0 %v967
          %v7032 = vpop.f32.mrf.mxu0
          %v7033 = vadd.f32 %v6944, %v7032
          %v7034 = vpop.f32.mrf.mxu0
          %v7035 = vadd.f32 %v6946, %v7034
          %7036 = vmatmul.bf16.gmra.mxu0 %v971
          %v7037 = vpop.f32.mrf.mxu0
          %v7038 = vadd.f32 %v6949, %v7037
          %v7039 = vpop.f32.mrf.mxu0
          %v7040 = vadd.f32 %v6951, %v7039
          %7041 = vmatmul.bf16.gmra.mxu0 %v975
          %v7042 = vpop.f32.mrf.mxu0
          %v7043 = vadd.f32 %v6954, %v7042
          %v7044 = vpop.f32.mrf.mxu0
          %v7045 = vadd.f32 %v6956, %v7044
          %7046 = vmatmul.bf16.gmra.mxu0 %v979
          %v7047 = vpop.f32.mrf.mxu0
          %v7048 = vadd.f32 %v6959, %v7047
          %v7049 = vpop.f32.mrf.mxu0
          %v7050 = vadd.f32 %v6961, %v7049
          %7051 = vmatmul.bf16.gmra.mxu0 %v983
          %v7052 = vpop.f32.mrf.mxu0
          %v7053 = vadd.f32 %v6964, %v7052
          %v7054 = vpop.f32.mrf.mxu0
          %v7055 = vadd.f32 %v6966, %v7054
          %7056 = vmatmul.bf16.gmra.mxu0 %v987
          %v7057 = vpop.f32.mrf.mxu0
          %v7058 = vadd.f32 %v6969, %v7057
          %v7059 = vpop.f32.mrf.mxu0
          %v7060 = vadd.f32 %v6971, %v7059
          %7061 = vmatmul.bf16.gmra.mxu0 %v991
          %v7062 = vpop.f32.mrf.mxu0
          %v7063 = vadd.f32 %v6974, %v7062
          %v7064 = vpop.f32.mrf.mxu0
          %v7065 = vadd.f32 %v6976, %v7064
          %7066 = vmatmul.bf16.gmra.mxu0 %v995
          %v7067 = vpop.f32.mrf.mxu0
          %v7068 = vadd.f32 %v6979, %v7067
          %v7069 = vpop.f32.mrf.mxu0
          %v7070 = vadd.f32 %v6981, %v7069
          %7071 = vmatmul.bf16.gmra.mxu0 %v999
          %v7072 = vpop.f32.mrf.mxu0
          %v7073 = vadd.f32 %v6984, %v7072
          %v7074 = vpop.f32.mrf.mxu0
          %v7075 = vadd.f32 %v6986, %v7074
          %7076 = vmatmul.bf16.gmra.mxu0 %v1003
          %v7077 = vpop.f32.mrf.mxu0
          %v7078 = vadd.f32 %v6989, %v7077
          %v7079 = vpop.f32.mrf.mxu0
          %v7080 = vadd.f32 %v6991, %v7079
          %7081 = vmatmul.bf16.gmra.mxu0 %v1007
          %v7082 = vpop.f32.mrf.mxu0
          %v7083 = vadd.f32 %v6994, %v7082
          %v7084 = vpop.f32.mrf.mxu0
          %v7085 = vadd.f32 %v6996, %v7084
          %7086 = vmatmul.bf16.gmra.mxu0 %v1011
          %v7087 = vpop.f32.mrf.mxu0
          %v7088 = vadd.f32 %v6999, %v7087
          %v7089 = vpop.f32.mrf.mxu0
          %v7090 = vadd.f32 %v7001, %v7089
          %7091 = vdwg.mxu0
          %7092 = vmatpush.bf16.msra.mxu0 %v2517
          %7093 = vmatpush.bf16.msra.mxu0 %v2505
          %7094 = vmatpush.bf16.msra.mxu0 %v2493
          %7095 = vmatpush.bf16.msra.mxu0 %v2481
          %7096 = vmatpush.bf16.msra.mxu0 %v2469
          %7097 = vmatpush.bf16.msra.mxu0 %v2457
          %7098 = vmatpush.bf16.msra.mxu0 %v2445
          %7099 = vmatpush.bf16.msra.mxu0 %v2433
          %7100 = vmatmul.bf16.gmra.mxu0 %v952
          %v7101 = vpop.f32.mrf.mxu0
          %v7102 = vadd.f32 %v7013, %v7101
          %v7103 = vpop.f32.mrf.mxu0
          %v7104 = vadd.f32 %v7015, %v7103
          %7105 = vmatmul.bf16.gmra.mxu0 %v956
          %v7106 = vpop.f32.mrf.mxu0
          %v7107 = vadd.f32 %v7018, %v7106
          %v7108 = vpop.f32.mrf.mxu0
          %v7109 = vadd.f32 %v7020, %v7108
          %7110 = vmatmul.bf16.gmra.mxu0 %v960
          %v7111 = vpop.f32.mrf.mxu0
          %v7112 = vadd.f32 %v7023, %v7111
          %v7113 = vpop.f32.mrf.mxu0
          %v7114 = vadd.f32 %v7025, %v7113
          %7115 = vmatmul.bf16.gmra.mxu0 %v964
          %v7116 = vpop.f32.mrf.mxu0
          %v7117 = vadd.f32 %v7028, %v7116
          %v7118 = vpop.f32.mrf.mxu0
          %v7119 = vadd.f32 %v7030, %v7118
          %7120 = vmatmul.bf16.gmra.mxu0 %v968
          %v7121 = vpop.f32.mrf.mxu0
          %v7122 = vadd.f32 %v7033, %v7121
          %v7123 = vpop.f32.mrf.mxu0
          %v7124 = vadd.f32 %v7035, %v7123
          %7125 = vmatmul.bf16.gmra.mxu0 %v972
          %v7126 = vpop.f32.mrf.mxu0
          %v7127 = vadd.f32 %v7038, %v7126
          %v7128 = vpop.f32.mrf.mxu0
          %v7129 = vadd.f32 %v7040, %v7128
          %7130 = vmatmul.bf16.gmra.mxu0 %v976
          %v7131 = vpop.f32.mrf.mxu0
          %v7132 = vadd.f32 %v7043, %v7131
          %v7133 = vpop.f32.mrf.mxu0
          %v7134 = vadd.f32 %v7045, %v7133
          %7135 = vmatmul.bf16.gmra.mxu0 %v980
          %v7136 = vpop.f32.mrf.mxu0
          %v7137 = vadd.f32 %v7048, %v7136
          %v7138 = vpop.f32.mrf.mxu0
          %v7139 = vadd.f32 %v7050, %v7138
          %7140 = vmatmul.bf16.gmra.mxu0 %v984
          %v7141 = vpop.f32.mrf.mxu0
          %v7142 = vadd.f32 %v7053, %v7141
          %v7143 = vpop.f32.mrf.mxu0
          %v7144 = vadd.f32 %v7055, %v7143
          %7145 = vmatmul.bf16.gmra.mxu0 %v988
          %v7146 = vpop.f32.mrf.mxu0
          %v7147 = vadd.f32 %v7058, %v7146
          %v7148 = vpop.f32.mrf.mxu0
          %v7149 = vadd.f32 %v7060, %v7148
          %7150 = vmatmul.bf16.gmra.mxu0 %v992
          %v7151 = vpop.f32.mrf.mxu0
          %v7152 = vadd.f32 %v7063, %v7151
          %v7153 = vpop.f32.mrf.mxu0
          %v7154 = vadd.f32 %v7065, %v7153
          %7155 = vmatmul.bf16.gmra.mxu0 %v996
          %v7156 = vpop.f32.mrf.mxu0
          %v7157 = vadd.f32 %v7068, %v7156
          %v7158 = vpop.f32.mrf.mxu0
          %v7159 = vadd.f32 %v7070, %v7158
          %7160 = vmatmul.bf16.gmra.mxu0 %v1000
          %v7161 = vpop.f32.mrf.mxu0
          %v7162 = vadd.f32 %v7073, %v7161
          %v7163 = vpop.f32.mrf.mxu0
          %v7164 = vadd.f32 %v7075, %v7163
          %7165 = vmatmul.bf16.gmra.mxu0 %v1004
          %v7166 = vpop.f32.mrf.mxu0
          %v7167 = vadd.f32 %v7078, %v7166
          %v7168 = vpop.f32.mrf.mxu0
          %v7169 = vadd.f32 %v7080, %v7168
          %7170 = vmatmul.bf16.gmra.mxu0 %v1008
          %v7171 = vpop.f32.mrf.mxu0
          %v7172 = vadd.f32 %v7083, %v7171
          %v7173 = vpop.f32.mrf.mxu0
          %v7174 = vadd.f32 %v7085, %v7173
          %7175 = vmatmul.bf16.gmra.mxu0 %v1012
          %v7176 = vpop.f32.mrf.mxu0
          %v7177 = vadd.f32 %v7088, %v7176
          %v7178 = vpop.f32.mrf.mxu0
          %v7179 = vadd.f32 %v7090, %v7178
          %7180 = vdwg.mxu0
          %7181 = vmatpush.bf16.msra.mxu0 %v2613
          %7182 = vmatpush.bf16.msra.mxu0 %v2601
          %7183 = vmatpush.bf16.msra.mxu0 %v2589
          %7184 = vmatpush.bf16.msra.mxu0 %v2577
          %7185 = vmatpush.bf16.msra.mxu0 %v2565
          %7186 = vmatpush.bf16.msra.mxu0 %v2553
          %7187 = vmatpush.bf16.msra.mxu0 %v2541
          %7188 = vmatpush.bf16.msra.mxu0 %v2529
          %7189 = vmatmul.bf16.gmra.mxu0 %v953
          %v7190 = vpop.f32.mrf.mxu0
          %v7191 = vadd.f32 %v7102, %v7190
          %v7192 = vpop.f32.mrf.mxu0
          %v7193 = vadd.f32 %v7104, %v7192
          %7194 = vmatmul.bf16.gmra.mxu0 %v957
          %v7195 = vpop.f32.mrf.mxu0
          %v7196 = vadd.f32 %v7107, %v7195
          %v7197 = vpop.f32.mrf.mxu0
          %v7198 = vadd.f32 %v7109, %v7197
          %7199 = vmatmul.bf16.gmra.mxu0 %v961
          %v7200 = vpop.f32.mrf.mxu0
          %v7201 = vadd.f32 %v7112, %v7200
          %v7202 = vpop.f32.mrf.mxu0
          %v7203 = vadd.f32 %v7114, %v7202
          %7204 = vmatmul.bf16.gmra.mxu0 %v965
          %v7205 = vpop.f32.mrf.mxu0
          %v7206 = vadd.f32 %v7117, %v7205
          %v7207 = vpop.f32.mrf.mxu0
          %v7208 = vadd.f32 %v7119, %v7207
          %7209 = vmatmul.bf16.gmra.mxu0 %v969
          %v7210 = vpop.f32.mrf.mxu0
          %v7211 = vadd.f32 %v7122, %v7210
          %v7212 = vpop.f32.mrf.mxu0
          %v7213 = vadd.f32 %v7124, %v7212
          %7214 = vmatmul.bf16.gmra.mxu0 %v973
          %v7215 = vpop.f32.mrf.mxu0
          %v7216 = vadd.f32 %v7127, %v7215
          %v7217 = vpop.f32.mrf.mxu0
          %v7218 = vadd.f32 %v7129, %v7217
          %7219 = vmatmul.bf16.gmra.mxu0 %v977
          %v7220 = vpop.f32.mrf.mxu0
          %v7221 = vadd.f32 %v7132, %v7220
          %v7222 = vpop.f32.mrf.mxu0
          %v7223 = vadd.f32 %v7134, %v7222
          %7224 = vmatmul.bf16.gmra.mxu0 %v981
          %v7225 = vpop.f32.mrf.mxu0
          %v7226 = vadd.f32 %v7137, %v7225
          %v7227 = vpop.f32.mrf.mxu0
          %v7228 = vadd.f32 %v7139, %v7227
          %7229 = vmatmul.bf16.gmra.mxu0 %v985
          %v7230 = vpop.f32.mrf.mxu0
          %v7231 = vadd.f32 %v7142, %v7230
          %v7232 = vpop.f32.mrf.mxu0
          %v7233 = vadd.f32 %v7144, %v7232
          %7234 = vmatmul.bf16.gmra.mxu0 %v989
          %v7235 = vpop.f32.mrf.mxu0
          %v7236 = vadd.f32 %v7147, %v7235
          %v7237 = vpop.f32.mrf.mxu0
          %v7238 = vadd.f32 %v7149, %v7237
          %7239 = vmatmul.bf16.gmra.mxu0 %v993
          %v7240 = vpop.f32.mrf.mxu0
          %v7241 = vadd.f32 %v7152, %v7240
          %v7242 = vpop.f32.mrf.mxu0
          %v7243 = vadd.f32 %v7154, %v7242
          %7244 = vmatmul.bf16.gmra.mxu0 %v997
          %v7245 = vpop.f32.mrf.mxu0
          %v7246 = vadd.f32 %v7157, %v7245
          %v7247 = vpop.f32.mrf.mxu0
          %v7248 = vadd.f32 %v7159, %v7247
          %7249 = vmatmul.bf16.gmra.mxu0 %v1001
          %v7250 = vpop.f32.mrf.mxu0
          %v7251 = vadd.f32 %v7162, %v7250
          %v7252 = vpop.f32.mrf.mxu0
          %v7253 = vadd.f32 %v7164, %v7252
          %7254 = vmatmul.bf16.gmra.mxu0 %v1005
          %v7255 = vpop.f32.mrf.mxu0
          %v7256 = vadd.f32 %v7167, %v7255
          %v7257 = vpop.f32.mrf.mxu0
          %v7258 = vadd.f32 %v7169, %v7257
          %7259 = vmatmul.bf16.gmra.mxu0 %v1009
          %v7260 = vpop.f32.mrf.mxu0
          %v7261 = vadd.f32 %v7172, %v7260
          %v7262 = vpop.f32.mrf.mxu0
          %v7263 = vadd.f32 %v7174, %v7262
          %7264 = vmatmul.bf16.gmra.mxu0 %v1013
          %v7265 = vpop.f32.mrf.mxu0
          %v7266 = vadd.f32 %v7177, %v7265
          %v7267 = vpop.f32.mrf.mxu0
          %v7268 = vadd.f32 %v7179, %v7267
          %7269 = vdwg.mxu0
          %v7270 = vpack.c.bf16 %v3631, %v3275
          %v7271 = vpack.c.bf16 %v4343, %v3987
          %v7272 = vpack.c.bf16 %v5055, %v4699
          %v7273 = vpack.c.bf16 %v5767, %v5411
          %v7274 = vpack.c.bf16 %v6479, %v6123
          %v7275 = vpack.c.bf16 %v7191, %v6835
          %v7276 = vpack.c.bf16 %v3633, %v3277
          %v7277 = vpack.c.bf16 %v4345, %v3989
          %v7278 = vpack.c.bf16 %v5057, %v4701
          %v7279 = vpack.c.bf16 %v5769, %v5413
          %v7280 = vpack.c.bf16 %v6481, %v6125
          %v7281 = vpack.c.bf16 %v7193, %v6837
          %v7282 = vpack.c.bf16 %v3636, %v3280
          %v7283 = vpack.c.bf16 %v4348, %v3992
          %v7284 = vpack.c.bf16 %v5060, %v4704
          %v7285 = vpack.c.bf16 %v5772, %v5416
          %v7286 = vpack.c.bf16 %v6484, %v6128
          %v7287 = vpack.c.bf16 %v7196, %v6840
          %v7288 = vpack.c.bf16 %v3638, %v3282
          %v7289 = vpack.c.bf16 %v4350, %v3994
          %v7290 = vpack.c.bf16 %v5062, %v4706
          %v7291 = vpack.c.bf16 %v5774, %v5418
          %v7292 = vpack.c.bf16 %v6486, %v6130
          %v7293 = vpack.c.bf16 %v7198, %v6842
          %v7294 = vpack.c.bf16 %v3641, %v3285
          %v7295 = vpack.c.bf16 %v4353, %v3997
          %v7296 = vpack.c.bf16 %v5065, %v4709
          %v7297 = vpack.c.bf16 %v5777, %v5421
          %v7298 = vpack.c.bf16 %v6489, %v6133
          %v7299 = vpack.c.bf16 %v7201, %v6845
          %v7300 = vpack.c.bf16 %v3643, %v3287
          %v7301 = vpack.c.bf16 %v4355, %v3999
          %v7302 = vpack.c.bf16 %v5067, %v4711
          %v7303 = vpack.c.bf16 %v5779, %v5423
          %v7304 = vpack.c.bf16 %v6491, %v6135
          %v7305 = vpack.c.bf16 %v7203, %v6847
          %v7306 = vpack.c.bf16 %v3646, %v3290
          %v7307 = vpack.c.bf16 %v4358, %v4002
          %v7308 = vpack.c.bf16 %v5070, %v4714
          %v7309 = vpack.c.bf16 %v5782, %v5426
          %v7310 = vpack.c.bf16 %v6494, %v6138
          %v7311 = vpack.c.bf16 %v7206, %v6850
          %v7312 = vpack.c.bf16 %v3648, %v3292
          %v7313 = vpack.c.bf16 %v4360, %v4004
          %v7314 = vpack.c.bf16 %v5072, %v4716
          %v7315 = vpack.c.bf16 %v5784, %v5428
          %v7316 = vpack.c.bf16 %v6496, %v6140
          %v7317 = vpack.c.bf16 %v7208, %v6852
          %v7318 = vpack.c.bf16 %v3651, %v3295
          %v7319 = vpack.c.bf16 %v4363, %v4007
          %v7320 = vpack.c.bf16 %v5075, %v4719
          %v7321 = vpack.c.bf16 %v5787, %v5431
          %v7322 = vpack.c.bf16 %v6499, %v6143
          %v7323 = vpack.c.bf16 %v7211, %v6855
          %v7324 = vpack.c.bf16 %v3653, %v3297
          %v7325 = vpack.c.bf16 %v4365, %v4009
          %v7326 = vpack.c.bf16 %v5077, %v4721
          %v7327 = vpack.c.bf16 %v5789, %v5433
          %v7328 = vpack.c.bf16 %v6501, %v6145
          %v7329 = vpack.c.bf16 %v7213, %v6857
          %v7330 = vpack.c.bf16 %v3656, %v3300
          %v7331 = vpack.c.bf16 %v4368, %v4012
          %v7332 = vpack.c.bf16 %v5080, %v4724
          %v7333 = vpack.c.bf16 %v5792, %v5436
          %v7334 = vpack.c.bf16 %v6504, %v6148
          %v7335 = vpack.c.bf16 %v7216, %v6860
          %v7336 = vpack.c.bf16 %v3658, %v3302
          %v7337 = vpack.c.bf16 %v4370, %v4014
          %v7338 = vpack.c.bf16 %v5082, %v4726
          %v7339 = vpack.c.bf16 %v5794, %v5438
          %v7340 = vpack.c.bf16 %v6506, %v6150
          %v7341 = vpack.c.bf16 %v7218, %v6862
          %v7342 = vpack.c.bf16 %v3661, %v3305
          %v7343 = vpack.c.bf16 %v4373, %v4017
          %v7344 = vpack.c.bf16 %v5085, %v4729
          %v7345 = vpack.c.bf16 %v5797, %v5441
          %v7346 = vpack.c.bf16 %v6509, %v6153
          %v7347 = vpack.c.bf16 %v7221, %v6865
          %v7348 = vpack.c.bf16 %v3663, %v3307
          %v7349 = vpack.c.bf16 %v4375, %v4019
          %v7350 = vpack.c.bf16 %v5087, %v4731
          %v7351 = vpack.c.bf16 %v5799, %v5443
          %v7352 = vpack.c.bf16 %v6511, %v6155
          %v7353 = vpack.c.bf16 %v7223, %v6867
          %v7354 = vpack.c.bf16 %v3666, %v3310
          %v7355 = vpack.c.bf16 %v4378, %v4022
          %v7356 = vpack.c.bf16 %v5090, %v4734
          %v7357 = vpack.c.bf16 %v5802, %v5446
          %v7358 = vpack.c.bf16 %v6514, %v6158
          %v7359 = vpack.c.bf16 %v7226, %v6870
          %v7360 = vpack.c.bf16 %v3668, %v3312
          %v7361 = vpack.c.bf16 %v4380, %v4024
          %v7362 = vpack.c.bf16 %v5092, %v4736
          %v7363 = vpack.c.bf16 %v5804, %v5448
          %v7364 = vpack.c.bf16 %v6516, %v6160
          %v7365 = vpack.c.bf16 %v7228, %v6872
          %v7366 = vpack.c.bf16 %v3671, %v3315
          %v7367 = vpack.c.bf16 %v4383, %v4027
          %v7368 = vpack.c.bf16 %v5095, %v4739
          %v7369 = vpack.c.bf16 %v5807, %v5451
          %v7370 = vpack.c.bf16 %v6519, %v6163
          %v7371 = vpack.c.bf16 %v7231, %v6875
          %v7372 = vpack.c.bf16 %v3673, %v3317
          %v7373 = vpack.c.bf16 %v4385, %v4029
          %v7374 = vpack.c.bf16 %v5097, %v4741
          %v7375 = vpack.c.bf16 %v5809, %v5453
          %v7376 = vpack.c.bf16 %v6521, %v6165
          %v7377 = vpack.c.bf16 %v7233, %v6877
          %v7378 = vpack.c.bf16 %v3676, %v3320
          %v7379 = vpack.c.bf16 %v4388, %v4032
          %v7380 = vpack.c.bf16 %v5100, %v4744
          %v7381 = vpack.c.bf16 %v5812, %v5456
          %v7382 = vpack.c.bf16 %v6524, %v6168
          %v7383 = vpack.c.bf16 %v7236, %v6880
          %v7384 = vpack.c.bf16 %v3678, %v3322
          %v7385 = vpack.c.bf16 %v4390, %v4034
          %v7386 = vpack.c.bf16 %v5102, %v4746
          %v7387 = vpack.c.bf16 %v5814, %v5458
          %v7388 = vpack.c.bf16 %v6526, %v6170
          %v7389 = vpack.c.bf16 %v7238, %v6882
          %v7390 = vpack.c.bf16 %v3681, %v3325
          %v7391 = vpack.c.bf16 %v4393, %v4037
          %v7392 = vpack.c.bf16 %v5105, %v4749
          %v7393 = vpack.c.bf16 %v5817, %v5461
          %v7394 = vpack.c.bf16 %v6529, %v6173
          %v7395 = vpack.c.bf16 %v7241, %v6885
          %v7396 = vpack.c.bf16 %v3683, %v3327
          %v7397 = vpack.c.bf16 %v4395, %v4039
          %v7398 = vpack.c.bf16 %v5107, %v4751
          %v7399 = vpack.c.bf16 %v5819, %v5463
          %v7400 = vpack.c.bf16 %v6531, %v6175
          %v7401 = vpack.c.bf16 %v7243, %v6887
          %v7402 = vpack.c.bf16 %v3686, %v3330
          %v7403 = vpack.c.bf16 %v4398, %v4042
          %v7404 = vpack.c.bf16 %v5110, %v4754
          %v7405 = vpack.c.bf16 %v5822, %v5466
          %v7406 = vpack.c.bf16 %v6534, %v6178
          %v7407 = vpack.c.bf16 %v7246, %v6890
          %v7408 = vpack.c.bf16 %v3688, %v3332
          %v7409 = vpack.c.bf16 %v4400, %v4044
          %v7410 = vpack.c.bf16 %v5112, %v4756
          %v7411 = vpack.c.bf16 %v5824, %v5468
          %v7412 = vpack.c.bf16 %v6536, %v6180
          %v7413 = vpack.c.bf16 %v7248, %v6892
          %v7414 = vpack.c.bf16 %v3691, %v3335
          %v7415 = vpack.c.bf16 %v4403, %v4047
          %v7416 = vpack.c.bf16 %v5115, %v4759
          %v7417 = vpack.c.bf16 %v5827, %v5471
          %v7418 = vpack.c.bf16 %v6539, %v6183
          %v7419 = vpack.c.bf16 %v7251, %v6895
          %v7420 = vpack.c.bf16 %v3693, %v3337
          %v7421 = vpack.c.bf16 %v4405, %v4049
          %v7422 = vpack.c.bf16 %v5117, %v4761
          %v7423 = vpack.c.bf16 %v5829, %v5473
          %v7424 = vpack.c.bf16 %v6541, %v6185
          %v7425 = vpack.c.bf16 %v7253, %v6897
          %v7426 = vpack.c.bf16 %v3696, %v3340
          %v7427 = vpack.c.bf16 %v4408, %v4052
          %v7428 = vpack.c.bf16 %v5120, %v4764
          %v7429 = vpack.c.bf16 %v5832, %v5476
          %v7430 = vpack.c.bf16 %v6544, %v6188
          %v7431 = vpack.c.bf16 %v7256, %v6900
          %v7432 = vpack.c.bf16 %v3698, %v3342
          %v7433 = vpack.c.bf16 %v4410, %v4054
          %v7434 = vpack.c.bf16 %v5122, %v4766
          %v7435 = vpack.c.bf16 %v5834, %v5478
          %v7436 = vpack.c.bf16 %v6546, %v6190
          %v7437 = vpack.c.bf16 %v7258, %v6902
          %v7438 = vpack.c.bf16 %v3701, %v3345
          %v7439 = vpack.c.bf16 %v4413, %v4057
          %v7440 = vpack.c.bf16 %v5125, %v4769
          %v7441 = vpack.c.bf16 %v5837, %v5481
          %v7442 = vpack.c.bf16 %v6549, %v6193
          %v7443 = vpack.c.bf16 %v7261, %v6905
          %v7444 = vpack.c.bf16 %v3703, %v3347
          %v7445 = vpack.c.bf16 %v4415, %v4059
          %v7446 = vpack.c.bf16 %v5127, %v4771
          %v7447 = vpack.c.bf16 %v5839, %v5483
          %v7448 = vpack.c.bf16 %v6551, %v6195
          %v7449 = vpack.c.bf16 %v7263, %v6907
          %v7450 = vpack.c.bf16 %v3706, %v3350
          %v7451 = vpack.c.bf16 %v4418, %v4062
          %v7452 = vpack.c.bf16 %v5130, %v4774
          %v7453 = vpack.c.bf16 %v5842, %v5486
          %v7454 = vpack.c.bf16 %v6554, %v6198
          %v7455 = vpack.c.bf16 %v7266, %v6910
          %v7456 = vpack.c.bf16 %v3708, %v3352
          %v7457 = vpack.c.bf16 %v4420, %v4064
          %v7458 = vpack.c.bf16 %v5132, %v4776
          %v7459 = vpack.c.bf16 %v5844, %v5488
          %v7460 = vpack.c.bf16 %v6556, %v6200
          %v7461 = vpack.c.bf16 %v7268, %v6912
          %7462 = vst [vmem:[#allocation2] sm:$0xff] %v7270
          %7463 = vst [vmem:[#allocation2 + $0x8] sm:$0xff] %v7271
          %7464 = vst [vmem:[#allocation2 + $0x10] sm:$0xff] %v7272
          %7465 = vst [vmem:[#allocation2 + $0x18] sm:$0xff] %v7273
          %7466 = vst [vmem:[#allocation2 + $0x20] sm:$0xff] %v7274
          %7467 = vst [vmem:[#allocation2 + $0x28] sm:$0xff] %v7275
          %7468 = vst [vmem:[#allocation2 + $0x30] sm:$0xff] %v7276
          %7469 = vst [vmem:[#allocation2 + $0x38] sm:$0xff] %v7277
          %7470 = vst [vmem:[#allocation2 + $0x40] sm:$0xff] %v7278
          %7471 = vst [vmem:[#allocation2 + $0x48] sm:$0xff] %v7279
          %7472 = vst [vmem:[#allocation2 + $0x50] sm:$0xff] %v7280
          %7473 = vst [vmem:[#allocation2 + $0x58] sm:$0xff] %v7281
          %7474 = vst [vmem:[#allocation2 + $0x60] sm:$0xff] %v7282
          %7475 = vst [vmem:[#allocation2 + $0x68] sm:$0xff] %v7283
          %7476 = vst [vmem:[#allocation2 + $0x70] sm:$0xff] %v7284
          %7477 = vst [vmem:[#allocation2 + $0x78] sm:$0xff] %v7285
          %7478 = vst [vmem:[#allocation2 + $0x80] sm:$0xff] %v7286
          %7479 = vst [vmem:[#allocation2 + $0x88] sm:$0xff] %v7287
          %7480 = vst [vmem:[#allocation2 + $0x90] sm:$0xff] %v7288
          %7481 = vst [vmem:[#allocation2 + $0x98] sm:$0xff] %v7289
          %7482 = vst [vmem:[#allocation2 + $0xa0] sm:$0xff] %v7290
          %7483 = vst [vmem:[#allocation2 + $0xa8] sm:$0xff] %v7291
          %7484 = vst [vmem:[#allocation2 + $0xb0] sm:$0xff] %v7292
          %7485 = vst [vmem:[#allocation2 + $0xb8] sm:$0xff] %v7293
          %7486 = vst [vmem:[#allocation2 + $0xc0] sm:$0xff] %v7294
          %7487 = vst [vmem:[#allocation2 + $0xc8] sm:$0xff] %v7295
          %7488 = vst [vmem:[#allocation2 + $0xd0] sm:$0xff] %v7296
          %7489 = vst [vmem:[#allocation2 + $0xd8] sm:$0xff] %v7297
          %7490 = vst [vmem:[#allocation2 + $0xe0] sm:$0xff] %v7298
          %7491 = vst [vmem:[#allocation2 + $0xe8] sm:$0xff] %v7299
          %7492 = vst [vmem:[#allocation2 + $0xf0] sm:$0xff] %v7300
          %7493 = vst [vmem:[#allocation2 + $0xf8] sm:$0xff] %v7301
          %7494 = vst [vmem:[#allocation2 + $0x100] sm:$0xff] %v7302
          %7495 = vst [vmem:[#allocation2 + $0x108] sm:$0xff] %v7303
          %7496 = vst [vmem:[#allocation2 + $0x110] sm:$0xff] %v7304
          %7497 = vst [vmem:[#allocation2 + $0x118] sm:$0xff] %v7305
          %7498 = vst [vmem:[#allocation2 + $0x120] sm:$0xff] %v7306
          %7499 = vst [vmem:[#allocation2 + $0x128] sm:$0xff] %v7307
          %7500 = vst [vmem:[#allocation2 + $0x130] sm:$0xff] %v7308
          %7501 = vst [vmem:[#allocation2 + $0x138] sm:$0xff] %v7309
          %7502 = vst [vmem:[#allocation2 + $0x140] sm:$0xff] %v7310
          %7503 = vst [vmem:[#allocation2 + $0x148] sm:$0xff] %v7311
          %7504 = vst [vmem:[#allocation2 + $0x150] sm:$0xff] %v7312
          %7505 = vst [vmem:[#allocation2 + $0x158] sm:$0xff] %v7313
          %7506 = vst [vmem:[#allocation2 + $0x160] sm:$0xff] %v7314
          %7507 = vst [vmem:[#allocation2 + $0x168] sm:$0xff] %v7315
          %7508 = vst [vmem:[#allocation2 + $0x170] sm:$0xff] %v7316
          %7509 = vst [vmem:[#allocation2 + $0x178] sm:$0xff] %v7317
          %7510 = vst [vmem:[#allocation2 + $0x180] sm:$0xff] %v7318
          %7511 = vst [vmem:[#allocation2 + $0x188] sm:$0xff] %v7319
          %7512 = vst [vmem:[#allocation2 + $0x190] sm:$0xff] %v7320
          %7513 = vst [vmem:[#allocation2 + $0x198] sm:$0xff] %v7321
          %7514 = vst [vmem:[#allocation2 + $0x1a0] sm:$0xff] %v7322
          %7515 = vst [vmem:[#allocation2 + $0x1a8] sm:$0xff] %v7323
          %7516 = vst [vmem:[#allocation2 + $0x1b0] sm:$0xff] %v7324
          %7517 = vst [vmem:[#allocation2 + $0x1b8] sm:$0xff] %v7325
          %7518 = vst [vmem:[#allocation2 + $0x1c0] sm:$0xff] %v7326
          %7519 = vst [vmem:[#allocation2 + $0x1c8] sm:$0xff] %v7327
          %7520 = vst [vmem:[#allocation2 + $0x1d0] sm:$0xff] %v7328
          %7521 = vst [vmem:[#allocation2 + $0x1d8] sm:$0xff] %v7329
          %7522 = vst [vmem:[#allocation2 + $0x1e0] sm:$0xff] %v7330
          %7523 = vst [vmem:[#allocation2 + $0x1e8] sm:$0xff] %v7331
          %7524 = vst [vmem:[#allocation2 + $0x1f0] sm:$0xff] %v7332
          %7525 = vst [vmem:[#allocation2 + $0x1f8] sm:$0xff] %v7333
          %7526 = vst [vmem:[#allocation2 + $0x200] sm:$0xff] %v7334
          %7527 = vst [vmem:[#allocation2 + $0x208] sm:$0xff] %v7335
          %7528 = vst [vmem:[#allocation2 + $0x210] sm:$0xff] %v7336
          %7529 = vst [vmem:[#allocation2 + $0x218] sm:$0xff] %v7337
          %7530 = vst [vmem:[#allocation2 + $0x220] sm:$0xff] %v7338
          %7531 = vst [vmem:[#allocation2 + $0x228] sm:$0xff] %v7339
          %7532 = vst [vmem:[#allocation2 + $0x230] sm:$0xff] %v7340
          %7533 = vst [vmem:[#allocation2 + $0x238] sm:$0xff] %v7341
          %7534 = vst [vmem:[#allocation2 + $0x240] sm:$0xff] %v7342
          %7535 = vst [vmem:[#allocation2 + $0x248] sm:$0xff] %v7343
          %7536 = vst [vmem:[#allocation2 + $0x250] sm:$0xff] %v7344
          %7537 = vst [vmem:[#allocation2 + $0x258] sm:$0xff] %v7345
          %7538 = vst [vmem:[#allocation2 + $0x260] sm:$0xff] %v7346
          %7539 = vst [vmem:[#allocation2 + $0x268] sm:$0xff] %v7347
          %7540 = vst [vmem:[#allocation2 + $0x270] sm:$0xff] %v7348
          %7541 = vst [vmem:[#allocation2 + $0x278] sm:$0xff] %v7349
          %7542 = vst [vmem:[#allocation2 + $0x280] sm:$0xff] %v7350
          %7543 = vst [vmem:[#allocation2 + $0x288] sm:$0xff] %v7351
          %7544 = vst [vmem:[#allocation2 + $0x290] sm:$0xff] %v7352
          %7545 = vst [vmem:[#allocation2 + $0x298] sm:$0xff] %v7353
          %7546 = vst [vmem:[#allocation2 + $0x2a0] sm:$0xff] %v7354
          %7547 = vst [vmem:[#allocation2 + $0x2a8] sm:$0xff] %v7355
          %7548 = vst [vmem:[#allocation2 + $0x2b0] sm:$0xff] %v7356
          %7549 = vst [vmem:[#allocation2 + $0x2b8] sm:$0xff] %v7357
          %7550 = vst [vmem:[#allocation2 + $0x2c0] sm:$0xff] %v7358
          %7551 = vst [vmem:[#allocation2 + $0x2c8] sm:$0xff] %v7359
          %7552 = vst [vmem:[#allocation2 + $0x2d0] sm:$0xff] %v7360
          %7553 = vst [vmem:[#allocation2 + $0x2d8] sm:$0xff] %v7361
          %7554 = vst [vmem:[#allocation2 + $0x2e0] sm:$0xff] %v7362
          %7555 = vst [vmem:[#allocation2 + $0x2e8] sm:$0xff] %v7363
          %7556 = vst [vmem:[#allocation2 + $0x2f0] sm:$0xff] %v7364
          %7557 = vst [vmem:[#allocation2 + $0x2f8] sm:$0xff] %v7365
          %7558 = vst [vmem:[#allocation2 + $0x300] sm:$0xff] %v7366
          %7559 = vst [vmem:[#allocation2 + $0x308] sm:$0xff] %v7367
          %7560 = vst [vmem:[#allocation2 + $0x310] sm:$0xff] %v7368
          %7561 = vst [vmem:[#allocation2 + $0x318] sm:$0xff] %v7369
          %7562 = vst [vmem:[#allocation2 + $0x320] sm:$0xff] %v7370
          %7563 = vst [vmem:[#allocation2 + $0x328] sm:$0xff] %v7371
          %7564 = vst [vmem:[#allocation2 + $0x330] sm:$0xff] %v7372
          %7565 = vst [vmem:[#allocation2 + $0x338] sm:$0xff] %v7373
          %7566 = vst [vmem:[#allocation2 + $0x340] sm:$0xff] %v7374
          %7567 = vst [vmem:[#allocation2 + $0x348] sm:$0xff] %v7375
          %7568 = vst [vmem:[#allocation2 + $0x350] sm:$0xff] %v7376
          %7569 = vst [vmem:[#allocation2 + $0x358] sm:$0xff] %v7377
          %7570 = vst [vmem:[#allocation2 + $0x360] sm:$0xff] %v7378
          %7571 = vst [vmem:[#allocation2 + $0x368] sm:$0xff] %v7379
          %7572 = vst [vmem:[#allocation2 + $0x370] sm:$0xff] %v7380
          %7573 = vst [vmem:[#allocation2 + $0x378] sm:$0xff] %v7381
          %7574 = vst [vmem:[#allocation2 + $0x380] sm:$0xff] %v7382
          %7575 = vst [vmem:[#allocation2 + $0x388] sm:$0xff] %v7383
          %7576 = vst [vmem:[#allocation2 + $0x390] sm:$0xff] %v7384
          %7577 = vst [vmem:[#allocation2 + $0x398] sm:$0xff] %v7385
          %7578 = vst [vmem:[#allocation2 + $0x3a0] sm:$0xff] %v7386
          %7579 = vst [vmem:[#allocation2 + $0x3a8] sm:$0xff] %v7387
          %7580 = vst [vmem:[#allocation2 + $0x3b0] sm:$0xff] %v7388
          %7581 = vst [vmem:[#allocation2 + $0x3b8] sm:$0xff] %v7389
          %7582 = vst [vmem:[#allocation2 + $0x3c0] sm:$0xff] %v7390
          %7583 = vst [vmem:[#allocation2 + $0x3c8] sm:$0xff] %v7391
          %7584 = vst [vmem:[#allocation2 + $0x3d0] sm:$0xff] %v7392
          %7585 = vst [vmem:[#allocation2 + $0x3d8] sm:$0xff] %v7393
          %7586 = vst [vmem:[#allocation2 + $0x3e0] sm:$0xff] %v7394
          %7587 = vst [vmem:[#allocation2 + $0x3e8] sm:$0xff] %v7395
          %7588 = vst [vmem:[#allocation2 + $0x3f0] sm:$0xff] %v7396
          %7589 = vst [vmem:[#allocation2 + $0x3f8] sm:$0xff] %v7397
          %7590 = vst [vmem:[#allocation2 + $0x400] sm:$0xff] %v7398
          %7591 = vst [vmem:[#allocation2 + $0x408] sm:$0xff] %v7399
          %7592 = vst [vmem:[#allocation2 + $0x410] sm:$0xff] %v7400
          %7593 = vst [vmem:[#allocation2 + $0x418] sm:$0xff] %v7401
          %7594 = vst [vmem:[#allocation2 + $0x420] sm:$0xff] %v7402
          %7595 = vst [vmem:[#allocation2 + $0x428] sm:$0xff] %v7403
          %7596 = vst [vmem:[#allocation2 + $0x430] sm:$0xff] %v7404
          %7597 = vst [vmem:[#allocation2 + $0x438] sm:$0xff] %v7405
          %7598 = vst [vmem:[#allocation2 + $0x440] sm:$0xff] %v7406
          %7599 = vst [vmem:[#allocation2 + $0x448] sm:$0xff] %v7407
          %7600 = vst [vmem:[#allocation2 + $0x450] sm:$0xff] %v7408
          %7601 = vst [vmem:[#allocation2 + $0x458] sm:$0xff] %v7409
          %7602 = vst [vmem:[#allocation2 + $0x460] sm:$0xff] %v7410
          %7603 = vst [vmem:[#allocation2 + $0x468] sm:$0xff] %v7411
          %7604 = vst [vmem:[#allocation2 + $0x470] sm:$0xff] %v7412
          %7605 = vst [vmem:[#allocation2 + $0x478] sm:$0xff] %v7413
          %7606 = vst [vmem:[#allocation2 + $0x480] sm:$0xff] %v7414
          %7607 = vst [vmem:[#allocation2 + $0x488] sm:$0xff] %v7415
          %7608 = vst [vmem:[#allocation2 + $0x490] sm:$0xff] %v7416
          %7609 = vst [vmem:[#allocation2 + $0x498] sm:$0xff] %v7417
          %7610 = vst [vmem:[#allocation2 + $0x4a0] sm:$0xff] %v7418
          %7611 = vst [vmem:[#allocation2 + $0x4a8] sm:$0xff] %v7419
          %7612 = vst [vmem:[#allocation2 + $0x4b0] sm:$0xff] %v7420
          %7613 = vst [vmem:[#allocation2 + $0x4b8] sm:$0xff] %v7421
          %7614 = vst [vmem:[#allocation2 + $0x4c0] sm:$0xff] %v7422
          %7615 = vst [vmem:[#allocation2 + $0x4c8] sm:$0xff] %v7423
          %7616 = vst [vmem:[#allocation2 + $0x4d0] sm:$0xff] %v7424
          %7617 = vst [vmem:[#allocation2 + $0x4d8] sm:$0xff] %v7425
          %7618 = vst [vmem:[#allocation2 + $0x4e0] sm:$0xff] %v7426
          %7619 = vst [vmem:[#allocation2 + $0x4e8] sm:$0xff] %v7427
          %7620 = vst [vmem:[#allocation2 + $0x4f0] sm:$0xff] %v7428
          %7621 = vst [vmem:[#allocation2 + $0x4f8] sm:$0xff] %v7429
          %7622 = vst [vmem:[#allocation2 + $0x500] sm:$0xff] %v7430
          %7623 = vst [vmem:[#allocation2 + $0x508] sm:$0xff] %v7431
          %7624 = vst [vmem:[#allocation2 + $0x510] sm:$0xff] %v7432
          %7625 = vst [vmem:[#allocation2 + $0x518] sm:$0xff] %v7433
          %7626 = vst [vmem:[#allocation2 + $0x520] sm:$0xff] %v7434
          %7627 = vst [vmem:[#allocation2 + $0x528] sm:$0xff] %v7435
          %7628 = vst [vmem:[#allocation2 + $0x530] sm:$0xff] %v7436
          %7629 = vst [vmem:[#allocation2 + $0x538] sm:$0xff] %v7437
          %7630 = vst [vmem:[#allocation2 + $0x540] sm:$0xff] %v7438
          %7631 = vst [vmem:[#allocation2 + $0x548] sm:$0xff] %v7439
          %7632 = vst [vmem:[#allocation2 + $0x550] sm:$0xff] %v7440
          %7633 = vst [vmem:[#allocation2 + $0x558] sm:$0xff] %v7441
          %7634 = vst [vmem:[#allocation2 + $0x560] sm:$0xff] %v7442
          %7635 = vst [vmem:[#allocation2 + $0x568] sm:$0xff] %v7443
          %7636 = vst [vmem:[#allocation2 + $0x570] sm:$0xff] %v7444
          %7637 = vst [vmem:[#allocation2 + $0x578] sm:$0xff] %v7445
          %7638 = vst [vmem:[#allocation2 + $0x580] sm:$0xff] %v7446
          %7639 = vst [vmem:[#allocation2 + $0x588] sm:$0xff] %v7447
          %7640 = vst [vmem:[#allocation2 + $0x590] sm:$0xff] %v7448
          %7641 = vst [vmem:[#allocation2 + $0x598] sm:$0xff] %v7449
          %7642 = vst [vmem:[#allocation2 + $0x5a0] sm:$0xff] %v7450
          %7643 = vst [vmem:[#allocation2 + $0x5a8] sm:$0xff] %v7451
          %7644 = vst [vmem:[#allocation2 + $0x5b0] sm:$0xff] %v7452
          %7645 = vst [vmem:[#allocation2 + $0x5b8] sm:$0xff] %v7453
          %7646 = vst [vmem:[#allocation2 + $0x5c0] sm:$0xff] %v7454
          %7647 = vst [vmem:[#allocation2 + $0x5c8] sm:$0xff] %v7455
          %7648 = vst [vmem:[#allocation2 + $0x5d0] sm:$0xff] %v7456
          %7649 = vst [vmem:[#allocation2 + $0x5d8] sm:$0xff] %v7457
          %7650 = vst [vmem:[#allocation2 + $0x5e0] sm:$0xff] %v7458
          %7651 = vst [vmem:[#allocation2 + $0x5e8] sm:$0xff] %v7459
          %7652 = vst [vmem:[#allocation2 + $0x5f0] sm:$0xff] %v7460
          %7653 = vst [vmem:[#allocation2 + $0x5f8] sm:$0xff] %v7461
        $region48: #{tpu_custom_call.1} parent=31 // pred_fallthru
          _
        %s7654 = smul.u32 %s31, 256
        %s7655 = sshra.s32 %s7654, 3
        %s7656 = sand.u32 %s7654, 7
        %s7657 = smul.u32 %s7655, 12
        %s7658 = smul.addr %s7657, 4
        %s7659 = scalar_lea.vmem [#allocation2], %s7658
        %v7660 = vld [vmem:[%s7659] sm:$0xff]
        %v7661 = vld [vmem:[%s7659 + $0x8] sm:$0xff]
        %v7662 = vld [vmem:[%s7659 + $0x30] sm:$0xff]
        %v7663 = vld [vmem:[%s7659 + $0x38] sm:$0xff]
        %v7664 = vld [vmem:[%s7659 + $0x60] sm:$0xff]
        %v7665 = vld [vmem:[%s7659 + $0x68] sm:$0xff]
        %v7666 = vld [vmem:[%s7659 + $0x90] sm:$0xff]
        %v7667 = vld [vmem:[%s7659 + $0x98] sm:$0xff]
        %v7668 = vld [vmem:[%s7659 + $0xc0] sm:$0xff]
        %v7669 = vld [vmem:[%s7659 + $0xc8] sm:$0xff]
        %v7670 = vld [vmem:[%s7659 + $0xf0] sm:$0xff]
        %v7671 = vld [vmem:[%s7659 + $0xf8] sm:$0xff]
        %v7672 = vld [vmem:[%s7659 + $0x120] sm:$0xff]
        %v7673 = vld [vmem:[%s7659 + $0x128] sm:$0xff]
        %v7674 = vld [vmem:[%s7659 + $0x150] sm:$0xff]
        %v7675 = vld [vmem:[%s7659 + $0x158] sm:$0xff]
        %v7676 = vld [vmem:[%s7659 + $0x180] sm:$0xff]
        %v7677 = vld [vmem:[%s7659 + $0x188] sm:$0xff]
        %v7678 = vld [vmem:[%s7659 + $0x1b0] sm:$0xff]
        %v7679 = vld [vmem:[%s7659 + $0x1b8] sm:$0xff]
        %v7680 = vld [vmem:[%s7659 + $0x1e0] sm:$0xff]
        %v7681 = vld [vmem:[%s7659 + $0x1e8] sm:$0xff]
        %v7682 = vld [vmem:[%s7659 + $0x210] sm:$0xff]
        %v7683 = vld [vmem:[%s7659 + $0x218] sm:$0xff]
        %v7684 = vld [vmem:[%s7659 + $0x240] sm:$0xff]
        %v7685 = vld [vmem:[%s7659 + $0x248] sm:$0xff]
        %v7686 = vld [vmem:[%s7659 + $0x270] sm:$0xff]
        %v7687 = vld [vmem:[%s7659 + $0x278] sm:$0xff]
        %v7688 = vld [vmem:[%s7659 + $0x2a0] sm:$0xff]
        %v7689 = vld [vmem:[%s7659 + $0x2a8] sm:$0xff]
        %v7690 = vld [vmem:[%s7659 + $0x2d0] sm:$0xff]
        %v7691 = vld [vmem:[%s7659 + $0x2d8] sm:$0xff]
        %v7692 = vld [vmem:[%s7659 + $0x300] sm:$0xff]
        %v7693 = vld [vmem:[%s7659 + $0x308] sm:$0xff]
        %v7694 = vld [vmem:[%s7659 + $0x330] sm:$0xff]
        %v7695 = vld [vmem:[%s7659 + $0x338] sm:$0xff]
        %v7696 = vld [vmem:[%s7659 + $0x360] sm:$0xff]
        %v7697 = vld [vmem:[%s7659 + $0x368] sm:$0xff]
        %v7698 = vld [vmem:[%s7659 + $0x390] sm:$0xff]
        %v7699 = vld [vmem:[%s7659 + $0x398] sm:$0xff]
        %v7700 = vld [vmem:[%s7659 + $0x3c0] sm:$0xff]
        %v7701 = vld [vmem:[%s7659 + $0x3c8] sm:$0xff]
        %v7702 = vld [vmem:[%s7659 + $0x3f0] sm:$0xff]
        %v7703 = vld [vmem:[%s7659 + $0x3f8] sm:$0xff]
        %v7704 = vld [vmem:[%s7659 + $0x420] sm:$0xff]
        %v7705 = vld [vmem:[%s7659 + $0x428] sm:$0xff]
        %v7706 = vld [vmem:[%s7659 + $0x450] sm:$0xff]
        %v7707 = vld [vmem:[%s7659 + $0x458] sm:$0xff]
        %v7708 = vld [vmem:[%s7659 + $0x480] sm:$0xff]
        %v7709 = vld [vmem:[%s7659 + $0x488] sm:$0xff]
        %v7710 = vld [vmem:[%s7659 + $0x4b0] sm:$0xff]
        %v7711 = vld [vmem:[%s7659 + $0x4b8] sm:$0xff]
        %v7712 = vld [vmem:[%s7659 + $0x4e0] sm:$0xff]
        %v7713 = vld [vmem:[%s7659 + $0x4e8] sm:$0xff]
        %v7714 = vld [vmem:[%s7659 + $0x510] sm:$0xff]
        %v7715 = vld [vmem:[%s7659 + $0x518] sm:$0xff]
        %v7716 = vld [vmem:[%s7659 + $0x540] sm:$0xff]
        %v7717 = vld [vmem:[%s7659 + $0x548] sm:$0xff]
        %v7718 = vld [vmem:[%s7659 + $0x570] sm:$0xff]
        %v7719 = vld [vmem:[%s7659 + $0x578] sm:$0xff]
        %v7720 = vld [vmem:[%s7659 + $0x5a0] sm:$0xff]
        %v7721 = vld [vmem:[%s7659 + $0x5a8] sm:$0xff]
        %v7722 = vld [vmem:[%s7659 + $0x5d0] sm:$0xff]
        %v7723 = vld [vmem:[%s7659 + $0x5d8] sm:$0xff]
        %v7724 = vld [vmem:[#allocation2 + $0x10] sm:$0xff]
        %v7725 = vld [vmem:[#allocation2 + $0x18] sm:$0xff]
        %v7726 = vld [vmem:[#allocation2 + $0x40] sm:$0xff]
        %v7727 = vld [vmem:[#allocation2 + $0x48] sm:$0xff]
        %v7728 = vld [vmem:[#allocation2 + $0x70] sm:$0xff]
        %v7729 = vld [vmem:[#allocation2 + $0x78] sm:$0xff]
        %v7730 = vld [vmem:[#allocation2 + $0xa0] sm:$0xff]
        %v7731 = vld [vmem:[#allocation2 + $0xa8] sm:$0xff]
        %v7732 = vld [vmem:[#allocation2 + $0xd0] sm:$0xff]
        %v7733 = vld [vmem:[#allocation2 + $0xd8] sm:$0xff]
        %v7734 = vld [vmem:[#allocation2 + $0x100] sm:$0xff]
        %v7735 = vld [vmem:[#allocation2 + $0x108] sm:$0xff]
        %v7736 = vld [vmem:[#allocation2 + $0x130] sm:$0xff]
        %v7737 = vld [vmem:[#allocation2 + $0x138] sm:$0xff]
        %v7738 = vld [vmem:[#allocation2 + $0x160] sm:$0xff]
        %v7739 = vld [vmem:[#allocation2 + $0x168] sm:$0xff]
        %v7740 = vld [vmem:[#allocation2 + $0x190] sm:$0xff]
        %v7741 = vld [vmem:[#allocation2 + $0x198] sm:$0xff]
        %v7742 = vld [vmem:[#allocation2 + $0x1c0] sm:$0xff]
        %v7743 = vld [vmem:[#allocation2 + $0x1c8] sm:$0xff]
        %v7744 = vld [vmem:[#allocation2 + $0x1f0] sm:$0xff]
        %v7745 = vld [vmem:[#allocation2 + $0x1f8] sm:$0xff]
        %v7746 = vld [vmem:[#allocation2 + $0x220] sm:$0xff]
        %v7747 = vld [vmem:[#allocation2 + $0x228] sm:$0xff]
        %v7748 = vld [vmem:[#allocation2 + $0x250] sm:$0xff]
        %v7749 = vld [vmem:[#allocation2 + $0x258] sm:$0xff]
        %v7750 = vld [vmem:[#allocation2 + $0x280] sm:$0xff]
        %v7751 = vld [vmem:[#allocation2 + $0x288] sm:$0xff]
        %v7752 = vld [vmem:[#allocation2 + $0x2b0] sm:$0xff]
        %v7753 = vld [vmem:[#allocation2 + $0x2b8] sm:$0xff]
        %v7754 = vld [vmem:[#allocation2 + $0x2e0] sm:$0xff]
        %v7755 = vld [vmem:[#allocation2 + $0x2e8] sm:$0xff]
        %v7756 = vld [vmem:[#allocation2 + $0x310] sm:$0xff]
        %v7757 = vld [vmem:[#allocation2 + $0x318] sm:$0xff]
        %v7758 = vld [vmem:[#allocation2 + $0x340] sm:$0xff]
        %v7759 = vld [vmem:[#allocation2 + $0x348] sm:$0xff]
        %v7760 = vld [vmem:[#allocation2 + $0x370] sm:$0xff]
        %v7761 = vld [vmem:[#allocation2 + $0x378] sm:$0xff]
        %v7762 = vld [vmem:[#allocation2 + $0x3a0] sm:$0xff]
        %v7763 = vld [vmem:[#allocation2 + $0x3a8] sm:$0xff]
        %v7764 = vld [vmem:[#allocation2 + $0x3d0] sm:$0xff]
        %v7765 = vld [vmem:[#allocation2 + $0x3d8] sm:$0xff]
        %v7766 = vld [vmem:[#allocation2 + $0x400] sm:$0xff]
        %v7767 = vld [vmem:[#allocation2 + $0x408] sm:$0xff]
        %v7768 = vld [vmem:[#allocation2 + $0x430] sm:$0xff]
        %v7769 = vld [vmem:[#allocation2 + $0x438] sm:$0xff]
        %v7770 = vld [vmem:[#allocation2 + $0x460] sm:$0xff]
        %v7771 = vld [vmem:[#allocation2 + $0x468] sm:$0xff]
        %v7772 = vld [vmem:[#allocation2 + $0x490] sm:$0xff]
        %v7773 = vld [vmem:[#allocation2 + $0x498] sm:$0xff]
        %v7774 = vld [vmem:[#allocation2 + $0x4c0] sm:$0xff]
        %v7775 = vld [vmem:[#allocation2 + $0x4c8] sm:$0xff]
        %v7776 = vld [vmem:[#allocation2 + $0x4f0] sm:$0xff]
        %v7777 = vld [vmem:[#allocation2 + $0x4f8] sm:$0xff]
        %v7778 = vld [vmem:[#allocation2 + $0x520] sm:$0xff]
        %v7779 = vld [vmem:[#allocation2 + $0x528] sm:$0xff]
        %v7780 = vld [vmem:[#allocation2 + $0x550] sm:$0xff]
        %v7781 = vld [vmem:[#allocation2 + $0x558] sm:$0xff]
        %v7782 = vld [vmem:[#allocation2 + $0x580] sm:$0xff]
        %v7783 = vld [vmem:[#allocation2 + $0x588] sm:$0xff]
        %v7784 = vld [vmem:[#allocation2 + $0x5b0] sm:$0xff]
        %v7785 = vld [vmem:[#allocation2 + $0x5b8] sm:$0xff]
        %v7786 = vld [vmem:[#allocation2 + $0x5e0] sm:$0xff]
        %v7787 = vld [vmem:[#allocation2 + $0x5e8] sm:$0xff]
        %v7788 = vld [vmem:[#allocation2 + $0x20] sm:$0xff]
        %v7789 = vld [vmem:[#allocation2 + $0x28] sm:$0xff]
        %v7790 = vld [vmem:[#allocation2 + $0x50] sm:$0xff]
        %v7791 = vld [vmem:[#allocation2 + $0x58] sm:$0xff]
        %v7792 = vld [vmem:[#allocation2 + $0x80] sm:$0xff]
        %v7793 = vld [vmem:[#allocation2 + $0x88] sm:$0xff]
        %v7794 = vld [vmem:[#allocation2 + $0xb0] sm:$0xff]
        %v7795 = vld [vmem:[#allocation2 + $0xb8] sm:$0xff]
        %v7796 = vld [vmem:[#allocation2 + $0xe0] sm:$0xff]
        %v7797 = vld [vmem:[#allocation2 + $0xe8] sm:$0xff]
        %v7798 = vld [vmem:[#allocation2 + $0x110] sm:$0xff]
        %v7799 = vld [vmem:[#allocation2 + $0x118] sm:$0xff]
        %v7800 = vld [vmem:[#allocation2 + $0x140] sm:$0xff]
        %v7801 = vld [vmem:[#allocation2 + $0x148] sm:$0xff]
        %v7802 = vld [vmem:[#allocation2 + $0x170] sm:$0xff]
        %v7803 = vld [vmem:[#allocation2 + $0x178] sm:$0xff]
        %v7804 = vld [vmem:[#allocation2 + $0x1a0] sm:$0xff]
        %v7805 = vld [vmem:[#allocation2 + $0x1a8] sm:$0xff]
        %v7806 = vld [vmem:[#allocation2 + $0x1d0] sm:$0xff]
        %v7807 = vld [vmem:[#allocation2 + $0x1d8] sm:$0xff]
        %v7808 = vld [vmem:[#allocation2 + $0x200] sm:$0xff]
        %v7809 = vld [vmem:[#allocation2 + $0x208] sm:$0xff]
        %v7810 = vld [vmem:[#allocation2 + $0x230] sm:$0xff]
        %v7811 = vld [vmem:[#allocation2 + $0x238] sm:$0xff]
        %v7812 = vld [vmem:[#allocation2 + $0x260] sm:$0xff]
        %v7813 = vld [vmem:[#allocation2 + $0x268] sm:$0xff]
        %v7814 = vld [vmem:[#allocation2 + $0x290] sm:$0xff]
        %v7815 = vld [vmem:[#allocation2 + $0x298] sm:$0xff]
        %v7816 = vld [vmem:[#allocation2 + $0x2c0] sm:$0xff]
        %v7817 = vld [vmem:[#allocation2 + $0x2c8] sm:$0xff]
        %v7818 = vld [vmem:[#allocation2 + $0x2f0] sm:$0xff]
        %v7819 = vld [vmem:[#allocation2 + $0x2f8] sm:$0xff]
        %v7820 = vld [vmem:[#allocation2 + $0x320] sm:$0xff]
        %v7821 = vld [vmem:[#allocation2 + $0x328] sm:$0xff]
        %v7822 = vld [vmem:[#allocation2 + $0x350] sm:$0xff]
        %v7823 = vld [vmem:[#allocation2 + $0x358] sm:$0xff]
        %v7824 = vld [vmem:[#allocation2 + $0x380] sm:$0xff]
        %v7825 = vld [vmem:[#allocation2 + $0x388] sm:$0xff]
        %v7826 = vld [vmem:[#allocation2 + $0x3b0] sm:$0xff]
        %v7827 = vld [vmem:[#allocation2 + $0x3b8] sm:$0xff]
        %v7828 = vld [vmem:[#allocation2 + $0x3e0] sm:$0xff]
        %v7829 = vld [vmem:[#allocation2 + $0x3e8] sm:$0xff]
        %v7830 = vld [vmem:[#allocation2 + $0x410] sm:$0xff]
        %v7831 = vld [vmem:[#allocation2 + $0x418] sm:$0xff]
        %v7832 = vld [vmem:[#allocation2 + $0x440] sm:$0xff]
        %v7833 = vld [vmem:[#allocation2 + $0x448] sm:$0xff]
        %v7834 = vld [vmem:[#allocation2 + $0x470] sm:$0xff]
        %v7835 = vld [vmem:[#allocation2 + $0x478] sm:$0xff]
        %v7836 = vld [vmem:[#allocation2 + $0x4a0] sm:$0xff]
        %v7837 = vld [vmem:[#allocation2 + $0x4a8] sm:$0xff]
        %v7838 = vld [vmem:[#allocation2 + $0x4d0] sm:$0xff]
        %v7839 = vld [vmem:[#allocation2 + $0x4d8] sm:$0xff]
        %v7840 = vld [vmem:[#allocation2 + $0x500] sm:$0xff]
        %v7841 = vld [vmem:[#allocation2 + $0x508] sm:$0xff]
        %v7842 = vld [vmem:[#allocation2 + $0x530] sm:$0xff]
        %v7843 = vld [vmem:[#allocation2 + $0x538] sm:$0xff]
        %v7844 = vld [vmem:[#allocation2 + $0x560] sm:$0xff]
        %v7845 = vld [vmem:[#allocation2 + $0x568] sm:$0xff]
        %v7846 = vld [vmem:[#allocation2 + $0x590] sm:$0xff]
        %v7847 = vld [vmem:[#allocation2 + $0x598] sm:$0xff]
        %v7848 = vld [vmem:[#allocation2 + $0x5c0] sm:$0xff]
        %v7849 = vld [vmem:[#allocation2 + $0x5c8] sm:$0xff]
        %v7850 = vld [vmem:[#allocation2 + $0x5f0] sm:$0xff]
        %v7851 = vld [vmem:[#allocation2 + $0x5f8] sm:$0xff]
        %v7916 = vunpack.c.l.b16 %v7660
        %v7917 = vunpack.c.h.b16 %v7660
        %v7918 = vunpack.c.l.b16 %v7661
        %v7919 = vunpack.c.h.b16 %v7661
        %v7920 = vunpack.c.l.b16 %v7662
        %v7921 = vunpack.c.h.b16 %v7662
        %v7922 = vunpack.c.l.b16 %v7663
        %v7923 = vunpack.c.h.b16 %v7663
        %v7924 = vunpack.c.l.b16 %v7664
        %v7925 = vunpack.c.h.b16 %v7664
        %v7926 = vunpack.c.l.b16 %v7665
        %v7927 = vunpack.c.h.b16 %v7665
        %v7928 = vunpack.c.l.b16 %v7666
        %v7929 = vunpack.c.h.b16 %v7666
        %v7930 = vunpack.c.l.b16 %v7667
        %v7931 = vunpack.c.h.b16 %v7667
        %v7932 = vunpack.c.l.b16 %v7668
        %v7933 = vunpack.c.h.b16 %v7668
        %v7934 = vunpack.c.l.b16 %v7669
        %v7935 = vunpack.c.h.b16 %v7669
        %v7936 = vunpack.c.l.b16 %v7670
        %v7937 = vunpack.c.h.b16 %v7670
        %v7938 = vunpack.c.l.b16 %v7671
        %v7939 = vunpack.c.h.b16 %v7671
        %v7940 = vunpack.c.l.b16 %v7672
        %v7941 = vunpack.c.h.b16 %v7672
        %v7942 = vunpack.c.l.b16 %v7673
        %v7943 = vunpack.c.h.b16 %v7673
        %v7944 = vunpack.c.l.b16 %v7674
        %v7945 = vunpack.c.h.b16 %v7674
        %v7946 = vunpack.c.l.b16 %v7675
        %v7947 = vunpack.c.h.b16 %v7675
        %v7948 = vunpack.c.l.b16 %v7676
        %v7949 = vunpack.c.h.b16 %v7676
        %v7950 = vunpack.c.l.b16 %v7677
        %v7951 = vunpack.c.h.b16 %v7677
        %v7952 = vunpack.c.l.b16 %v7678
        %v7953 = vunpack.c.h.b16 %v7678
        %v7954 = vunpack.c.l.b16 %v7679
        %v7955 = vunpack.c.h.b16 %v7679
        %v7956 = vunpack.c.l.b16 %v7680
        %v7957 = vunpack.c.h.b16 %v7680
        %v7958 = vunpack.c.l.b16 %v7681
        %v7959 = vunpack.c.h.b16 %v7681
        %v7960 = vunpack.c.l.b16 %v7682
        %v7961 = vunpack.c.h.b16 %v7682
        %v7962 = vunpack.c.l.b16 %v7683
        %v7963 = vunpack.c.h.b16 %v7683
        %v7964 = vunpack.c.l.b16 %v7684
        %v7965 = vunpack.c.h.b16 %v7684
        %v7966 = vunpack.c.l.b16 %v7685
        %v7967 = vunpack.c.h.b16 %v7685
        %v7968 = vunpack.c.l.b16 %v7686
        %v7969 = vunpack.c.h.b16 %v7686
        %v7970 = vunpack.c.l.b16 %v7687
        %v7971 = vunpack.c.h.b16 %v7687
        %v7972 = vunpack.c.l.b16 %v7688
        %v7973 = vunpack.c.h.b16 %v7688
        %v7974 = vunpack.c.l.b16 %v7689
        %v7975 = vunpack.c.h.b16 %v7689
        %v7976 = vunpack.c.l.b16 %v7690
        %v7977 = vunpack.c.h.b16 %v7690
        %v7978 = vunpack.c.l.b16 %v7691
        %v7979 = vunpack.c.h.b16 %v7691
        %v7980 = vunpack.c.l.b16 %v7692
        %v7981 = vunpack.c.h.b16 %v7692
        %v7982 = vunpack.c.l.b16 %v7693
        %v7983 = vunpack.c.h.b16 %v7693
        %v7984 = vunpack.c.l.b16 %v7694
        %v7985 = vunpack.c.h.b16 %v7694
        %v7986 = vunpack.c.l.b16 %v7695
        %v7987 = vunpack.c.h.b16 %v7695
        %v7988 = vunpack.c.l.b16 %v7696
        %v7989 = vunpack.c.h.b16 %v7696
        %v7990 = vunpack.c.l.b16 %v7697
        %v7991 = vunpack.c.h.b16 %v7697
        %v7992 = vunpack.c.l.b16 %v7698
        %v7993 = vunpack.c.h.b16 %v7698
        %v7994 = vunpack.c.l.b16 %v7699
        %v7995 = vunpack.c.h.b16 %v7699
        %v7996 = vunpack.c.l.b16 %v7700
        %v7997 = vunpack.c.h.b16 %v7700
        %v7998 = vunpack.c.l.b16 %v7701
        %v7999 = vunpack.c.h.b16 %v7701
        %v8000 = vunpack.c.l.b16 %v7702
        %v8001 = vunpack.c.h.b16 %v7702
        %v8002 = vunpack.c.l.b16 %v7703
        %v8003 = vunpack.c.h.b16 %v7703
        %v8004 = vunpack.c.l.b16 %v7704
        %v8005 = vunpack.c.h.b16 %v7704
        %v8006 = vunpack.c.l.b16 %v7705
        %v8007 = vunpack.c.h.b16 %v7705
        %v8008 = vunpack.c.l.b16 %v7706
        %v8009 = vunpack.c.h.b16 %v7706
        %v8010 = vunpack.c.l.b16 %v7707
        %v8011 = vunpack.c.h.b16 %v7707
        %v8012 = vunpack.c.l.b16 %v7708
        %v8013 = vunpack.c.h.b16 %v7708
        %v8014 = vunpack.c.l.b16 %v7709
        %v8015 = vunpack.c.h.b16 %v7709
        %v8016 = vunpack.c.l.b16 %v7710
        %v8017 = vunpack.c.h.b16 %v7710
        %v8018 = vunpack.c.l.b16 %v7711
        %v8019 = vunpack.c.h.b16 %v7711
        %v8020 = vunpack.c.l.b16 %v7712
        %v8021 = vunpack.c.h.b16 %v7712
        %v8022 = vunpack.c.l.b16 %v7713
        %v8023 = vunpack.c.h.b16 %v7713
        %v8024 = vunpack.c.l.b16 %v7714
        %v8025 = vunpack.c.h.b16 %v7714
        %v8026 = vunpack.c.l.b16 %v7715
        %v8027 = vunpack.c.h.b16 %v7715
        %v8028 = vunpack.c.l.b16 %v7716
        %v8029 = vunpack.c.h.b16 %v7716
        %v8030 = vunpack.c.l.b16 %v7717
        %v8031 = vunpack.c.h.b16 %v7717
        %v8032 = vunpack.c.l.b16 %v7718
        %v8033 = vunpack.c.h.b16 %v7718
        %v8034 = vunpack.c.l.b16 %v7719
        %v8035 = vunpack.c.h.b16 %v7719
        %v8036 = vunpack.c.l.b16 %v7720
        %v8037 = vunpack.c.h.b16 %v7720
        %v8038 = vunpack.c.l.b16 %v7721
        %v8039 = vunpack.c.h.b16 %v7721
        %v8040 = vunpack.c.l.b16 %v7722
        %v8041 = vunpack.c.h.b16 %v7722
        %v8042 = vunpack.c.l.b16 %v7723
        %v8043 = vunpack.c.h.b16 %v7723
        %v8044 = vpack.c.b16 %v7920, %v7916
        %v8045 = vpack.c.b16 %v7921, %v7917
        %v8046 = vpack.c.b16 %v7922, %v7918
        %v8047 = vpack.c.b16 %v7923, %v7919
        %v8048 = vpack.c.b16 %v7928, %v7924
        %v8049 = vpack.c.b16 %v7929, %v7925
        %v8050 = vpack.c.b16 %v7930, %v7926
        %v8051 = vpack.c.b16 %v7931, %v7927
        %v8052 = vpack.c.b16 %v7936, %v7932
        %v8053 = vpack.c.b16 %v7937, %v7933
        %v8054 = vpack.c.b16 %v7938, %v7934
        %v8055 = vpack.c.b16 %v7939, %v7935
        %v8056 = vpack.c.b16 %v7944, %v7940
        %v8057 = vpack.c.b16 %v7945, %v7941
        %v8058 = vpack.c.b16 %v7946, %v7942
        %v8059 = vpack.c.b16 %v7947, %v7943
        %v8060 = vpack.c.b16 %v7952, %v7948
        %v8061 = vpack.c.b16 %v7953, %v7949
        %v8062 = vpack.c.b16 %v7954, %v7950
        %v8063 = vpack.c.b16 %v7955, %v7951
        %v8064 = vpack.c.b16 %v7960, %v7956
        %v8065 = vpack.c.b16 %v7961, %v7957
        %v8066 = vpack.c.b16 %v7962, %v7958
        %v8067 = vpack.c.b16 %v7963, %v7959
        %v8068 = vpack.c.b16 %v7968, %v7964
        %v8069 = vpack.c.b16 %v7969, %v7965
        %v8070 = vpack.c.b16 %v7970, %v7966
        %v8071 = vpack.c.b16 %v7971, %v7967
        %v8072 = vpack.c.b16 %v7976, %v7972
        %v8073 = vpack.c.b16 %v7977, %v7973
        %v8074 = vpack.c.b16 %v7978, %v7974
        %v8075 = vpack.c.b16 %v7979, %v7975
        %v8076 = vpack.c.b16 %v7984, %v7980
        %v8077 = vpack.c.b16 %v7985, %v7981
        %v8078 = vpack.c.b16 %v7986, %v7982
        %v8079 = vpack.c.b16 %v7987, %v7983
        %v8080 = vpack.c.b16 %v7992, %v7988
        %v8081 = vpack.c.b16 %v7993, %v7989
        %v8082 = vpack.c.b16 %v7994, %v7990
        %v8083 = vpack.c.b16 %v7995, %v7991
        %v8084 = vpack.c.b16 %v8000, %v7996
        %v8085 = vpack.c.b16 %v8001, %v7997
        %v8086 = vpack.c.b16 %v8002, %v7998
        %v8087 = vpack.c.b16 %v8003, %v7999
        %v8088 = vpack.c.b16 %v8008, %v8004
        %v8089 = vpack.c.b16 %v8009, %v8005
        %v8090 = vpack.c.b16 %v8010, %v8006
        %v8091 = vpack.c.b16 %v8011, %v8007
        %v8092 = vpack.c.b16 %v8016, %v8012
        %v8093 = vpack.c.b16 %v8017, %v8013
        %v8094 = vpack.c.b16 %v8018, %v8014
        %v8095 = vpack.c.b16 %v8019, %v8015
        %v8096 = vpack.c.b16 %v8024, %v8020
        %v8097 = vpack.c.b16 %v8025, %v8021
        %v8098 = vpack.c.b16 %v8026, %v8022
        %v8099 = vpack.c.b16 %v8027, %v8023
        %v8100 = vpack.c.b16 %v8032, %v8028
        %v8101 = vpack.c.b16 %v8033, %v8029
        %v8102 = vpack.c.b16 %v8034, %v8030
        %v8103 = vpack.c.b16 %v8035, %v8031
        %v8104 = vpack.c.b16 %v8040, %v8036
        %v8105 = vpack.c.b16 %v8041, %v8037
        %v8106 = vpack.c.b16 %v8042, %v8038
        %v8107 = vpack.c.b16 %v8043, %v8039
        %v8236 = vunpack.c.l.b16 %v7724
        %v8237 = vunpack.c.h.b16 %v7724
        %v8238 = vunpack.c.l.b16 %v7725
        %v8239 = vunpack.c.h.b16 %v7725
        %v8240 = vunpack.c.l.b16 %v7726
        %v8241 = vunpack.c.h.b16 %v7726
        %v8242 = vunpack.c.l.b16 %v7727
        %v8243 = vunpack.c.h.b16 %v7727
        %v8244 = vunpack.c.l.b16 %v7728
        %v8245 = vunpack.c.h.b16 %v7728
        %v8246 = vunpack.c.l.b16 %v7729
        %v8247 = vunpack.c.h.b16 %v7729
        %v8248 = vunpack.c.l.b16 %v7730
        %v8249 = vunpack.c.h.b16 %v7730
        %v8250 = vunpack.c.l.b16 %v7731
        %v8251 = vunpack.c.h.b16 %v7731
        %v8252 = vunpack.c.l.b16 %v7732
        %v8253 = vunpack.c.h.b16 %v7732
        %v8254 = vunpack.c.l.b16 %v7733
        %v8255 = vunpack.c.h.b16 %v7733
        %v8256 = vunpack.c.l.b16 %v7734
        %v8257 = vunpack.c.h.b16 %v7734
        %v8258 = vunpack.c.l.b16 %v7735
        %v8259 = vunpack.c.h.b16 %v7735
        %v8260 = vunpack.c.l.b16 %v7736
        %v8261 = vunpack.c.h.b16 %v7736
        %v8262 = vunpack.c.l.b16 %v7737
        %v8263 = vunpack.c.h.b16 %v7737
        %v8264 = vunpack.c.l.b16 %v7738
        %v8265 = vunpack.c.h.b16 %v7738
        %v8266 = vunpack.c.l.b16 %v7739
        %v8267 = vunpack.c.h.b16 %v7739
        %v8268 = vunpack.c.l.b16 %v7740
        %v8269 = vunpack.c.h.b16 %v7740
        %v8270 = vunpack.c.l.b16 %v7741
        %v8271 = vunpack.c.h.b16 %v7741
        %v8272 = vunpack.c.l.b16 %v7742
        %v8273 = vunpack.c.h.b16 %v7742
        %v8274 = vunpack.c.l.b16 %v7743
        %v8275 = vunpack.c.h.b16 %v7743
        %v8276 = vunpack.c.l.b16 %v7744
        %v8277 = vunpack.c.h.b16 %v7744
        %v8278 = vunpack.c.l.b16 %v7745
        %v8279 = vunpack.c.h.b16 %v7745
        %v8280 = vunpack.c.l.b16 %v7746
        %v8281 = vunpack.c.h.b16 %v7746
        %v8282 = vunpack.c.l.b16 %v7747
        %v8283 = vunpack.c.h.b16 %v7747
        %v8284 = vunpack.c.l.b16 %v7748
        %v8285 = vunpack.c.h.b16 %v7748
        %v8286 = vunpack.c.l.b16 %v7749
        %v8287 = vunpack.c.h.b16 %v7749
        %v8288 = vunpack.c.l.b16 %v7750
        %v8289 = vunpack.c.h.b16 %v7750
        %v8290 = vunpack.c.l.b16 %v7751
        %v8291 = vunpack.c.h.b16 %v7751
        %v8292 = vunpack.c.l.b16 %v7752
        %v8293 = vunpack.c.h.b16 %v7752
        %v8294 = vunpack.c.l.b16 %v7753
        %v8295 = vunpack.c.h.b16 %v7753
        %v8296 = vunpack.c.l.b16 %v7754
        %v8297 = vunpack.c.h.b16 %v7754
        %v8298 = vunpack.c.l.b16 %v7755
        %v8299 = vunpack.c.h.b16 %v7755
        %v8300 = vunpack.c.l.b16 %v7756
        %v8301 = vunpack.c.h.b16 %v7756
        %v8302 = vunpack.c.l.b16 %v7757
        %v8303 = vunpack.c.h.b16 %v7757
        %v8304 = vunpack.c.l.b16 %v7758
        %v8305 = vunpack.c.h.b16 %v7758
        %v8306 = vunpack.c.l.b16 %v7759
        %v8307 = vunpack.c.h.b16 %v7759
        %v8308 = vunpack.c.l.b16 %v7760
        %v8309 = vunpack.c.h.b16 %v7760
        %v8310 = vunpack.c.l.b16 %v7761
        %v8311 = vunpack.c.h.b16 %v7761
        %v8312 = vunpack.c.l.b16 %v7762
        %v8313 = vunpack.c.h.b16 %v7762
        %v8314 = vunpack.c.l.b16 %v7763
        %v8315 = vunpack.c.h.b16 %v7763
        %v8316 = vunpack.c.l.b16 %v7764
        %v8317 = vunpack.c.h.b16 %v7764
        %v8318 = vunpack.c.l.b16 %v7765
        %v8319 = vunpack.c.h.b16 %v7765
        %v8320 = vunpack.c.l.b16 %v7766
        %v8321 = vunpack.c.h.b16 %v7766
        %v8322 = vunpack.c.l.b16 %v7767
        %v8323 = vunpack.c.h.b16 %v7767
        %v8324 = vunpack.c.l.b16 %v7768
        %v8325 = vunpack.c.h.b16 %v7768
        %v8326 = vunpack.c.l.b16 %v7769
        %v8327 = vunpack.c.h.b16 %v7769
        %v8328 = vunpack.c.l.b16 %v7770
        %v8329 = vunpack.c.h.b16 %v7770
        %v8330 = vunpack.c.l.b16 %v7771
        %v8331 = vunpack.c.h.b16 %v7771
        %v8332 = vunpack.c.l.b16 %v7772
        %v8333 = vunpack.c.h.b16 %v7772
        %v8334 = vunpack.c.l.b16 %v7773
        %v8335 = vunpack.c.h.b16 %v7773
        %v8336 = vunpack.c.l.b16 %v7774
        %v8337 = vunpack.c.h.b16 %v7774
        %v8338 = vunpack.c.l.b16 %v7775
        %v8339 = vunpack.c.h.b16 %v7775
        %v8340 = vunpack.c.l.b16 %v7776
        %v8341 = vunpack.c.h.b16 %v7776
        %v8342 = vunpack.c.l.b16 %v7777
        %v8343 = vunpack.c.h.b16 %v7777
        %v8344 = vunpack.c.l.b16 %v7778
        %v8345 = vunpack.c.h.b16 %v7778
        %v8346 = vunpack.c.l.b16 %v7779
        %v8347 = vunpack.c.h.b16 %v7779
        %v8348 = vunpack.c.l.b16 %v7780
        %v8349 = vunpack.c.h.b16 %v7780
        %v8350 = vunpack.c.l.b16 %v7781
        %v8351 = vunpack.c.h.b16 %v7781
        %v8352 = vunpack.c.l.b16 %v7782
        %v8353 = vunpack.c.h.b16 %v7782
        %v8354 = vunpack.c.l.b16 %v7783
        %v8355 = vunpack.c.h.b16 %v7783
        %v8356 = vunpack.c.l.b16 %v7784
        %v8357 = vunpack.c.h.b16 %v7784
        %v8358 = vunpack.c.l.b16 %v7785
        %v8359 = vunpack.c.h.b16 %v7785
        %v8360 = vunpack.c.l.b16 %v7786
        %v8361 = vunpack.c.h.b16 %v7786
        %v8362 = vunpack.c.l.b16 %v7787
        %v8363 = vunpack.c.h.b16 %v7787
        %v8364 = vpack.c.b16 %v8240, %v8236
        %v8365 = vpack.c.b16 %v8241, %v8237
        %v8366 = vpack.c.b16 %v8242, %v8238
        %v8367 = vpack.c.b16 %v8243, %v8239
        %v8368 = vpack.c.b16 %v8248, %v8244
        %v8369 = vpack.c.b16 %v8249, %v8245
        %v8370 = vpack.c.b16 %v8250, %v8246
        %v8371 = vpack.c.b16 %v8251, %v8247
        %v8372 = vpack.c.b16 %v8256, %v8252
        %v8373 = vpack.c.b16 %v8257, %v8253
        %v8374 = vpack.c.b16 %v8258, %v8254
        %v8375 = vpack.c.b16 %v8259, %v8255
        %v8376 = vpack.c.b16 %v8264, %v8260
        %v8377 = vpack.c.b16 %v8265, %v8261
        %v8378 = vpack.c.b16 %v8266, %v8262
        %v8379 = vpack.c.b16 %v8267, %v8263
        %v8380 = vpack.c.b16 %v8272, %v8268
        %v8381 = vpack.c.b16 %v8273, %v8269
        %v8382 = vpack.c.b16 %v8274, %v8270
        %v8383 = vpack.c.b16 %v8275, %v8271
        %v8384 = vpack.c.b16 %v8280, %v8276
        %v8385 = vpack.c.b16 %v8281, %v8277
        %v8386 = vpack.c.b16 %v8282, %v8278
        %v8387 = vpack.c.b16 %v8283, %v8279
        %v8388 = vpack.c.b16 %v8288, %v8284
        %v8389 = vpack.c.b16 %v8289, %v8285
        %v8390 = vpack.c.b16 %v8290, %v8286
        %v8391 = vpack.c.b16 %v8291, %v8287
        %v8392 = vpack.c.b16 %v8296, %v8292
        %v8393 = vpack.c.b16 %v8297, %v8293
        %v8394 = vpack.c.b16 %v8298, %v8294
        %v8395 = vpack.c.b16 %v8299, %v8295
        %v8396 = vpack.c.b16 %v8304, %v8300
        %v8397 = vpack.c.b16 %v8305, %v8301
        %v8398 = vpack.c.b16 %v8306, %v8302
        %v8399 = vpack.c.b16 %v8307, %v8303
        %v8400 = vpack.c.b16 %v8312, %v8308
        %v8401 = vpack.c.b16 %v8313, %v8309
        %v8402 = vpack.c.b16 %v8314, %v8310
        %v8403 = vpack.c.b16 %v8315, %v8311
        %v8404 = vpack.c.b16 %v8320, %v8316
        %v8405 = vpack.c.b16 %v8321, %v8317
        %v8406 = vpack.c.b16 %v8322, %v8318
        %v8407 = vpack.c.b16 %v8323, %v8319
        %v8408 = vpack.c.b16 %v8328, %v8324
        %v8409 = vpack.c.b16 %v8329, %v8325
        %v8410 = vpack.c.b16 %v8330, %v8326
        %v8411 = vpack.c.b16 %v8331, %v8327
        %v8412 = vpack.c.b16 %v8336, %v8332
        %v8413 = vpack.c.b16 %v8337, %v8333
        %v8414 = vpack.c.b16 %v8338, %v8334
        %v8415 = vpack.c.b16 %v8339, %v8335
        %v8416 = vpack.c.b16 %v8344, %v8340
        %v8417 = vpack.c.b16 %v8345, %v8341
        %v8418 = vpack.c.b16 %v8346, %v8342
        %v8419 = vpack.c.b16 %v8347, %v8343
        %v8420 = vpack.c.b16 %v8352, %v8348
        %v8421 = vpack.c.b16 %v8353, %v8349
        %v8422 = vpack.c.b16 %v8354, %v8350
        %v8423 = vpack.c.b16 %v8355, %v8351
        %v8424 = vpack.c.b16 %v8360, %v8356
        %v8425 = vpack.c.b16 %v8361, %v8357
        %v8426 = vpack.c.b16 %v8362, %v8358
        %v8427 = vpack.c.b16 %v8363, %v8359
        %8492 = vmatpush.bf16.xpose.msra.mxu0 %v8392
        %8493 = vmatpush.bf16.xpose.msra.mxu0 %v8388
        %8494 = vmatpush.bf16.xpose.msra.mxu0 %v8384
        %8495 = vmatpush.bf16.xpose.msra.mxu0 %v8380
        %8496 = vmatpush.bf16.xpose.msra.mxu0 %v8376
        %8497 = vmatpush.bf16.xpose.msra.mxu0 %v8372
        %8498 = vmatpush.bf16.xpose.msra.mxu0 %v8368
        %8499 = vmatpush.bf16.xpose.msra.mxu0 %v8364
        %8500 = vmatmul.bf16.gmra.mxu0 %v8044
        %v8501 = vpop.f32.mrf.mxu0
        %v8502 = vadd.f32 0.0, %v8501
        %v8503 = vpop.f32.mrf.mxu0
        %v8504 = vadd.f32 0.0, %v8503
        %8505 = vmatmul.bf16.gmra.mxu0 %v8048
        %v8506 = vpop.f32.mrf.mxu0
        %v8507 = vadd.f32 0.0, %v8506
        %v8508 = vpop.f32.mrf.mxu0
        %v8509 = vadd.f32 0.0, %v8508
        %8510 = vmatmul.bf16.gmra.mxu0 %v8052
        %v8511 = vpop.f32.mrf.mxu0
        %v8512 = vadd.f32 0.0, %v8511
        %v8513 = vpop.f32.mrf.mxu0
        %v8514 = vadd.f32 0.0, %v8513
        %8515 = vmatmul.bf16.gmra.mxu0 %v8056
        %v8516 = vpop.f32.mrf.mxu0
        %v8517 = vadd.f32 0.0, %v8516
        %v8518 = vpop.f32.mrf.mxu0
        %v8519 = vadd.f32 0.0, %v8518
        %8520 = vmatmul.bf16.gmra.mxu0 %v8060
        %v8521 = vpop.f32.mrf.mxu0
        %v8522 = vadd.f32 0.0, %v8521
        %v8523 = vpop.f32.mrf.mxu0
        %v8524 = vadd.f32 0.0, %v8523
        %8525 = vmatmul.bf16.gmra.mxu0 %v8064
        %v8526 = vpop.f32.mrf.mxu0
        %v8527 = vadd.f32 0.0, %v8526
        %v8528 = vpop.f32.mrf.mxu0
        %v8529 = vadd.f32 0.0, %v8528
        %8530 = vmatmul.bf16.gmra.mxu0 %v8068
        %v8531 = vpop.f32.mrf.mxu0
        %v8532 = vadd.f32 0.0, %v8531
        %v8533 = vpop.f32.mrf.mxu0
        %v8534 = vadd.f32 0.0, %v8533
        %8535 = vmatmul.bf16.gmra.mxu0 %v8072
        %v8536 = vpop.f32.mrf.mxu0
        %v8537 = vadd.f32 0.0, %v8536
        %v8538 = vpop.f32.mrf.mxu0
        %v8539 = vadd.f32 0.0, %v8538
        %8540 = vmatmul.bf16.gmra.mxu0 %v8076
        %v8541 = vpop.f32.mrf.mxu0
        %v8542 = vadd.f32 0.0, %v8541
        %v8543 = vpop.f32.mrf.mxu0
        %v8544 = vadd.f32 0.0, %v8543
        %8545 = vmatmul.bf16.gmra.mxu0 %v8080
        %v8546 = vpop.f32.mrf.mxu0
        %v8547 = vadd.f32 0.0, %v8546
        %v8548 = vpop.f32.mrf.mxu0
        %v8549 = vadd.f32 0.0, %v8548
        %8550 = vmatmul.bf16.gmra.mxu0 %v8084
        %v8551 = vpop.f32.mrf.mxu0
        %v8552 = vadd.f32 0.0, %v8551
        %v8553 = vpop.f32.mrf.mxu0
        %v8554 = vadd.f32 0.0, %v8553
        %8555 = vmatmul.bf16.gmra.mxu0 %v8088
        %v8556 = vpop.f32.mrf.mxu0
        %v8557 = vadd.f32 0.0, %v8556
        %v8558 = vpop.f32.mrf.mxu0
        %v8559 = vadd.f32 0.0, %v8558
        %8560 = vmatmul.bf16.gmra.mxu0 %v8092
        %v8561 = vpop.f32.mrf.mxu0
        %v8562 = vadd.f32 0.0, %v8561
        %v8563 = vpop.f32.mrf.mxu0
        %v8564 = vadd.f32 0.0, %v8563
        %8565 = vmatmul.bf16.gmra.mxu0 %v8096
        %v8566 = vpop.f32.mrf.mxu0
        %v8567 = vadd.f32 0.0, %v8566
        %v8568 = vpop.f32.mrf.mxu0
        %v8569 = vadd.f32 0.0, %v8568
        %8570 = vmatmul.bf16.gmra.mxu0 %v8100
        %v8571 = vpop.f32.mrf.mxu0
        %v8572 = vadd.f32 0.0, %v8571
        %v8573 = vpop.f32.mrf.mxu0
        %v8574 = vadd.f32 0.0, %v8573
        %8575 = vmatmul.bf16.gmra.mxu0 %v8104
        %v8576 = vpop.f32.mrf.mxu0
        %v8577 = vadd.f32 0.0, %v8576
        %v8578 = vpop.f32.mrf.mxu0
        %v8579 = vadd.f32 0.0, %v8578
        %8580 = vdwg.mxu0
        %8581 = vmatpush.bf16.xpose.msra.mxu0 %v8393
        %8582 = vmatpush.bf16.xpose.msra.mxu0 %v8389
        %8583 = vmatpush.bf16.xpose.msra.mxu0 %v8385
        %8584 = vmatpush.bf16.xpose.msra.mxu0 %v8381
        %8585 = vmatpush.bf16.xpose.msra.mxu0 %v8377
        %8586 = vmatpush.bf16.xpose.msra.mxu0 %v8373
        %8587 = vmatpush.bf16.xpose.msra.mxu0 %v8369
        %8588 = vmatpush.bf16.xpose.msra.mxu0 %v8365
        %8589 = vmatmul.bf16.gmra.mxu0 %v8045
        %v8590 = vpop.f32.mrf.mxu0
        %v8591 = vadd.f32 %v8502, %v8590
        %v8592 = vpop.f32.mrf.mxu0
        %v8593 = vadd.f32 %v8504, %v8592
        %8594 = vmatmul.bf16.gmra.mxu0 %v8049
        %v8595 = vpop.f32.mrf.mxu0
        %v8596 = vadd.f32 %v8507, %v8595
        %v8597 = vpop.f32.mrf.mxu0
        %v8598 = vadd.f32 %v8509, %v8597
        %8599 = vmatmul.bf16.gmra.mxu0 %v8053
        %v8600 = vpop.f32.mrf.mxu0
        %v8601 = vadd.f32 %v8512, %v8600
        %v8602 = vpop.f32.mrf.mxu0
        %v8603 = vadd.f32 %v8514, %v8602
        %8604 = vmatmul.bf16.gmra.mxu0 %v8057
        %v8605 = vpop.f32.mrf.mxu0
        %v8606 = vadd.f32 %v8517, %v8605
        %v8607 = vpop.f32.mrf.mxu0
        %v8608 = vadd.f32 %v8519, %v8607
        %8609 = vmatmul.bf16.gmra.mxu0 %v8061
        %v8610 = vpop.f32.mrf.mxu0
        %v8611 = vadd.f32 %v8522, %v8610
        %v8612 = vpop.f32.mrf.mxu0
        %v8613 = vadd.f32 %v8524, %v8612
        %8614 = vmatmul.bf16.gmra.mxu0 %v8065
        %v8615 = vpop.f32.mrf.mxu0
        %v8616 = vadd.f32 %v8527, %v8615
        %v8617 = vpop.f32.mrf.mxu0
        %v8618 = vadd.f32 %v8529, %v8617
        %8619 = vmatmul.bf16.gmra.mxu0 %v8069
        %v8620 = vpop.f32.mrf.mxu0
        %v8621 = vadd.f32 %v8532, %v8620
        %v8622 = vpop.f32.mrf.mxu0
        %v8623 = vadd.f32 %v8534, %v8622
        %8624 = vmatmul.bf16.gmra.mxu0 %v8073
        %v8625 = vpop.f32.mrf.mxu0
        %v8626 = vadd.f32 %v8537, %v8625
        %v8627 = vpop.f32.mrf.mxu0
        %v8628 = vadd.f32 %v8539, %v8627
        %8629 = vmatmul.bf16.gmra.mxu0 %v8077
        %v8630 = vpop.f32.mrf.mxu0
        %v8631 = vadd.f32 %v8542, %v8630
        %v8632 = vpop.f32.mrf.mxu0
        %v8633 = vadd.f32 %v8544, %v8632
        %8634 = vmatmul.bf16.gmra.mxu0 %v8081
        %v8635 = vpop.f32.mrf.mxu0
        %v8636 = vadd.f32 %v8547, %v8635
        %v8637 = vpop.f32.mrf.mxu0
        %v8638 = vadd.f32 %v8549, %v8637
        %8639 = vmatmul.bf16.gmra.mxu0 %v8085
        %v8640 = vpop.f32.mrf.mxu0
        %v8641 = vadd.f32 %v8552, %v8640
        %v8642 = vpop.f32.mrf.mxu0
        %v8643 = vadd.f32 %v8554, %v8642
        %8644 = vmatmul.bf16.gmra.mxu0 %v8089
        %v8645 = vpop.f32.mrf.mxu0
        %v8646 = vadd.f32 %v8557, %v8645
        %v8647 = vpop.f32.mrf.mxu0
        %v8648 = vadd.f32 %v8559, %v8647
        %8649 = vmatmul.bf16.gmra.mxu0 %v8093
        %v8650 = vpop.f32.mrf.mxu0
        %v8651 = vadd.f32 %v8562, %v8650
        %v8652 = vpop.f32.mrf.mxu0
        %v8653 = vadd.f32 %v8564, %v8652
        %8654 = vmatmul.bf16.gmra.mxu0 %v8097
        %v8655 = vpop.f32.mrf.mxu0
        %v8656 = vadd.f32 %v8567, %v8655
        %v8657 = vpop.f32.mrf.mxu0
        %v8658 = vadd.f32 %v8569, %v8657
        %8659 = vmatmul.bf16.gmra.mxu0 %v8101
        %v8660 = vpop.f32.mrf.mxu0
        %v8661 = vadd.f32 %v8572, %v8660
        %v8662 = vpop.f32.mrf.mxu0
        %v8663 = vadd.f32 %v8574, %v8662
        %8664 = vmatmul.bf16.gmra.mxu0 %v8105
        %v8665 = vpop.f32.mrf.mxu0
        %v8666 = vadd.f32 %v8577, %v8665
        %v8667 = vpop.f32.mrf.mxu0
        %v8668 = vadd.f32 %v8579, %v8667
        %8669 = vdwg.mxu0
        %8670 = vmatpush.bf16.xpose.msra.mxu0 %v8394
        %8671 = vmatpush.bf16.xpose.msra.mxu0 %v8390
        %8672 = vmatpush.bf16.xpose.msra.mxu0 %v8386
        %8673 = vmatpush.bf16.xpose.msra.mxu0 %v8382
        %8674 = vmatpush.bf16.xpose.msra.mxu0 %v8378
        %8675 = vmatpush.bf16.xpose.msra.mxu0 %v8374
        %8676 = vmatpush.bf16.xpose.msra.mxu0 %v8370
        %8677 = vmatpush.bf16.xpose.msra.mxu0 %v8366
        %8678 = vmatmul.bf16.gmra.mxu0 %v8046
        %v8679 = vpop.f32.mrf.mxu0
        %v8680 = vadd.f32 %v8591, %v8679
        %v8681 = vpop.f32.mrf.mxu0
        %v8682 = vadd.f32 %v8593, %v8681
        %8683 = vmatmul.bf16.gmra.mxu0 %v8050
        %v8684 = vpop.f32.mrf.mxu0
        %v8685 = vadd.f32 %v8596, %v8684
        %v8686 = vpop.f32.mrf.mxu0
        %v8687 = vadd.f32 %v8598, %v8686
        %8688 = vmatmul.bf16.gmra.mxu0 %v8054
        %v8689 = vpop.f32.mrf.mxu0
        %v8690 = vadd.f32 %v8601, %v8689
        %v8691 = vpop.f32.mrf.mxu0
        %v8692 = vadd.f32 %v8603, %v8691
        %8693 = vmatmul.bf16.gmra.mxu0 %v8058
        %v8694 = vpop.f32.mrf.mxu0
        %v8695 = vadd.f32 %v8606, %v8694
        %v8696 = vpop.f32.mrf.mxu0
        %v8697 = vadd.f32 %v8608, %v8696
        %8698 = vmatmul.bf16.gmra.mxu0 %v8062
        %v8699 = vpop.f32.mrf.mxu0
        %v8700 = vadd.f32 %v8611, %v8699
        %v8701 = vpop.f32.mrf.mxu0
        %v8702 = vadd.f32 %v8613, %v8701
        %8703 = vmatmul.bf16.gmra.mxu0 %v8066
        %v8704 = vpop.f32.mrf.mxu0
        %v8705 = vadd.f32 %v8616, %v8704
        %v8706 = vpop.f32.mrf.mxu0
        %v8707 = vadd.f32 %v8618, %v8706
        %8708 = vmatmul.bf16.gmra.mxu0 %v8070
        %v8709 = vpop.f32.mrf.mxu0
        %v8710 = vadd.f32 %v8621, %v8709
        %v8711 = vpop.f32.mrf.mxu0
        %v8712 = vadd.f32 %v8623, %v8711
        %8713 = vmatmul.bf16.gmra.mxu0 %v8074
        %v8714 = vpop.f32.mrf.mxu0
        %v8715 = vadd.f32 %v8626, %v8714
        %v8716 = vpop.f32.mrf.mxu0
        %v8717 = vadd.f32 %v8628, %v8716
        %8718 = vmatmul.bf16.gmra.mxu0 %v8078
        %v8719 = vpop.f32.mrf.mxu0
        %v8720 = vadd.f32 %v8631, %v8719
        %v8721 = vpop.f32.mrf.mxu0
        %v8722 = vadd.f32 %v8633, %v8721
        %8723 = vmatmul.bf16.gmra.mxu0 %v8082
        %v8724 = vpop.f32.mrf.mxu0
        %v8725 = vadd.f32 %v8636, %v8724
        %v8726 = vpop.f32.mrf.mxu0
        %v8727 = vadd.f32 %v8638, %v8726
        %8728 = vmatmul.bf16.gmra.mxu0 %v8086
        %v8729 = vpop.f32.mrf.mxu0
        %v8730 = vadd.f32 %v8641, %v8729
        %v8731 = vpop.f32.mrf.mxu0
        %v8732 = vadd.f32 %v8643, %v8731
        %8733 = vmatmul.bf16.gmra.mxu0 %v8090
        %v8734 = vpop.f32.mrf.mxu0
        %v8735 = vadd.f32 %v8646, %v8734
        %v8736 = vpop.f32.mrf.mxu0
        %v8737 = vadd.f32 %v8648, %v8736
        %8738 = vmatmul.bf16.gmra.mxu0 %v8094
        %v8739 = vpop.f32.mrf.mxu0
        %v8740 = vadd.f32 %v8651, %v8739
        %v8741 = vpop.f32.mrf.mxu0
        %v8742 = vadd.f32 %v8653, %v8741
        %8743 = vmatmul.bf16.gmra.mxu0 %v8098
        %v8744 = vpop.f32.mrf.mxu0
        %v8745 = vadd.f32 %v8656, %v8744
        %v8746 = vpop.f32.mrf.mxu0
        %v8747 = vadd.f32 %v8658, %v8746
        %8748 = vmatmul.bf16.gmra.mxu0 %v8102
        %v8749 = vpop.f32.mrf.mxu0
        %v8750 = vadd.f32 %v8661, %v8749
        %v8751 = vpop.f32.mrf.mxu0
        %v8752 = vadd.f32 %v8663, %v8751
        %8753 = vmatmul.bf16.gmra.mxu0 %v8106
        %v8754 = vpop.f32.mrf.mxu0
        %v8755 = vadd.f32 %v8666, %v8754
        %v8756 = vpop.f32.mrf.mxu0
        %v8757 = vadd.f32 %v8668, %v8756
        %8758 = vdwg.mxu0
        %8759 = vmatpush.bf16.xpose.msra.mxu0 %v8395
        %8760 = vmatpush.bf16.xpose.msra.mxu0 %v8391
        %8761 = vmatpush.bf16.xpose.msra.mxu0 %v8387
        %8762 = vmatpush.bf16.xpose.msra.mxu0 %v8383
        %8763 = vmatpush.bf16.xpose.msra.mxu0 %v8379
        %8764 = vmatpush.bf16.xpose.msra.mxu0 %v8375
        %8765 = vmatpush.bf16.xpose.msra.mxu0 %v8371
        %8766 = vmatpush.bf16.xpose.msra.mxu0 %v8367
        %8767 = vmatmul.bf16.gmra.mxu0 %v8047
        %v8768 = vpop.f32.mrf.mxu0
        %v8769 = vadd.f32 %v8680, %v8768
        %v8770 = vpop.f32.mrf.mxu0
        %v8771 = vadd.f32 %v8682, %v8770
        %8772 = vmatmul.bf16.gmra.mxu0 %v8051
        %v8773 = vpop.f32.mrf.mxu0
        %v8774 = vadd.f32 %v8685, %v8773
        %v8775 = vpop.f32.mrf.mxu0
        %v8776 = vadd.f32 %v8687, %v8775
        %8777 = vmatmul.bf16.gmra.mxu0 %v8055
        %v8778 = vpop.f32.mrf.mxu0
        %v8779 = vadd.f32 %v8690, %v8778
        %v8780 = vpop.f32.mrf.mxu0
        %v8781 = vadd.f32 %v8692, %v8780
        %8782 = vmatmul.bf16.gmra.mxu0 %v8059
        %v8783 = vpop.f32.mrf.mxu0
        %v8784 = vadd.f32 %v8695, %v8783
        %v8785 = vpop.f32.mrf.mxu0
        %v8786 = vadd.f32 %v8697, %v8785
        %8787 = vmatmul.bf16.gmra.mxu0 %v8063
        %v8788 = vpop.f32.mrf.mxu0
        %v8789 = vadd.f32 %v8700, %v8788
        %v8790 = vpop.f32.mrf.mxu0
        %v8791 = vadd.f32 %v8702, %v8790
        %8792 = vmatmul.bf16.gmra.mxu0 %v8067
        %v8793 = vpop.f32.mrf.mxu0
        %v8794 = vadd.f32 %v8705, %v8793
        %v8795 = vpop.f32.mrf.mxu0
        %v8796 = vadd.f32 %v8707, %v8795
        %8797 = vmatmul.bf16.gmra.mxu0 %v8071
        %v8798 = vpop.f32.mrf.mxu0
        %v8799 = vadd.f32 %v8710, %v8798
        %v8800 = vpop.f32.mrf.mxu0
        %v8801 = vadd.f32 %v8712, %v8800
        %8802 = vmatmul.bf16.gmra.mxu0 %v8075
        %v8803 = vpop.f32.mrf.mxu0
        %v8804 = vadd.f32 %v8715, %v8803
        %v8805 = vpop.f32.mrf.mxu0
        %v8806 = vadd.f32 %v8717, %v8805
        %8807 = vmatmul.bf16.gmra.mxu0 %v8079
        %v8808 = vpop.f32.mrf.mxu0
        %v8809 = vadd.f32 %v8720, %v8808
        %v8810 = vpop.f32.mrf.mxu0
        %v8811 = vadd.f32 %v8722, %v8810
        %8812 = vmatmul.bf16.gmra.mxu0 %v8083
        %v8813 = vpop.f32.mrf.mxu0
        %v8814 = vadd.f32 %v8725, %v8813
        %v8815 = vpop.f32.mrf.mxu0
        %v8816 = vadd.f32 %v8727, %v8815
        %8817 = vmatmul.bf16.gmra.mxu0 %v8087
        %v8818 = vpop.f32.mrf.mxu0
        %v8819 = vadd.f32 %v8730, %v8818
        %v8820 = vpop.f32.mrf.mxu0
        %v8821 = vadd.f32 %v8732, %v8820
        %8822 = vmatmul.bf16.gmra.mxu0 %v8091
        %v8823 = vpop.f32.mrf.mxu0
        %v8824 = vadd.f32 %v8735, %v8823
        %v8825 = vpop.f32.mrf.mxu0
        %v8826 = vadd.f32 %v8737, %v8825
        %8827 = vmatmul.bf16.gmra.mxu0 %v8095
        %v8828 = vpop.f32.mrf.mxu0
        %v8829 = vadd.f32 %v8740, %v8828
        %v8830 = vpop.f32.mrf.mxu0
        %v8831 = vadd.f32 %v8742, %v8830
        %8832 = vmatmul.bf16.gmra.mxu0 %v8099
        %v8833 = vpop.f32.mrf.mxu0
        %v8834 = vadd.f32 %v8745, %v8833
        %v8835 = vpop.f32.mrf.mxu0
        %v8836 = vadd.f32 %v8747, %v8835
        %8837 = vmatmul.bf16.gmra.mxu0 %v8103
        %v8838 = vpop.f32.mrf.mxu0
        %v8839 = vadd.f32 %v8750, %v8838
        %v8840 = vpop.f32.mrf.mxu0
        %v8841 = vadd.f32 %v8752, %v8840
        %8842 = vmatmul.bf16.gmra.mxu0 %v8107
        %v8843 = vpop.f32.mrf.mxu0
        %v8844 = vadd.f32 %v8755, %v8843
        %v8845 = vpop.f32.mrf.mxu0
        %v8846 = vadd.f32 %v8757, %v8845
        %8847 = vdwg.mxu0
        %8848 = vmatpush.bf16.xpose.msra.mxu0 %v8424
        %8849 = vmatpush.bf16.xpose.msra.mxu0 %v8420
        %8850 = vmatpush.bf16.xpose.msra.mxu0 %v8416
        %8851 = vmatpush.bf16.xpose.msra.mxu0 %v8412
        %8852 = vmatpush.bf16.xpose.msra.mxu0 %v8408
        %8853 = vmatpush.bf16.xpose.msra.mxu0 %v8404
        %8854 = vmatpush.bf16.xpose.msra.mxu0 %v8400
        %8855 = vmatpush.bf16.xpose.msra.mxu0 %v8396
        %8856 = vmatmul.bf16.gmra.mxu0 %v8044
        %v8857 = vpop.f32.mrf.mxu0
        %v8858 = vadd.f32 0.0, %v8857
        %v8859 = vpop.f32.mrf.mxu0
        %v8860 = vadd.f32 0.0, %v8859
        %8861 = vmatmul.bf16.gmra.mxu0 %v8048
        %v8862 = vpop.f32.mrf.mxu0
        %v8863 = vadd.f32 0.0, %v8862
        %v8864 = vpop.f32.mrf.mxu0
        %v8865 = vadd.f32 0.0, %v8864
        %8866 = vmatmul.bf16.gmra.mxu0 %v8052
        %v8867 = vpop.f32.mrf.mxu0
        %v8868 = vadd.f32 0.0, %v8867
        %v8869 = vpop.f32.mrf.mxu0
        %v8870 = vadd.f32 0.0, %v8869
        %8871 = vmatmul.bf16.gmra.mxu0 %v8056
        %v8872 = vpop.f32.mrf.mxu0
        %v8873 = vadd.f32 0.0, %v8872
        %v8874 = vpop.f32.mrf.mxu0
        %v8875 = vadd.f32 0.0, %v8874
        %8876 = vmatmul.bf16.gmra.mxu0 %v8060
        %v8877 = vpop.f32.mrf.mxu0
        %v8878 = vadd.f32 0.0, %v8877
        %v8879 = vpop.f32.mrf.mxu0
        %v8880 = vadd.f32 0.0, %v8879
        %8881 = vmatmul.bf16.gmra.mxu0 %v8064
        %v8882 = vpop.f32.mrf.mxu0
        %v8883 = vadd.f32 0.0, %v8882
        %v8884 = vpop.f32.mrf.mxu0
        %v8885 = vadd.f32 0.0, %v8884
        %8886 = vmatmul.bf16.gmra.mxu0 %v8068
        %v8887 = vpop.f32.mrf.mxu0
        %v8888 = vadd.f32 0.0, %v8887
        %v8889 = vpop.f32.mrf.mxu0
        %v8890 = vadd.f32 0.0, %v8889
        %8891 = vmatmul.bf16.gmra.mxu0 %v8072
        %v8892 = vpop.f32.mrf.mxu0
        %v8893 = vadd.f32 0.0, %v8892
        %v8894 = vpop.f32.mrf.mxu0
        %v8895 = vadd.f32 0.0, %v8894
        %8896 = vmatmul.bf16.gmra.mxu0 %v8076
        %v8897 = vpop.f32.mrf.mxu0
        %v8898 = vadd.f32 0.0, %v8897
        %v8899 = vpop.f32.mrf.mxu0
        %v8900 = vadd.f32 0.0, %v8899
        %8901 = vmatmul.bf16.gmra.mxu0 %v8080
        %v8902 = vpop.f32.mrf.mxu0
        %v8903 = vadd.f32 0.0, %v8902
        %v8904 = vpop.f32.mrf.mxu0
        %v8905 = vadd.f32 0.0, %v8904
        %8906 = vmatmul.bf16.gmra.mxu0 %v8084
        %v8907 = vpop.f32.mrf.mxu0
        %v8908 = vadd.f32 0.0, %v8907
        %v8909 = vpop.f32.mrf.mxu0
        %v8910 = vadd.f32 0.0, %v8909
        %8911 = vmatmul.bf16.gmra.mxu0 %v8088
        %v8912 = vpop.f32.mrf.mxu0
        %v8913 = vadd.f32 0.0, %v8912
        %v8914 = vpop.f32.mrf.mxu0
        %v8915 = vadd.f32 0.0, %v8914
        %8916 = vmatmul.bf16.gmra.mxu0 %v8092
        %v8917 = vpop.f32.mrf.mxu0
        %v8918 = vadd.f32 0.0, %v8917
        %v8919 = vpop.f32.mrf.mxu0
        %v8920 = vadd.f32 0.0, %v8919
        %8921 = vmatmul.bf16.gmra.mxu0 %v8096
        %v8922 = vpop.f32.mrf.mxu0
        %v8923 = vadd.f32 0.0, %v8922
        %v8924 = vpop.f32.mrf.mxu0
        %v8925 = vadd.f32 0.0, %v8924
        %8926 = vmatmul.bf16.gmra.mxu0 %v8100
        %v8927 = vpop.f32.mrf.mxu0
        %v8928 = vadd.f32 0.0, %v8927
        %v8929 = vpop.f32.mrf.mxu0
        %v8930 = vadd.f32 0.0, %v8929
        %8931 = vmatmul.bf16.gmra.mxu0 %v8104
        %v8932 = vpop.f32.mrf.mxu0
        %v8933 = vadd.f32 0.0, %v8932
        %v8934 = vpop.f32.mrf.mxu0
        %v8935 = vadd.f32 0.0, %v8934
        %8936 = vdwg.mxu0
        %8937 = vmatpush.bf16.xpose.msra.mxu0 %v8425
        %8938 = vmatpush.bf16.xpose.msra.mxu0 %v8421
        %8939 = vmatpush.bf16.xpose.msra.mxu0 %v8417
        %8940 = vmatpush.bf16.xpose.msra.mxu0 %v8413
        %8941 = vmatpush.bf16.xpose.msra.mxu0 %v8409
        %8942 = vmatpush.bf16.xpose.msra.mxu0 %v8405
        %8943 = vmatpush.bf16.xpose.msra.mxu0 %v8401
        %8944 = vmatpush.bf16.xpose.msra.mxu0 %v8397
        %8945 = vmatmul.bf16.gmra.mxu0 %v8045
        %v8946 = vpop.f32.mrf.mxu0
        %v8947 = vadd.f32 %v8858, %v8946
        %v8948 = vpop.f32.mrf.mxu0
        %v8949 = vadd.f32 %v8860, %v8948
        %8950 = vmatmul.bf16.gmra.mxu0 %v8049
        %v8951 = vpop.f32.mrf.mxu0
        %v8952 = vadd.f32 %v8863, %v8951
        %v8953 = vpop.f32.mrf.mxu0
        %v8954 = vadd.f32 %v8865, %v8953
        %8955 = vmatmul.bf16.gmra.mxu0 %v8053
        %v8956 = vpop.f32.mrf.mxu0
        %v8957 = vadd.f32 %v8868, %v8956
        %v8958 = vpop.f32.mrf.mxu0
        %v8959 = vadd.f32 %v8870, %v8958
        %8960 = vmatmul.bf16.gmra.mxu0 %v8057
        %v8961 = vpop.f32.mrf.mxu0
        %v8962 = vadd.f32 %v8873, %v8961
        %v8963 = vpop.f32.mrf.mxu0
        %v8964 = vadd.f32 %v8875, %v8963
        %8965 = vmatmul.bf16.gmra.mxu0 %v8061
        %v8966 = vpop.f32.mrf.mxu0
        %v8967 = vadd.f32 %v8878, %v8966
        %v8968 = vpop.f32.mrf.mxu0
        %v8969 = vadd.f32 %v8880, %v8968
        %8970 = vmatmul.bf16.gmra.mxu0 %v8065
        %v8971 = vpop.f32.mrf.mxu0
        %v8972 = vadd.f32 %v8883, %v8971
        %v8973 = vpop.f32.mrf.mxu0
        %v8974 = vadd.f32 %v8885, %v8973
        %8975 = vmatmul.bf16.gmra.mxu0 %v8069
        %v8976 = vpop.f32.mrf.mxu0
        %v8977 = vadd.f32 %v8888, %v8976
        %v8978 = vpop.f32.mrf.mxu0
        %v8979 = vadd.f32 %v8890, %v8978
        %8980 = vmatmul.bf16.gmra.mxu0 %v8073
        %v8981 = vpop.f32.mrf.mxu0
        %v8982 = vadd.f32 %v8893, %v8981
        %v8983 = vpop.f32.mrf.mxu0
        %v8984 = vadd.f32 %v8895, %v8983
        %8985 = vmatmul.bf16.gmra.mxu0 %v8077
        %v8986 = vpop.f32.mrf.mxu0
        %v8987 = vadd.f32 %v8898, %v8986
        %v8988 = vpop.f32.mrf.mxu0
        %v8989 = vadd.f32 %v8900, %v8988
        %8990 = vmatmul.bf16.gmra.mxu0 %v8081
        %v8991 = vpop.f32.mrf.mxu0
        %v8992 = vadd.f32 %v8903, %v8991
        %v8993 = vpop.f32.mrf.mxu0
        %v8994 = vadd.f32 %v8905, %v8993
        %8995 = vmatmul.bf16.gmra.mxu0 %v8085
        %v8996 = vpop.f32.mrf.mxu0
        %v8997 = vadd.f32 %v8908, %v8996
        %v8998 = vpop.f32.mrf.mxu0
        %v8999 = vadd.f32 %v8910, %v8998
        %9000 = vmatmul.bf16.gmra.mxu0 %v8089
        %v9001 = vpop.f32.mrf.mxu0
        %v9002 = vadd.f32 %v8913, %v9001
        %v9003 = vpop.f32.mrf.mxu0
        %v9004 = vadd.f32 %v8915, %v9003
        %9005 = vmatmul.bf16.gmra.mxu0 %v8093
        %v9006 = vpop.f32.mrf.mxu0
        %v9007 = vadd.f32 %v8918, %v9006
        %v9008 = vpop.f32.mrf.mxu0
        %v9009 = vadd.f32 %v8920, %v9008
        %9010 = vmatmul.bf16.gmra.mxu0 %v8097
        %v9011 = vpop.f32.mrf.mxu0
        %v9012 = vadd.f32 %v8923, %v9011
        %v9013 = vpop.f32.mrf.mxu0
        %v9014 = vadd.f32 %v8925, %v9013
        %9015 = vmatmul.bf16.gmra.mxu0 %v8101
        %v9016 = vpop.f32.mrf.mxu0
        %v9017 = vadd.f32 %v8928, %v9016
        %v9018 = vpop.f32.mrf.mxu0
        %v9019 = vadd.f32 %v8930, %v9018
        %9020 = vmatmul.bf16.gmra.mxu0 %v8105
        %v9021 = vpop.f32.mrf.mxu0
        %v9022 = vadd.f32 %v8933, %v9021
        %v9023 = vpop.f32.mrf.mxu0
        %v9024 = vadd.f32 %v8935, %v9023
        %9025 = vdwg.mxu0
        %9026 = vmatpush.bf16.xpose.msra.mxu0 %v8426
        %9027 = vmatpush.bf16.xpose.msra.mxu0 %v8422
        %9028 = vmatpush.bf16.xpose.msra.mxu0 %v8418
        %9029 = vmatpush.bf16.xpose.msra.mxu0 %v8414
        %9030 = vmatpush.bf16.xpose.msra.mxu0 %v8410
        %9031 = vmatpush.bf16.xpose.msra.mxu0 %v8406
        %9032 = vmatpush.bf16.xpose.msra.mxu0 %v8402
        %9033 = vmatpush.bf16.xpose.msra.mxu0 %v8398
        %9034 = vmatmul.bf16.gmra.mxu0 %v8046
        %v9035 = vpop.f32.mrf.mxu0
        %v9036 = vadd.f32 %v8947, %v9035
        %v9037 = vpop.f32.mrf.mxu0
        %v9038 = vadd.f32 %v8949, %v9037
        %9039 = vmatmul.bf16.gmra.mxu0 %v8050
        %v9040 = vpop.f32.mrf.mxu0
        %v9041 = vadd.f32 %v8952, %v9040
        %v9042 = vpop.f32.mrf.mxu0
        %v9043 = vadd.f32 %v8954, %v9042
        %9044 = vmatmul.bf16.gmra.mxu0 %v8054
        %v9045 = vpop.f32.mrf.mxu0
        %v9046 = vadd.f32 %v8957, %v9045
        %v9047 = vpop.f32.mrf.mxu0
        %v9048 = vadd.f32 %v8959, %v9047
        %9049 = vmatmul.bf16.gmra.mxu0 %v8058
        %v9050 = vpop.f32.mrf.mxu0
        %v9051 = vadd.f32 %v8962, %v9050
        %v9052 = vpop.f32.mrf.mxu0
        %v9053 = vadd.f32 %v8964, %v9052
        %9054 = vmatmul.bf16.gmra.mxu0 %v8062
        %v9055 = vpop.f32.mrf.mxu0
        %v9056 = vadd.f32 %v8967, %v9055
        %v9057 = vpop.f32.mrf.mxu0
        %v9058 = vadd.f32 %v8969, %v9057
        %9059 = vmatmul.bf16.gmra.mxu0 %v8066
        %v9060 = vpop.f32.mrf.mxu0
        %v9061 = vadd.f32 %v8972, %v9060
        %v9062 = vpop.f32.mrf.mxu0
        %v9063 = vadd.f32 %v8974, %v9062
        %9064 = vmatmul.bf16.gmra.mxu0 %v8070
        %v9065 = vpop.f32.mrf.mxu0
        %v9066 = vadd.f32 %v8977, %v9065
        %v9067 = vpop.f32.mrf.mxu0
        %v9068 = vadd.f32 %v8979, %v9067
        %9069 = vmatmul.bf16.gmra.mxu0 %v8074
        %v9070 = vpop.f32.mrf.mxu0
        %v9071 = vadd.f32 %v8982, %v9070
        %v9072 = vpop.f32.mrf.mxu0
        %v9073 = vadd.f32 %v8984, %v9072
        %9074 = vmatmul.bf16.gmra.mxu0 %v8078
        %v9075 = vpop.f32.mrf.mxu0
        %v9076 = vadd.f32 %v8987, %v9075
        %v9077 = vpop.f32.mrf.mxu0
        %v9078 = vadd.f32 %v8989, %v9077
        %9079 = vmatmul.bf16.gmra.mxu0 %v8082
        %v9080 = vpop.f32.mrf.mxu0
        %v9081 = vadd.f32 %v8992, %v9080
        %v9082 = vpop.f32.mrf.mxu0
        %v9083 = vadd.f32 %v8994, %v9082
        %9084 = vmatmul.bf16.gmra.mxu0 %v8086
        %v9085 = vpop.f32.mrf.mxu0
        %v9086 = vadd.f32 %v8997, %v9085
        %v9087 = vpop.f32.mrf.mxu0
        %v9088 = vadd.f32 %v8999, %v9087
        %9089 = vmatmul.bf16.gmra.mxu0 %v8090
        %v9090 = vpop.f32.mrf.mxu0
        %v9091 = vadd.f32 %v9002, %v9090
        %v9092 = vpop.f32.mrf.mxu0
        %v9093 = vadd.f32 %v9004, %v9092
        %9094 = vmatmul.bf16.gmra.mxu0 %v8094
        %v9095 = vpop.f32.mrf.mxu0
        %v9096 = vadd.f32 %v9007, %v9095
        %v9097 = vpop.f32.mrf.mxu0
        %v9098 = vadd.f32 %v9009, %v9097
        %9099 = vmatmul.bf16.gmra.mxu0 %v8098
        %v9100 = vpop.f32.mrf.mxu0
        %v9101 = vadd.f32 %v9012, %v9100
        %v9102 = vpop.f32.mrf.mxu0
        %v9103 = vadd.f32 %v9014, %v9102
        %9104 = vmatmul.bf16.gmra.mxu0 %v8102
        %v9105 = vpop.f32.mrf.mxu0
        %v9106 = vadd.f32 %v9017, %v9105
        %v9107 = vpop.f32.mrf.mxu0
        %v9108 = vadd.f32 %v9019, %v9107
        %9109 = vmatmul.bf16.gmra.mxu0 %v8106
        %v9110 = vpop.f32.mrf.mxu0
        %v9111 = vadd.f32 %v9022, %v9110
        %v9112 = vpop.f32.mrf.mxu0
        %v9113 = vadd.f32 %v9024, %v9112
        %9114 = vdwg.mxu0
        %9115 = vmatpush.bf16.xpose.msra.mxu0 %v8427
        %9116 = vmatpush.bf16.xpose.msra.mxu0 %v8423
        %9117 = vmatpush.bf16.xpose.msra.mxu0 %v8419
        %9118 = vmatpush.bf16.xpose.msra.mxu0 %v8415
        %9119 = vmatpush.bf16.xpose.msra.mxu0 %v8411
        %9120 = vmatpush.bf16.xpose.msra.mxu0 %v8407
        %9121 = vmatpush.bf16.xpose.msra.mxu0 %v8403
        %9122 = vmatpush.bf16.xpose.msra.mxu0 %v8399
        %9123 = vmatmul.bf16.gmra.mxu0 %v8047
        %v9124 = vpop.f32.mrf.mxu0
        %v9125 = vadd.f32 %v9036, %v9124
        %v9126 = vpop.f32.mrf.mxu0
        %v9127 = vadd.f32 %v9038, %v9126
        %9128 = vmatmul.bf16.gmra.mxu0 %v8051
        %v9129 = vpop.f32.mrf.mxu0
        %v9130 = vadd.f32 %v9041, %v9129
        %v9131 = vpop.f32.mrf.mxu0
        %v9132 = vadd.f32 %v9043, %v9131
        %9133 = vmatmul.bf16.gmra.mxu0 %v8055
        %v9134 = vpop.f32.mrf.mxu0
        %v9135 = vadd.f32 %v9046, %v9134
        %v9136 = vpop.f32.mrf.mxu0
        %v9137 = vadd.f32 %v9048, %v9136
        %9138 = vmatmul.bf16.gmra.mxu0 %v8059
        %v9139 = vpop.f32.mrf.mxu0
        %v9140 = vadd.f32 %v9051, %v9139
        %v9141 = vpop.f32.mrf.mxu0
        %v9142 = vadd.f32 %v9053, %v9141
        %9143 = vmatmul.bf16.gmra.mxu0 %v8063
        %v9144 = vpop.f32.mrf.mxu0
        %v9145 = vadd.f32 %v9056, %v9144
        %v9146 = vpop.f32.mrf.mxu0
        %v9147 = vadd.f32 %v9058, %v9146
        %9148 = vmatmul.bf16.gmra.mxu0 %v8067
        %v9149 = vpop.f32.mrf.mxu0
        %v9150 = vadd.f32 %v9061, %v9149
        %v9151 = vpop.f32.mrf.mxu0
        %v9152 = vadd.f32 %v9063, %v9151
        %9153 = vmatmul.bf16.gmra.mxu0 %v8071
        %v9154 = vpop.f32.mrf.mxu0
        %v9155 = vadd.f32 %v9066, %v9154
        %v9156 = vpop.f32.mrf.mxu0
        %v9157 = vadd.f32 %v9068, %v9156
        %9158 = vmatmul.bf16.gmra.mxu0 %v8075
        %v9159 = vpop.f32.mrf.mxu0
        %v9160 = vadd.f32 %v9071, %v9159
        %v9161 = vpop.f32.mrf.mxu0
        %v9162 = vadd.f32 %v9073, %v9161
        %9163 = vmatmul.bf16.gmra.mxu0 %v8079
        %v9164 = vpop.f32.mrf.mxu0
        %v9165 = vadd.f32 %v9076, %v9164
        %v9166 = vpop.f32.mrf.mxu0
        %v9167 = vadd.f32 %v9078, %v9166
        %9168 = vmatmul.bf16.gmra.mxu0 %v8083
        %v9169 = vpop.f32.mrf.mxu0
        %v9170 = vadd.f32 %v9081, %v9169
        %v9171 = vpop.f32.mrf.mxu0
        %v9172 = vadd.f32 %v9083, %v9171
        %9173 = vmatmul.bf16.gmra.mxu0 %v8087
        %v9174 = vpop.f32.mrf.mxu0
        %v9175 = vadd.f32 %v9086, %v9174
        %v9176 = vpop.f32.mrf.mxu0
        %v9177 = vadd.f32 %v9088, %v9176
        %9178 = vmatmul.bf16.gmra.mxu0 %v8091
        %v9179 = vpop.f32.mrf.mxu0
        %v9180 = vadd.f32 %v9091, %v9179
        %v9181 = vpop.f32.mrf.mxu0
        %v9182 = vadd.f32 %v9093, %v9181
        %9183 = vmatmul.bf16.gmra.mxu0 %v8095
        %v9184 = vpop.f32.mrf.mxu0
        %v9185 = vadd.f32 %v9096, %v9184
        %v9186 = vpop.f32.mrf.mxu0
        %v9187 = vadd.f32 %v9098, %v9186
        %9188 = vmatmul.bf16.gmra.mxu0 %v8099
        %v9189 = vpop.f32.mrf.mxu0
        %v9190 = vadd.f32 %v9101, %v9189
        %v9191 = vpop.f32.mrf.mxu0
        %v9192 = vadd.f32 %v9103, %v9191
        %9193 = vmatmul.bf16.gmra.mxu0 %v8103
        %v9194 = vpop.f32.mrf.mxu0
        %v9195 = vadd.f32 %v9106, %v9194
        %v9196 = vpop.f32.mrf.mxu0
        %v9197 = vadd.f32 %v9108, %v9196
        %9198 = vmatmul.bf16.gmra.mxu0 %v8107
        %v9199 = vpop.f32.mrf.mxu0
        %v9200 = vadd.f32 %v9111, %v9199
        %v9201 = vpop.f32.mrf.mxu0
        %v9202 = vadd.f32 %v9113, %v9201
        %9203 = vdwg.mxu0
        %v9204 = vmax.f32 %v8769, %v9125
        %9205 = vmax.xlane.f32.xlu0 %v9204
        %v9206 = vpop.xlane.xlu0 %9205
        %v9207 = vmax.f32 %v8771, %v9127
        %9208 = vmax.xlane.f32.xlu0 %v9207
        %v9209 = vpop.xlane.xlu0 %9208
        %v9210 = vmax.f32 %v8774, %v9130
        %9211 = vmax.xlane.f32.xlu0 %v9210
        %v9212 = vpop.xlane.xlu0 %9211
        %v9213 = vmax.f32 %v8776, %v9132
        %9214 = vmax.xlane.f32.xlu0 %v9213
        %v9215 = vpop.xlane.xlu0 %9214
        %v9216 = vmax.f32 %v8779, %v9135
        %9217 = vmax.xlane.f32.xlu0 %v9216
        %v9218 = vpop.xlane.xlu0 %9217
        %v9219 = vmax.f32 %v8781, %v9137
        %9220 = vmax.xlane.f32.xlu0 %v9219
        %v9221 = vpop.xlane.xlu0 %9220
        %v9222 = vmax.f32 %v8784, %v9140
        %9223 = vmax.xlane.f32.xlu0 %v9222
        %v9224 = vpop.xlane.xlu0 %9223
        %v9225 = vmax.f32 %v8786, %v9142
        %9226 = vmax.xlane.f32.xlu0 %v9225
        %v9227 = vpop.xlane.xlu0 %9226
        %v9228 = vmax.f32 %v8789, %v9145
        %9229 = vmax.xlane.f32.xlu0 %v9228
        %v9230 = vpop.xlane.xlu0 %9229
        %v9231 = vmax.f32 %v8791, %v9147
        %9232 = vmax.xlane.f32.xlu0 %v9231
        %v9233 = vpop.xlane.xlu0 %9232
        %v9234 = vmax.f32 %v8794, %v9150
        %9235 = vmax.xlane.f32.xlu0 %v9234
        %v9236 = vpop.xlane.xlu0 %9235
        %v9237 = vmax.f32 %v8796, %v9152
        %9238 = vmax.xlane.f32.xlu0 %v9237
        %v9239 = vpop.xlane.xlu0 %9238
        %v9240 = vmax.f32 %v8799, %v9155
        %9241 = vmax.xlane.f32.xlu0 %v9240
        %v9242 = vpop.xlane.xlu0 %9241
        %v9243 = vmax.f32 %v8801, %v9157
        %9244 = vmax.xlane.f32.xlu0 %v9243
        %v9245 = vpop.xlane.xlu0 %9244
        %v9246 = vmax.f32 %v8804, %v9160
        %9247 = vmax.xlane.f32.xlu0 %v9246
        %v9248 = vpop.xlane.xlu0 %9247
        %v9249 = vmax.f32 %v8806, %v9162
        %9250 = vmax.xlane.f32.xlu0 %v9249
        %v9251 = vpop.xlane.xlu0 %9250
        %v9252 = vmax.f32 %v8809, %v9165
        %9253 = vmax.xlane.f32.xlu0 %v9252
        %v9254 = vpop.xlane.xlu0 %9253
        %v9255 = vmax.f32 %v8811, %v9167
        %9256 = vmax.xlane.f32.xlu0 %v9255
        %v9257 = vpop.xlane.xlu0 %9256
        %v9258 = vmax.f32 %v8814, %v9170
        %9259 = vmax.xlane.f32.xlu0 %v9258
        %v9260 = vpop.xlane.xlu0 %9259
        %v9261 = vmax.f32 %v8816, %v9172
        %9262 = vmax.xlane.f32.xlu0 %v9261
        %v9263 = vpop.xlane.xlu0 %9262
        %v9264 = vmax.f32 %v8819, %v9175
        %9265 = vmax.xlane.f32.xlu0 %v9264
        %v9266 = vpop.xlane.xlu0 %9265
        %v9267 = vmax.f32 %v8821, %v9177
        %9268 = vmax.xlane.f32.xlu0 %v9267
        %v9269 = vpop.xlane.xlu0 %9268
        %v9270 = vmax.f32 %v8824, %v9180
        %9271 = vmax.xlane.f32.xlu0 %v9270
        %v9272 = vpop.xlane.xlu0 %9271
        %v9273 = vmax.f32 %v8826, %v9182
        %9274 = vmax.xlane.f32.xlu0 %v9273
        %v9275 = vpop.xlane.xlu0 %9274
        %v9276 = vmax.f32 %v8829, %v9185
        %9277 = vmax.xlane.f32.xlu0 %v9276
        %v9278 = vpop.xlane.xlu0 %9277
        %v9279 = vmax.f32 %v8831, %v9187
        %9280 = vmax.xlane.f32.xlu0 %v9279
        %v9281 = vpop.xlane.xlu0 %9280
        %v9282 = vmax.f32 %v8834, %v9190
        %9283 = vmax.xlane.f32.xlu0 %v9282
        %v9284 = vpop.xlane.xlu0 %9283
        %v9285 = vmax.f32 %v8836, %v9192
        %9286 = vmax.xlane.f32.xlu0 %v9285
        %v9287 = vpop.xlane.xlu0 %9286
        %v9288 = vmax.f32 %v8839, %v9195
        %9289 = vmax.xlane.f32.xlu0 %v9288
        %v9290 = vpop.xlane.xlu0 %9289
        %v9291 = vmax.f32 %v8841, %v9197
        %9292 = vmax.xlane.f32.xlu0 %v9291
        %v9293 = vpop.xlane.xlu0 %9292
        %v9294 = vmax.f32 %v8844, %v9200
        %9295 = vmax.xlane.f32.xlu0 %v9294
        %v9296 = vpop.xlane.xlu0 %9295
        %v9297 = vmax.f32 %v8846, %v9202
        %9298 = vmax.xlane.f32.xlu0 %v9297
        %v9299 = vpop.xlane.xlu0 %9298
        %v9300 = vsub.f32 %v8769, %v9206
        %v9301 = vsub.f32 %v9125, %v9206
        %v9302 = vsub.f32 %v8771, %v9209
        %v9303 = vsub.f32 %v9127, %v9209
        %v9304 = vsub.f32 %v8774, %v9212
        %v9305 = vsub.f32 %v9130, %v9212
        %v9306 = vsub.f32 %v8776, %v9215
        %v9307 = vsub.f32 %v9132, %v9215
        %v9308 = vsub.f32 %v8779, %v9218
        %v9309 = vsub.f32 %v9135, %v9218
        %v9310 = vsub.f32 %v8781, %v9221
        %v9311 = vsub.f32 %v9137, %v9221
        %v9312 = vsub.f32 %v8784, %v9224
        %v9313 = vsub.f32 %v9140, %v9224
        %v9314 = vsub.f32 %v8786, %v9227
        %v9315 = vsub.f32 %v9142, %v9227
        %v9316 = vsub.f32 %v8789, %v9230
        %v9317 = vsub.f32 %v9145, %v9230
        %v9318 = vsub.f32 %v8791, %v9233
        %v9319 = vsub.f32 %v9147, %v9233
        %v9320 = vsub.f32 %v8794, %v9236
        %v9321 = vsub.f32 %v9150, %v9236
        %v9322 = vsub.f32 %v8796, %v9239
        %v9323 = vsub.f32 %v9152, %v9239
        %v9324 = vsub.f32 %v8799, %v9242
        %v9325 = vsub.f32 %v9155, %v9242
        %v9326 = vsub.f32 %v8801, %v9245
        %v9327 = vsub.f32 %v9157, %v9245
        %v9328 = vsub.f32 %v8804, %v9248
        %v9329 = vsub.f32 %v9160, %v9248
        %v9330 = vsub.f32 %v8806, %v9251
        %v9331 = vsub.f32 %v9162, %v9251
        %v9332 = vsub.f32 %v8809, %v9254
        %v9333 = vsub.f32 %v9165, %v9254
        %v9334 = vsub.f32 %v8811, %v9257
        %v9335 = vsub.f32 %v9167, %v9257
        %v9336 = vsub.f32 %v8814, %v9260
        %v9337 = vsub.f32 %v9170, %v9260
        %v9338 = vsub.f32 %v8816, %v9263
        %v9339 = vsub.f32 %v9172, %v9263
        %v9340 = vsub.f32 %v8819, %v9266
        %v9341 = vsub.f32 %v9175, %v9266
        %v9342 = vsub.f32 %v8821, %v9269
        %v9343 = vsub.f32 %v9177, %v9269
        %v9344 = vsub.f32 %v8824, %v9272
        %v9345 = vsub.f32 %v9180, %v9272
        %v9346 = vsub.f32 %v8826, %v9275
        %v9347 = vsub.f32 %v9182, %v9275
        %v9348 = vsub.f32 %v8829, %v9278
        %v9349 = vsub.f32 %v9185, %v9278
        %v9350 = vsub.f32 %v8831, %v9281
        %v9351 = vsub.f32 %v9187, %v9281
        %v9352 = vsub.f32 %v8834, %v9284
        %v9353 = vsub.f32 %v9190, %v9284
        %v9354 = vsub.f32 %v8836, %v9287
        %v9355 = vsub.f32 %v9192, %v9287
        %v9356 = vsub.f32 %v8839, %v9290
        %v9357 = vsub.f32 %v9195, %v9290
        %v9358 = vsub.f32 %v8841, %v9293
        %v9359 = vsub.f32 %v9197, %v9293
        %v9360 = vsub.f32 %v8844, %v9296
        %v9361 = vsub.f32 %v9200, %v9296
        %v9362 = vsub.f32 %v8846, %v9299
        %v9363 = vsub.f32 %v9202, %v9299
        %v9364 = vmul.f32 %v9300, 1.442695
        %v9365 = vpow.pop %v9364
        %v9366 = vmul.f32 %v9301, 1.442695
        %v9367 = vpow.pop %v9366
        %v9368 = vmul.f32 %v9302, 1.442695
        %v9369 = vpow.pop %v9368
        %v9370 = vmul.f32 %v9303, 1.442695
        %v9371 = vpow.pop %v9370
        %v9372 = vmul.f32 %v9304, 1.442695
        %v9373 = vpow.pop %v9372
        %v9374 = vmul.f32 %v9305, 1.442695
        %v9375 = vpow.pop %v9374
        %v9376 = vmul.f32 %v9306, 1.442695
        %v9377 = vpow.pop %v9376
        %v9378 = vmul.f32 %v9307, 1.442695
        %v9379 = vpow.pop %v9378
        %v9380 = vmul.f32 %v9308, 1.442695
        %v9381 = vpow.pop %v9380
        %v9382 = vmul.f32 %v9309, 1.442695
        %v9383 = vpow.pop %v9382
        %v9384 = vmul.f32 %v9310, 1.442695
        %v9385 = vpow.pop %v9384
        %v9386 = vmul.f32 %v9311, 1.442695
        %v9387 = vpow.pop %v9386
        %v9388 = vmul.f32 %v9312, 1.442695
        %v9389 = vpow.pop %v9388
        %v9390 = vmul.f32 %v9313, 1.442695
        %v9391 = vpow.pop %v9390
        %v9392 = vmul.f32 %v9314, 1.442695
        %v9393 = vpow.pop %v9392
        %v9394 = vmul.f32 %v9315, 1.442695
        %v9395 = vpow.pop %v9394
        %v9396 = vmul.f32 %v9316, 1.442695
        %v9397 = vpow.pop %v9396
        %v9398 = vmul.f32 %v9317, 1.442695
        %v9399 = vpow.pop %v9398
        %v9400 = vmul.f32 %v9318, 1.442695
        %v9401 = vpow.pop %v9400
        %v9402 = vmul.f32 %v9319, 1.442695
        %v9403 = vpow.pop %v9402
        %v9404 = vmul.f32 %v9320, 1.442695
        %v9405 = vpow.pop %v9404
        %v9406 = vmul.f32 %v9321, 1.442695
        %v9407 = vpow.pop %v9406
        %v9408 = vmul.f32 %v9322, 1.442695
        %v9409 = vpow.pop %v9408
        %v9410 = vmul.f32 %v9323, 1.442695
        %v9411 = vpow.pop %v9410
        %v9412 = vmul.f32 %v9324, 1.442695
        %v9413 = vpow.pop %v9412
        %v9414 = vmul.f32 %v9325, 1.442695
        %v9415 = vpow.pop %v9414
        %v9416 = vmul.f32 %v9326, 1.442695
        %v9417 = vpow.pop %v9416
        %v9418 = vmul.f32 %v9327, 1.442695
        %v9419 = vpow.pop %v9418
        %v9420 = vmul.f32 %v9328, 1.442695
        %v9421 = vpow.pop %v9420
        %v9422 = vmul.f32 %v9329, 1.442695
        %v9423 = vpow.pop %v9422
        %v9424 = vmul.f32 %v9330, 1.442695
        %v9425 = vpow.pop %v9424
        %v9426 = vmul.f32 %v9331, 1.442695
        %v9427 = vpow.pop %v9426
        %v9428 = vmul.f32 %v9332, 1.442695
        %v9429 = vpow.pop %v9428
        %v9430 = vmul.f32 %v9333, 1.442695
        %v9431 = vpow.pop %v9430
        %v9432 = vmul.f32 %v9334, 1.442695
        %v9433 = vpow.pop %v9432
        %v9434 = vmul.f32 %v9335, 1.442695
        %v9435 = vpow.pop %v9434
        %v9436 = vmul.f32 %v9336, 1.442695
        %v9437 = vpow.pop %v9436
        %v9438 = vmul.f32 %v9337, 1.442695
        %v9439 = vpow.pop %v9438
        %v9440 = vmul.f32 %v9338, 1.442695
        %v9441 = vpow.pop %v9440
        %v9442 = vmul.f32 %v9339, 1.442695
        %v9443 = vpow.pop %v9442
        %v9444 = vmul.f32 %v9340, 1.442695
        %v9445 = vpow.pop %v9444
        %v9446 = vmul.f32 %v9341, 1.442695
        %v9447 = vpow.pop %v9446
        %v9448 = vmul.f32 %v9342, 1.442695
        %v9449 = vpow.pop %v9448
        %v9450 = vmul.f32 %v9343, 1.442695
        %v9451 = vpow.pop %v9450
        %v9452 = vmul.f32 %v9344, 1.442695
        %v9453 = vpow.pop %v9452
        %v9454 = vmul.f32 %v9345, 1.442695
        %v9455 = vpow.pop %v9454
        %v9456 = vmul.f32 %v9346, 1.442695
        %v9457 = vpow.pop %v9456
        %v9458 = vmul.f32 %v9347, 1.442695
        %v9459 = vpow.pop %v9458
        %v9460 = vmul.f32 %v9348, 1.442695
        %v9461 = vpow.pop %v9460
        %v9462 = vmul.f32 %v9349, 1.442695
        %v9463 = vpow.pop %v9462
        %v9464 = vmul.f32 %v9350, 1.442695
        %v9465 = vpow.pop %v9464
        %v9466 = vmul.f32 %v9351, 1.442695
        %v9467 = vpow.pop %v9466
        %v9468 = vmul.f32 %v9352, 1.442695
        %v9469 = vpow.pop %v9468
        %v9470 = vmul.f32 %v9353, 1.442695
        %v9471 = vpow.pop %v9470
        %v9472 = vmul.f32 %v9354, 1.442695
        %v9473 = vpow.pop %v9472
        %v9474 = vmul.f32 %v9355, 1.442695
        %v9475 = vpow.pop %v9474
        %v9476 = vmul.f32 %v9356, 1.442695
        %v9477 = vpow.pop %v9476
        %v9478 = vmul.f32 %v9357, 1.442695
        %v9479 = vpow.pop %v9478
        %v9480 = vmul.f32 %v9358, 1.442695
        %v9481 = vpow.pop %v9480
        %v9482 = vmul.f32 %v9359, 1.442695
        %v9483 = vpow.pop %v9482
        %v9484 = vmul.f32 %v9360, 1.442695
        %v9485 = vpow.pop %v9484
        %v9486 = vmul.f32 %v9361, 1.442695
        %v9487 = vpow.pop %v9486
        %v9488 = vmul.f32 %v9362, 1.442695
        %v9489 = vpow.pop %v9488
        %v9490 = vmul.f32 %v9363, 1.442695
        %v9491 = vpow.pop %v9490
        %v9492 = vadd.f32 %v9365, %v9367
        %9493 = vadd.xlane.f32.xlu0 %v9492
        %v9494 = vpop.xlane.xlu0 %9493
        %v9495 = vadd.f32 %v9369, %v9371
        %9496 = vadd.xlane.f32.xlu0 %v9495
        %v9497 = vpop.xlane.xlu0 %9496
        %v9498 = vadd.f32 %v9373, %v9375
        %9499 = vadd.xlane.f32.xlu0 %v9498
        %v9500 = vpop.xlane.xlu0 %9499
        %v9501 = vadd.f32 %v9377, %v9379
        %9502 = vadd.xlane.f32.xlu0 %v9501
        %v9503 = vpop.xlane.xlu0 %9502
        %v9504 = vadd.f32 %v9381, %v9383
        %9505 = vadd.xlane.f32.xlu0 %v9504
        %v9506 = vpop.xlane.xlu0 %9505
        %v9507 = vadd.f32 %v9385, %v9387
        %9508 = vadd.xlane.f32.xlu0 %v9507
        %v9509 = vpop.xlane.xlu0 %9508
        %v9510 = vadd.f32 %v9389, %v9391
        %9511 = vadd.xlane.f32.xlu0 %v9510
        %v9512 = vpop.xlane.xlu0 %9511
        %v9513 = vadd.f32 %v9393, %v9395
        %9514 = vadd.xlane.f32.xlu0 %v9513
        %v9515 = vpop.xlane.xlu0 %9514
        %v9516 = vadd.f32 %v9397, %v9399
        %9517 = vadd.xlane.f32.xlu0 %v9516
        %v9518 = vpop.xlane.xlu0 %9517
        %v9519 = vadd.f32 %v9401, %v9403
        %9520 = vadd.xlane.f32.xlu0 %v9519
        %v9521 = vpop.xlane.xlu0 %9520
        %v9522 = vadd.f32 %v9405, %v9407
        %9523 = vadd.xlane.f32.xlu0 %v9522
        %v9524 = vpop.xlane.xlu0 %9523
        %v9525 = vadd.f32 %v9409, %v9411
        %9526 = vadd.xlane.f32.xlu0 %v9525
        %v9527 = vpop.xlane.xlu0 %9526
        %v9528 = vadd.f32 %v9413, %v9415
        %9529 = vadd.xlane.f32.xlu0 %v9528
        %v9530 = vpop.xlane.xlu0 %9529
        %v9531 = vadd.f32 %v9417, %v9419
        %9532 = vadd.xlane.f32.xlu0 %v9531
        %v9533 = vpop.xlane.xlu0 %9532
        %v9534 = vadd.f32 %v9421, %v9423
        %9535 = vadd.xlane.f32.xlu0 %v9534
        %v9536 = vpop.xlane.xlu0 %9535
        %v9537 = vadd.f32 %v9425, %v9427
        %9538 = vadd.xlane.f32.xlu0 %v9537
        %v9539 = vpop.xlane.xlu0 %9538
        %v9540 = vadd.f32 %v9429, %v9431
        %9541 = vadd.xlane.f32.xlu0 %v9540
        %v9542 = vpop.xlane.xlu0 %9541
        %v9543 = vadd.f32 %v9433, %v9435
        %9544 = vadd.xlane.f32.xlu0 %v9543
        %v9545 = vpop.xlane.xlu0 %9544
        %v9546 = vadd.f32 %v9437, %v9439
        %9547 = vadd.xlane.f32.xlu0 %v9546
        %v9548 = vpop.xlane.xlu0 %9547
        %v9549 = vadd.f32 %v9441, %v9443
        %9550 = vadd.xlane.f32.xlu0 %v9549
        %v9551 = vpop.xlane.xlu0 %9550
        %v9552 = vadd.f32 %v9445, %v9447
        %9553 = vadd.xlane.f32.xlu0 %v9552
        %v9554 = vpop.xlane.xlu0 %9553
        %v9555 = vadd.f32 %v9449, %v9451
        %9556 = vadd.xlane.f32.xlu0 %v9555
        %v9557 = vpop.xlane.xlu0 %9556
        %v9558 = vadd.f32 %v9453, %v9455
        %9559 = vadd.xlane.f32.xlu0 %v9558
        %v9560 = vpop.xlane.xlu0 %9559
        %v9561 = vadd.f32 %v9457, %v9459
        %9562 = vadd.xlane.f32.xlu0 %v9561
        %v9563 = vpop.xlane.xlu0 %9562
        %v9564 = vadd.f32 %v9461, %v9463
        %9565 = vadd.xlane.f32.xlu0 %v9564
        %v9566 = vpop.xlane.xlu0 %9565
        %v9567 = vadd.f32 %v9465, %v9467
        %9568 = vadd.xlane.f32.xlu0 %v9567
        %v9569 = vpop.xlane.xlu0 %9568
        %v9570 = vadd.f32 %v9469, %v9471
        %9571 = vadd.xlane.f32.xlu0 %v9570
        %v9572 = vpop.xlane.xlu0 %9571
        %v9573 = vadd.f32 %v9473, %v9475
        %9574 = vadd.xlane.f32.xlu0 %v9573
        %v9575 = vpop.xlane.xlu0 %9574
        %v9576 = vadd.f32 %v9477, %v9479
        %9577 = vadd.xlane.f32.xlu0 %v9576
        %v9578 = vpop.xlane.xlu0 %9577
        %v9579 = vadd.f32 %v9481, %v9483
        %9580 = vadd.xlane.f32.xlu0 %v9579
        %v9581 = vpop.xlane.xlu0 %9580
        %v9582 = vadd.f32 %v9485, %v9487
        %9583 = vadd.xlane.f32.xlu0 %v9582
        %v9584 = vpop.xlane.xlu0 %9583
        %v9585 = vadd.f32 %v9489, %v9491
        %9586 = vadd.xlane.f32.xlu0 %v9585
        %v9587 = vpop.xlane.xlu0 %9586
        %v9588 = vrcp.pop %v9494
        %v9589 = vmul.f32 %v9494, %v9588
        %v9590 = vsub.f32 1.0, %v9589
        %v9591 = vmul.f32 %v9588, %v9590
        %v9592 = vadd.f32 %v9588, %v9591
        %vm9593 = vweird.f32 %v9494
        %vm9594 = vweird.f32 %v9588
        %vm9595 = vmor %vm9593, %vm9594
        %v9596 = vsel %vm9595, %v9588, %v9592
        %v9597 = vand.u32 2147483647, %v9494
        %vm9598 = vcmp.eq.f32.partialorder %v9597, 8.507059e+37
        %v9599 = vand.u32 %v9494, 2147483648
        %v9600 = vor.u32 1.1754944e-38, %v9599
        %v9601 = vsel %vm9598, %v9600, %v9596
        %v9602 = vrcp.pop %v9497
        %v9603 = vmul.f32 %v9497, %v9602
        %v9604 = vsub.f32 1.0, %v9603
        %v9605 = vmul.f32 %v9602, %v9604
        %v9606 = vadd.f32 %v9602, %v9605
        %vm9607 = vweird.f32 %v9497
        %vm9608 = vweird.f32 %v9602
        %vm9609 = vmor %vm9607, %vm9608
        %v9610 = vsel %vm9609, %v9602, %v9606
        %v9611 = vand.u32 2147483647, %v9497
        %vm9612 = vcmp.eq.f32.partialorder %v9611, 8.507059e+37
        %v9613 = vand.u32 %v9497, 2147483648
        %v9614 = vor.u32 1.1754944e-38, %v9613
        %v9615 = vsel %vm9612, %v9614, %v9610
        %v9616 = vrcp.pop %v9500
        %v9617 = vmul.f32 %v9500, %v9616
        %v9618 = vsub.f32 1.0, %v9617
        %v9619 = vmul.f32 %v9616, %v9618
        %v9620 = vadd.f32 %v9616, %v9619
        %vm9621 = vweird.f32 %v9500
        %vm9622 = vweird.f32 %v9616
        %vm9623 = vmor %vm9621, %vm9622
        %v9624 = vsel %vm9623, %v9616, %v9620
        %v9625 = vand.u32 2147483647, %v9500
        %vm9626 = vcmp.eq.f32.partialorder %v9625, 8.507059e+37
        %v9627 = vand.u32 %v9500, 2147483648
        %v9628 = vor.u32 1.1754944e-38, %v9627
        %v9629 = vsel %vm9626, %v9628, %v9624
        %v9630 = vrcp.pop %v9503
        %v9631 = vmul.f32 %v9503, %v9630
        %v9632 = vsub.f32 1.0, %v9631
        %v9633 = vmul.f32 %v9630, %v9632
        %v9634 = vadd.f32 %v9630, %v9633
        %vm9635 = vweird.f32 %v9503
        %vm9636 = vweird.f32 %v9630
        %vm9637 = vmor %vm9635, %vm9636
        %v9638 = vsel %vm9637, %v9630, %v9634
        %v9639 = vand.u32 2147483647, %v9503
        %vm9640 = vcmp.eq.f32.partialorder %v9639, 8.507059e+37
        %v9641 = vand.u32 %v9503, 2147483648
        %v9642 = vor.u32 1.1754944e-38, %v9641
        %v9643 = vsel %vm9640, %v9642, %v9638
        %v9644 = vrcp.pop %v9506
        %v9645 = vmul.f32 %v9506, %v9644
        %v9646 = vsub.f32 1.0, %v9645
        %v9647 = vmul.f32 %v9644, %v9646
        %v9648 = vadd.f32 %v9644, %v9647
        %vm9649 = vweird.f32 %v9506
        %vm9650 = vweird.f32 %v9644
        %vm9651 = vmor %vm9649, %vm9650
        %v9652 = vsel %vm9651, %v9644, %v9648
        %v9653 = vand.u32 2147483647, %v9506
        %vm9654 = vcmp.eq.f32.partialorder %v9653, 8.507059e+37
        %v9655 = vand.u32 %v9506, 2147483648
        %v9656 = vor.u32 1.1754944e-38, %v9655
        %v9657 = vsel %vm9654, %v9656, %v9652
        %v9658 = vrcp.pop %v9509
        %v9659 = vmul.f32 %v9509, %v9658
        %v9660 = vsub.f32 1.0, %v9659
        %v9661 = vmul.f32 %v9658, %v9660
        %v9662 = vadd.f32 %v9658, %v9661
        %vm9663 = vweird.f32 %v9509
        %vm9664 = vweird.f32 %v9658
        %vm9665 = vmor %vm9663, %vm9664
        %v9666 = vsel %vm9665, %v9658, %v9662
        %v9667 = vand.u32 2147483647, %v9509
        %vm9668 = vcmp.eq.f32.partialorder %v9667, 8.507059e+37
        %v9669 = vand.u32 %v9509, 2147483648
        %v9670 = vor.u32 1.1754944e-38, %v9669
        %v9671 = vsel %vm9668, %v9670, %v9666
        %v9672 = vrcp.pop %v9512
        %v9673 = vmul.f32 %v9512, %v9672
        %v9674 = vsub.f32 1.0, %v9673
        %v9675 = vmul.f32 %v9672, %v9674
        %v9676 = vadd.f32 %v9672, %v9675
        %vm9677 = vweird.f32 %v9512
        %vm9678 = vweird.f32 %v9672
        %vm9679 = vmor %vm9677, %vm9678
        %v9680 = vsel %vm9679, %v9672, %v9676
        %v9681 = vand.u32 2147483647, %v9512
        %vm9682 = vcmp.eq.f32.partialorder %v9681, 8.507059e+37
        %v9683 = vand.u32 %v9512, 2147483648
        %v9684 = vor.u32 1.1754944e-38, %v9683
        %v9685 = vsel %vm9682, %v9684, %v9680
        %v9686 = vrcp.pop %v9515
        %v9687 = vmul.f32 %v9515, %v9686
        %v9688 = vsub.f32 1.0, %v9687
        %v9689 = vmul.f32 %v9686, %v9688
        %v9690 = vadd.f32 %v9686, %v9689
        %vm9691 = vweird.f32 %v9515
        %vm9692 = vweird.f32 %v9686
        %vm9693 = vmor %vm9691, %vm9692
        %v9694 = vsel %vm9693, %v9686, %v9690
        %v9695 = vand.u32 2147483647, %v9515
        %vm9696 = vcmp.eq.f32.partialorder %v9695, 8.507059e+37
        %v9697 = vand.u32 %v9515, 2147483648
        %v9698 = vor.u32 1.1754944e-38, %v9697
        %v9699 = vsel %vm9696, %v9698, %v9694
        %v9700 = vrcp.pop %v9518
        %v9701 = vmul.f32 %v9518, %v9700
        %v9702 = vsub.f32 1.0, %v9701
        %v9703 = vmul.f32 %v9700, %v9702
        %v9704 = vadd.f32 %v9700, %v9703
        %vm9705 = vweird.f32 %v9518
        %vm9706 = vweird.f32 %v9700
        %vm9707 = vmor %vm9705, %vm9706
        %v9708 = vsel %vm9707, %v9700, %v9704
        %v9709 = vand.u32 2147483647, %v9518
        %vm9710 = vcmp.eq.f32.partialorder %v9709, 8.507059e+37
        %v9711 = vand.u32 %v9518, 2147483648
        %v9712 = vor.u32 1.1754944e-38, %v9711
        %v9713 = vsel %vm9710, %v9712, %v9708
        %v9714 = vrcp.pop %v9521
        %v9715 = vmul.f32 %v9521, %v9714
        %v9716 = vsub.f32 1.0, %v9715
        %v9717 = vmul.f32 %v9714, %v9716
        %v9718 = vadd.f32 %v9714, %v9717
        %vm9719 = vweird.f32 %v9521
        %vm9720 = vweird.f32 %v9714
        %vm9721 = vmor %vm9719, %vm9720
        %v9722 = vsel %vm9721, %v9714, %v9718
        %v9723 = vand.u32 2147483647, %v9521
        %vm9724 = vcmp.eq.f32.partialorder %v9723, 8.507059e+37
        %v9725 = vand.u32 %v9521, 2147483648
        %v9726 = vor.u32 1.1754944e-38, %v9725
        %v9727 = vsel %vm9724, %v9726, %v9722
        %v9728 = vrcp.pop %v9524
        %v9729 = vmul.f32 %v9524, %v9728
        %v9730 = vsub.f32 1.0, %v9729
        %v9731 = vmul.f32 %v9728, %v9730
        %v9732 = vadd.f32 %v9728, %v9731
        %vm9733 = vweird.f32 %v9524
        %vm9734 = vweird.f32 %v9728
        %vm9735 = vmor %vm9733, %vm9734
        %v9736 = vsel %vm9735, %v9728, %v9732
        %v9737 = vand.u32 2147483647, %v9524
        %vm9738 = vcmp.eq.f32.partialorder %v9737, 8.507059e+37
        %v9739 = vand.u32 %v9524, 2147483648
        %v9740 = vor.u32 1.1754944e-38, %v9739
        %v9741 = vsel %vm9738, %v9740, %v9736
        %v9742 = vrcp.pop %v9527
        %v9743 = vmul.f32 %v9527, %v9742
        %v9744 = vsub.f32 1.0, %v9743
        %v9745 = vmul.f32 %v9742, %v9744
        %v9746 = vadd.f32 %v9742, %v9745
        %vm9747 = vweird.f32 %v9527
        %vm9748 = vweird.f32 %v9742
        %vm9749 = vmor %vm9747, %vm9748
        %v9750 = vsel %vm9749, %v9742, %v9746
        %v9751 = vand.u32 2147483647, %v9527
        %vm9752 = vcmp.eq.f32.partialorder %v9751, 8.507059e+37
        %v9753 = vand.u32 %v9527, 2147483648
        %v9754 = vor.u32 1.1754944e-38, %v9753
        %v9755 = vsel %vm9752, %v9754, %v9750
        %v9756 = vrcp.pop %v9530
        %v9757 = vmul.f32 %v9530, %v9756
        %v9758 = vsub.f32 1.0, %v9757
        %v9759 = vmul.f32 %v9756, %v9758
        %v9760 = vadd.f32 %v9756, %v9759
        %vm9761 = vweird.f32 %v9530
        %vm9762 = vweird.f32 %v9756
        %vm9763 = vmor %vm9761, %vm9762
        %v9764 = vsel %vm9763, %v9756, %v9760
        %v9765 = vand.u32 2147483647, %v9530
        %vm9766 = vcmp.eq.f32.partialorder %v9765, 8.507059e+37
        %v9767 = vand.u32 %v9530, 2147483648
        %v9768 = vor.u32 1.1754944e-38, %v9767
        %v9769 = vsel %vm9766, %v9768, %v9764
        %v9770 = vrcp.pop %v9533
        %v9771 = vmul.f32 %v9533, %v9770
        %v9772 = vsub.f32 1.0, %v9771
        %v9773 = vmul.f32 %v9770, %v9772
        %v9774 = vadd.f32 %v9770, %v9773
        %vm9775 = vweird.f32 %v9533
        %vm9776 = vweird.f32 %v9770
        %vm9777 = vmor %vm9775, %vm9776
        %v9778 = vsel %vm9777, %v9770, %v9774
        %v9779 = vand.u32 2147483647, %v9533
        %vm9780 = vcmp.eq.f32.partialorder %v9779, 8.507059e+37
        %v9781 = vand.u32 %v9533, 2147483648
        %v9782 = vor.u32 1.1754944e-38, %v9781
        %v9783 = vsel %vm9780, %v9782, %v9778
        %v9784 = vrcp.pop %v9536
        %v9785 = vmul.f32 %v9536, %v9784
        %v9786 = vsub.f32 1.0, %v9785
        %v9787 = vmul.f32 %v9784, %v9786
        %v9788 = vadd.f32 %v9784, %v9787
        %vm9789 = vweird.f32 %v9536
        %vm9790 = vweird.f32 %v9784
        %vm9791 = vmor %vm9789, %vm9790
        %v9792 = vsel %vm9791, %v9784, %v9788
        %v9793 = vand.u32 2147483647, %v9536
        %vm9794 = vcmp.eq.f32.partialorder %v9793, 8.507059e+37
        %v9795 = vand.u32 %v9536, 2147483648
        %v9796 = vor.u32 1.1754944e-38, %v9795
        %v9797 = vsel %vm9794, %v9796, %v9792
        %v9798 = vrcp.pop %v9539
        %v9799 = vmul.f32 %v9539, %v9798
        %v9800 = vsub.f32 1.0, %v9799
        %v9801 = vmul.f32 %v9798, %v9800
        %v9802 = vadd.f32 %v9798, %v9801
        %vm9803 = vweird.f32 %v9539
        %vm9804 = vweird.f32 %v9798
        %vm9805 = vmor %vm9803, %vm9804
        %v9806 = vsel %vm9805, %v9798, %v9802
        %v9807 = vand.u32 2147483647, %v9539
        %vm9808 = vcmp.eq.f32.partialorder %v9807, 8.507059e+37
        %v9809 = vand.u32 %v9539, 2147483648
        %v9810 = vor.u32 1.1754944e-38, %v9809
        %v9811 = vsel %vm9808, %v9810, %v9806
        %v9812 = vrcp.pop %v9542
        %v9813 = vmul.f32 %v9542, %v9812
        %v9814 = vsub.f32 1.0, %v9813
        %v9815 = vmul.f32 %v9812, %v9814
        %v9816 = vadd.f32 %v9812, %v9815
        %vm9817 = vweird.f32 %v9542
        %vm9818 = vweird.f32 %v9812
        %vm9819 = vmor %vm9817, %vm9818
        %v9820 = vsel %vm9819, %v9812, %v9816
        %v9821 = vand.u32 2147483647, %v9542
        %vm9822 = vcmp.eq.f32.partialorder %v9821, 8.507059e+37
        %v9823 = vand.u32 %v9542, 2147483648
        %v9824 = vor.u32 1.1754944e-38, %v9823
        %v9825 = vsel %vm9822, %v9824, %v9820
        %v9826 = vrcp.pop %v9545
        %v9827 = vmul.f32 %v9545, %v9826
        %v9828 = vsub.f32 1.0, %v9827
        %v9829 = vmul.f32 %v9826, %v9828
        %v9830 = vadd.f32 %v9826, %v9829
        %vm9831 = vweird.f32 %v9545
        %vm9832 = vweird.f32 %v9826
        %vm9833 = vmor %vm9831, %vm9832
        %v9834 = vsel %vm9833, %v9826, %v9830
        %v9835 = vand.u32 2147483647, %v9545
        %vm9836 = vcmp.eq.f32.partialorder %v9835, 8.507059e+37
        %v9837 = vand.u32 %v9545, 2147483648
        %v9838 = vor.u32 1.1754944e-38, %v9837
        %v9839 = vsel %vm9836, %v9838, %v9834
        %v9840 = vrcp.pop %v9548
        %v9841 = vmul.f32 %v9548, %v9840
        %v9842 = vsub.f32 1.0, %v9841
        %v9843 = vmul.f32 %v9840, %v9842
        %v9844 = vadd.f32 %v9840, %v9843
        %vm9845 = vweird.f32 %v9548
        %vm9846 = vweird.f32 %v9840
        %vm9847 = vmor %vm9845, %vm9846
        %v9848 = vsel %vm9847, %v9840, %v9844
        %v9849 = vand.u32 2147483647, %v9548
        %vm9850 = vcmp.eq.f32.partialorder %v9849, 8.507059e+37
        %v9851 = vand.u32 %v9548, 2147483648
        %v9852 = vor.u32 1.1754944e-38, %v9851
        %v9853 = vsel %vm9850, %v9852, %v9848
        %v9854 = vrcp.pop %v9551
        %v9855 = vmul.f32 %v9551, %v9854
        %v9856 = vsub.f32 1.0, %v9855
        %v9857 = vmul.f32 %v9854, %v9856
        %v9858 = vadd.f32 %v9854, %v9857
        %vm9859 = vweird.f32 %v9551
        %vm9860 = vweird.f32 %v9854
        %vm9861 = vmor %vm9859, %vm9860
        %v9862 = vsel %vm9861, %v9854, %v9858
        %v9863 = vand.u32 2147483647, %v9551
        %vm9864 = vcmp.eq.f32.partialorder %v9863, 8.507059e+37
        %v9865 = vand.u32 %v9551, 2147483648
        %v9866 = vor.u32 1.1754944e-38, %v9865
        %v9867 = vsel %vm9864, %v9866, %v9862
        %v9868 = vrcp.pop %v9554
        %v9869 = vmul.f32 %v9554, %v9868
        %v9870 = vsub.f32 1.0, %v9869
        %v9871 = vmul.f32 %v9868, %v9870
        %v9872 = vadd.f32 %v9868, %v9871
        %vm9873 = vweird.f32 %v9554
        %vm9874 = vweird.f32 %v9868
        %vm9875 = vmor %vm9873, %vm9874
        %v9876 = vsel %vm9875, %v9868, %v9872
        %v9877 = vand.u32 2147483647, %v9554
        %vm9878 = vcmp.eq.f32.partialorder %v9877, 8.507059e+37
        %v9879 = vand.u32 %v9554, 2147483648
        %v9880 = vor.u32 1.1754944e-38, %v9879
        %v9881 = vsel %vm9878, %v9880, %v9876
        %v9882 = vrcp.pop %v9557
        %v9883 = vmul.f32 %v9557, %v9882
        %v9884 = vsub.f32 1.0, %v9883
        %v9885 = vmul.f32 %v9882, %v9884
        %v9886 = vadd.f32 %v9882, %v9885
        %vm9887 = vweird.f32 %v9557
        %vm9888 = vweird.f32 %v9882
        %vm9889 = vmor %vm9887, %vm9888
        %v9890 = vsel %vm9889, %v9882, %v9886
        %v9891 = vand.u32 2147483647, %v9557
        %vm9892 = vcmp.eq.f32.partialorder %v9891, 8.507059e+37
        %v9893 = vand.u32 %v9557, 2147483648
        %v9894 = vor.u32 1.1754944e-38, %v9893
        %v9895 = vsel %vm9892, %v9894, %v9890
        %v9896 = vrcp.pop %v9560
        %v9897 = vmul.f32 %v9560, %v9896
        %v9898 = vsub.f32 1.0, %v9897
        %v9899 = vmul.f32 %v9896, %v9898
        %v9900 = vadd.f32 %v9896, %v9899
        %vm9901 = vweird.f32 %v9560
        %vm9902 = vweird.f32 %v9896
        %vm9903 = vmor %vm9901, %vm9902
        %v9904 = vsel %vm9903, %v9896, %v9900
        %v9905 = vand.u32 2147483647, %v9560
        %vm9906 = vcmp.eq.f32.partialorder %v9905, 8.507059e+37
        %v9907 = vand.u32 %v9560, 2147483648
        %v9908 = vor.u32 1.1754944e-38, %v9907
        %v9909 = vsel %vm9906, %v9908, %v9904
        %v9910 = vrcp.pop %v9563
        %v9911 = vmul.f32 %v9563, %v9910
        %v9912 = vsub.f32 1.0, %v9911
        %v9913 = vmul.f32 %v9910, %v9912
        %v9914 = vadd.f32 %v9910, %v9913
        %vm9915 = vweird.f32 %v9563
        %vm9916 = vweird.f32 %v9910
        %vm9917 = vmor %vm9915, %vm9916
        %v9918 = vsel %vm9917, %v9910, %v9914
        %v9919 = vand.u32 2147483647, %v9563
        %vm9920 = vcmp.eq.f32.partialorder %v9919, 8.507059e+37
        %v9921 = vand.u32 %v9563, 2147483648
        %v9922 = vor.u32 1.1754944e-38, %v9921
        %v9923 = vsel %vm9920, %v9922, %v9918
        %v9924 = vrcp.pop %v9566
        %v9925 = vmul.f32 %v9566, %v9924
        %v9926 = vsub.f32 1.0, %v9925
        %v9927 = vmul.f32 %v9924, %v9926
        %v9928 = vadd.f32 %v9924, %v9927
        %vm9929 = vweird.f32 %v9566
        %vm9930 = vweird.f32 %v9924
        %vm9931 = vmor %vm9929, %vm9930
        %v9932 = vsel %vm9931, %v9924, %v9928
        %v9933 = vand.u32 2147483647, %v9566
        %vm9934 = vcmp.eq.f32.partialorder %v9933, 8.507059e+37
        %v9935 = vand.u32 %v9566, 2147483648
        %v9936 = vor.u32 1.1754944e-38, %v9935
        %v9937 = vsel %vm9934, %v9936, %v9932
        %v9938 = vrcp.pop %v9569
        %v9939 = vmul.f32 %v9569, %v9938
        %v9940 = vsub.f32 1.0, %v9939
        %v9941 = vmul.f32 %v9938, %v9940
        %v9942 = vadd.f32 %v9938, %v9941
        %vm9943 = vweird.f32 %v9569
        %vm9944 = vweird.f32 %v9938
        %vm9945 = vmor %vm9943, %vm9944
        %v9946 = vsel %vm9945, %v9938, %v9942
        %v9947 = vand.u32 2147483647, %v9569
        %vm9948 = vcmp.eq.f32.partialorder %v9947, 8.507059e+37
        %v9949 = vand.u32 %v9569, 2147483648
        %v9950 = vor.u32 1.1754944e-38, %v9949
        %v9951 = vsel %vm9948, %v9950, %v9946
        %v9952 = vrcp.pop %v9572
        %v9953 = vmul.f32 %v9572, %v9952
        %v9954 = vsub.f32 1.0, %v9953
        %v9955 = vmul.f32 %v9952, %v9954
        %v9956 = vadd.f32 %v9952, %v9955
        %vm9957 = vweird.f32 %v9572
        %vm9958 = vweird.f32 %v9952
        %vm9959 = vmor %vm9957, %vm9958
        %v9960 = vsel %vm9959, %v9952, %v9956
        %v9961 = vand.u32 2147483647, %v9572
        %vm9962 = vcmp.eq.f32.partialorder %v9961, 8.507059e+37
        %v9963 = vand.u32 %v9572, 2147483648
        %v9964 = vor.u32 1.1754944e-38, %v9963
        %v9965 = vsel %vm9962, %v9964, %v9960
        %v9966 = vrcp.pop %v9575
        %v9967 = vmul.f32 %v9575, %v9966
        %v9968 = vsub.f32 1.0, %v9967
        %v9969 = vmul.f32 %v9966, %v9968
        %v9970 = vadd.f32 %v9966, %v9969
        %vm9971 = vweird.f32 %v9575
        %vm9972 = vweird.f32 %v9966
        %vm9973 = vmor %vm9971, %vm9972
        %v9974 = vsel %vm9973, %v9966, %v9970
        %v9975 = vand.u32 2147483647, %v9575
        %vm9976 = vcmp.eq.f32.partialorder %v9975, 8.507059e+37
        %v9977 = vand.u32 %v9575, 2147483648
        %v9978 = vor.u32 1.1754944e-38, %v9977
        %v9979 = vsel %vm9976, %v9978, %v9974
        %v9980 = vrcp.pop %v9578
        %v9981 = vmul.f32 %v9578, %v9980
        %v9982 = vsub.f32 1.0, %v9981
        %v9983 = vmul.f32 %v9980, %v9982
        %v9984 = vadd.f32 %v9980, %v9983
        %vm9985 = vweird.f32 %v9578
        %vm9986 = vweird.f32 %v9980
        %vm9987 = vmor %vm9985, %vm9986
        %v9988 = vsel %vm9987, %v9980, %v9984
        %v9989 = vand.u32 2147483647, %v9578
        %vm9990 = vcmp.eq.f32.partialorder %v9989, 8.507059e+37
        %v9991 = vand.u32 %v9578, 2147483648
        %v9992 = vor.u32 1.1754944e-38, %v9991
        %v9993 = vsel %vm9990, %v9992, %v9988
        %v9994 = vrcp.pop %v9581
        %v9995 = vmul.f32 %v9581, %v9994
        %v9996 = vsub.f32 1.0, %v9995
        %v9997 = vmul.f32 %v9994, %v9996
        %v9998 = vadd.f32 %v9994, %v9997
        %vm9999 = vweird.f32 %v9581
        %vm10000 = vweird.f32 %v9994
        %vm10001 = vmor %vm9999, %vm10000
        %v10002 = vsel %vm10001, %v9994, %v9998
        %v10003 = vand.u32 2147483647, %v9581
        %vm10004 = vcmp.eq.f32.partialorder %v10003, 8.507059e+37
        %v10005 = vand.u32 %v9581, 2147483648
        %v10006 = vor.u32 1.1754944e-38, %v10005
        %v10007 = vsel %vm10004, %v10006, %v10002
        %v10008 = vrcp.pop %v9584
        %v10009 = vmul.f32 %v9584, %v10008
        %v10010 = vsub.f32 1.0, %v10009
        %v10011 = vmul.f32 %v10008, %v10010
        %v10012 = vadd.f32 %v10008, %v10011
        %vm10013 = vweird.f32 %v9584
        %vm10014 = vweird.f32 %v10008
        %vm10015 = vmor %vm10013, %vm10014
        %v10016 = vsel %vm10015, %v10008, %v10012
        %v10017 = vand.u32 2147483647, %v9584
        %vm10018 = vcmp.eq.f32.partialorder %v10017, 8.507059e+37
        %v10019 = vand.u32 %v9584, 2147483648
        %v10020 = vor.u32 1.1754944e-38, %v10019
        %v10021 = vsel %vm10018, %v10020, %v10016
        %v10022 = vrcp.pop %v9587
        %v10023 = vmul.f32 %v9587, %v10022
        %v10024 = vsub.f32 1.0, %v10023
        %v10025 = vmul.f32 %v10022, %v10024
        %v10026 = vadd.f32 %v10022, %v10025
        %vm10027 = vweird.f32 %v9587
        %vm10028 = vweird.f32 %v10022
        %vm10029 = vmor %vm10027, %vm10028
        %v10030 = vsel %vm10029, %v10022, %v10026
        %v10031 = vand.u32 2147483647, %v9587
        %vm10032 = vcmp.eq.f32.partialorder %v10031, 8.507059e+37
        %v10033 = vand.u32 %v9587, 2147483648
        %v10034 = vor.u32 1.1754944e-38, %v10033
        %v10035 = vsel %vm10032, %v10034, %v10030
        %v10036 = vmul.f32 %v9365, %v9601
        %v10037 = vmul.f32 %v9367, %v9601
        %v10038 = vmul.f32 %v9369, %v9615
        %v10039 = vmul.f32 %v9371, %v9615
        %v10040 = vmul.f32 %v9373, %v9629
        %v10041 = vmul.f32 %v9375, %v9629
        %v10042 = vmul.f32 %v9377, %v9643
        %v10043 = vmul.f32 %v9379, %v9643
        %v10044 = vmul.f32 %v9381, %v9657
        %v10045 = vmul.f32 %v9383, %v9657
        %v10046 = vmul.f32 %v9385, %v9671
        %v10047 = vmul.f32 %v9387, %v9671
        %v10048 = vmul.f32 %v9389, %v9685
        %v10049 = vmul.f32 %v9391, %v9685
        %v10050 = vmul.f32 %v9393, %v9699
        %v10051 = vmul.f32 %v9395, %v9699
        %v10052 = vmul.f32 %v9397, %v9713
        %v10053 = vmul.f32 %v9399, %v9713
        %v10054 = vmul.f32 %v9401, %v9727
        %v10055 = vmul.f32 %v9403, %v9727
        %v10056 = vmul.f32 %v9405, %v9741
        %v10057 = vmul.f32 %v9407, %v9741
        %v10058 = vmul.f32 %v9409, %v9755
        %v10059 = vmul.f32 %v9411, %v9755
        %v10060 = vmul.f32 %v9413, %v9769
        %v10061 = vmul.f32 %v9415, %v9769
        %v10062 = vmul.f32 %v9417, %v9783
        %v10063 = vmul.f32 %v9419, %v9783
        %v10064 = vmul.f32 %v9421, %v9797
        %v10065 = vmul.f32 %v9423, %v9797
        %v10066 = vmul.f32 %v9425, %v9811
        %v10067 = vmul.f32 %v9427, %v9811
        %v10068 = vmul.f32 %v9429, %v9825
        %v10069 = vmul.f32 %v9431, %v9825
        %v10070 = vmul.f32 %v9433, %v9839
        %v10071 = vmul.f32 %v9435, %v9839
        %v10072 = vmul.f32 %v9437, %v9853
        %v10073 = vmul.f32 %v9439, %v9853
        %v10074 = vmul.f32 %v9441, %v9867
        %v10075 = vmul.f32 %v9443, %v9867
        %v10076 = vmul.f32 %v9445, %v9881
        %v10077 = vmul.f32 %v9447, %v9881
        %v10078 = vmul.f32 %v9449, %v9895
        %v10079 = vmul.f32 %v9451, %v9895
        %v10080 = vmul.f32 %v9453, %v9909
        %v10081 = vmul.f32 %v9455, %v9909
        %v10082 = vmul.f32 %v9457, %v9923
        %v10083 = vmul.f32 %v9459, %v9923
        %v10084 = vmul.f32 %v9461, %v9937
        %v10085 = vmul.f32 %v9463, %v9937
        %v10086 = vmul.f32 %v9465, %v9951
        %v10087 = vmul.f32 %v9467, %v9951
        %v10088 = vmul.f32 %v9469, %v9965
        %v10089 = vmul.f32 %v9471, %v9965
        %v10090 = vmul.f32 %v9473, %v9979
        %v10091 = vmul.f32 %v9475, %v9979
        %v10092 = vmul.f32 %v9477, %v9993
        %v10093 = vmul.f32 %v9479, %v9993
        %v10094 = vmul.f32 %v9481, %v10007
        %v10095 = vmul.f32 %v9483, %v10007
        %v10096 = vmul.f32 %v9485, %v10021
        %v10097 = vmul.f32 %v9487, %v10021
        %v10098 = vmul.f32 %v9489, %v10035
        %v10099 = vmul.f32 %v9491, %v10035
        %10100 = vst [vmem:[%s275] sm:$0xff] %v10036
        %10101 = vst [vmem:[%s275 + $0x8] sm:$0xff] %v10037
        %10102 = vst [vmem:[%s275 + $0x10] sm:$0xff] %v10038
        %10103 = vst [vmem:[%s275 + $0x18] sm:$0xff] %v10039
        %10104 = vst [vmem:[%s275 + $0x20] sm:$0xff] %v10040
        %10105 = vst [vmem:[%s275 + $0x28] sm:$0xff] %v10041
        %10106 = vst [vmem:[%s275 + $0x30] sm:$0xff] %v10042
        %10107 = vst [vmem:[%s275 + $0x38] sm:$0xff] %v10043
        %10108 = vst [vmem:[%s275 + $0x40] sm:$0xff] %v10044
        %10109 = vst [vmem:[%s275 + $0x48] sm:$0xff] %v10045
        %10110 = vst [vmem:[%s275 + $0x50] sm:$0xff] %v10046
        %10111 = vst [vmem:[%s275 + $0x58] sm:$0xff] %v10047
        %10112 = vst [vmem:[%s275 + $0x60] sm:$0xff] %v10048
        %10113 = vst [vmem:[%s275 + $0x68] sm:$0xff] %v10049
        %10114 = vst [vmem:[%s275 + $0x70] sm:$0xff] %v10050
        %10115 = vst [vmem:[%s275 + $0x78] sm:$0xff] %v10051
        %10116 = vst [vmem:[%s275 + $0x80] sm:$0xff] %v10052
        %10117 = vst [vmem:[%s275 + $0x88] sm:$0xff] %v10053
        %10118 = vst [vmem:[%s275 + $0x90] sm:$0xff] %v10054
        %10119 = vst [vmem:[%s275 + $0x98] sm:$0xff] %v10055
        %10120 = vst [vmem:[%s275 + $0xa0] sm:$0xff] %v10056
        %10121 = vst [vmem:[%s275 + $0xa8] sm:$0xff] %v10057
        %10122 = vst [vmem:[%s275 + $0xb0] sm:$0xff] %v10058
        %10123 = vst [vmem:[%s275 + $0xb8] sm:$0xff] %v10059
        %10124 = vst [vmem:[%s275 + $0xc0] sm:$0xff] %v10060
        %10125 = vst [vmem:[%s275 + $0xc8] sm:$0xff] %v10061
        %10126 = vst [vmem:[%s275 + $0xd0] sm:$0xff] %v10062
        %10127 = vst [vmem:[%s275 + $0xd8] sm:$0xff] %v10063
        %10128 = vst [vmem:[%s275 + $0xe0] sm:$0xff] %v10064
        %10129 = vst [vmem:[%s275 + $0xe8] sm:$0xff] %v10065
        %10130 = vst [vmem:[%s275 + $0xf0] sm:$0xff] %v10066
        %10131 = vst [vmem:[%s275 + $0xf8] sm:$0xff] %v10067
        %10132 = vst [vmem:[%s275 + $0x100] sm:$0xff] %v10068
        %10133 = vst [vmem:[%s275 + $0x108] sm:$0xff] %v10069
        %10134 = vst [vmem:[%s275 + $0x110] sm:$0xff] %v10070
        %10135 = vst [vmem:[%s275 + $0x118] sm:$0xff] %v10071
        %10136 = vst [vmem:[%s275 + $0x120] sm:$0xff] %v10072
        %10137 = vst [vmem:[%s275 + $0x128] sm:$0xff] %v10073
        %10138 = vst [vmem:[%s275 + $0x130] sm:$0xff] %v10074
        %10139 = vst [vmem:[%s275 + $0x138] sm:$0xff] %v10075
        %10140 = vst [vmem:[%s275 + $0x140] sm:$0xff] %v10076
        %10141 = vst [vmem:[%s275 + $0x148] sm:$0xff] %v10077
        %10142 = vst [vmem:[%s275 + $0x150] sm:$0xff] %v10078
        %10143 = vst [vmem:[%s275 + $0x158] sm:$0xff] %v10079
        %10144 = vst [vmem:[%s275 + $0x160] sm:$0xff] %v10080
        %10145 = vst [vmem:[%s275 + $0x168] sm:$0xff] %v10081
        %10146 = vst [vmem:[%s275 + $0x170] sm:$0xff] %v10082
        %10147 = vst [vmem:[%s275 + $0x178] sm:$0xff] %v10083
        %10148 = vst [vmem:[%s275 + $0x180] sm:$0xff] %v10084
        %10149 = vst [vmem:[%s275 + $0x188] sm:$0xff] %v10085
        %10150 = vst [vmem:[%s275 + $0x190] sm:$0xff] %v10086
        %10151 = vst [vmem:[%s275 + $0x198] sm:$0xff] %v10087
        %10152 = vst [vmem:[%s275 + $0x1a0] sm:$0xff] %v10088
        %10153 = vst [vmem:[%s275 + $0x1a8] sm:$0xff] %v10089
        %10154 = vst [vmem:[%s275 + $0x1b0] sm:$0xff] %v10090
        %10155 = vst [vmem:[%s275 + $0x1b8] sm:$0xff] %v10091
        %10156 = vst [vmem:[%s275 + $0x1c0] sm:$0xff] %v10092
        %10157 = vst [vmem:[%s275 + $0x1c8] sm:$0xff] %v10093
        %10158 = vst [vmem:[%s275 + $0x1d0] sm:$0xff] %v10094
        %10159 = vst [vmem:[%s275 + $0x1d8] sm:$0xff] %v10095
        %10160 = vst [vmem:[%s275 + $0x1e0] sm:$0xff] %v10096
        %10161 = vst [vmem:[%s275 + $0x1e8] sm:$0xff] %v10097
        %10162 = vst [vmem:[%s275 + $0x1f0] sm:$0xff] %v10098
        %10163 = vst [vmem:[%s275 + $0x1f8] sm:$0xff] %v10099
        %v10164 = vld [vmem:[%s275] sm:$0xff]
        %v10165 = vld [vmem:[%s275 + $0x8] sm:$0xff]
        %v10166 = vld [vmem:[%s275 + $0x10] sm:$0xff]
        %v10167 = vld [vmem:[%s275 + $0x18] sm:$0xff]
        %v10168 = vld [vmem:[%s275 + $0x20] sm:$0xff]
        %v10169 = vld [vmem:[%s275 + $0x28] sm:$0xff]
        %v10170 = vld [vmem:[%s275 + $0x30] sm:$0xff]
        %v10171 = vld [vmem:[%s275 + $0x38] sm:$0xff]
        %v10172 = vld [vmem:[%s275 + $0x40] sm:$0xff]
        %v10173 = vld [vmem:[%s275 + $0x48] sm:$0xff]
        %v10174 = vld [vmem:[%s275 + $0x50] sm:$0xff]
        %v10175 = vld [vmem:[%s275 + $0x58] sm:$0xff]
        %v10176 = vld [vmem:[%s275 + $0x60] sm:$0xff]
        %v10177 = vld [vmem:[%s275 + $0x68] sm:$0xff]
        %v10178 = vld [vmem:[%s275 + $0x70] sm:$0xff]
        %v10179 = vld [vmem:[%s275 + $0x78] sm:$0xff]
        %v10180 = vld [vmem:[%s275 + $0x80] sm:$0xff]
        %v10181 = vld [vmem:[%s275 + $0x88] sm:$0xff]
        %v10182 = vld [vmem:[%s275 + $0x90] sm:$0xff]
        %v10183 = vld [vmem:[%s275 + $0x98] sm:$0xff]
        %v10184 = vld [vmem:[%s275 + $0xa0] sm:$0xff]
        %v10185 = vld [vmem:[%s275 + $0xa8] sm:$0xff]
        %v10186 = vld [vmem:[%s275 + $0xb0] sm:$0xff]
        %v10187 = vld [vmem:[%s275 + $0xb8] sm:$0xff]
        %v10188 = vld [vmem:[%s275 + $0xc0] sm:$0xff]
        %v10189 = vld [vmem:[%s275 + $0xc8] sm:$0xff]
        %v10190 = vld [vmem:[%s275 + $0xd0] sm:$0xff]
        %v10191 = vld [vmem:[%s275 + $0xd8] sm:$0xff]
        %v10192 = vld [vmem:[%s275 + $0xe0] sm:$0xff]
        %v10193 = vld [vmem:[%s275 + $0xe8] sm:$0xff]
        %v10194 = vld [vmem:[%s275 + $0xf0] sm:$0xff]
        %v10195 = vld [vmem:[%s275 + $0xf8] sm:$0xff]
        %v10196 = vld [vmem:[%s275 + $0x100] sm:$0xff]
        %v10197 = vld [vmem:[%s275 + $0x108] sm:$0xff]
        %v10198 = vld [vmem:[%s275 + $0x110] sm:$0xff]
        %v10199 = vld [vmem:[%s275 + $0x118] sm:$0xff]
        %v10200 = vld [vmem:[%s275 + $0x120] sm:$0xff]
        %v10201 = vld [vmem:[%s275 + $0x128] sm:$0xff]
        %v10202 = vld [vmem:[%s275 + $0x130] sm:$0xff]
        %v10203 = vld [vmem:[%s275 + $0x138] sm:$0xff]
        %v10204 = vld [vmem:[%s275 + $0x140] sm:$0xff]
        %v10205 = vld [vmem:[%s275 + $0x148] sm:$0xff]
        %v10206 = vld [vmem:[%s275 + $0x150] sm:$0xff]
        %v10207 = vld [vmem:[%s275 + $0x158] sm:$0xff]
        %v10208 = vld [vmem:[%s275 + $0x160] sm:$0xff]
        %v10209 = vld [vmem:[%s275 + $0x168] sm:$0xff]
        %v10210 = vld [vmem:[%s275 + $0x170] sm:$0xff]
        %v10211 = vld [vmem:[%s275 + $0x178] sm:$0xff]
        %v10212 = vld [vmem:[%s275 + $0x180] sm:$0xff]
        %v10213 = vld [vmem:[%s275 + $0x188] sm:$0xff]
        %v10214 = vld [vmem:[%s275 + $0x190] sm:$0xff]
        %v10215 = vld [vmem:[%s275 + $0x198] sm:$0xff]
        %v10216 = vld [vmem:[%s275 + $0x1a0] sm:$0xff]
        %v10217 = vld [vmem:[%s275 + $0x1a8] sm:$0xff]
        %v10218 = vld [vmem:[%s275 + $0x1b0] sm:$0xff]
        %v10219 = vld [vmem:[%s275 + $0x1b8] sm:$0xff]
        %v10220 = vld [vmem:[%s275 + $0x1c0] sm:$0xff]
        %v10221 = vld [vmem:[%s275 + $0x1c8] sm:$0xff]
        %v10222 = vld [vmem:[%s275 + $0x1d0] sm:$0xff]
        %v10223 = vld [vmem:[%s275 + $0x1d8] sm:$0xff]
        %v10224 = vld [vmem:[%s275 + $0x1e0] sm:$0xff]
        %v10225 = vld [vmem:[%s275 + $0x1e8] sm:$0xff]
        %v10226 = vld [vmem:[%s275 + $0x1f0] sm:$0xff]
        %v10227 = vld [vmem:[%s275 + $0x1f8] sm:$0xff]
        %v10228 = vpack.c.bf16 %v10166, %v10164
        %v10229 = vpack.c.bf16 %v10167, %v10165
        %v10230 = vpack.c.bf16 %v10170, %v10168
        %v10231 = vpack.c.bf16 %v10171, %v10169
        %v10232 = vpack.c.bf16 %v10174, %v10172
        %v10233 = vpack.c.bf16 %v10175, %v10173
        %v10234 = vpack.c.bf16 %v10178, %v10176
        %v10235 = vpack.c.bf16 %v10179, %v10177
        %v10236 = vpack.c.bf16 %v10182, %v10180
        %v10237 = vpack.c.bf16 %v10183, %v10181
        %v10238 = vpack.c.bf16 %v10186, %v10184
        %v10239 = vpack.c.bf16 %v10187, %v10185
        %v10240 = vpack.c.bf16 %v10190, %v10188
        %v10241 = vpack.c.bf16 %v10191, %v10189
        %v10242 = vpack.c.bf16 %v10194, %v10192
        %v10243 = vpack.c.bf16 %v10195, %v10193
        %v10244 = vpack.c.bf16 %v10198, %v10196
        %v10245 = vpack.c.bf16 %v10199, %v10197
        %v10246 = vpack.c.bf16 %v10202, %v10200
        %v10247 = vpack.c.bf16 %v10203, %v10201
        %v10248 = vpack.c.bf16 %v10206, %v10204
        %v10249 = vpack.c.bf16 %v10207, %v10205
        %v10250 = vpack.c.bf16 %v10210, %v10208
        %v10251 = vpack.c.bf16 %v10211, %v10209
        %v10252 = vpack.c.bf16 %v10214, %v10212
        %v10253 = vpack.c.bf16 %v10215, %v10213
        %v10254 = vpack.c.bf16 %v10218, %v10216
        %v10255 = vpack.c.bf16 %v10219, %v10217
        %v10256 = vpack.c.bf16 %v10222, %v10220
        %v10257 = vpack.c.bf16 %v10223, %v10221
        %v10258 = vpack.c.bf16 %v10226, %v10224
        %v10259 = vpack.c.bf16 %v10227, %v10225
        %v10324 = vunpack.c.l.b16 %v7788
        %v10325 = vunpack.c.h.b16 %v7788
        %v10326 = vunpack.c.l.b16 %v7789
        %v10327 = vunpack.c.h.b16 %v7789
        %v10328 = vunpack.c.l.b16 %v7790
        %v10329 = vunpack.c.h.b16 %v7790
        %v10330 = vunpack.c.l.b16 %v7791
        %v10331 = vunpack.c.h.b16 %v7791
        %v10332 = vunpack.c.l.b16 %v7792
        %v10333 = vunpack.c.h.b16 %v7792
        %v10334 = vunpack.c.l.b16 %v7793
        %v10335 = vunpack.c.h.b16 %v7793
        %v10336 = vunpack.c.l.b16 %v7794
        %v10337 = vunpack.c.h.b16 %v7794
        %v10338 = vunpack.c.l.b16 %v7795
        %v10339 = vunpack.c.h.b16 %v7795
        %v10340 = vunpack.c.l.b16 %v7796
        %v10341 = vunpack.c.h.b16 %v7796
        %v10342 = vunpack.c.l.b16 %v7797
        %v10343 = vunpack.c.h.b16 %v7797
        %v10344 = vunpack.c.l.b16 %v7798
        %v10345 = vunpack.c.h.b16 %v7798
        %v10346 = vunpack.c.l.b16 %v7799
        %v10347 = vunpack.c.h.b16 %v7799
        %v10348 = vunpack.c.l.b16 %v7800
        %v10349 = vunpack.c.h.b16 %v7800
        %v10350 = vunpack.c.l.b16 %v7801
        %v10351 = vunpack.c.h.b16 %v7801
        %v10352 = vunpack.c.l.b16 %v7802
        %v10353 = vunpack.c.h.b16 %v7802
        %v10354 = vunpack.c.l.b16 %v7803
        %v10355 = vunpack.c.h.b16 %v7803
        %v10356 = vunpack.c.l.b16 %v7804
        %v10357 = vunpack.c.h.b16 %v7804
        %v10358 = vunpack.c.l.b16 %v7805
        %v10359 = vunpack.c.h.b16 %v7805
        %v10360 = vunpack.c.l.b16 %v7806
        %v10361 = vunpack.c.h.b16 %v7806
        %v10362 = vunpack.c.l.b16 %v7807
        %v10363 = vunpack.c.h.b16 %v7807
        %v10364 = vunpack.c.l.b16 %v7808
        %v10365 = vunpack.c.h.b16 %v7808
        %v10366 = vunpack.c.l.b16 %v7809
        %v10367 = vunpack.c.h.b16 %v7809
        %v10368 = vunpack.c.l.b16 %v7810
        %v10369 = vunpack.c.h.b16 %v7810
        %v10370 = vunpack.c.l.b16 %v7811
        %v10371 = vunpack.c.h.b16 %v7811
        %v10372 = vunpack.c.l.b16 %v7812
        %v10373 = vunpack.c.h.b16 %v7812
        %v10374 = vunpack.c.l.b16 %v7813
        %v10375 = vunpack.c.h.b16 %v7813
        %v10376 = vunpack.c.l.b16 %v7814
        %v10377 = vunpack.c.h.b16 %v7814
        %v10378 = vunpack.c.l.b16 %v7815
        %v10379 = vunpack.c.h.b16 %v7815
        %v10380 = vunpack.c.l.b16 %v7816
        %v10381 = vunpack.c.h.b16 %v7816
        %v10382 = vunpack.c.l.b16 %v7817
        %v10383 = vunpack.c.h.b16 %v7817
        %v10384 = vunpack.c.l.b16 %v7818
        %v10385 = vunpack.c.h.b16 %v7818
        %v10386 = vunpack.c.l.b16 %v7819
        %v10387 = vunpack.c.h.b16 %v7819
        %v10388 = vunpack.c.l.b16 %v7820
        %v10389 = vunpack.c.h.b16 %v7820
        %v10390 = vunpack.c.l.b16 %v7821
        %v10391 = vunpack.c.h.b16 %v7821
        %v10392 = vunpack.c.l.b16 %v7822
        %v10393 = vunpack.c.h.b16 %v7822
        %v10394 = vunpack.c.l.b16 %v7823
        %v10395 = vunpack.c.h.b16 %v7823
        %v10396 = vunpack.c.l.b16 %v7824
        %v10397 = vunpack.c.h.b16 %v7824
        %v10398 = vunpack.c.l.b16 %v7825
        %v10399 = vunpack.c.h.b16 %v7825
        %v10400 = vunpack.c.l.b16 %v7826
        %v10401 = vunpack.c.h.b16 %v7826
        %v10402 = vunpack.c.l.b16 %v7827
        %v10403 = vunpack.c.h.b16 %v7827
        %v10404 = vunpack.c.l.b16 %v7828
        %v10405 = vunpack.c.h.b16 %v7828
        %v10406 = vunpack.c.l.b16 %v7829
        %v10407 = vunpack.c.h.b16 %v7829
        %v10408 = vunpack.c.l.b16 %v7830
        %v10409 = vunpack.c.h.b16 %v7830
        %v10410 = vunpack.c.l.b16 %v7831
        %v10411 = vunpack.c.h.b16 %v7831
        %v10412 = vunpack.c.l.b16 %v7832
        %v10413 = vunpack.c.h.b16 %v7832
        %v10414 = vunpack.c.l.b16 %v7833
        %v10415 = vunpack.c.h.b16 %v7833
        %v10416 = vunpack.c.l.b16 %v7834
        %v10417 = vunpack.c.h.b16 %v7834
        %v10418 = vunpack.c.l.b16 %v7835
        %v10419 = vunpack.c.h.b16 %v7835
        %v10420 = vunpack.c.l.b16 %v7836
        %v10421 = vunpack.c.h.b16 %v7836
        %v10422 = vunpack.c.l.b16 %v7837
        %v10423 = vunpack.c.h.b16 %v7837
        %v10424 = vunpack.c.l.b16 %v7838
        %v10425 = vunpack.c.h.b16 %v7838
        %v10426 = vunpack.c.l.b16 %v7839
        %v10427 = vunpack.c.h.b16 %v7839
        %v10428 = vunpack.c.l.b16 %v7840
        %v10429 = vunpack.c.h.b16 %v7840
        %v10430 = vunpack.c.l.b16 %v7841
        %v10431 = vunpack.c.h.b16 %v7841
        %v10432 = vunpack.c.l.b16 %v7842
        %v10433 = vunpack.c.h.b16 %v7842
        %v10434 = vunpack.c.l.b16 %v7843
        %v10435 = vunpack.c.h.b16 %v7843
        %v10436 = vunpack.c.l.b16 %v7844
        %v10437 = vunpack.c.h.b16 %v7844
        %v10438 = vunpack.c.l.b16 %v7845
        %v10439 = vunpack.c.h.b16 %v7845
        %v10440 = vunpack.c.l.b16 %v7846
        %v10441 = vunpack.c.h.b16 %v7846
        %v10442 = vunpack.c.l.b16 %v7847
        %v10443 = vunpack.c.h.b16 %v7847
        %v10444 = vunpack.c.l.b16 %v7848
        %v10445 = vunpack.c.h.b16 %v7848
        %v10446 = vunpack.c.l.b16 %v7849
        %v10447 = vunpack.c.h.b16 %v7849
        %v10448 = vunpack.c.l.b16 %v7850
        %v10449 = vunpack.c.h.b16 %v7850
        %v10450 = vunpack.c.l.b16 %v7851
        %v10451 = vunpack.c.h.b16 %v7851
        %v10452 = vpack.c.b16 %v10328, %v10324
        %v10453 = vpack.c.b16 %v10329, %v10325
        %v10454 = vpack.c.b16 %v10330, %v10326
        %v10455 = vpack.c.b16 %v10331, %v10327
        %v10456 = vpack.c.b16 %v10336, %v10332
        %v10457 = vpack.c.b16 %v10337, %v10333
        %v10458 = vpack.c.b16 %v10338, %v10334
        %v10459 = vpack.c.b16 %v10339, %v10335
        %v10460 = vpack.c.b16 %v10344, %v10340
        %v10461 = vpack.c.b16 %v10345, %v10341
        %v10462 = vpack.c.b16 %v10346, %v10342
        %v10463 = vpack.c.b16 %v10347, %v10343
        %v10464 = vpack.c.b16 %v10352, %v10348
        %v10465 = vpack.c.b16 %v10353, %v10349
        %v10466 = vpack.c.b16 %v10354, %v10350
        %v10467 = vpack.c.b16 %v10355, %v10351
        %v10468 = vpack.c.b16 %v10360, %v10356
        %v10469 = vpack.c.b16 %v10361, %v10357
        %v10470 = vpack.c.b16 %v10362, %v10358
        %v10471 = vpack.c.b16 %v10363, %v10359
        %v10472 = vpack.c.b16 %v10368, %v10364
        %v10473 = vpack.c.b16 %v10369, %v10365
        %v10474 = vpack.c.b16 %v10370, %v10366
        %v10475 = vpack.c.b16 %v10371, %v10367
        %v10476 = vpack.c.b16 %v10376, %v10372
        %v10477 = vpack.c.b16 %v10377, %v10373
        %v10478 = vpack.c.b16 %v10378, %v10374
        %v10479 = vpack.c.b16 %v10379, %v10375
        %v10480 = vpack.c.b16 %v10384, %v10380
        %v10481 = vpack.c.b16 %v10385, %v10381
        %v10482 = vpack.c.b16 %v10386, %v10382
        %v10483 = vpack.c.b16 %v10387, %v10383
        %v10484 = vpack.c.b16 %v10392, %v10388
        %v10485 = vpack.c.b16 %v10393, %v10389
        %v10486 = vpack.c.b16 %v10394, %v10390
        %v10487 = vpack.c.b16 %v10395, %v10391
        %v10488 = vpack.c.b16 %v10400, %v10396
        %v10489 = vpack.c.b16 %v10401, %v10397
        %v10490 = vpack.c.b16 %v10402, %v10398
        %v10491 = vpack.c.b16 %v10403, %v10399
        %v10492 = vpack.c.b16 %v10408, %v10404
        %v10493 = vpack.c.b16 %v10409, %v10405
        %v10494 = vpack.c.b16 %v10410, %v10406
        %v10495 = vpack.c.b16 %v10411, %v10407
        %v10496 = vpack.c.b16 %v10416, %v10412
        %v10497 = vpack.c.b16 %v10417, %v10413
        %v10498 = vpack.c.b16 %v10418, %v10414
        %v10499 = vpack.c.b16 %v10419, %v10415
        %v10500 = vpack.c.b16 %v10424, %v10420
        %v10501 = vpack.c.b16 %v10425, %v10421
        %v10502 = vpack.c.b16 %v10426, %v10422
        %v10503 = vpack.c.b16 %v10427, %v10423
        %v10504 = vpack.c.b16 %v10432, %v10428
        %v10505 = vpack.c.b16 %v10433, %v10429
        %v10506 = vpack.c.b16 %v10434, %v10430
        %v10507 = vpack.c.b16 %v10435, %v10431
        %v10508 = vpack.c.b16 %v10440, %v10436
        %v10509 = vpack.c.b16 %v10441, %v10437
        %v10510 = vpack.c.b16 %v10442, %v10438
        %v10511 = vpack.c.b16 %v10443, %v10439
        %v10512 = vpack.c.b16 %v10448, %v10444
        %v10513 = vpack.c.b16 %v10449, %v10445
        %v10514 = vpack.c.b16 %v10450, %v10446
        %v10515 = vpack.c.b16 %v10451, %v10447
        %10580 = vmatpush.bf16.msra.mxu0 %v10480
        %10581 = vmatpush.bf16.msra.mxu0 %v10476
        %10582 = vmatpush.bf16.msra.mxu0 %v10472
        %10583 = vmatpush.bf16.msra.mxu0 %v10468
        %10584 = vmatpush.bf16.msra.mxu0 %v10464
        %10585 = vmatpush.bf16.msra.mxu0 %v10460
        %10586 = vmatpush.bf16.msra.mxu0 %v10456
        %10587 = vmatpush.bf16.msra.mxu0 %v10452
        %10588 = vmatmul.bf16.gmra.mxu0 %v10228
        %v10589 = vpop.f32.mrf.mxu0
        %v10590 = vadd.f32 0.0, %v10589
        %v10591 = vpop.f32.mrf.mxu0
        %v10592 = vadd.f32 0.0, %v10591
        %10593 = vmatmul.bf16.gmra.mxu0 %v10230
        %v10594 = vpop.f32.mrf.mxu0
        %v10595 = vadd.f32 0.0, %v10594
        %v10596 = vpop.f32.mrf.mxu0
        %v10597 = vadd.f32 0.0, %v10596
        %10598 = vmatmul.bf16.gmra.mxu0 %v10232
        %v10599 = vpop.f32.mrf.mxu0
        %v10600 = vadd.f32 0.0, %v10599
        %v10601 = vpop.f32.mrf.mxu0
        %v10602 = vadd.f32 0.0, %v10601
        %10603 = vmatmul.bf16.gmra.mxu0 %v10234
        %v10604 = vpop.f32.mrf.mxu0
        %v10605 = vadd.f32 0.0, %v10604
        %v10606 = vpop.f32.mrf.mxu0
        %v10607 = vadd.f32 0.0, %v10606
        %10608 = vmatmul.bf16.gmra.mxu0 %v10236
        %v10609 = vpop.f32.mrf.mxu0
        %v10610 = vadd.f32 0.0, %v10609
        %v10611 = vpop.f32.mrf.mxu0
        %v10612 = vadd.f32 0.0, %v10611
        %10613 = vmatmul.bf16.gmra.mxu0 %v10238
        %v10614 = vpop.f32.mrf.mxu0
        %v10615 = vadd.f32 0.0, %v10614
        %v10616 = vpop.f32.mrf.mxu0
        %v10617 = vadd.f32 0.0, %v10616
        %10618 = vmatmul.bf16.gmra.mxu0 %v10240
        %v10619 = vpop.f32.mrf.mxu0
        %v10620 = vadd.f32 0.0, %v10619
        %v10621 = vpop.f32.mrf.mxu0
        %v10622 = vadd.f32 0.0, %v10621
        %10623 = vmatmul.bf16.gmra.mxu0 %v10242
        %v10624 = vpop.f32.mrf.mxu0
        %v10625 = vadd.f32 0.0, %v10624
        %v10626 = vpop.f32.mrf.mxu0
        %v10627 = vadd.f32 0.0, %v10626
        %10628 = vmatmul.bf16.gmra.mxu0 %v10244
        %v10629 = vpop.f32.mrf.mxu0
        %v10630 = vadd.f32 0.0, %v10629
        %v10631 = vpop.f32.mrf.mxu0
        %v10632 = vadd.f32 0.0, %v10631
        %10633 = vmatmul.bf16.gmra.mxu0 %v10246
        %v10634 = vpop.f32.mrf.mxu0
        %v10635 = vadd.f32 0.0, %v10634
        %v10636 = vpop.f32.mrf.mxu0
        %v10637 = vadd.f32 0.0, %v10636
        %10638 = vmatmul.bf16.gmra.mxu0 %v10248
        %v10639 = vpop.f32.mrf.mxu0
        %v10640 = vadd.f32 0.0, %v10639
        %v10641 = vpop.f32.mrf.mxu0
        %v10642 = vadd.f32 0.0, %v10641
        %10643 = vmatmul.bf16.gmra.mxu0 %v10250
        %v10644 = vpop.f32.mrf.mxu0
        %v10645 = vadd.f32 0.0, %v10644
        %v10646 = vpop.f32.mrf.mxu0
        %v10647 = vadd.f32 0.0, %v10646
        %10648 = vmatmul.bf16.gmra.mxu0 %v10252
        %v10649 = vpop.f32.mrf.mxu0
        %v10650 = vadd.f32 0.0, %v10649
        %v10651 = vpop.f32.mrf.mxu0
        %v10652 = vadd.f32 0.0, %v10651
        %10653 = vmatmul.bf16.gmra.mxu0 %v10254
        %v10654 = vpop.f32.mrf.mxu0
        %v10655 = vadd.f32 0.0, %v10654
        %v10656 = vpop.f32.mrf.mxu0
        %v10657 = vadd.f32 0.0, %v10656
        %10658 = vmatmul.bf16.gmra.mxu0 %v10256
        %v10659 = vpop.f32.mrf.mxu0
        %v10660 = vadd.f32 0.0, %v10659
        %v10661 = vpop.f32.mrf.mxu0
        %v10662 = vadd.f32 0.0, %v10661
        %10663 = vmatmul.bf16.gmra.mxu0 %v10258
        %v10664 = vpop.f32.mrf.mxu0
        %v10665 = vadd.f32 0.0, %v10664
        %v10666 = vpop.f32.mrf.mxu0
        %v10667 = vadd.f32 0.0, %v10666
        %10668 = vdwg.mxu0
        %10669 = vmatpush.bf16.msra.mxu0 %v10512
        %10670 = vmatpush.bf16.msra.mxu0 %v10508
        %10671 = vmatpush.bf16.msra.mxu0 %v10504
        %10672 = vmatpush.bf16.msra.mxu0 %v10500
        %10673 = vmatpush.bf16.msra.mxu0 %v10496
        %10674 = vmatpush.bf16.msra.mxu0 %v10492
        %10675 = vmatpush.bf16.msra.mxu0 %v10488
        %10676 = vmatpush.bf16.msra.mxu0 %v10484
        %10677 = vmatmul.bf16.gmra.mxu0 %v10229
        %v10678 = vpop.f32.mrf.mxu0
        %v10679 = vadd.f32 %v10590, %v10678
        %v10680 = vpop.f32.mrf.mxu0
        %v10681 = vadd.f32 %v10592, %v10680
        %10682 = vmatmul.bf16.gmra.mxu0 %v10231
        %v10683 = vpop.f32.mrf.mxu0
        %v10684 = vadd.f32 %v10595, %v10683
        %v10685 = vpop.f32.mrf.mxu0
        %v10686 = vadd.f32 %v10597, %v10685
        %10687 = vmatmul.bf16.gmra.mxu0 %v10233
        %v10688 = vpop.f32.mrf.mxu0
        %v10689 = vadd.f32 %v10600, %v10688
        %v10690 = vpop.f32.mrf.mxu0
        %v10691 = vadd.f32 %v10602, %v10690
        %10692 = vmatmul.bf16.gmra.mxu0 %v10235
        %v10693 = vpop.f32.mrf.mxu0
        %v10694 = vadd.f32 %v10605, %v10693
        %v10695 = vpop.f32.mrf.mxu0
        %v10696 = vadd.f32 %v10607, %v10695
        %10697 = vmatmul.bf16.gmra.mxu0 %v10237
        %v10698 = vpop.f32.mrf.mxu0
        %v10699 = vadd.f32 %v10610, %v10698
        %v10700 = vpop.f32.mrf.mxu0
        %v10701 = vadd.f32 %v10612, %v10700
        %10702 = vmatmul.bf16.gmra.mxu0 %v10239
        %v10703 = vpop.f32.mrf.mxu0
        %v10704 = vadd.f32 %v10615, %v10703
        %v10705 = vpop.f32.mrf.mxu0
        %v10706 = vadd.f32 %v10617, %v10705
        %10707 = vmatmul.bf16.gmra.mxu0 %v10241
        %v10708 = vpop.f32.mrf.mxu0
        %v10709 = vadd.f32 %v10620, %v10708
        %v10710 = vpop.f32.mrf.mxu0
        %v10711 = vadd.f32 %v10622, %v10710
        %10712 = vmatmul.bf16.gmra.mxu0 %v10243
        %v10713 = vpop.f32.mrf.mxu0
        %v10714 = vadd.f32 %v10625, %v10713
        %v10715 = vpop.f32.mrf.mxu0
        %v10716 = vadd.f32 %v10627, %v10715
        %10717 = vmatmul.bf16.gmra.mxu0 %v10245
        %v10718 = vpop.f32.mrf.mxu0
        %v10719 = vadd.f32 %v10630, %v10718
        %v10720 = vpop.f32.mrf.mxu0
        %v10721 = vadd.f32 %v10632, %v10720
        %10722 = vmatmul.bf16.gmra.mxu0 %v10247
        %v10723 = vpop.f32.mrf.mxu0
        %v10724 = vadd.f32 %v10635, %v10723
        %v10725 = vpop.f32.mrf.mxu0
        %v10726 = vadd.f32 %v10637, %v10725
        %10727 = vmatmul.bf16.gmra.mxu0 %v10249
        %v10728 = vpop.f32.mrf.mxu0
        %v10729 = vadd.f32 %v10640, %v10728
        %v10730 = vpop.f32.mrf.mxu0
        %v10731 = vadd.f32 %v10642, %v10730
        %10732 = vmatmul.bf16.gmra.mxu0 %v10251
        %v10733 = vpop.f32.mrf.mxu0
        %v10734 = vadd.f32 %v10645, %v10733
        %v10735 = vpop.f32.mrf.mxu0
        %v10736 = vadd.f32 %v10647, %v10735
        %10737 = vmatmul.bf16.gmra.mxu0 %v10253
        %v10738 = vpop.f32.mrf.mxu0
        %v10739 = vadd.f32 %v10650, %v10738
        %v10740 = vpop.f32.mrf.mxu0
        %v10741 = vadd.f32 %v10652, %v10740
        %10742 = vmatmul.bf16.gmra.mxu0 %v10255
        %v10743 = vpop.f32.mrf.mxu0
        %v10744 = vadd.f32 %v10655, %v10743
        %v10745 = vpop.f32.mrf.mxu0
        %v10746 = vadd.f32 %v10657, %v10745
        %10747 = vmatmul.bf16.gmra.mxu0 %v10257
        %v10748 = vpop.f32.mrf.mxu0
        %v10749 = vadd.f32 %v10660, %v10748
        %v10750 = vpop.f32.mrf.mxu0
        %v10751 = vadd.f32 %v10662, %v10750
        %10752 = vmatmul.bf16.gmra.mxu0 %v10259
        %v10753 = vpop.f32.mrf.mxu0
        %v10754 = vadd.f32 %v10665, %v10753
        %v10755 = vpop.f32.mrf.mxu0
        %v10756 = vadd.f32 %v10667, %v10755
        %10757 = vdwg.mxu0
        %10758 = vmatpush.bf16.msra.mxu0 %v10481
        %10759 = vmatpush.bf16.msra.mxu0 %v10477
        %10760 = vmatpush.bf16.msra.mxu0 %v10473
        %10761 = vmatpush.bf16.msra.mxu0 %v10469
        %10762 = vmatpush.bf16.msra.mxu0 %v10465
        %10763 = vmatpush.bf16.msra.mxu0 %v10461
        %10764 = vmatpush.bf16.msra.mxu0 %v10457
        %10765 = vmatpush.bf16.msra.mxu0 %v10453
        %10766 = vmatmul.bf16.gmra.mxu0 %v10228
        %v10767 = vpop.f32.mrf.mxu0
        %v10768 = vadd.f32 0.0, %v10767
        %v10769 = vpop.f32.mrf.mxu0
        %v10770 = vadd.f32 0.0, %v10769
        %10771 = vmatmul.bf16.gmra.mxu0 %v10230
        %v10772 = vpop.f32.mrf.mxu0
        %v10773 = vadd.f32 0.0, %v10772
        %v10774 = vpop.f32.mrf.mxu0
        %v10775 = vadd.f32 0.0, %v10774
        %10776 = vmatmul.bf16.gmra.mxu0 %v10232
        %v10777 = vpop.f32.mrf.mxu0
        %v10778 = vadd.f32 0.0, %v10777
        %v10779 = vpop.f32.mrf.mxu0
        %v10780 = vadd.f32 0.0, %v10779
        %10781 = vmatmul.bf16.gmra.mxu0 %v10234
        %v10782 = vpop.f32.mrf.mxu0
        %v10783 = vadd.f32 0.0, %v10782
        %v10784 = vpop.f32.mrf.mxu0
        %v10785 = vadd.f32 0.0, %v10784
        %10786 = vmatmul.bf16.gmra.mxu0 %v10236
        %v10787 = vpop.f32.mrf.mxu0
        %v10788 = vadd.f32 0.0, %v10787
        %v10789 = vpop.f32.mrf.mxu0
        %v10790 = vadd.f32 0.0, %v10789
        %10791 = vmatmul.bf16.gmra.mxu0 %v10238
        %v10792 = vpop.f32.mrf.mxu0
        %v10793 = vadd.f32 0.0, %v10792
        %v10794 = vpop.f32.mrf.mxu0
        %v10795 = vadd.f32 0.0, %v10794
        %10796 = vmatmul.bf16.gmra.mxu0 %v10240
        %v10797 = vpop.f32.mrf.mxu0
        %v10798 = vadd.f32 0.0, %v10797
        %v10799 = vpop.f32.mrf.mxu0
        %v10800 = vadd.f32 0.0, %v10799
        %10801 = vmatmul.bf16.gmra.mxu0 %v10242
        %v10802 = vpop.f32.mrf.mxu0
        %v10803 = vadd.f32 0.0, %v10802
        %v10804 = vpop.f32.mrf.mxu0
        %v10805 = vadd.f32 0.0, %v10804
        %10806 = vmatmul.bf16.gmra.mxu0 %v10244
        %v10807 = vpop.f32.mrf.mxu0
        %v10808 = vadd.f32 0.0, %v10807
        %v10809 = vpop.f32.mrf.mxu0
        %v10810 = vadd.f32 0.0, %v10809
        %10811 = vmatmul.bf16.gmra.mxu0 %v10246
        %v10812 = vpop.f32.mrf.mxu0
        %v10813 = vadd.f32 0.0, %v10812
        %v10814 = vpop.f32.mrf.mxu0
        %v10815 = vadd.f32 0.0, %v10814
        %10816 = vmatmul.bf16.gmra.mxu0 %v10248
        %v10817 = vpop.f32.mrf.mxu0
        %v10818 = vadd.f32 0.0, %v10817
        %v10819 = vpop.f32.mrf.mxu0
        %v10820 = vadd.f32 0.0, %v10819
        %10821 = vmatmul.bf16.gmra.mxu0 %v10250
        %v10822 = vpop.f32.mrf.mxu0
        %v10823 = vadd.f32 0.0, %v10822
        %v10824 = vpop.f32.mrf.mxu0
        %v10825 = vadd.f32 0.0, %v10824
        %10826 = vmatmul.bf16.gmra.mxu0 %v10252
        %v10827 = vpop.f32.mrf.mxu0
        %v10828 = vadd.f32 0.0, %v10827
        %v10829 = vpop.f32.mrf.mxu0
        %v10830 = vadd.f32 0.0, %v10829
        %10831 = vmatmul.bf16.gmra.mxu0 %v10254
        %v10832 = vpop.f32.mrf.mxu0
        %v10833 = vadd.f32 0.0, %v10832
        %v10834 = vpop.f32.mrf.mxu0
        %v10835 = vadd.f32 0.0, %v10834
        %10836 = vmatmul.bf16.gmra.mxu0 %v10256
        %v10837 = vpop.f32.mrf.mxu0
        %v10838 = vadd.f32 0.0, %v10837
        %v10839 = vpop.f32.mrf.mxu0
        %v10840 = vadd.f32 0.0, %v10839
        %10841 = vmatmul.bf16.gmra.mxu0 %v10258
        %v10842 = vpop.f32.mrf.mxu0
        %v10843 = vadd.f32 0.0, %v10842
        %v10844 = vpop.f32.mrf.mxu0
        %v10845 = vadd.f32 0.0, %v10844
        %10846 = vdwg.mxu0
        %10847 = vmatpush.bf16.msra.mxu0 %v10513
        %10848 = vmatpush.bf16.msra.mxu0 %v10509
        %10849 = vmatpush.bf16.msra.mxu0 %v10505
        %10850 = vmatpush.bf16.msra.mxu0 %v10501
        %10851 = vmatpush.bf16.msra.mxu0 %v10497
        %10852 = vmatpush.bf16.msra.mxu0 %v10493
        %10853 = vmatpush.bf16.msra.mxu0 %v10489
        %10854 = vmatpush.bf16.msra.mxu0 %v10485
        %10855 = vmatmul.bf16.gmra.mxu0 %v10229
        %v10856 = vpop.f32.mrf.mxu0
        %v10857 = vadd.f32 %v10768, %v10856
        %v10858 = vpop.f32.mrf.mxu0
        %v10859 = vadd.f32 %v10770, %v10858
        %10860 = vmatmul.bf16.gmra.mxu0 %v10231
        %v10861 = vpop.f32.mrf.mxu0
        %v10862 = vadd.f32 %v10773, %v10861
        %v10863 = vpop.f32.mrf.mxu0
        %v10864 = vadd.f32 %v10775, %v10863
        %10865 = vmatmul.bf16.gmra.mxu0 %v10233
        %v10866 = vpop.f32.mrf.mxu0
        %v10867 = vadd.f32 %v10778, %v10866
        %v10868 = vpop.f32.mrf.mxu0
        %v10869 = vadd.f32 %v10780, %v10868
        %10870 = vmatmul.bf16.gmra.mxu0 %v10235
        %v10871 = vpop.f32.mrf.mxu0
        %v10872 = vadd.f32 %v10783, %v10871
        %v10873 = vpop.f32.mrf.mxu0
        %v10874 = vadd.f32 %v10785, %v10873
        %10875 = vmatmul.bf16.gmra.mxu0 %v10237
        %v10876 = vpop.f32.mrf.mxu0
        %v10877 = vadd.f32 %v10788, %v10876
        %v10878 = vpop.f32.mrf.mxu0
        %v10879 = vadd.f32 %v10790, %v10878
        %10880 = vmatmul.bf16.gmra.mxu0 %v10239
        %v10881 = vpop.f32.mrf.mxu0
        %v10882 = vadd.f32 %v10793, %v10881
        %v10883 = vpop.f32.mrf.mxu0
        %v10884 = vadd.f32 %v10795, %v10883
        %10885 = vmatmul.bf16.gmra.mxu0 %v10241
        %v10886 = vpop.f32.mrf.mxu0
        %v10887 = vadd.f32 %v10798, %v10886
        %v10888 = vpop.f32.mrf.mxu0
        %v10889 = vadd.f32 %v10800, %v10888
        %10890 = vmatmul.bf16.gmra.mxu0 %v10243
        %v10891 = vpop.f32.mrf.mxu0
        %v10892 = vadd.f32 %v10803, %v10891
        %v10893 = vpop.f32.mrf.mxu0
        %v10894 = vadd.f32 %v10805, %v10893
        %10895 = vmatmul.bf16.gmra.mxu0 %v10245
        %v10896 = vpop.f32.mrf.mxu0
        %v10897 = vadd.f32 %v10808, %v10896
        %v10898 = vpop.f32.mrf.mxu0
        %v10899 = vadd.f32 %v10810, %v10898
        %10900 = vmatmul.bf16.gmra.mxu0 %v10247
        %v10901 = vpop.f32.mrf.mxu0
        %v10902 = vadd.f32 %v10813, %v10901
        %v10903 = vpop.f32.mrf.mxu0
        %v10904 = vadd.f32 %v10815, %v10903
        %10905 = vmatmul.bf16.gmra.mxu0 %v10249
        %v10906 = vpop.f32.mrf.mxu0
        %v10907 = vadd.f32 %v10818, %v10906
        %v10908 = vpop.f32.mrf.mxu0
        %v10909 = vadd.f32 %v10820, %v10908
        %10910 = vmatmul.bf16.gmra.mxu0 %v10251
        %v10911 = vpop.f32.mrf.mxu0
        %v10912 = vadd.f32 %v10823, %v10911
        %v10913 = vpop.f32.mrf.mxu0
        %v10914 = vadd.f32 %v10825, %v10913
        %10915 = vmatmul.bf16.gmra.mxu0 %v10253
        %v10916 = vpop.f32.mrf.mxu0
        %v10917 = vadd.f32 %v10828, %v10916
        %v10918 = vpop.f32.mrf.mxu0
        %v10919 = vadd.f32 %v10830, %v10918
        %10920 = vmatmul.bf16.gmra.mxu0 %v10255
        %v10921 = vpop.f32.mrf.mxu0
        %v10922 = vadd.f32 %v10833, %v10921
        %v10923 = vpop.f32.mrf.mxu0
        %v10924 = vadd.f32 %v10835, %v10923
        %10925 = vmatmul.bf16.gmra.mxu0 %v10257
        %v10926 = vpop.f32.mrf.mxu0
        %v10927 = vadd.f32 %v10838, %v10926
        %v10928 = vpop.f32.mrf.mxu0
        %v10929 = vadd.f32 %v10840, %v10928
        %10930 = vmatmul.bf16.gmra.mxu0 %v10259
        %v10931 = vpop.f32.mrf.mxu0
        %v10932 = vadd.f32 %v10843, %v10931
        %v10933 = vpop.f32.mrf.mxu0
        %v10934 = vadd.f32 %v10845, %v10933
        %10935 = vdwg.mxu0
        %10936 = vmatpush.bf16.msra.mxu0 %v10482
        %10937 = vmatpush.bf16.msra.mxu0 %v10478
        %10938 = vmatpush.bf16.msra.mxu0 %v10474
        %10939 = vmatpush.bf16.msra.mxu0 %v10470
        %10940 = vmatpush.bf16.msra.mxu0 %v10466
        %10941 = vmatpush.bf16.msra.mxu0 %v10462
        %10942 = vmatpush.bf16.msra.mxu0 %v10458
        %10943 = vmatpush.bf16.msra.mxu0 %v10454
        %10944 = vmatmul.bf16.gmra.mxu0 %v10228
        %v10945 = vpop.f32.mrf.mxu0
        %v10946 = vadd.f32 0.0, %v10945
        %v10947 = vpop.f32.mrf.mxu0
        %v10948 = vadd.f32 0.0, %v10947
        %10949 = vmatmul.bf16.gmra.mxu0 %v10230
        %v10950 = vpop.f32.mrf.mxu0
        %v10951 = vadd.f32 0.0, %v10950
        %v10952 = vpop.f32.mrf.mxu0
        %v10953 = vadd.f32 0.0, %v10952
        %10954 = vmatmul.bf16.gmra.mxu0 %v10232
        %v10955 = vpop.f32.mrf.mxu0
        %v10956 = vadd.f32 0.0, %v10955
        %v10957 = vpop.f32.mrf.mxu0
        %v10958 = vadd.f32 0.0, %v10957
        %10959 = vmatmul.bf16.gmra.mxu0 %v10234
        %v10960 = vpop.f32.mrf.mxu0
        %v10961 = vadd.f32 0.0, %v10960
        %v10962 = vpop.f32.mrf.mxu0
        %v10963 = vadd.f32 0.0, %v10962
        %10964 = vmatmul.bf16.gmra.mxu0 %v10236
        %v10965 = vpop.f32.mrf.mxu0
        %v10966 = vadd.f32 0.0, %v10965
        %v10967 = vpop.f32.mrf.mxu0
        %v10968 = vadd.f32 0.0, %v10967
        %10969 = vmatmul.bf16.gmra.mxu0 %v10238
        %v10970 = vpop.f32.mrf.mxu0
        %v10971 = vadd.f32 0.0, %v10970
        %v10972 = vpop.f32.mrf.mxu0
        %v10973 = vadd.f32 0.0, %v10972
        %10974 = vmatmul.bf16.gmra.mxu0 %v10240
        %v10975 = vpop.f32.mrf.mxu0
        %v10976 = vadd.f32 0.0, %v10975
        %v10977 = vpop.f32.mrf.mxu0
        %v10978 = vadd.f32 0.0, %v10977
        %10979 = vmatmul.bf16.gmra.mxu0 %v10242
        %v10980 = vpop.f32.mrf.mxu0
        %v10981 = vadd.f32 0.0, %v10980
        %v10982 = vpop.f32.mrf.mxu0
        %v10983 = vadd.f32 0.0, %v10982
        %10984 = vmatmul.bf16.gmra.mxu0 %v10244
        %v10985 = vpop.f32.mrf.mxu0
        %v10986 = vadd.f32 0.0, %v10985
        %v10987 = vpop.f32.mrf.mxu0
        %v10988 = vadd.f32 0.0, %v10987
        %10989 = vmatmul.bf16.gmra.mxu0 %v10246
        %v10990 = vpop.f32.mrf.mxu0
        %v10991 = vadd.f32 0.0, %v10990
        %v10992 = vpop.f32.mrf.mxu0
        %v10993 = vadd.f32 0.0, %v10992
        %10994 = vmatmul.bf16.gmra.mxu0 %v10248
        %v10995 = vpop.f32.mrf.mxu0
        %v10996 = vadd.f32 0.0, %v10995
        %v10997 = vpop.f32.mrf.mxu0
        %v10998 = vadd.f32 0.0, %v10997
        %10999 = vmatmul.bf16.gmra.mxu0 %v10250
        %v11000 = vpop.f32.mrf.mxu0
        %v11001 = vadd.f32 0.0, %v11000
        %v11002 = vpop.f32.mrf.mxu0
        %v11003 = vadd.f32 0.0, %v11002
        %11004 = vmatmul.bf16.gmra.mxu0 %v10252
        %v11005 = vpop.f32.mrf.mxu0
        %v11006 = vadd.f32 0.0, %v11005
        %v11007 = vpop.f32.mrf.mxu0
        %v11008 = vadd.f32 0.0, %v11007
        %11009 = vmatmul.bf16.gmra.mxu0 %v10254
        %v11010 = vpop.f32.mrf.mxu0
        %v11011 = vadd.f32 0.0, %v11010
        %v11012 = vpop.f32.mrf.mxu0
        %v11013 = vadd.f32 0.0, %v11012
        %11014 = vmatmul.bf16.gmra.mxu0 %v10256
        %v11015 = vpop.f32.mrf.mxu0
        %v11016 = vadd.f32 0.0, %v11015
        %v11017 = vpop.f32.mrf.mxu0
        %v11018 = vadd.f32 0.0, %v11017
        %11019 = vmatmul.bf16.gmra.mxu0 %v10258
        %v11020 = vpop.f32.mrf.mxu0
        %v11021 = vadd.f32 0.0, %v11020
        %v11022 = vpop.f32.mrf.mxu0
        %v11023 = vadd.f32 0.0, %v11022
        %11024 = vdwg.mxu0
        %11025 = vmatpush.bf16.msra.mxu0 %v10514
        %11026 = vmatpush.bf16.msra.mxu0 %v10510
        %11027 = vmatpush.bf16.msra.mxu0 %v10506
        %11028 = vmatpush.bf16.msra.mxu0 %v10502
        %11029 = vmatpush.bf16.msra.mxu0 %v10498
        %11030 = vmatpush.bf16.msra.mxu0 %v10494
        %11031 = vmatpush.bf16.msra.mxu0 %v10490
        %11032 = vmatpush.bf16.msra.mxu0 %v10486
        %11033 = vmatmul.bf16.gmra.mxu0 %v10229
        %v11034 = vpop.f32.mrf.mxu0
        %v11035 = vadd.f32 %v10946, %v11034
        %v11036 = vpop.f32.mrf.mxu0
        %v11037 = vadd.f32 %v10948, %v11036
        %11038 = vmatmul.bf16.gmra.mxu0 %v10231
        %v11039 = vpop.f32.mrf.mxu0
        %v11040 = vadd.f32 %v10951, %v11039
        %v11041 = vpop.f32.mrf.mxu0
        %v11042 = vadd.f32 %v10953, %v11041
        %11043 = vmatmul.bf16.gmra.mxu0 %v10233
        %v11044 = vpop.f32.mrf.mxu0
        %v11045 = vadd.f32 %v10956, %v11044
        %v11046 = vpop.f32.mrf.mxu0
        %v11047 = vadd.f32 %v10958, %v11046
        %11048 = vmatmul.bf16.gmra.mxu0 %v10235
        %v11049 = vpop.f32.mrf.mxu0
        %v11050 = vadd.f32 %v10961, %v11049
        %v11051 = vpop.f32.mrf.mxu0
        %v11052 = vadd.f32 %v10963, %v11051
        %11053 = vmatmul.bf16.gmra.mxu0 %v10237
        %v11054 = vpop.f32.mrf.mxu0
        %v11055 = vadd.f32 %v10966, %v11054
        %v11056 = vpop.f32.mrf.mxu0
        %v11057 = vadd.f32 %v10968, %v11056
        %11058 = vmatmul.bf16.gmra.mxu0 %v10239
        %v11059 = vpop.f32.mrf.mxu0
        %v11060 = vadd.f32 %v10971, %v11059
        %v11061 = vpop.f32.mrf.mxu0
        %v11062 = vadd.f32 %v10973, %v11061
        %11063 = vmatmul.bf16.gmra.mxu0 %v10241
        %v11064 = vpop.f32.mrf.mxu0
        %v11065 = vadd.f32 %v10976, %v11064
        %v11066 = vpop.f32.mrf.mxu0
        %v11067 = vadd.f32 %v10978, %v11066
        %11068 = vmatmul.bf16.gmra.mxu0 %v10243
        %v11069 = vpop.f32.mrf.mxu0
        %v11070 = vadd.f32 %v10981, %v11069
        %v11071 = vpop.f32.mrf.mxu0
        %v11072 = vadd.f32 %v10983, %v11071
        %11073 = vmatmul.bf16.gmra.mxu0 %v10245
        %v11074 = vpop.f32.mrf.mxu0
        %v11075 = vadd.f32 %v10986, %v11074
        %v11076 = vpop.f32.mrf.mxu0
        %v11077 = vadd.f32 %v10988, %v11076
        %11078 = vmatmul.bf16.gmra.mxu0 %v10247
        %v11079 = vpop.f32.mrf.mxu0
        %v11080 = vadd.f32 %v10991, %v11079
        %v11081 = vpop.f32.mrf.mxu0
        %v11082 = vadd.f32 %v10993, %v11081
        %11083 = vmatmul.bf16.gmra.mxu0 %v10249
        %v11084 = vpop.f32.mrf.mxu0
        %v11085 = vadd.f32 %v10996, %v11084
        %v11086 = vpop.f32.mrf.mxu0
        %v11087 = vadd.f32 %v10998, %v11086
        %11088 = vmatmul.bf16.gmra.mxu0 %v10251
        %v11089 = vpop.f32.mrf.mxu0
        %v11090 = vadd.f32 %v11001, %v11089
        %v11091 = vpop.f32.mrf.mxu0
        %v11092 = vadd.f32 %v11003, %v11091
        %11093 = vmatmul.bf16.gmra.mxu0 %v10253
        %v11094 = vpop.f32.mrf.mxu0
        %v11095 = vadd.f32 %v11006, %v11094
        %v11096 = vpop.f32.mrf.mxu0
        %v11097 = vadd.f32 %v11008, %v11096
        %11098 = vmatmul.bf16.gmra.mxu0 %v10255
        %v11099 = vpop.f32.mrf.mxu0
        %v11100 = vadd.f32 %v11011, %v11099
        %v11101 = vpop.f32.mrf.mxu0
        %v11102 = vadd.f32 %v11013, %v11101
        %11103 = vmatmul.bf16.gmra.mxu0 %v10257
        %v11104 = vpop.f32.mrf.mxu0
        %v11105 = vadd.f32 %v11016, %v11104
        %v11106 = vpop.f32.mrf.mxu0
        %v11107 = vadd.f32 %v11018, %v11106
        %11108 = vmatmul.bf16.gmra.mxu0 %v10259
        %v11109 = vpop.f32.mrf.mxu0
        %v11110 = vadd.f32 %v11021, %v11109
        %v11111 = vpop.f32.mrf.mxu0
        %v11112 = vadd.f32 %v11023, %v11111
        %11113 = vdwg.mxu0
        %11114 = vmatpush.bf16.msra.mxu0 %v10483
        %11115 = vmatpush.bf16.msra.mxu0 %v10479
        %11116 = vmatpush.bf16.msra.mxu0 %v10475
        %11117 = vmatpush.bf16.msra.mxu0 %v10471
        %11118 = vmatpush.bf16.msra.mxu0 %v10467
        %11119 = vmatpush.bf16.msra.mxu0 %v10463
        %11120 = vmatpush.bf16.msra.mxu0 %v10459
        %11121 = vmatpush.bf16.msra.mxu0 %v10455
        %11122 = vmatmul.bf16.gmra.mxu0 %v10228
        %v11123 = vpop.f32.mrf.mxu0
        %v11124 = vadd.f32 0.0, %v11123
        %v11125 = vpop.f32.mrf.mxu0
        %v11126 = vadd.f32 0.0, %v11125
        %11127 = vmatmul.bf16.gmra.mxu0 %v10230
        %v11128 = vpop.f32.mrf.mxu0
        %v11129 = vadd.f32 0.0, %v11128
        %v11130 = vpop.f32.mrf.mxu0
        %v11131 = vadd.f32 0.0, %v11130
        %11132 = vmatmul.bf16.gmra.mxu0 %v10232
        %v11133 = vpop.f32.mrf.mxu0
        %v11134 = vadd.f32 0.0, %v11133
        %v11135 = vpop.f32.mrf.mxu0
        %v11136 = vadd.f32 0.0, %v11135
        %11137 = vmatmul.bf16.gmra.mxu0 %v10234
        %v11138 = vpop.f32.mrf.mxu0
        %v11139 = vadd.f32 0.0, %v11138
        %v11140 = vpop.f32.mrf.mxu0
        %v11141 = vadd.f32 0.0, %v11140
        %11142 = vmatmul.bf16.gmra.mxu0 %v10236
        %v11143 = vpop.f32.mrf.mxu0
        %v11144 = vadd.f32 0.0, %v11143
        %v11145 = vpop.f32.mrf.mxu0
        %v11146 = vadd.f32 0.0, %v11145
        %11147 = vmatmul.bf16.gmra.mxu0 %v10238
        %v11148 = vpop.f32.mrf.mxu0
        %v11149 = vadd.f32 0.0, %v11148
        %v11150 = vpop.f32.mrf.mxu0
        %v11151 = vadd.f32 0.0, %v11150
        %11152 = vmatmul.bf16.gmra.mxu0 %v10240
        %v11153 = vpop.f32.mrf.mxu0
        %v11154 = vadd.f32 0.0, %v11153
        %v11155 = vpop.f32.mrf.mxu0
        %v11156 = vadd.f32 0.0, %v11155
        %11157 = vmatmul.bf16.gmra.mxu0 %v10242
        %v11158 = vpop.f32.mrf.mxu0
        %v11159 = vadd.f32 0.0, %v11158
        %v11160 = vpop.f32.mrf.mxu0
        %v11161 = vadd.f32 0.0, %v11160
        %11162 = vmatmul.bf16.gmra.mxu0 %v10244
        %v11163 = vpop.f32.mrf.mxu0
        %v11164 = vadd.f32 0.0, %v11163
        %v11165 = vpop.f32.mrf.mxu0
        %v11166 = vadd.f32 0.0, %v11165
        %11167 = vmatmul.bf16.gmra.mxu0 %v10246
        %v11168 = vpop.f32.mrf.mxu0
        %v11169 = vadd.f32 0.0, %v11168
        %v11170 = vpop.f32.mrf.mxu0
        %v11171 = vadd.f32 0.0, %v11170
        %11172 = vmatmul.bf16.gmra.mxu0 %v10248
        %v11173 = vpop.f32.mrf.mxu0
        %v11174 = vadd.f32 0.0, %v11173
        %v11175 = vpop.f32.mrf.mxu0
        %v11176 = vadd.f32 0.0, %v11175
        %11177 = vmatmul.bf16.gmra.mxu0 %v10250
        %v11178 = vpop.f32.mrf.mxu0
        %v11179 = vadd.f32 0.0, %v11178
        %v11180 = vpop.f32.mrf.mxu0
        %v11181 = vadd.f32 0.0, %v11180
        %11182 = vmatmul.bf16.gmra.mxu0 %v10252
        %v11183 = vpop.f32.mrf.mxu0
        %v11184 = vadd.f32 0.0, %v11183
        %v11185 = vpop.f32.mrf.mxu0
        %v11186 = vadd.f32 0.0, %v11185
        %11187 = vmatmul.bf16.gmra.mxu0 %v10254
        %v11188 = vpop.f32.mrf.mxu0
        %v11189 = vadd.f32 0.0, %v11188
        %v11190 = vpop.f32.mrf.mxu0
        %v11191 = vadd.f32 0.0, %v11190
        %11192 = vmatmul.bf16.gmra.mxu0 %v10256
        %v11193 = vpop.f32.mrf.mxu0
        %v11194 = vadd.f32 0.0, %v11193
        %v11195 = vpop.f32.mrf.mxu0
        %v11196 = vadd.f32 0.0, %v11195
        %11197 = vmatmul.bf16.gmra.mxu0 %v10258
        %v11198 = vpop.f32.mrf.mxu0
        %v11199 = vadd.f32 0.0, %v11198
        %v11200 = vpop.f32.mrf.mxu0
        %v11201 = vadd.f32 0.0, %v11200
        %11202 = vdwg.mxu0
        %11203 = vmatpush.bf16.msra.mxu0 %v10515
        %11204 = vmatpush.bf16.msra.mxu0 %v10511
        %11205 = vmatpush.bf16.msra.mxu0 %v10507
        %11206 = vmatpush.bf16.msra.mxu0 %v10503
        %11207 = vmatpush.bf16.msra.mxu0 %v10499
        %11208 = vmatpush.bf16.msra.mxu0 %v10495
        %11209 = vmatpush.bf16.msra.mxu0 %v10491
        %11210 = vmatpush.bf16.msra.mxu0 %v10487
        %11211 = vmatmul.bf16.gmra.mxu0 %v10229
        %v11212 = vpop.f32.mrf.mxu0
        %v11213 = vadd.f32 %v11124, %v11212
        %v11214 = vpop.f32.mrf.mxu0
        %v11215 = vadd.f32 %v11126, %v11214
        %11216 = vmatmul.bf16.gmra.mxu0 %v10231
        %v11217 = vpop.f32.mrf.mxu0
        %v11218 = vadd.f32 %v11129, %v11217
        %v11219 = vpop.f32.mrf.mxu0
        %v11220 = vadd.f32 %v11131, %v11219
        %11221 = vmatmul.bf16.gmra.mxu0 %v10233
        %v11222 = vpop.f32.mrf.mxu0
        %v11223 = vadd.f32 %v11134, %v11222
        %v11224 = vpop.f32.mrf.mxu0
        %v11225 = vadd.f32 %v11136, %v11224
        %11226 = vmatmul.bf16.gmra.mxu0 %v10235
        %v11227 = vpop.f32.mrf.mxu0
        %v11228 = vadd.f32 %v11139, %v11227
        %v11229 = vpop.f32.mrf.mxu0
        %v11230 = vadd.f32 %v11141, %v11229
        %11231 = vmatmul.bf16.gmra.mxu0 %v10237
        %v11232 = vpop.f32.mrf.mxu0
        %v11233 = vadd.f32 %v11144, %v11232
        %v11234 = vpop.f32.mrf.mxu0
        %v11235 = vadd.f32 %v11146, %v11234
        %11236 = vmatmul.bf16.gmra.mxu0 %v10239
        %v11237 = vpop.f32.mrf.mxu0
        %v11238 = vadd.f32 %v11149, %v11237
        %v11239 = vpop.f32.mrf.mxu0
        %v11240 = vadd.f32 %v11151, %v11239
        %11241 = vmatmul.bf16.gmra.mxu0 %v10241
        %v11242 = vpop.f32.mrf.mxu0
        %v11243 = vadd.f32 %v11154, %v11242
        %v11244 = vpop.f32.mrf.mxu0
        %v11245 = vadd.f32 %v11156, %v11244
        %11246 = vmatmul.bf16.gmra.mxu0 %v10243
        %v11247 = vpop.f32.mrf.mxu0
        %v11248 = vadd.f32 %v11159, %v11247
        %v11249 = vpop.f32.mrf.mxu0
        %v11250 = vadd.f32 %v11161, %v11249
        %11251 = vmatmul.bf16.gmra.mxu0 %v10245
        %v11252 = vpop.f32.mrf.mxu0
        %v11253 = vadd.f32 %v11164, %v11252
        %v11254 = vpop.f32.mrf.mxu0
        %v11255 = vadd.f32 %v11166, %v11254
        %11256 = vmatmul.bf16.gmra.mxu0 %v10247
        %v11257 = vpop.f32.mrf.mxu0
        %v11258 = vadd.f32 %v11169, %v11257
        %v11259 = vpop.f32.mrf.mxu0
        %v11260 = vadd.f32 %v11171, %v11259
        %11261 = vmatmul.bf16.gmra.mxu0 %v10249
        %v11262 = vpop.f32.mrf.mxu0
        %v11263 = vadd.f32 %v11174, %v11262
        %v11264 = vpop.f32.mrf.mxu0
        %v11265 = vadd.f32 %v11176, %v11264
        %11266 = vmatmul.bf16.gmra.mxu0 %v10251
        %v11267 = vpop.f32.mrf.mxu0
        %v11268 = vadd.f32 %v11179, %v11267
        %v11269 = vpop.f32.mrf.mxu0
        %v11270 = vadd.f32 %v11181, %v11269
        %11271 = vmatmul.bf16.gmra.mxu0 %v10253
        %v11272 = vpop.f32.mrf.mxu0
        %v11273 = vadd.f32 %v11184, %v11272
        %v11274 = vpop.f32.mrf.mxu0
        %v11275 = vadd.f32 %v11186, %v11274
        %11276 = vmatmul.bf16.gmra.mxu0 %v10255
        %v11277 = vpop.f32.mrf.mxu0
        %v11278 = vadd.f32 %v11189, %v11277
        %v11279 = vpop.f32.mrf.mxu0
        %v11280 = vadd.f32 %v11191, %v11279
        %11281 = vmatmul.bf16.gmra.mxu0 %v10257
        %v11282 = vpop.f32.mrf.mxu0
        %v11283 = vadd.f32 %v11194, %v11282
        %v11284 = vpop.f32.mrf.mxu0
        %v11285 = vadd.f32 %v11196, %v11284
        %11286 = vmatmul.bf16.gmra.mxu0 %v10259
        %v11287 = vpop.f32.mrf.mxu0
        %v11288 = vadd.f32 %v11199, %v11287
        %v11289 = vpop.f32.mrf.mxu0
        %v11290 = vadd.f32 %v11201, %v11289
        %11291 = vdwg.mxu0
        %11292 = vst [vmem:[%s268] sm:$0xff] %v10679
        %11293 = vst [vmem:[%s268 + $0x8] sm:$0xff] %v10857
        %11294 = vst [vmem:[%s268 + $0x10] sm:$0xff] %v11035
        %11295 = vst [vmem:[%s268 + $0x18] sm:$0xff] %v11213
        %11296 = vst [vmem:[%s268 + $0x20] sm:$0xff] %v10681
        %11297 = vst [vmem:[%s268 + $0x28] sm:$0xff] %v10859
        %11298 = vst [vmem:[%s268 + $0x30] sm:$0xff] %v11037
        %11299 = vst [vmem:[%s268 + $0x38] sm:$0xff] %v11215
        %11300 = vst [vmem:[%s268 + $0x40] sm:$0xff] %v10684
        %11301 = vst [vmem:[%s268 + $0x48] sm:$0xff] %v10862
        %11302 = vst [vmem:[%s268 + $0x50] sm:$0xff] %v11040
        %11303 = vst [vmem:[%s268 + $0x58] sm:$0xff] %v11218
        %11304 = vst [vmem:[%s268 + $0x60] sm:$0xff] %v10686
        %11305 = vst [vmem:[%s268 + $0x68] sm:$0xff] %v10864
        %11306 = vst [vmem:[%s268 + $0x70] sm:$0xff] %v11042
        %11307 = vst [vmem:[%s268 + $0x78] sm:$0xff] %v11220
        %11308 = vst [vmem:[%s268 + $0x80] sm:$0xff] %v10689
        %11309 = vst [vmem:[%s268 + $0x88] sm:$0xff] %v10867
        %11310 = vst [vmem:[%s268 + $0x90] sm:$0xff] %v11045
        %11311 = vst [vmem:[%s268 + $0x98] sm:$0xff] %v11223
        %11312 = vst [vmem:[%s268 + $0xa0] sm:$0xff] %v10691
        %11313 = vst [vmem:[%s268 + $0xa8] sm:$0xff] %v10869
        %11314 = vst [vmem:[%s268 + $0xb0] sm:$0xff] %v11047
        %11315 = vst [vmem:[%s268 + $0xb8] sm:$0xff] %v11225
        %11316 = vst [vmem:[%s268 + $0xc0] sm:$0xff] %v10694
        %11317 = vst [vmem:[%s268 + $0xc8] sm:$0xff] %v10872
        %11318 = vst [vmem:[%s268 + $0xd0] sm:$0xff] %v11050
        %11319 = vst [vmem:[%s268 + $0xd8] sm:$0xff] %v11228
        %11320 = vst [vmem:[%s268 + $0xe0] sm:$0xff] %v10696
        %11321 = vst [vmem:[%s268 + $0xe8] sm:$0xff] %v10874
        %11322 = vst [vmem:[%s268 + $0xf0] sm:$0xff] %v11052
        %11323 = vst [vmem:[%s268 + $0xf8] sm:$0xff] %v11230
        %11324 = vst [vmem:[%s268 + $0x100] sm:$0xff] %v10699
        %11325 = vst [vmem:[%s268 + $0x108] sm:$0xff] %v10877
        %11326 = vst [vmem:[%s268 + $0x110] sm:$0xff] %v11055
        %11327 = vst [vmem:[%s268 + $0x118] sm:$0xff] %v11233
        %11328 = vst [vmem:[%s268 + $0x120] sm:$0xff] %v10701
        %11329 = vst [vmem:[%s268 + $0x128] sm:$0xff] %v10879
        %11330 = vst [vmem:[%s268 + $0x130] sm:$0xff] %v11057
        %11331 = vst [vmem:[%s268 + $0x138] sm:$0xff] %v11235
        %11332 = vst [vmem:[%s268 + $0x140] sm:$0xff] %v10704
        %11333 = vst [vmem:[%s268 + $0x148] sm:$0xff] %v10882
        %11334 = vst [vmem:[%s268 + $0x150] sm:$0xff] %v11060
        %11335 = vst [vmem:[%s268 + $0x158] sm:$0xff] %v11238
        %11336 = vst [vmem:[%s268 + $0x160] sm:$0xff] %v10706
        %11337 = vst [vmem:[%s268 + $0x168] sm:$0xff] %v10884
        %11338 = vst [vmem:[%s268 + $0x170] sm:$0xff] %v11062
        %11339 = vst [vmem:[%s268 + $0x178] sm:$0xff] %v11240
        %11340 = vst [vmem:[%s268 + $0x180] sm:$0xff] %v10709
        %11341 = vst [vmem:[%s268 + $0x188] sm:$0xff] %v10887
        %11342 = vst [vmem:[%s268 + $0x190] sm:$0xff] %v11065
        %11343 = vst [vmem:[%s268 + $0x198] sm:$0xff] %v11243
        %11344 = vst [vmem:[%s268 + $0x1a0] sm:$0xff] %v10711
        %11345 = vst [vmem:[%s268 + $0x1a8] sm:$0xff] %v10889
        %11346 = vst [vmem:[%s268 + $0x1b0] sm:$0xff] %v11067
        %11347 = vst [vmem:[%s268 + $0x1b8] sm:$0xff] %v11245
        %11348 = vst [vmem:[%s268 + $0x1c0] sm:$0xff] %v10714
        %11349 = vst [vmem:[%s268 + $0x1c8] sm:$0xff] %v10892
        %11350 = vst [vmem:[%s268 + $0x1d0] sm:$0xff] %v11070
        %11351 = vst [vmem:[%s268 + $0x1d8] sm:$0xff] %v11248
        %11352 = vst [vmem:[%s268 + $0x1e0] sm:$0xff] %v10716
        %11353 = vst [vmem:[%s268 + $0x1e8] sm:$0xff] %v10894
        %11354 = vst [vmem:[%s268 + $0x1f0] sm:$0xff] %v11072
        %11355 = vst [vmem:[%s268 + $0x1f8] sm:$0xff] %v11250
        %11356 = vst [vmem:[%s268 + $0x200] sm:$0xff] %v10719
        %11357 = vst [vmem:[%s268 + $0x208] sm:$0xff] %v10897
        %11358 = vst [vmem:[%s268 + $0x210] sm:$0xff] %v11075
        %11359 = vst [vmem:[%s268 + $0x218] sm:$0xff] %v11253
        %11360 = vst [vmem:[%s268 + $0x220] sm:$0xff] %v10721
        %11361 = vst [vmem:[%s268 + $0x228] sm:$0xff] %v10899
        %11362 = vst [vmem:[%s268 + $0x230] sm:$0xff] %v11077
        %11363 = vst [vmem:[%s268 + $0x238] sm:$0xff] %v11255
        %11364 = vst [vmem:[%s268 + $0x240] sm:$0xff] %v10724
        %11365 = vst [vmem:[%s268 + $0x248] sm:$0xff] %v10902
        %11366 = vst [vmem:[%s268 + $0x250] sm:$0xff] %v11080
        %11367 = vst [vmem:[%s268 + $0x258] sm:$0xff] %v11258
        %11368 = vst [vmem:[%s268 + $0x260] sm:$0xff] %v10726
        %11369 = vst [vmem:[%s268 + $0x268] sm:$0xff] %v10904
        %11370 = vst [vmem:[%s268 + $0x270] sm:$0xff] %v11082
        %11371 = vst [vmem:[%s268 + $0x278] sm:$0xff] %v11260
        %11372 = vst [vmem:[%s268 + $0x280] sm:$0xff] %v10729
        %11373 = vst [vmem:[%s268 + $0x288] sm:$0xff] %v10907
        %11374 = vst [vmem:[%s268 + $0x290] sm:$0xff] %v11085
        %11375 = vst [vmem:[%s268 + $0x298] sm:$0xff] %v11263
        %11376 = vst [vmem:[%s268 + $0x2a0] sm:$0xff] %v10731
        %11377 = vst [vmem:[%s268 + $0x2a8] sm:$0xff] %v10909
        %11378 = vst [vmem:[%s268 + $0x2b0] sm:$0xff] %v11087
        %11379 = vst [vmem:[%s268 + $0x2b8] sm:$0xff] %v11265
        %11380 = vst [vmem:[%s268 + $0x2c0] sm:$0xff] %v10734
        %11381 = vst [vmem:[%s268 + $0x2c8] sm:$0xff] %v10912
        %11382 = vst [vmem:[%s268 + $0x2d0] sm:$0xff] %v11090
        %11383 = vst [vmem:[%s268 + $0x2d8] sm:$0xff] %v11268
        %11384 = vst [vmem:[%s268 + $0x2e0] sm:$0xff] %v10736
        %11385 = vst [vmem:[%s268 + $0x2e8] sm:$0xff] %v10914
        %11386 = vst [vmem:[%s268 + $0x2f0] sm:$0xff] %v11092
        %11387 = vst [vmem:[%s268 + $0x2f8] sm:$0xff] %v11270
        %11388 = vst [vmem:[%s268 + $0x300] sm:$0xff] %v10739
        %11389 = vst [vmem:[%s268 + $0x308] sm:$0xff] %v10917
        %11390 = vst [vmem:[%s268 + $0x310] sm:$0xff] %v11095
        %11391 = vst [vmem:[%s268 + $0x318] sm:$0xff] %v11273
        %11392 = vst [vmem:[%s268 + $0x320] sm:$0xff] %v10741
        %11393 = vst [vmem:[%s268 + $0x328] sm:$0xff] %v10919
        %11394 = vst [vmem:[%s268 + $0x330] sm:$0xff] %v11097
        %11395 = vst [vmem:[%s268 + $0x338] sm:$0xff] %v11275
        %11396 = vst [vmem:[%s268 + $0x340] sm:$0xff] %v10744
        %11397 = vst [vmem:[%s268 + $0x348] sm:$0xff] %v10922
        %11398 = vst [vmem:[%s268 + $0x350] sm:$0xff] %v11100
        %11399 = vst [vmem:[%s268 + $0x358] sm:$0xff] %v11278
        %11400 = vst [vmem:[%s268 + $0x360] sm:$0xff] %v10746
        %11401 = vst [vmem:[%s268 + $0x368] sm:$0xff] %v10924
        %11402 = vst [vmem:[%s268 + $0x370] sm:$0xff] %v11102
        %11403 = vst [vmem:[%s268 + $0x378] sm:$0xff] %v11280
        %11404 = vst [vmem:[%s268 + $0x380] sm:$0xff] %v10749
        %11405 = vst [vmem:[%s268 + $0x388] sm:$0xff] %v10927
        %11406 = vst [vmem:[%s268 + $0x390] sm:$0xff] %v11105
        %11407 = vst [vmem:[%s268 + $0x398] sm:$0xff] %v11283
        %11408 = vst [vmem:[%s268 + $0x3a0] sm:$0xff] %v10751
        %11409 = vst [vmem:[%s268 + $0x3a8] sm:$0xff] %v10929
        %11410 = vst [vmem:[%s268 + $0x3b0] sm:$0xff] %v11107
        %11411 = vst [vmem:[%s268 + $0x3b8] sm:$0xff] %v11285
        %11412 = vst [vmem:[%s268 + $0x3c0] sm:$0xff] %v10754
        %11413 = vst [vmem:[%s268 + $0x3c8] sm:$0xff] %v10932
        %11414 = vst [vmem:[%s268 + $0x3d0] sm:$0xff] %v11110
        %11415 = vst [vmem:[%s268 + $0x3d8] sm:$0xff] %v11288
        %11416 = vst [vmem:[%s268 + $0x3e0] sm:$0xff] %v10756
        %11417 = vst [vmem:[%s268 + $0x3e8] sm:$0xff] %v10934
        %11418 = vst [vmem:[%s268 + $0x3f0] sm:$0xff] %v11112
        %11419 = vst [vmem:[%s268 + $0x3f8] sm:$0xff] %v11290
        %s11420 = sand.u32 %s116, 1
        %s11421 = scalar_lea.sflag [#allocation5], %s11420
        %s11422 = sand.u32 %s116, 1
        %s11423 = smul.addr %s11422, 1024
        %s11424 = scalar_lea.vmem [#allocation9], %s11423
        %s11425 = sand.u32 %s144, 1
        %s11426 = scalar_lea.sflag [#allocation11], %s11425
        %s11427 = sand.u32 %s144, 1
        %s11428 = smul.addr %s11427, 512
        %s11429 = scalar_lea.vmem [#allocation10], %s11428
        // Predicated region
        $region49: #{tpu_custom_call.1} parent=31 // pred_check
          %p11430 = pneg %p126
        $region50: #{tpu_custom_call.1} parent=31 // pred_check_branch
          %11432 = sbr.rel (%p11430) target = $region52
        $region51: #{tpu_custom_call.1} parent=31 // pred_region
          %s11433 = smul.u32 32, %s31
          %11435 = vsyncadd %s11421, 0
          %s11436 = smul.addr %s11433, 4
          %s11437 = smul.addr %s30, 128
          %s11438 = sadd.s32 %s11436, %s11437
          %s11439 = smul.addr %s11438, 8
          %s11440 = scalar_lea.hbm %s3, %s11439
          %s11441 = sshll.u32 %s11424, 4
          %s11442 = int_to_ptr.vmem [resolvable:$true] %s11441
          %s11443 = sshll.u32 %s11440, 4
          %s11444 = int_to_ptr.hbm [resolvable:$true] %s11443
          %11449 = dma.vmem_to_hbm [thread:$0]  %s11442, 16384, %s11444, %s11421, 512, 512, 32
        $region52: #{tpu_custom_call.1} parent=31 // pred_fallthru
          _
        // Predicated region
        $region53: #{tpu_custom_call.1} parent=31 // pred_check
          %p11450 = pneg %p154
        $region54: #{tpu_custom_call.1} parent=31 // pred_check_branch
          %11452 = sbr.rel (%p11450) target = $region56
        $region55: #{tpu_custom_call.1} parent=31 // pred_region
          %s11453 = smul.u32 32, %s31
          %11455 = vsyncadd %s11426, 0
          %s11456 = smul.addr %s11453, 2
          %s11457 = smul.addr %s30, 64
          %s11458 = sadd.s32 %s11456, %s11457
          %s11459 = smul.addr %s11458, 8
          %s11460 = scalar_lea.hbm %s4, %s11459
          %s11461 = sshll.u32 %s11429, 4
          %s11462 = int_to_ptr.vmem [resolvable:$true] %s11461
          %s11463 = sshll.u32 %s11460, 4
          %s11464 = int_to_ptr.hbm [resolvable:$true] %s11463
          %11469 = dma.vmem_to_hbm [thread:$0]  %s11462, 8192, %s11464, %s11426, 256, 256, 16
        $region56: #{tpu_custom_call.1} parent=31 // pred_fallthru
          _
      $region32: #{tpu_custom_call.1} parent=5 // pred_fallthru
        _
      %p11470 = scmp.le.s32.totalorder 2, %s21
      // Predicated region
      $region57: #{tpu_custom_call.1} parent=5 // pred_check
        %p11471 = pneg %p11470
      $region58: #{tpu_custom_call.1} parent=5 // pred_check_branch
        %11473 = sbr.rel (%p11471) target = $region60
      $region59: #{tpu_custom_call.1} parent=5 // pred_region
        %s11474 = ssub.s32 %s21, 2
        // Predicated region
        $region61: #{tpu_custom_call.1} parent=59 // pred_check
          %p11475 = pneg %p132
        $region62: #{tpu_custom_call.1} parent=59 // pred_check_branch
          %11477 = sbr.rel (%p11475) target = $region64
        $region63: #{tpu_custom_call.1} parent=59 // pred_region
          %s11478 = sand.u32 %s117, 1
          %s11479 = scalar_lea.sflag [#allocation5], %s11478
          %s11480 = sand.u32 %s117, 1
          %s11481 = smul.addr %s11480, 1024
          %s11482 = scalar_lea.vmem [#allocation9], %s11481
          %11484 = dma.done %s11479, 16384
        $region64: #{tpu_custom_call.1} parent=59 // pred_fallthru
          _
        // Predicated region
        $region65: #{tpu_custom_call.1} parent=59 // pred_check
          %p11485 = pneg %p160
        $region66: #{tpu_custom_call.1} parent=59 // pred_check_branch
          %11487 = sbr.rel (%p11485) target = $region68
        $region67: #{tpu_custom_call.1} parent=59 // pred_region
          %s11488 = sand.u32 %s145, 1
          %s11489 = scalar_lea.sflag [#allocation11], %s11488
          %s11490 = sand.u32 %s145, 1
          %s11491 = smul.addr %s11490, 512
          %s11492 = scalar_lea.vmem [#allocation10], %s11491
          %11494 = dma.done %s11489, 8192
        $region68: #{tpu_custom_call.1} parent=59 // pred_fallthru
          _
      $region60: #{tpu_custom_call.1} parent=5 // pred_fallthru
        _
    $region6: #{tpu_custom_call.1} parent=1 // loop_footer
      %s25 = sadd.s32 1, %s21
    $region7: #{tpu_custom_call.1} parent=1 // loop_footer_branch
      %20 = sbr.rel target = $region3
    $region8: #{tpu_custom_call.1} parent=1 // loop_exit
      _
    %11495 = vsyncpa [#allocation4], 1
    %s11496 = scalar_lea.sflag [#allocation4], 1
    %11497 = vsyncpa %s11496, 1
    %11498 = vsyncpa [#allocation7], 1
    %11499 = vsyncpa [#allocation5], 1
    %s11500 = scalar_lea.sflag [#allocation5], 1
    %11501 = vsyncpa %s11500, 1
    %11502 = vsyncpa [#allocation11], 1
    %s11503 = scalar_lea.sflag [#allocation11], 1
    %11504 = vsyncpa %s11503, 1

</llo_original>
